<compile_context>
chip_gen: v6e
topology: v6e:2x2x1
jax: 0.10.0
libtpu: 0.0.40
codegen_flags: <defaults>
</compile_context>

<pallas_src>
import jax
import jax.numpy as jnp
from jax.experimental import pallas as pl
from jax.experimental.pallas import tpu as pltpu

# ----- model hyper-parameters (small, consistent with a BERT encoder) -------
B = 2              # batch
S = 8              # sequence length
H = 32             # hidden size
NUM_HEADS = 4
HEAD_DIM = H // NUM_HEADS
FFN = 4 * H        # intermediate size
NUM_LAYERS = 2
VOCAB = 100
TYPE_VOCAB = 2
MAX_POS = 64
NUM_LABELS = 3
LN_EPS = 1e-12

NUM_EMB_ROWS = VOCAB + S + TYPE_VOCAB     # packed embedding table: word | pos[:S] | type
OUT_ROWS = 8                              # sublane-padded logits rows (>= B)
OUT_COLS = 128                            # lane-dense logits width   (>= NUM_LABELS)
INV_SQRT2 = 0.7071067811865476

# per-layer vector-slab row layout (each row is a [1, H] vector)
BO, LN1G, LN1B, BF, LN2G, LN2B, NVEC = 0, 1, 2, 3, 4, 5, 6


def _vmem_spec():
    return pl.BlockSpec(memory_space=pltpu.MemorySpace.VMEM)


# ---------------- single fused forward kernel --------------------------------
def _bert_fused_kernel(ids_ref, tt_ref, mask_ref,
                       emb_ref, evec_ref,
                       wqkv_ref, bqkv_ref, wo_ref,
                       wi_ref, bi_ref, wf_ref,
                       lvec_ref,
                       clsw_ref, clsb_ref,
                       o_ref):
    f32 = jnp.float32

    def layernorm(y, g, b):
        mu = jnp.mean(y, axis=-1, keepdims=True)
        var = jnp.mean(jnp.square(y - mu), axis=-1, keepdims=True)
        return (y - mu) * jax.lax.rsqrt(var + LN_EPS) * g + b

    # ---- embeddings: word + position + token-type gather as ONE one-hot matmul
    ids = ids_ref[...]                                   # [B*S, 1] int32
    tt = tt_ref[...]                                     # [B*S, 1] int32
    col = jax.lax.broadcasted_iota(jnp.int32, (B * S, NUM_EMB_ROWS), 1)
    row = jax.lax.broadcasted_iota(jnp.int32, (B * S, NUM_EMB_ROWS), 0)
    if (S & (S - 1)) == 0:
        posn = jnp.bitwise_and(row, S - 1)               # row % S (S power of two)
    else:
        posn = jax.lax.rem(row, S)
    # the three hit-ranges are disjoint (word < VOCAB, pos/type offset past it)
    onehot = jnp.logical_or(jnp.logical_or(col == ids, col == posn + VOCAB),
                            col == tt + (VOCAB + S)).astype(f32)   # [B*S, 110]
    x = jnp.dot(onehot, emb_ref[...], preferred_element_type=f32)  # [B*S, H]
    x = layernorm(x, evec_ref[0], evec_ref[1])

    # ---- additive attention-mask bias: built & broadcast ONCE, reused everywhere
    bias = jnp.broadcast_to(
        (1.0 - mask_ref[...].astype(f32)) * jnp.float32(-1e9), (B, S, S))

    for l in range(NUM_LAYERS):                  # static loop, fully in-VMEM
        # ---- multi-head self-attention (per-head weight tiles; no activation
        #      lane-slices; 1/sqrt(Dh) already folded into the Q weights/bias) ----
        attn = jnp.zeros((B * S, H), f32)
        for h in range(NUM_HEADS):               # static head loop
            iq = (l * 3 + 0) * NUM_HEADS + h
            ik = (l * 3 + 1) * NUM_HEADS + h
            iv = (l * 3 + 2) * NUM_HEADS + h
            q = (jnp.dot(x, wqkv_ref[iq], preferred_element_type=f32)
                 + bqkv_ref[iq]).reshape(B, S, HEAD_DIM)
            k = (jnp.dot(x, wqkv_ref[ik], preferred_element_type=f32)
                 + bqkv_ref[ik]).reshape(B, S, HEAD_DIM)
            v = (jnp.dot(x, wqkv_ref[iv], preferred_element_type=f32)
                 + bqkv_ref[iv]).reshape(B, S, HEAD_DIM)

            # batched q·kᵀ (contract last dims), softmax with EUP reciprocal
            s = jnp.einsum('bqd,bkd->bqk', q, k,
                           preferred_element_type=f32) + bias        # [B, S, S]
            s = s - jnp.max(s, axis=-1, keepdims=True)
            p = jnp.exp(s)
            p = p * pl.reciprocal(jnp.sum(p, axis=-1, keepdims=True), approx=True)
            ctx = jnp.einsum('bqk,bkd->bqd', p, v,
                             preferred_element_type=f32)              # [B, S, Dh]

            # concat-over-heads @ W_O  ==  sum_h ctx_h @ W_O[h]
            attn = attn + jnp.dot(ctx.reshape(B * S, HEAD_DIM),
                                  wo_ref[l * NUM_HEADS + h],
                                  preferred_element_type=f32)          # [B*S, H]
        attn = attn + lvec_ref[l * NVEC + BO]

        # residual + LN1
        x = layernorm(x + attn, lvec_ref[l * NVEC + LN1G], lvec_ref[l * NVEC + LN1B])

        # ---- feed-forward (exact erf GELU, as in BERT) ----
        ffn = jnp.dot(x, wi_ref[l], preferred_element_type=f32) + bi_ref[l]
        ffn = 0.5 * ffn * (1.0 + jax.lax.erf(ffn * jnp.float32(INV_SQRT2)))
        ffn = jnp.dot(ffn, wf_ref[l], preferred_element_type=f32) + lvec_ref[l * NVEC + BF]

        # residual + LN2
        x = layernorm(x + ffn, lvec_ref[l * NVEC + LN2G], lvec_ref[l * NVEC + LN2B])

    # ---- CLS pooling (rows 0, S, 2S, ...) + classifier head ----
    # Dropout(0.3) is identity at inference.  Selection done with a tiny matmul
    # so the result stays layout-friendly; extra rows (>= B) select nothing.
    colI = jax.lax.broadcasted_iota(jnp.int32, (OUT_ROWS, B * S), 1)
    want = jax.lax.broadcasted_iota(jnp.int32, (OUT_ROWS, B * S), 0) * S
    sel = (colI == want).astype(f32)                                   # [OUT_ROWS, B*S]
    cls = jnp.dot(sel, x, preferred_element_type=f32)                  # [OUT_ROWS, H]

    # lane-dense padded logits (classifier weight/bias were padded to 128 lanes)
    logits = jnp.dot(cls, clsw_ref[...], preferred_element_type=f32) + clsb_ref[...]
    o_ref[...] = logits.astype(o_ref.dtype)                            # [8, 128] unmasked store


# ---------------- deterministic parameter init + kernel-layout packing -------
def init_params(key):
    keys = iter(jax.random.split(key, 64))

    def w(shape, scale=0.02):
        return (scale * jax.random.normal(next(keys), shape)).astype(jnp.float32)

    f32 = jnp.float32
    # ---- "logical" BERT parameters ----
    word_emb = w((VOCAB, H))
    pos_emb = w((MAX_POS, H))
    type_emb = w((TYPE_VOCAB, H))

    # packed embedding table rows: [word | pos[:S] | type]  -> [110, H]
    emb_table = jnp.concatenate([word_emb, pos_emb[:S], type_emb], axis=0)
    evec = jnp.stack([jnp.ones((1, H), f32), jnp.zeros((1, H), f32)], axis=0)  # emb LN g, b

    q_scale = 1.0 / float(HEAD_DIM) ** 0.5

    wqkv_rows, bqkv_rows, wo_rows, lvec_rows = [], [], [], []
    wi_l, bi_l, wf_l = [], [], []
    for _ in range(NUM_LAYERS):
        wq, wk, wv = w((H, H)), w((H, H)), w((H, H))
        bq = bk = bv = jnp.zeros((H,), f32)
        wo, bo = w((H, H)), jnp.zeros((H,), f32)
        ln1_g, ln1_b = jnp.ones((H,), f32), jnp.zeros((H,), f32)
        wi, bi = w((H, FFN)), jnp.zeros((1, FFN), f32)
        wf, bf = w((FFN, H)), jnp.zeros((H,), f32)
        ln2_g, ln2_b = jnp.ones((H,), f32), jnp.zeros((H,), f32)

        # per-head Q/K/V weight tiles; fold 1/sqrt(Dh) into the Q weight & bias
        for mat, vec, sc in ((wq, bq, q_scale), (wk, bk, 1.0), (wv, bv, 1.0)):
            for h in range(NUM_HEADS):
                lo, hi = h * HEAD_DIM, (h + 1) * HEAD_DIM
                wqkv_rows.append(mat[:, lo:hi] * sc)            # [H, Dh]
                bqkv_rows.append(vec[lo:hi][None, :] * sc)      # [1, Dh]
        for h in range(NUM_HEADS):
            wo_rows.append(wo[h * HEAD_DIM:(h + 1) * HEAD_DIM, :])   # [Dh, H]

        # per-layer vector slab rows: [bo, ln1_g, ln1_b, bf, ln2_g, ln2_b]
        lvec_rows += [bo[None, :], ln1_g[None, :], ln1_b[None, :],
                      bf[None, :], ln2_g[None, :], ln2_b[None, :]]
        wi_l.append(wi); bi_l.append(bi); wf_l.append(wf)

    cls_w = w((H, NUM_LABELS))
    cls_b = jnp.zeros((NUM_LABELS,), f32)
    clsw_pad = jnp.zeros((H, OUT_COLS), f32).at[:, :NUM_LABELS].set(cls_w)
    clsb_pad = jnp.zeros((1, OUT_COLS), f32).at[:, :NUM_LABELS].set(cls_b[None, :])

    return {
        "emb": emb_table,                       # [110, H]
        "evec": evec,                           # [2, 1, H]
        "wqkv": jnp.stack(wqkv_rows, axis=0),   # [L*3*NH, H, Dh]
        "bqkv": jnp.stack(bqkv_rows, axis=0),   # [L*3*NH, 1, Dh]
        "wo": jnp.stack(wo_rows, axis=0),       # [L*NH, Dh, H]
        "wi": jnp.stack(wi_l, axis=0),          # [L, H, FFN]
        "bi": jnp.stack(bi_l, axis=0),          # [L, 1, FFN]
        "wf": jnp.stack(wf_l, axis=0),          # [L, FFN, H]
        "lvec": jnp.stack(lvec_rows, axis=0),   # [L*6, 1, H]
        "clsw": clsw_pad,                       # [H, 128]
        "clsb": clsb_pad,                       # [1, 128]
    }


# ---------------- BERTClass.forward ------------------------------------------
def bert_class_forward(params, input_ids, attn_mask, token_type_ids):
    # Only free metadata reshapes here — all math (incl. embedding gathers)
    # happens inside the single pallas_call.
    ids = input_ids.reshape(B * S, 1).astype(jnp.int32)
    tt = token_type_ids.reshape(B * S, 1).astype(jnp.int32)
    mask = attn_mask.reshape(B, 1, S).astype(jnp.int32)

    out = pl.pallas_call(
        _bert_fused_kernel,
        out_shape=jax.ShapeDtypeStruct((OUT_ROWS, OUT_COLS), jnp.float32),
        in_specs=[_vmem_spec() for _ in range(14)],
        out_specs=_vmem_spec(),
    )(ids, tt, mask,
      params["emb"], params["evec"],
      params["wqkv"], params["bqkv"], params["wo"],
      params["wi"], params["bi"], params["wf"],
      params["lvec"],
      params["clsw"], params["clsb"])

    # lane-dense padded logits -> [B, NUM_LABELS]
    return out[:B, :NUM_LABELS]


if __name__ == "__main__":
    key = jax.random.PRNGKey(0)
    pkey, ikey = jax.random.split(key)
    params = init_params(pkey)

    input_ids = jax.random.randint(ikey, (B, S), 0, VOCAB, dtype=jnp.int32)
    attn_mask = jnp.ones((B, S), dtype=jnp.int32)
    token_type_ids = jnp.zeros((B, S), dtype=jnp.int32)

    logits = jax.jit(bert_class_forward)(params, input_ids, attn_mask, token_type_ids)
    jax.block_until_ready(logits)
    assert logits.shape == (B, NUM_LABELS) and logits.dtype == jnp.float32
    print("KERNEL_OK")
</pallas_src>

<mosaic_0001>
module attributes {stable_mosaic.version = 11 : i64} {
  func.func @_bert_fused_kernel(%arg0: memref<16x1xi32, #tpu.memory_space<vmem>>, %arg1: memref<16x1xi32, #tpu.memory_space<vmem>>, %arg2: memref<2x1x8xi32, #tpu.memory_space<vmem>>, %arg3: memref<110x32xf32, #tpu.memory_space<vmem>>, %arg4: memref<2x1x32xf32, #tpu.memory_space<vmem>>, %arg5: memref<24x32x8xf32, #tpu.memory_space<vmem>>, %arg6: memref<24x1x8xf32, #tpu.memory_space<vmem>>, %arg7: memref<8x8x32xf32, #tpu.memory_space<vmem>>, %arg8: memref<2x32x128xf32, #tpu.memory_space<vmem>>, %arg9: memref<2x1x128xf32, #tpu.memory_space<vmem>>, %arg10: memref<2x128x32xf32, #tpu.memory_space<vmem>>, %arg11: memref<12x1x32xf32, #tpu.memory_space<vmem>>, %arg12: memref<32x128xf32, #tpu.memory_space<vmem>>, %arg13: memref<1x128xf32, #tpu.memory_space<vmem>>, %arg14: memref<8x128xf32, #tpu.memory_space<vmem>>) attributes {dimension_semantics = [], scalar_prefetch = 0 : i64, scratch_operands = 0 : i64, tpu.core_type = #tpu.core_type<tc>} {
    %c0 = arith.constant 0 : index
    %c0_0 = arith.constant 0 : index
    %0 = vector.load %arg0[%c0, %c0_0] : memref<16x1xi32, #tpu.memory_space<vmem>>, vector<16x1xi32>
    %c0_1 = arith.constant 0 : index
    %c0_2 = arith.constant 0 : index
    %1 = vector.load %arg1[%c0_1, %c0_2] : memref<16x1xi32, #tpu.memory_space<vmem>>, vector<16x1xi32>
    %2 = tpu.iota {dimensions = array<i32: 1>} : vector<16x110xi32>
    %3 = tpu.iota {dimensions = array<i32: 0>} : vector<16x110xi32>
    %c7_i32 = arith.constant 7 : i32
    %4 = vector.broadcast %c7_i32 : i32 to vector<16x110xi32>
    %5 = arith.andi %3, %4 : vector<16x110xi32>
    %6 = vector.broadcast %0 : vector<16x1xi32> to vector<16x110xi32>
    %7 = arith.cmpi eq, %2, %6 : vector<16x110xi32>
    %c100_i32 = arith.constant 100 : i32
    %8 = vector.broadcast %c100_i32 : i32 to vector<16x110xi32>
    %9 = arith.addi %5, %8 : vector<16x110xi32>
    %10 = arith.cmpi eq, %2, %9 : vector<16x110xi32>
    %11 = arith.ori %7, %10 : vector<16x110xi1>
    %c108_i32 = arith.constant 108 : i32
    %12 = vector.broadcast %c108_i32 : i32 to vector<16x1xi32>
    %13 = arith.addi %1, %12 : vector<16x1xi32>
    %14 = vector.broadcast %13 : vector<16x1xi32> to vector<16x110xi32>
    %15 = arith.cmpi eq, %2, %14 : vector<16x110xi32>
    %16 = arith.ori %11, %15 : vector<16x110xi1>
    %17 = arith.extui %16 : vector<16x110xi1> to vector<16x110xi32>
    %18 = arith.sitofp %17 : vector<16x110xi32> to vector<16x110xf32>
    %c0_3 = arith.constant 0 : index
    %c0_4 = arith.constant 0 : index
    %19 = vector.load %arg3[%c0_3, %c0_4] : memref<110x32xf32, #tpu.memory_space<vmem>>, vector<110x32xf32>
    %cst = arith.constant dense<0.000000e+00> : vector<16x32xf32>
    %20 = tpu.matmul %18, %19, %cst {dimension_numbers = #tpu.dot_dimension_numbers<[1], [0], [0], [1], [0, 0, 1, 1], [], []>} : vector<16x110xf32>, vector<110x32xf32>, vector<16x32xf32> -> vector<16x32xf32>
    %c0_5 = arith.constant 0 : index
    %c0_6 = arith.constant 0 : index
    %c0_7 = arith.constant 0 : index
    %21 = vector.load %arg4[%c0_5, %c0_6, %c0_7] : memref<2x1x32xf32, #tpu.memory_space<vmem>>, vector<1x1x32xf32>
    %22 = vector.shape_cast %21 : vector<1x1x32xf32> to vector<1x32xf32>
    %c1 = arith.constant 1 : index
    %c0_8 = arith.constant 0 : index
    %c0_9 = arith.constant 0 : index
    %23 = vector.load %arg4[%c1, %c0_8, %c0_9] : memref<2x1x32xf32, #tpu.memory_space<vmem>>, vector<1x1x32xf32>
    %24 = vector.shape_cast %23 : vector<1x1x32xf32> to vector<1x32xf32>
    %cst_10 = arith.constant dense<0.000000e+00> : vector<16xf32>
    %25 = vector.multi_reduction <add>, %20, %cst_10 [1] : vector<16x32xf32> to vector<16xf32>
    %26 = vector.shape_cast %25 : vector<16xf32> to vector<16x1xf32>
    %cst_11 = arith.constant 3.200000e+01 : f32
    %27 = vector.broadcast %cst_11 : f32 to vector<16x1xf32>
    %28 = arith.divf %26, %27 : vector<16x1xf32>
    %29 = vector.broadcast %28 : vector<16x1xf32> to vector<16x32xf32>
    %30 = arith.subf %20, %29 : vector<16x32xf32>
    %31 = arith.mulf %30, %30 : vector<16x32xf32>
    %cst_12 = arith.constant dense<0.000000e+00> : vector<16xf32>
    %32 = vector.multi_reduction <add>, %31, %cst_12 [1] : vector<16x32xf32> to vector<16xf32>
    %33 = vector.shape_cast %32 : vector<16xf32> to vector<16x1xf32>
    %cst_13 = arith.constant 3.200000e+01 : f32
    %34 = vector.broadcast %cst_13 : f32 to vector<16x1xf32>
    %35 = arith.divf %33, %34 : vector<16x1xf32>
    %36 = vector.broadcast %28 : vector<16x1xf32> to vector<16x32xf32>
    %37 = arith.subf %20, %36 : vector<16x32xf32>
    %cst_14 = arith.constant 9.99999996E-13 : f32
    %38 = vector.broadcast %cst_14 : f32 to vector<16x1xf32>
    %39 = arith.addf %35, %38 : vector<16x1xf32>
    %40 = math.rsqrt %39 : vector<16x1xf32>
    %41 = vector.broadcast %40 : vector<16x1xf32> to vector<16x32xf32>
    %42 = arith.mulf %37, %41 : vector<16x32xf32>
    %43 = vector.broadcast %22 : vector<1x32xf32> to vector<16x32xf32>
    %44 = arith.mulf %42, %43 : vector<16x32xf32>
    %45 = vector.broadcast %24 : vector<1x32xf32> to vector<16x32xf32>
    %46 = arith.addf %44, %45 : vector<16x32xf32>
    %c0_15 = arith.constant 0 : index
    %c0_16 = arith.constant 0 : index
    %c0_17 = arith.constant 0 : index
    %47 = vector.load %arg2[%c0_15, %c0_16, %c0_17] : memref<2x1x8xi32, #tpu.memory_space<vmem>>, vector<2x1x8xi32>
    %48 = arith.sitofp %47 : vector<2x1x8xi32> to vector<2x1x8xf32>
    %cst_18 = arith.constant 1.000000e+00 : f32
    %49 = vector.broadcast %cst_18 : f32 to vector<2x1x8xf32>
    %50 = arith.subf %49, %48 : vector<2x1x8xf32>
    %cst_19 = arith.constant -1.000000e+09 : f32
    %51 = vector.broadcast %cst_19 : f32 to vector<2x1x8xf32>
    %52 = arith.mulf %50, %51 : vector<2x1x8xf32>
    %53 = vector.shape_cast %52 : vector<2x1x8xf32> to vector<2x1x8xf32>
    %54 = vector.broadcast %53 : vector<2x1x8xf32> to vector<2x8x8xf32>
    %cst_20 = arith.constant 0.000000e+00 : f32
    %55 = vector.broadcast %cst_20 : f32 to vector<16x32xf32>
    %c0_21 = arith.constant 0 : index
    %c0_22 = arith.constant 0 : index
    %c0_23 = arith.constant 0 : index
    %56 = vector.load %arg5[%c0_21, %c0_22, %c0_23] : memref<24x32x8xf32, #tpu.memory_space<vmem>>, vector<1x32x8xf32>
    %57 = vector.shape_cast %56 : vector<1x32x8xf32> to vector<32x8xf32>
    %cst_24 = arith.constant dense<0.000000e+00> : vector<16x8xf32>
    %58 = tpu.matmul %46, %57, %cst_24 {dimension_numbers = #tpu.dot_dimension_numbers<[1], [0], [0], [1], [0, 0, 1, 1], [], []>} : vector<16x32xf32>, vector<32x8xf32>, vector<16x8xf32> -> vector<16x8xf32>
    %c0_25 = arith.constant 0 : index
    %c0_26 = arith.constant 0 : index
    %c0_27 = arith.constant 0 : index
    %59 = vector.load %arg6[%c0_25, %c0_26, %c0_27] : memref<24x1x8xf32, #tpu.memory_space<vmem>>, vector<1x1x8xf32>
    %60 = vector.shape_cast %59 : vector<1x1x8xf32> to vector<1x8xf32>
    %61 = vector.broadcast %60 : vector<1x8xf32> to vector<16x8xf32>
    %62 = arith.addf %58, %61 : vector<16x8xf32>
    %63 = vector.shape_cast %62 : vector<16x8xf32> to vector<2x8x8xf32>
    %c4 = arith.constant 4 : index
    %c0_28 = arith.constant 0 : index
    %c0_29 = arith.constant 0 : index
    %64 = vector.load %arg5[%c4, %c0_28, %c0_29] : memref<24x32x8xf32, #tpu.memory_space<vmem>>, vector<1x32x8xf32>
    %65 = vector.shape_cast %64 : vector<1x32x8xf32> to vector<32x8xf32>
    %cst_30 = arith.constant dense<0.000000e+00> : vector<16x8xf32>
    %66 = tpu.matmul %46, %65, %cst_30 {dimension_numbers = #tpu.dot_dimension_numbers<[1], [0], [0], [1], [0, 0, 1, 1], [], []>} : vector<16x32xf32>, vector<32x8xf32>, vector<16x8xf32> -> vector<16x8xf32>
    %c4_31 = arith.constant 4 : index
    %c0_32 = arith.constant 0 : index
    %c0_33 = arith.constant 0 : index
    %67 = vector.load %arg6[%c4_31, %c0_32, %c0_33] : memref<24x1x8xf32, #tpu.memory_space<vmem>>, vector<1x1x8xf32>
    %68 = vector.shape_cast %67 : vector<1x1x8xf32> to vector<1x8xf32>
    %69 = vector.broadcast %68 : vector<1x8xf32> to vector<16x8xf32>
    %70 = arith.addf %66, %69 : vector<16x8xf32>
    %71 = vector.shape_cast %70 : vector<16x8xf32> to vector<2x8x8xf32>
    %c8 = arith.constant 8 : index
    %c0_34 = arith.constant 0 : index
    %c0_35 = arith.constant 0 : index
    %72 = vector.load %arg5[%c8, %c0_34, %c0_35] : memref<24x32x8xf32, #tpu.memory_space<vmem>>, vector<1x32x8xf32>
    %73 = vector.shape_cast %72 : vector<1x32x8xf32> to vector<32x8xf32>
    %cst_36 = arith.constant dense<0.000000e+00> : vector<16x8xf32>
    %74 = tpu.matmul %46, %73, %cst_36 {dimension_numbers = #tpu.dot_dimension_numbers<[1], [0], [0], [1], [0, 0, 1, 1], [], []>} : vector<16x32xf32>, vector<32x8xf32>, vector<16x8xf32> -> vector<16x8xf32>
    %c8_37 = arith.constant 8 : index
    %c0_38 = arith.constant 0 : index
    %c0_39 = arith.constant 0 : index
    %75 = vector.load %arg6[%c8_37, %c0_38, %c0_39] : memref<24x1x8xf32, #tpu.memory_space<vmem>>, vector<1x1x8xf32>
    %76 = vector.shape_cast %75 : vector<1x1x8xf32> to vector<1x8xf32>
    %77 = vector.broadcast %76 : vector<1x8xf32> to vector<16x8xf32>
    %78 = arith.addf %74, %77 : vector<16x8xf32>
    %79 = vector.shape_cast %78 : vector<16x8xf32> to vector<2x8x8xf32>
    "tpu.trace_start"() <{level = 10 : i32, message = "bqd,bkd->bqk"}> : () -> ()
    %cst_40 = arith.constant dense<0.000000e+00> : vector<2x8x8xf32>
    %80 = tpu.matmul %63, %71, %cst_40 {dimension_numbers = #tpu.dot_dimension_numbers<[2], [2], [1], [1], [0, 0, 0, 1, 1, 1], [0], [0]>} : vector<2x8x8xf32>, vector<2x8x8xf32>, vector<2x8x8xf32> -> vector<2x8x8xf32>
    "tpu.trace_stop"() : () -> ()
    %81 = arith.addf %80, %54 : vector<2x8x8xf32>
    %cst_41 = arith.constant dense<0xFF800000> : vector<2x8xf32>
    %82 = vector.multi_reduction <maximumf>, %81, %cst_41 [2] : vector<2x8x8xf32> to vector<2x8xf32>
    %83 = vector.shape_cast %82 : vector<2x8xf32> to vector<2x8x1xf32>
    %84 = vector.broadcast %83 : vector<2x8x1xf32> to vector<2x8x8xf32>
    %85 = arith.subf %81, %84 : vector<2x8x8xf32>
    %86 = math.exp %85 : vector<2x8x8xf32>
    %cst_42 = arith.constant dense<0.000000e+00> : vector<2x8xf32>
    %87 = vector.multi_reduction <add>, %86, %cst_42 [2] : vector<2x8x8xf32> to vector<2x8xf32>
    %88 = vector.shape_cast %87 : vector<2x8xf32> to vector<2x8x1xf32>
    %89 = tpu.reciprocal %88 {approx = true} : vector<2x8x1xf32> -> vector<2x8x1xf32>
    %90 = vector.broadcast %89 : vector<2x8x1xf32> to vector<2x8x8xf32>
    %91 = arith.mulf %86, %90 : vector<2x8x8xf32>
    "tpu.trace_start"() <{level = 10 : i32, message = "bqk,bkd->bqd"}> : () -> ()
    %cst_43 = arith.constant dense<0.000000e+00> : vector<2x8x8xf32>
    %92 = tpu.matmul %91, %79, %cst_43 {dimension_numbers = #tpu.dot_dimension_numbers<[2], [1], [1], [2], [0, 0, 0, 1, 1, 2], [0], [0]>} : vector<2x8x8xf32>, vector<2x8x8xf32>, vector<2x8x8xf32> -> vector<2x8x8xf32>
    "tpu.trace_stop"() : () -> ()
    %93 = vector.shape_cast %92 : vector<2x8x8xf32> to vector<16x8xf32>
    %c0_44 = arith.constant 0 : index
    %c0_45 = arith.constant 0 : index
    %c0_46 = arith.constant 0 : index
    %94 = vector.load %arg7[%c0_44, %c0_45, %c0_46] : memref<8x8x32xf32, #tpu.memory_space<vmem>>, vector<1x8x32xf32>
    %95 = vector.shape_cast %94 : vector<1x8x32xf32> to vector<8x32xf32>
    %cst_47 = arith.constant dense<0.000000e+00> : vector<16x32xf32>
    %96 = tpu.matmul %93, %95, %cst_47 {dimension_numbers = #tpu.dot_dimension_numbers<[1], [0], [0], [1], [0, 0, 1, 1], [], []>} : vector<16x8xf32>, vector<8x32xf32>, vector<16x32xf32> -> vector<16x32xf32>
    %97 = arith.addf %55, %96 : vector<16x32xf32>
    %c1_48 = arith.constant 1 : index
    %c0_49 = arith.constant 0 : index
    %c0_50 = arith.constant 0 : index
    %98 = vector.load %arg5[%c1_48, %c0_49, %c0_50] : memref<24x32x8xf32, #tpu.memory_space<vmem>>, vector<1x32x8xf32>
    %99 = vector.shape_cast %98 : vector<1x32x8xf32> to vector<32x8xf32>
    %cst_51 = arith.constant dense<0.000000e+00> : vector<16x8xf32>
    %100 = tpu.matmul %46, %99, %cst_51 {dimension_numbers = #tpu.dot_dimension_numbers<[1], [0], [0], [1], [0, 0, 1, 1], [], []>} : vector<16x32xf32>, vector<32x8xf32>, vector<16x8xf32> -> vector<16x8xf32>
    %c1_52 = arith.constant 1 : index
    %c0_53 = arith.constant 0 : index
    %c0_54 = arith.constant 0 : index
    %101 = vector.load %arg6[%c1_52, %c0_53, %c0_54] : memref<24x1x8xf32, #tpu.memory_space<vmem>>, vector<1x1x8xf32>
    %102 = vector.shape_cast %101 : vector<1x1x8xf32> to vector<1x8xf32>
    %103 = vector.broadcast %102 : vector<1x8xf32> to vector<16x8xf32>
    %104 = arith.addf %100, %103 : vector<16x8xf32>
    %105 = vector.shape_cast %104 : vector<16x8xf32> to vector<2x8x8xf32>
    %c5 = arith.constant 5 : index
    %c0_55 = arith.constant 0 : index
    %c0_56 = arith.constant 0 : index
    %106 = vector.load %arg5[%c5, %c0_55, %c0_56] : memref<24x32x8xf32, #tpu.memory_space<vmem>>, vector<1x32x8xf32>
    %107 = vector.shape_cast %106 : vector<1x32x8xf32> to vector<32x8xf32>
    %cst_57 = arith.constant dense<0.000000e+00> : vector<16x8xf32>
    %108 = tpu.matmul %46, %107, %cst_57 {dimension_numbers = #tpu.dot_dimension_numbers<[1], [0], [0], [1], [0, 0, 1, 1], [], []>} : vector<16x32xf32>, vector<32x8xf32>, vector<16x8xf32> -> vector<16x8xf32>
    %c5_58 = arith.constant 5 : index
    %c0_59 = arith.constant 0 : index
    %c0_60 = arith.constant 0 : index
    %109 = vector.load %arg6[%c5_58, %c0_59, %c0_60] : memref<24x1x8xf32, #tpu.memory_space<vmem>>, vector<1x1x8xf32>
    %110 = vector.shape_cast %109 : vector<1x1x8xf32> to vector<1x8xf32>
    %111 = vector.broadcast %110 : vector<1x8xf32> to vector<16x8xf32>
    %112 = arith.addf %108, %111 : vector<16x8xf32>
    %113 = vector.shape_cast %112 : vector<16x8xf32> to vector<2x8x8xf32>
    %c9 = arith.constant 9 : index
    %c0_61 = arith.constant 0 : index
    %c0_62 = arith.constant 0 : index
    %114 = vector.load %arg5[%c9, %c0_61, %c0_62] : memref<24x32x8xf32, #tpu.memory_space<vmem>>, vector<1x32x8xf32>
    %115 = vector.shape_cast %114 : vector<1x32x8xf32> to vector<32x8xf32>
    %cst_63 = arith.constant dense<0.000000e+00> : vector<16x8xf32>
    %116 = tpu.matmul %46, %115, %cst_63 {dimension_numbers = #tpu.dot_dimension_numbers<[1], [0], [0], [1], [0, 0, 1, 1], [], []>} : vector<16x32xf32>, vector<32x8xf32>, vector<16x8xf32> -> vector<16x8xf32>
    %c9_64 = arith.constant 9 : index
    %c0_65 = arith.constant 0 : index
    %c0_66 = arith.constant 0 : index
    %117 = vector.load %arg6[%c9_64, %c0_65, %c0_66] : memref<24x1x8xf32, #tpu.memory_space<vmem>>, vector<1x1x8xf32>
    %118 = vector.shape_cast %117 : vector<1x1x8xf32> to vector<1x8xf32>
    %119 = vector.broadcast %118 : vector<1x8xf32> to vector<16x8xf32>
    %120 = arith.addf %116, %119 : vector<16x8xf32>
    %121 = vector.shape_cast %120 : vector<16x8xf32> to vector<2x8x8xf32>
    "tpu.trace_start"() <{level = 10 : i32, message = "bqd,bkd->bqk"}> : () -> ()
    %cst_67 = arith.constant dense<0.000000e+00> : vector<2x8x8xf32>
    %122 = tpu.matmul %105, %113, %cst_67 {dimension_numbers = #tpu.dot_dimension_numbers<[2], [2], [1], [1], [0, 0, 0, 1, 1, 1], [0], [0]>} : vector<2x8x8xf32>, vector<2x8x8xf32>, vector<2x8x8xf32> -> vector<2x8x8xf32>
    "tpu.trace_stop"() : () -> ()
    %123 = arith.addf %122, %54 : vector<2x8x8xf32>
    %cst_68 = arith.constant dense<0xFF800000> : vector<2x8xf32>
    %124 = vector.multi_reduction <maximumf>, %123, %cst_68 [2] : vector<2x8x8xf32> to vector<2x8xf32>
    %125 = vector.shape_cast %124 : vector<2x8xf32> to vector<2x8x1xf32>
    %126 = vector.broadcast %125 : vector<2x8x1xf32> to vector<2x8x8xf32>
    %127 = arith.subf %123, %126 : vector<2x8x8xf32>
    %128 = math.exp %127 : vector<2x8x8xf32>
    %cst_69 = arith.constant dense<0.000000e+00> : vector<2x8xf32>
    %129 = vector.multi_reduction <add>, %128, %cst_69 [2] : vector<2x8x8xf32> to vector<2x8xf32>
    %130 = vector.shape_cast %129 : vector<2x8xf32> to vector<2x8x1xf32>
    %131 = tpu.reciprocal %130 {approx = true} : vector<2x8x1xf32> -> vector<2x8x1xf32>
    %132 = vector.broadcast %131 : vector<2x8x1xf32> to vector<2x8x8xf32>
    %133 = arith.mulf %128, %132 : vector<2x8x8xf32>
    "tpu.trace_start"() <{level = 10 : i32, message = "bqk,bkd->bqd"}> : () -> ()
    %cst_70 = arith.constant dense<0.000000e+00> : vector<2x8x8xf32>
    %134 = tpu.matmul %133, %121, %cst_70 {dimension_numbers = #tpu.dot_dimension_numbers<[2], [1], [1], [2], [0, 0, 0, 1, 1, 2], [0], [0]>} : vector<2x8x8xf32>, vector<2x8x8xf32>, vector<2x8x8xf32> -> vector<2x8x8xf32>
    "tpu.trace_stop"() : () -> ()
    %135 = vector.shape_cast %134 : vector<2x8x8xf32> to vector<16x8xf32>
    %c1_71 = arith.constant 1 : index
    %c0_72 = arith.constant 0 : index
    %c0_73 = arith.constant 0 : index
    %136 = vector.load %arg7[%c1_71, %c0_72, %c0_73] : memref<8x8x32xf32, #tpu.memory_space<vmem>>, vector<1x8x32xf32>
    %137 = vector.shape_cast %136 : vector<1x8x32xf32> to vector<8x32xf32>
    %cst_74 = arith.constant dense<0.000000e+00> : vector<16x32xf32>
    %138 = tpu.matmul %135, %137, %cst_74 {dimension_numbers = #tpu.dot_dimension_numbers<[1], [0], [0], [1], [0, 0, 1, 1], [], []>} : vector<16x8xf32>, vector<8x32xf32>, vector<16x32xf32> -> vector<16x32xf32>
    %139 = arith.addf %97, %138 : vector<16x32xf32>
    %c2 = arith.constant 2 : index
    %c0_75 = arith.constant 0 : index
    %c0_76 = arith.constant 0 : index
    %140 = vector.load %arg5[%c2, %c0_75, %c0_76] : memref<24x32x8xf32, #tpu.memory_space<vmem>>, vector<1x32x8xf32>
    %141 = vector.shape_cast %140 : vector<1x32x8xf32> to vector<32x8xf32>
    %cst_77 = arith.constant dense<0.000000e+00> : vector<16x8xf32>
    %142 = tpu.matmul %46, %141, %cst_77 {dimension_numbers = #tpu.dot_dimension_numbers<[1], [0], [0], [1], [0, 0, 1, 1], [], []>} : vector<16x32xf32>, vector<32x8xf32>, vector<16x8xf32> -> vector<16x8xf32>
    %c2_78 = arith.constant 2 : index
    %c0_79 = arith.constant 0 : index
    %c0_80 = arith.constant 0 : index
    %143 = vector.load %arg6[%c2_78, %c0_79, %c0_80] : memref<24x1x8xf32, #tpu.memory_space<vmem>>, vector<1x1x8xf32>
    %144 = vector.shape_cast %143 : vector<1x1x8xf32> to vector<1x8xf32>
    %145 = vector.broadcast %144 : vector<1x8xf32> to vector<16x8xf32>
    %146 = arith.addf %142, %145 : vector<16x8xf32>
    %147 = vector.shape_cast %146 : vector<16x8xf32> to vector<2x8x8xf32>
    %c6 = arith.constant 6 : index
    %c0_81 = arith.constant 0 : index
    %c0_82 = arith.constant 0 : index
    %148 = vector.load %arg5[%c6, %c0_81, %c0_82] : memref<24x32x8xf32, #tpu.memory_space<vmem>>, vector<1x32x8xf32>
    %149 = vector.shape_cast %148 : vector<1x32x8xf32> to vector<32x8xf32>
    %cst_83 = arith.constant dense<0.000000e+00> : vector<16x8xf32>
    %150 = tpu.matmul %46, %149, %cst_83 {dimension_numbers = #tpu.dot_dimension_numbers<[1], [0], [0], [1], [0, 0, 1, 1], [], []>} : vector<16x32xf32>, vector<32x8xf32>, vector<16x8xf32> -> vector<16x8xf32>
    %c6_84 = arith.constant 6 : index
    %c0_85 = arith.constant 0 : index
    %c0_86 = arith.constant 0 : index
    %151 = vector.load %arg6[%c6_84, %c0_85, %c0_86] : memref<24x1x8xf32, #tpu.memory_space<vmem>>, vector<1x1x8xf32>
    %152 = vector.shape_cast %151 : vector<1x1x8xf32> to vector<1x8xf32>
    %153 = vector.broadcast %152 : vector<1x8xf32> to vector<16x8xf32>
    %154 = arith.addf %150, %153 : vector<16x8xf32>
    %155 = vector.shape_cast %154 : vector<16x8xf32> to vector<2x8x8xf32>
    %c10 = arith.constant 10 : index
    %c0_87 = arith.constant 0 : index
    %c0_88 = arith.constant 0 : index
    %156 = vector.load %arg5[%c10, %c0_87, %c0_88] : memref<24x32x8xf32, #tpu.memory_space<vmem>>, vector<1x32x8xf32>
    %157 = vector.shape_cast %156 : vector<1x32x8xf32> to vector<32x8xf32>
    %cst_89 = arith.constant dense<0.000000e+00> : vector<16x8xf32>
    %158 = tpu.matmul %46, %157, %cst_89 {dimension_numbers = #tpu.dot_dimension_numbers<[1], [0], [0], [1], [0, 0, 1, 1], [], []>} : vector<16x32xf32>, vector<32x8xf32>, vector<16x8xf32> -> vector<16x8xf32>
    %c10_90 = arith.constant 10 : index
    %c0_91 = arith.constant 0 : index
    %c0_92 = arith.constant 0 : index
    %159 = vector.load %arg6[%c10_90, %c0_91, %c0_92] : memref<24x1x8xf32, #tpu.memory_space<vmem>>, vector<1x1x8xf32>
    %160 = vector.shape_cast %159 : vector<1x1x8xf32> to vector<1x8xf32>
    %161 = vector.broadcast %160 : vector<1x8xf32> to vector<16x8xf32>
    %162 = arith.addf %158, %161 : vector<16x8xf32>
    %163 = vector.shape_cast %162 : vector<16x8xf32> to vector<2x8x8xf32>
    "tpu.trace_start"() <{level = 10 : i32, message = "bqd,bkd->bqk"}> : () -> ()
    %cst_93 = arith.constant dense<0.000000e+00> : vector<2x8x8xf32>
    %164 = tpu.matmul %147, %155, %cst_93 {dimension_numbers = #tpu.dot_dimension_numbers<[2], [2], [1], [1], [0, 0, 0, 1, 1, 1], [0], [0]>} : vector<2x8x8xf32>, vector<2x8x8xf32>, vector<2x8x8xf32> -> vector<2x8x8xf32>
    "tpu.trace_stop"() : () -> ()
    %165 = arith.addf %164, %54 : vector<2x8x8xf32>
    %cst_94 = arith.constant dense<0xFF800000> : vector<2x8xf32>
    %166 = vector.multi_reduction <maximumf>, %165, %cst_94 [2] : vector<2x8x8xf32> to vector<2x8xf32>
    %167 = vector.shape_cast %166 : vector<2x8xf32> to vector<2x8x1xf32>
    %168 = vector.broadcast %167 : vector<2x8x1xf32> to vector<2x8x8xf32>
    %169 = arith.subf %165, %168 : vector<2x8x8xf32>
    %170 = math.exp %169 : vector<2x8x8xf32>
    %cst_95 = arith.constant dense<0.000000e+00> : vector<2x8xf32>
    %171 = vector.multi_reduction <add>, %170, %cst_95 [2] : vector<2x8x8xf32> to vector<2x8xf32>
    %172 = vector.shape_cast %171 : vector<2x8xf32> to vector<2x8x1xf32>
    %173 = tpu.reciprocal %172 {approx = true} : vector<2x8x1xf32> -> vector<2x8x1xf32>
    %174 = vector.broadcast %173 : vector<2x8x1xf32> to vector<2x8x8xf32>
    %175 = arith.mulf %170, %174 : vector<2x8x8xf32>
    "tpu.trace_start"() <{level = 10 : i32, message = "bqk,bkd->bqd"}> : () -> ()
    %cst_96 = arith.constant dense<0.000000e+00> : vector<2x8x8xf32>
    %176 = tpu.matmul %175, %163, %cst_96 {dimension_numbers = #tpu.dot_dimension_numbers<[2], [1], [1], [2], [0, 0, 0, 1, 1, 2], [0], [0]>} : vector<2x8x8xf32>, vector<2x8x8xf32>, vector<2x8x8xf32> -> vector<2x8x8xf32>
    "tpu.trace_stop"() : () -> ()
    %177 = vector.shape_cast %176 : vector<2x8x8xf32> to vector<16x8xf32>
    %c2_97 = arith.constant 2 : index
    %c0_98 = arith.constant 0 : index
    %c0_99 = arith.constant 0 : index
    %178 = vector.load %arg7[%c2_97, %c0_98, %c0_99] : memref<8x8x32xf32, #tpu.memory_space<vmem>>, vector<1x8x32xf32>
    %179 = vector.shape_cast %178 : vector<1x8x32xf32> to vector<8x32xf32>
    %cst_100 = arith.constant dense<0.000000e+00> : vector<16x32xf32>
    %180 = tpu.matmul %177, %179, %cst_100 {dimension_numbers = #tpu.dot_dimension_numbers<[1], [0], [0], [1], [0, 0, 1, 1], [], []>} : vector<16x8xf32>, vector<8x32xf32>, vector<16x32xf32> -> vector<16x32xf32>
    %181 = arith.addf %139, %180 : vector<16x32xf32>
    %c3 = arith.constant 3 : index
    %c0_101 = arith.constant 0 : index
    %c0_102 = arith.constant 0 : index
    %182 = vector.load %arg5[%c3, %c0_101, %c0_102] : memref<24x32x8xf32, #tpu.memory_space<vmem>>, vector<1x32x8xf32>
    %183 = vector.shape_cast %182 : vector<1x32x8xf32> to vector<32x8xf32>
    %cst_103 = arith.constant dense<0.000000e+00> : vector<16x8xf32>
    %184 = tpu.matmul %46, %183, %cst_103 {dimension_numbers = #tpu.dot_dimension_numbers<[1], [0], [0], [1], [0, 0, 1, 1], [], []>} : vector<16x32xf32>, vector<32x8xf32>, vector<16x8xf32> -> vector<16x8xf32>
    %c3_104 = arith.constant 3 : index
    %c0_105 = arith.constant 0 : index
    %c0_106 = arith.constant 0 : index
    %185 = vector.load %arg6[%c3_104, %c0_105, %c0_106] : memref<24x1x8xf32, #tpu.memory_space<vmem>>, vector<1x1x8xf32>
    %186 = vector.shape_cast %185 : vector<1x1x8xf32> to vector<1x8xf32>
    %187 = vector.broadcast %186 : vector<1x8xf32> to vector<16x8xf32>
    %188 = arith.addf %184, %187 : vector<16x8xf32>
    %189 = vector.shape_cast %188 : vector<16x8xf32> to vector<2x8x8xf32>
    %c7 = arith.constant 7 : index
    %c0_107 = arith.constant 0 : index
    %c0_108 = arith.constant 0 : index
    %190 = vector.load %arg5[%c7, %c0_107, %c0_108] : memref<24x32x8xf32, #tpu.memory_space<vmem>>, vector<1x32x8xf32>
    %191 = vector.shape_cast %190 : vector<1x32x8xf32> to vector<32x8xf32>
    %cst_109 = arith.constant dense<0.000000e+00> : vector<16x8xf32>
    %192 = tpu.matmul %46, %191, %cst_109 {dimension_numbers = #tpu.dot_dimension_numbers<[1], [0], [0], [1], [0, 0, 1, 1], [], []>} : vector<16x32xf32>, vector<32x8xf32>, vector<16x8xf32> -> vector<16x8xf32>
    %c7_110 = arith.constant 7 : index
    %c0_111 = arith.constant 0 : index
    %c0_112 = arith.constant 0 : index
    %193 = vector.load %arg6[%c7_110, %c0_111, %c0_112] : memref<24x1x8xf32, #tpu.memory_space<vmem>>, vector<1x1x8xf32>
    %194 = vector.shape_cast %193 : vector<1x1x8xf32> to vector<1x8xf32>
    %195 = vector.broadcast %194 : vector<1x8xf32> to vector<16x8xf32>
    %196 = arith.addf %192, %195 : vector<16x8xf32>
    %197 = vector.shape_cast %196 : vector<16x8xf32> to vector<2x8x8xf32>
    %c11 = arith.constant 11 : index
    %c0_113 = arith.constant 0 : index
    %c0_114 = arith.constant 0 : index
    %198 = vector.load %arg5[%c11, %c0_113, %c0_114] : memref<24x32x8xf32, #tpu.memory_space<vmem>>, vector<1x32x8xf32>
    %199 = vector.shape_cast %198 : vector<1x32x8xf32> to vector<32x8xf32>
    %cst_115 = arith.constant dense<0.000000e+00> : vector<16x8xf32>
    %200 = tpu.matmul %46, %199, %cst_115 {dimension_numbers = #tpu.dot_dimension_numbers<[1], [0], [0], [1], [0, 0, 1, 1], [], []>} : vector<16x32xf32>, vector<32x8xf32>, vector<16x8xf32> -> vector<16x8xf32>
    %c11_116 = arith.constant 11 : index
    %c0_117 = arith.constant 0 : index
    %c0_118 = arith.constant 0 : index
    %201 = vector.load %arg6[%c11_116, %c0_117, %c0_118] : memref<24x1x8xf32, #tpu.memory_space<vmem>>, vector<1x1x8xf32>
    %202 = vector.shape_cast %201 : vector<1x1x8xf32> to vector<1x8xf32>
    %203 = vector.broadcast %202 : vector<1x8xf32> to vector<16x8xf32>
    %204 = arith.addf %200, %203 : vector<16x8xf32>
    %205 = vector.shape_cast %204 : vector<16x8xf32> to vector<2x8x8xf32>
    "tpu.trace_start"() <{level = 10 : i32, message = "bqd,bkd->bqk"}> : () -> ()
    %cst_119 = arith.constant dense<0.000000e+00> : vector<2x8x8xf32>
    %206 = tpu.matmul %189, %197, %cst_119 {dimension_numbers = #tpu.dot_dimension_numbers<[2], [2], [1], [1], [0, 0, 0, 1, 1, 1], [0], [0]>} : vector<2x8x8xf32>, vector<2x8x8xf32>, vector<2x8x8xf32> -> vector<2x8x8xf32>
    "tpu.trace_stop"() : () -> ()
    %207 = arith.addf %206, %54 : vector<2x8x8xf32>
    %cst_120 = arith.constant dense<0xFF800000> : vector<2x8xf32>
    %208 = vector.multi_reduction <maximumf>, %207, %cst_120 [2] : vector<2x8x8xf32> to vector<2x8xf32>
    %209 = vector.shape_cast %208 : vector<2x8xf32> to vector<2x8x1xf32>
    %210 = vector.broadcast %209 : vector<2x8x1xf32> to vector<2x8x8xf32>
    %211 = arith.subf %207, %210 : vector<2x8x8xf32>
    %212 = math.exp %211 : vector<2x8x8xf32>
    %cst_121 = arith.constant dense<0.000000e+00> : vector<2x8xf32>
    %213 = vector.multi_reduction <add>, %212, %cst_121 [2] : vector<2x8x8xf32> to vector<2x8xf32>
    %214 = vector.shape_cast %213 : vector<2x8xf32> to vector<2x8x1xf32>
    %215 = tpu.reciprocal %214 {approx = true} : vector<2x8x1xf32> -> vector<2x8x1xf32>
    %216 = vector.broadcast %215 : vector<2x8x1xf32> to vector<2x8x8xf32>
    %217 = arith.mulf %212, %216 : vector<2x8x8xf32>
    "tpu.trace_start"() <{level = 10 : i32, message = "bqk,bkd->bqd"}> : () -> ()
    %cst_122 = arith.constant dense<0.000000e+00> : vector<2x8x8xf32>
    %218 = tpu.matmul %217, %205, %cst_122 {dimension_numbers = #tpu.dot_dimension_numbers<[2], [1], [1], [2], [0, 0, 0, 1, 1, 2], [0], [0]>} : vector<2x8x8xf32>, vector<2x8x8xf32>, vector<2x8x8xf32> -> vector<2x8x8xf32>
    "tpu.trace_stop"() : () -> ()
    %219 = vector.shape_cast %218 : vector<2x8x8xf32> to vector<16x8xf32>
    %c3_123 = arith.constant 3 : index
    %c0_124 = arith.constant 0 : index
    %c0_125 = arith.constant 0 : index
    %220 = vector.load %arg7[%c3_123, %c0_124, %c0_125] : memref<8x8x32xf32, #tpu.memory_space<vmem>>, vector<1x8x32xf32>
    %221 = vector.shape_cast %220 : vector<1x8x32xf32> to vector<8x32xf32>
    %cst_126 = arith.constant dense<0.000000e+00> : vector<16x32xf32>
    %222 = tpu.matmul %219, %221, %cst_126 {dimension_numbers = #tpu.dot_dimension_numbers<[1], [0], [0], [1], [0, 0, 1, 1], [], []>} : vector<16x8xf32>, vector<8x32xf32>, vector<16x32xf32> -> vector<16x32xf32>
    %223 = arith.addf %181, %222 : vector<16x32xf32>
    %c0_127 = arith.constant 0 : index
    %c0_128 = arith.constant 0 : index
    %c0_129 = arith.constant 0 : index
    %224 = vector.load %arg11[%c0_127, %c0_128, %c0_129] : memref<12x1x32xf32, #tpu.memory_space<vmem>>, vector<1x1x32xf32>
    %225 = vector.shape_cast %224 : vector<1x1x32xf32> to vector<1x32xf32>
    %226 = vector.broadcast %225 : vector<1x32xf32> to vector<16x32xf32>
    %227 = arith.addf %223, %226 : vector<16x32xf32>
    %228 = arith.addf %46, %227 : vector<16x32xf32>
    %c1_130 = arith.constant 1 : index
    %c0_131 = arith.constant 0 : index
    %c0_132 = arith.constant 0 : index
    %229 = vector.load %arg11[%c1_130, %c0_131, %c0_132] : memref<12x1x32xf32, #tpu.memory_space<vmem>>, vector<1x1x32xf32>
    %230 = vector.shape_cast %229 : vector<1x1x32xf32> to vector<1x32xf32>
    %c2_133 = arith.constant 2 : index
    %c0_134 = arith.constant 0 : index
    %c0_135 = arith.constant 0 : index
    %231 = vector.load %arg11[%c2_133, %c0_134, %c0_135] : memref<12x1x32xf32, #tpu.memory_space<vmem>>, vector<1x1x32xf32>
    %232 = vector.shape_cast %231 : vector<1x1x32xf32> to vector<1x32xf32>
    %cst_136 = arith.constant dense<0.000000e+00> : vector<16xf32>
    %233 = vector.multi_reduction <add>, %228, %cst_136 [1] : vector<16x32xf32> to vector<16xf32>
    %234 = vector.shape_cast %233 : vector<16xf32> to vector<16x1xf32>
    %cst_137 = arith.constant 3.200000e+01 : f32
    %235 = vector.broadcast %cst_137 : f32 to vector<16x1xf32>
    %236 = arith.divf %234, %235 : vector<16x1xf32>
    %237 = vector.broadcast %236 : vector<16x1xf32> to vector<16x32xf32>
    %238 = arith.subf %228, %237 : vector<16x32xf32>
    %239 = arith.mulf %238, %238 : vector<16x32xf32>
    %cst_138 = arith.constant dense<0.000000e+00> : vector<16xf32>
    %240 = vector.multi_reduction <add>, %239, %cst_138 [1] : vector<16x32xf32> to vector<16xf32>
    %241 = vector.shape_cast %240 : vector<16xf32> to vector<16x1xf32>
    %cst_139 = arith.constant 3.200000e+01 : f32
    %242 = vector.broadcast %cst_139 : f32 to vector<16x1xf32>
    %243 = arith.divf %241, %242 : vector<16x1xf32>
    %244 = vector.broadcast %236 : vector<16x1xf32> to vector<16x32xf32>
    %245 = arith.subf %228, %244 : vector<16x32xf32>
    %cst_140 = arith.constant 9.99999996E-13 : f32
    %246 = vector.broadcast %cst_140 : f32 to vector<16x1xf32>
    %247 = arith.addf %243, %246 : vector<16x1xf32>
    %248 = math.rsqrt %247 : vector<16x1xf32>
    %249 = vector.broadcast %248 : vector<16x1xf32> to vector<16x32xf32>
    %250 = arith.mulf %245, %249 : vector<16x32xf32>
    %251 = vector.broadcast %230 : vector<1x32xf32> to vector<16x32xf32>
    %252 = arith.mulf %250, %251 : vector<16x32xf32>
    %253 = vector.broadcast %232 : vector<1x32xf32> to vector<16x32xf32>
    %254 = arith.addf %252, %253 : vector<16x32xf32>
    %c0_141 = arith.constant 0 : index
    %c0_142 = arith.constant 0 : index
    %c0_143 = arith.constant 0 : index
    %255 = vector.load %arg8[%c0_141, %c0_142, %c0_143] : memref<2x32x128xf32, #tpu.memory_space<vmem>>, vector<1x32x128xf32>
    %256 = vector.shape_cast %255 : vector<1x32x128xf32> to vector<32x128xf32>
    %cst_144 = arith.constant dense<0.000000e+00> : vector<16x128xf32>
    %257 = tpu.matmul %254, %256, %cst_144 {dimension_numbers = #tpu.dot_dimension_numbers<[1], [0], [0], [1], [0, 0, 1, 1], [], []>} : vector<16x32xf32>, vector<32x128xf32>, vector<16x128xf32> -> vector<16x128xf32>
    %c0_145 = arith.constant 0 : index
    %c0_146 = arith.constant 0 : index
    %c0_147 = arith.constant 0 : index
    %258 = vector.load %arg9[%c0_145, %c0_146, %c0_147] : memref<2x1x128xf32, #tpu.memory_space<vmem>>, vector<1x1x128xf32>
    %259 = vector.shape_cast %258 : vector<1x1x128xf32> to vector<1x128xf32>
    %260 = vector.broadcast %259 : vector<1x128xf32> to vector<16x128xf32>
    %261 = arith.addf %257, %260 : vector<16x128xf32>
    %cst_148 = arith.constant 5.000000e-01 : f32
    %262 = vector.broadcast %cst_148 : f32 to vector<16x128xf32>
    %263 = arith.mulf %262, %261 : vector<16x128xf32>
    %cst_149 = arith.constant 0.707106769 : f32
    %264 = vector.broadcast %cst_149 : f32 to vector<16x128xf32>
    %265 = arith.mulf %261, %264 : vector<16x128xf32>
    %266 = math.erf %265 : vector<16x128xf32>
    %cst_150 = arith.constant 1.000000e+00 : f32
    %267 = vector.broadcast %cst_150 : f32 to vector<16x128xf32>
    %268 = arith.addf %267, %266 : vector<16x128xf32>
    %269 = arith.mulf %263, %268 : vector<16x128xf32>
    %c0_151 = arith.constant 0 : index
    %c0_152 = arith.constant 0 : index
    %c0_153 = arith.constant 0 : index
    %270 = vector.load %arg10[%c0_151, %c0_152, %c0_153] : memref<2x128x32xf32, #tpu.memory_space<vmem>>, vector<1x128x32xf32>
    %271 = vector.shape_cast %270 : vector<1x128x32xf32> to vector<128x32xf32>
    %cst_154 = arith.constant dense<0.000000e+00> : vector<16x32xf32>
    %272 = tpu.matmul %269, %271, %cst_154 {dimension_numbers = #tpu.dot_dimension_numbers<[1], [0], [0], [1], [0, 0, 1, 1], [], []>} : vector<16x128xf32>, vector<128x32xf32>, vector<16x32xf32> -> vector<16x32xf32>
    %c3_155 = arith.constant 3 : index
    %c0_156 = arith.constant 0 : index
    %c0_157 = arith.constant 0 : index
    %273 = vector.load %arg11[%c3_155, %c0_156, %c0_157] : memref<12x1x32xf32, #tpu.memory_space<vmem>>, vector<1x1x32xf32>
    %274 = vector.shape_cast %273 : vector<1x1x32xf32> to vector<1x32xf32>
    %275 = vector.broadcast %274 : vector<1x32xf32> to vector<16x32xf32>
    %276 = arith.addf %272, %275 : vector<16x32xf32>
    %277 = arith.addf %254, %276 : vector<16x32xf32>
    %c4_158 = arith.constant 4 : index
    %c0_159 = arith.constant 0 : index
    %c0_160 = arith.constant 0 : index
    %278 = vector.load %arg11[%c4_158, %c0_159, %c0_160] : memref<12x1x32xf32, #tpu.memory_space<vmem>>, vector<1x1x32xf32>
    %279 = vector.shape_cast %278 : vector<1x1x32xf32> to vector<1x32xf32>
    %c5_161 = arith.constant 5 : index
    %c0_162 = arith.constant 0 : index
    %c0_163 = arith.constant 0 : index
    %280 = vector.load %arg11[%c5_161, %c0_162, %c0_163] : memref<12x1x32xf32, #tpu.memory_space<vmem>>, vector<1x1x32xf32>
    %281 = vector.shape_cast %280 : vector<1x1x32xf32> to vector<1x32xf32>
    %cst_164 = arith.constant dense<0.000000e+00> : vector<16xf32>
    %282 = vector.multi_reduction <add>, %277, %cst_164 [1] : vector<16x32xf32> to vector<16xf32>
    %283 = vector.shape_cast %282 : vector<16xf32> to vector<16x1xf32>
    %cst_165 = arith.constant 3.200000e+01 : f32
    %284 = vector.broadcast %cst_165 : f32 to vector<16x1xf32>
    %285 = arith.divf %283, %284 : vector<16x1xf32>
    %286 = vector.broadcast %285 : vector<16x1xf32> to vector<16x32xf32>
    %287 = arith.subf %277, %286 : vector<16x32xf32>
    %288 = arith.mulf %287, %287 : vector<16x32xf32>
    %cst_166 = arith.constant dense<0.000000e+00> : vector<16xf32>
    %289 = vector.multi_reduction <add>, %288, %cst_166 [1] : vector<16x32xf32> to vector<16xf32>
    %290 = vector.shape_cast %289 : vector<16xf32> to vector<16x1xf32>
    %cst_167 = arith.constant 3.200000e+01 : f32
    %291 = vector.broadcast %cst_167 : f32 to vector<16x1xf32>
    %292 = arith.divf %290, %291 : vector<16x1xf32>
    %293 = vector.broadcast %285 : vector<16x1xf32> to vector<16x32xf32>
    %294 = arith.subf %277, %293 : vector<16x32xf32>
    %cst_168 = arith.constant 9.99999996E-13 : f32
    %295 = vector.broadcast %cst_168 : f32 to vector<16x1xf32>
    %296 = arith.addf %292, %295 : vector<16x1xf32>
    %297 = math.rsqrt %296 : vector<16x1xf32>
    %298 = vector.broadcast %297 : vector<16x1xf32> to vector<16x32xf32>
    %299 = arith.mulf %294, %298 : vector<16x32xf32>
    %300 = vector.broadcast %279 : vector<1x32xf32> to vector<16x32xf32>
    %301 = arith.mulf %299, %300 : vector<16x32xf32>
    %302 = vector.broadcast %281 : vector<1x32xf32> to vector<16x32xf32>
    %303 = arith.addf %301, %302 : vector<16x32xf32>
    %cst_169 = arith.constant 0.000000e+00 : f32
    %304 = vector.broadcast %cst_169 : f32 to vector<16x32xf32>
    %c12 = arith.constant 12 : index
    %c0_170 = arith.constant 0 : index
    %c0_171 = arith.constant 0 : index
    %305 = vector.load %arg5[%c12, %c0_170, %c0_171] : memref<24x32x8xf32, #tpu.memory_space<vmem>>, vector<1x32x8xf32>
    %306 = vector.shape_cast %305 : vector<1x32x8xf32> to vector<32x8xf32>
    %cst_172 = arith.constant dense<0.000000e+00> : vector<16x8xf32>
    %307 = tpu.matmul %303, %306, %cst_172 {dimension_numbers = #tpu.dot_dimension_numbers<[1], [0], [0], [1], [0, 0, 1, 1], [], []>} : vector<16x32xf32>, vector<32x8xf32>, vector<16x8xf32> -> vector<16x8xf32>
    %c12_173 = arith.constant 12 : index
    %c0_174 = arith.constant 0 : index
    %c0_175 = arith.constant 0 : index
    %308 = vector.load %arg6[%c12_173, %c0_174, %c0_175] : memref<24x1x8xf32, #tpu.memory_space<vmem>>, vector<1x1x8xf32>
    %309 = vector.shape_cast %308 : vector<1x1x8xf32> to vector<1x8xf32>
    %310 = vector.broadcast %309 : vector<1x8xf32> to vector<16x8xf32>
    %311 = arith.addf %307, %310 : vector<16x8xf32>
    %312 = vector.shape_cast %311 : vector<16x8xf32> to vector<2x8x8xf32>
    %c16 = arith.constant 16 : index
    %c0_176 = arith.constant 0 : index
    %c0_177 = arith.constant 0 : index
    %313 = vector.load %arg5[%c16, %c0_176, %c0_177] : memref<24x32x8xf32, #tpu.memory_space<vmem>>, vector<1x32x8xf32>
    %314 = vector.shape_cast %313 : vector<1x32x8xf32> to vector<32x8xf32>
    %cst_178 = arith.constant dense<0.000000e+00> : vector<16x8xf32>
    %315 = tpu.matmul %303, %314, %cst_178 {dimension_numbers = #tpu.dot_dimension_numbers<[1], [0], [0], [1], [0, 0, 1, 1], [], []>} : vector<16x32xf32>, vector<32x8xf32>, vector<16x8xf32> -> vector<16x8xf32>
    %c16_179 = arith.constant 16 : index
    %c0_180 = arith.constant 0 : index
    %c0_181 = arith.constant 0 : index
    %316 = vector.load %arg6[%c16_179, %c0_180, %c0_181] : memref<24x1x8xf32, #tpu.memory_space<vmem>>, vector<1x1x8xf32>
    %317 = vector.shape_cast %316 : vector<1x1x8xf32> to vector<1x8xf32>
    %318 = vector.broadcast %317 : vector<1x8xf32> to vector<16x8xf32>
    %319 = arith.addf %315, %318 : vector<16x8xf32>
    %320 = vector.shape_cast %319 : vector<16x8xf32> to vector<2x8x8xf32>
    %c20 = arith.constant 20 : index
    %c0_182 = arith.constant 0 : index
    %c0_183 = arith.constant 0 : index
    %321 = vector.load %arg5[%c20, %c0_182, %c0_183] : memref<24x32x8xf32, #tpu.memory_space<vmem>>, vector<1x32x8xf32>
    %322 = vector.shape_cast %321 : vector<1x32x8xf32> to vector<32x8xf32>
    %cst_184 = arith.constant dense<0.000000e+00> : vector<16x8xf32>
    %323 = tpu.matmul %303, %322, %cst_184 {dimension_numbers = #tpu.dot_dimension_numbers<[1], [0], [0], [1], [0, 0, 1, 1], [], []>} : vector<16x32xf32>, vector<32x8xf32>, vector<16x8xf32> -> vector<16x8xf32>
    %c20_185 = arith.constant 20 : index
    %c0_186 = arith.constant 0 : index
    %c0_187 = arith.constant 0 : index
    %324 = vector.load %arg6[%c20_185, %c0_186, %c0_187] : memref<24x1x8xf32, #tpu.memory_space<vmem>>, vector<1x1x8xf32>
    %325 = vector.shape_cast %324 : vector<1x1x8xf32> to vector<1x8xf32>
    %326 = vector.broadcast %325 : vector<1x8xf32> to vector<16x8xf32>
    %327 = arith.addf %323, %326 : vector<16x8xf32>
    %328 = vector.shape_cast %327 : vector<16x8xf32> to vector<2x8x8xf32>
    "tpu.trace_start"() <{level = 10 : i32, message = "bqd,bkd->bqk"}> : () -> ()
    %cst_188 = arith.constant dense<0.000000e+00> : vector<2x8x8xf32>
    %329 = tpu.matmul %312, %320, %cst_188 {dimension_numbers = #tpu.dot_dimension_numbers<[2], [2], [1], [1], [0, 0, 0, 1, 1, 1], [0], [0]>} : vector<2x8x8xf32>, vector<2x8x8xf32>, vector<2x8x8xf32> -> vector<2x8x8xf32>
    "tpu.trace_stop"() : () -> ()
    %330 = arith.addf %329, %54 : vector<2x8x8xf32>
    %cst_189 = arith.constant dense<0xFF800000> : vector<2x8xf32>
    %331 = vector.multi_reduction <maximumf>, %330, %cst_189 [2] : vector<2x8x8xf32> to vector<2x8xf32>
    %332 = vector.shape_cast %331 : vector<2x8xf32> to vector<2x8x1xf32>
    %333 = vector.broadcast %332 : vector<2x8x1xf32> to vector<2x8x8xf32>
    %334 = arith.subf %330, %333 : vector<2x8x8xf32>
    %335 = math.exp %334 : vector<2x8x8xf32>
    %cst_190 = arith.constant dense<0.000000e+00> : vector<2x8xf32>
    %336 = vector.multi_reduction <add>, %335, %cst_190 [2] : vector<2x8x8xf32> to vector<2x8xf32>
    %337 = vector.shape_cast %336 : vector<2x8xf32> to vector<2x8x1xf32>
    %338 = tpu.reciprocal %337 {approx = true} : vector<2x8x1xf32> -> vector<2x8x1xf32>
    %339 = vector.broadcast %338 : vector<2x8x1xf32> to vector<2x8x8xf32>
    %340 = arith.mulf %335, %339 : vector<2x8x8xf32>
    "tpu.trace_start"() <{level = 10 : i32, message = "bqk,bkd->bqd"}> : () -> ()
    %cst_191 = arith.constant dense<0.000000e+00> : vector<2x8x8xf32>
    %341 = tpu.matmul %340, %328, %cst_191 {dimension_numbers = #tpu.dot_dimension_numbers<[2], [1], [1], [2], [0, 0, 0, 1, 1, 2], [0], [0]>} : vector<2x8x8xf32>, vector<2x8x8xf32>, vector<2x8x8xf32> -> vector<2x8x8xf32>
    "tpu.trace_stop"() : () -> ()
    %342 = vector.shape_cast %341 : vector<2x8x8xf32> to vector<16x8xf32>
    %c4_192 = arith.constant 4 : index
    %c0_193 = arith.constant 0 : index
    %c0_194 = arith.constant 0 : index
    %343 = vector.load %arg7[%c4_192, %c0_193, %c0_194] : memref<8x8x32xf32, #tpu.memory_space<vmem>>, vector<1x8x32xf32>
    %344 = vector.shape_cast %343 : vector<1x8x32xf32> to vector<8x32xf32>
    %cst_195 = arith.constant dense<0.000000e+00> : vector<16x32xf32>
    %345 = tpu.matmul %342, %344, %cst_195 {dimension_numbers = #tpu.dot_dimension_numbers<[1], [0], [0], [1], [0, 0, 1, 1], [], []>} : vector<16x8xf32>, vector<8x32xf32>, vector<16x32xf32> -> vector<16x32xf32>
    %346 = arith.addf %304, %345 : vector<16x32xf32>
    %c13 = arith.constant 13 : index
    %c0_196 = arith.constant 0 : index
    %c0_197 = arith.constant 0 : index
    %347 = vector.load %arg5[%c13, %c0_196, %c0_197] : memref<24x32x8xf32, #tpu.memory_space<vmem>>, vector<1x32x8xf32>
    %348 = vector.shape_cast %347 : vector<1x32x8xf32> to vector<32x8xf32>
    %cst_198 = arith.constant dense<0.000000e+00> : vector<16x8xf32>
    %349 = tpu.matmul %303, %348, %cst_198 {dimension_numbers = #tpu.dot_dimension_numbers<[1], [0], [0], [1], [0, 0, 1, 1], [], []>} : vector<16x32xf32>, vector<32x8xf32>, vector<16x8xf32> -> vector<16x8xf32>
    %c13_199 = arith.constant 13 : index
    %c0_200 = arith.constant 0 : index
    %c0_201 = arith.constant 0 : index
    %350 = vector.load %arg6[%c13_199, %c0_200, %c0_201] : memref<24x1x8xf32, #tpu.memory_space<vmem>>, vector<1x1x8xf32>
    %351 = vector.shape_cast %350 : vector<1x1x8xf32> to vector<1x8xf32>
    %352 = vector.broadcast %351 : vector<1x8xf32> to vector<16x8xf32>
    %353 = arith.addf %349, %352 : vector<16x8xf32>
    %354 = vector.shape_cast %353 : vector<16x8xf32> to vector<2x8x8xf32>
    %c17 = arith.constant 17 : index
    %c0_202 = arith.constant 0 : index
    %c0_203 = arith.constant 0 : index
    %355 = vector.load %arg5[%c17, %c0_202, %c0_203] : memref<24x32x8xf32, #tpu.memory_space<vmem>>, vector<1x32x8xf32>
    %356 = vector.shape_cast %355 : vector<1x32x8xf32> to vector<32x8xf32>
    %cst_204 = arith.constant dense<0.000000e+00> : vector<16x8xf32>
    %357 = tpu.matmul %303, %356, %cst_204 {dimension_numbers = #tpu.dot_dimension_numbers<[1], [0], [0], [1], [0, 0, 1, 1], [], []>} : vector<16x32xf32>, vector<32x8xf32>, vector<16x8xf32> -> vector<16x8xf32>
    %c17_205 = arith.constant 17 : index
    %c0_206 = arith.constant 0 : index
    %c0_207 = arith.constant 0 : index
    %358 = vector.load %arg6[%c17_205, %c0_206, %c0_207] : memref<24x1x8xf32, #tpu.memory_space<vmem>>, vector<1x1x8xf32>
    %359 = vector.shape_cast %358 : vector<1x1x8xf32> to vector<1x8xf32>
    %360 = vector.broadcast %359 : vector<1x8xf32> to vector<16x8xf32>
    %361 = arith.addf %357, %360 : vector<16x8xf32>
    %362 = vector.shape_cast %361 : vector<16x8xf32> to vector<2x8x8xf32>
    %c21 = arith.constant 21 : index
    %c0_208 = arith.constant 0 : index
    %c0_209 = arith.constant 0 : index
    %363 = vector.load %arg5[%c21, %c0_208, %c0_209] : memref<24x32x8xf32, #tpu.memory_space<vmem>>, vector<1x32x8xf32>
    %364 = vector.shape_cast %363 : vector<1x32x8xf32> to vector<32x8xf32>
    %cst_210 = arith.constant dense<0.000000e+00> : vector<16x8xf32>
    %365 = tpu.matmul %303, %364, %cst_210 {dimension_numbers = #tpu.dot_dimension_numbers<[1], [0], [0], [1], [0, 0, 1, 1], [], []>} : vector<16x32xf32>, vector<32x8xf32>, vector<16x8xf32> -> vector<16x8xf32>
    %c21_211 = arith.constant 21 : index
    %c0_212 = arith.constant 0 : index
    %c0_213 = arith.constant 0 : index
    %366 = vector.load %arg6[%c21_211, %c0_212, %c0_213] : memref<24x1x8xf32, #tpu.memory_space<vmem>>, vector<1x1x8xf32>
    %367 = vector.shape_cast %366 : vector<1x1x8xf32> to vector<1x8xf32>
    %368 = vector.broadcast %367 : vector<1x8xf32> to vector<16x8xf32>
    %369 = arith.addf %365, %368 : vector<16x8xf32>
    %370 = vector.shape_cast %369 : vector<16x8xf32> to vector<2x8x8xf32>
    "tpu.trace_start"() <{level = 10 : i32, message = "bqd,bkd->bqk"}> : () -> ()
    %cst_214 = arith.constant dense<0.000000e+00> : vector<2x8x8xf32>
    %371 = tpu.matmul %354, %362, %cst_214 {dimension_numbers = #tpu.dot_dimension_numbers<[2], [2], [1], [1], [0, 0, 0, 1, 1, 1], [0], [0]>} : vector<2x8x8xf32>, vector<2x8x8xf32>, vector<2x8x8xf32> -> vector<2x8x8xf32>
    "tpu.trace_stop"() : () -> ()
    %372 = arith.addf %371, %54 : vector<2x8x8xf32>
    %cst_215 = arith.constant dense<0xFF800000> : vector<2x8xf32>
    %373 = vector.multi_reduction <maximumf>, %372, %cst_215 [2] : vector<2x8x8xf32> to vector<2x8xf32>
    %374 = vector.shape_cast %373 : vector<2x8xf32> to vector<2x8x1xf32>
    %375 = vector.broadcast %374 : vector<2x8x1xf32> to vector<2x8x8xf32>
    %376 = arith.subf %372, %375 : vector<2x8x8xf32>
    %377 = math.exp %376 : vector<2x8x8xf32>
    %cst_216 = arith.constant dense<0.000000e+00> : vector<2x8xf32>
    %378 = vector.multi_reduction <add>, %377, %cst_216 [2] : vector<2x8x8xf32> to vector<2x8xf32>
    %379 = vector.shape_cast %378 : vector<2x8xf32> to vector<2x8x1xf32>
    %380 = tpu.reciprocal %379 {approx = true} : vector<2x8x1xf32> -> vector<2x8x1xf32>
    %381 = vector.broadcast %380 : vector<2x8x1xf32> to vector<2x8x8xf32>
    %382 = arith.mulf %377, %381 : vector<2x8x8xf32>
    "tpu.trace_start"() <{level = 10 : i32, message = "bqk,bkd->bqd"}> : () -> ()
    %cst_217 = arith.constant dense<0.000000e+00> : vector<2x8x8xf32>
    %383 = tpu.matmul %382, %370, %cst_217 {dimension_numbers = #tpu.dot_dimension_numbers<[2], [1], [1], [2], [0, 0, 0, 1, 1, 2], [0], [0]>} : vector<2x8x8xf32>, vector<2x8x8xf32>, vector<2x8x8xf32> -> vector<2x8x8xf32>
    "tpu.trace_stop"() : () -> ()
    %384 = vector.shape_cast %383 : vector<2x8x8xf32> to vector<16x8xf32>
    %c5_218 = arith.constant 5 : index
    %c0_219 = arith.constant 0 : index
    %c0_220 = arith.constant 0 : index
    %385 = vector.load %arg7[%c5_218, %c0_219, %c0_220] : memref<8x8x32xf32, #tpu.memory_space<vmem>>, vector<1x8x32xf32>
    %386 = vector.shape_cast %385 : vector<1x8x32xf32> to vector<8x32xf32>
    %cst_221 = arith.constant dense<0.000000e+00> : vector<16x32xf32>
    %387 = tpu.matmul %384, %386, %cst_221 {dimension_numbers = #tpu.dot_dimension_numbers<[1], [0], [0], [1], [0, 0, 1, 1], [], []>} : vector<16x8xf32>, vector<8x32xf32>, vector<16x32xf32> -> vector<16x32xf32>
    %388 = arith.addf %346, %387 : vector<16x32xf32>
    %c14 = arith.constant 14 : index
    %c0_222 = arith.constant 0 : index
    %c0_223 = arith.constant 0 : index
    %389 = vector.load %arg5[%c14, %c0_222, %c0_223] : memref<24x32x8xf32, #tpu.memory_space<vmem>>, vector<1x32x8xf32>
    %390 = vector.shape_cast %389 : vector<1x32x8xf32> to vector<32x8xf32>
    %cst_224 = arith.constant dense<0.000000e+00> : vector<16x8xf32>
    %391 = tpu.matmul %303, %390, %cst_224 {dimension_numbers = #tpu.dot_dimension_numbers<[1], [0], [0], [1], [0, 0, 1, 1], [], []>} : vector<16x32xf32>, vector<32x8xf32>, vector<16x8xf32> -> vector<16x8xf32>
    %c14_225 = arith.constant 14 : index
    %c0_226 = arith.constant 0 : index
    %c0_227 = arith.constant 0 : index
    %392 = vector.load %arg6[%c14_225, %c0_226, %c0_227] : memref<24x1x8xf32, #tpu.memory_space<vmem>>, vector<1x1x8xf32>
    %393 = vector.shape_cast %392 : vector<1x1x8xf32> to vector<1x8xf32>
    %394 = vector.broadcast %393 : vector<1x8xf32> to vector<16x8xf32>
    %395 = arith.addf %391, %394 : vector<16x8xf32>
    %396 = vector.shape_cast %395 : vector<16x8xf32> to vector<2x8x8xf32>
    %c18 = arith.constant 18 : index
    %c0_228 = arith.constant 0 : index
    %c0_229 = arith.constant 0 : index
    %397 = vector.load %arg5[%c18, %c0_228, %c0_229] : memref<24x32x8xf32, #tpu.memory_space<vmem>>, vector<1x32x8xf32>
    %398 = vector.shape_cast %397 : vector<1x32x8xf32> to vector<32x8xf32>
    %cst_230 = arith.constant dense<0.000000e+00> : vector<16x8xf32>
    %399 = tpu.matmul %303, %398, %cst_230 {dimension_numbers = #tpu.dot_dimension_numbers<[1], [0], [0], [1], [0, 0, 1, 1], [], []>} : vector<16x32xf32>, vector<32x8xf32>, vector<16x8xf32> -> vector<16x8xf32>
    %c18_231 = arith.constant 18 : index
    %c0_232 = arith.constant 0 : index
    %c0_233 = arith.constant 0 : index
    %400 = vector.load %arg6[%c18_231, %c0_232, %c0_233] : memref<24x1x8xf32, #tpu.memory_space<vmem>>, vector<1x1x8xf32>
    %401 = vector.shape_cast %400 : vector<1x1x8xf32> to vector<1x8xf32>
    %402 = vector.broadcast %401 : vector<1x8xf32> to vector<16x8xf32>
    %403 = arith.addf %399, %402 : vector<16x8xf32>
    %404 = vector.shape_cast %403 : vector<16x8xf32> to vector<2x8x8xf32>
    %c22 = arith.constant 22 : index
    %c0_234 = arith.constant 0 : index
    %c0_235 = arith.constant 0 : index
    %405 = vector.load %arg5[%c22, %c0_234, %c0_235] : memref<24x32x8xf32, #tpu.memory_space<vmem>>, vector<1x32x8xf32>
    %406 = vector.shape_cast %405 : vector<1x32x8xf32> to vector<32x8xf32>
    %cst_236 = arith.constant dense<0.000000e+00> : vector<16x8xf32>
    %407 = tpu.matmul %303, %406, %cst_236 {dimension_numbers = #tpu.dot_dimension_numbers<[1], [0], [0], [1], [0, 0, 1, 1], [], []>} : vector<16x32xf32>, vector<32x8xf32>, vector<16x8xf32> -> vector<16x8xf32>
    %c22_237 = arith.constant 22 : index
    %c0_238 = arith.constant 0 : index
    %c0_239 = arith.constant 0 : index
    %408 = vector.load %arg6[%c22_237, %c0_238, %c0_239] : memref<24x1x8xf32, #tpu.memory_space<vmem>>, vector<1x1x8xf32>
    %409 = vector.shape_cast %408 : vector<1x1x8xf32> to vector<1x8xf32>
    %410 = vector.broadcast %409 : vector<1x8xf32> to vector<16x8xf32>
    %411 = arith.addf %407, %410 : vector<16x8xf32>
    %412 = vector.shape_cast %411 : vector<16x8xf32> to vector<2x8x8xf32>
    "tpu.trace_start"() <{level = 10 : i32, message = "bqd,bkd->bqk"}> : () -> ()
    %cst_240 = arith.constant dense<0.000000e+00> : vector<2x8x8xf32>
    %413 = tpu.matmul %396, %404, %cst_240 {dimension_numbers = #tpu.dot_dimension_numbers<[2], [2], [1], [1], [0, 0, 0, 1, 1, 1], [0], [0]>} : vector<2x8x8xf32>, vector<2x8x8xf32>, vector<2x8x8xf32> -> vector<2x8x8xf32>
    "tpu.trace_stop"() : () -> ()
    %414 = arith.addf %413, %54 : vector<2x8x8xf32>
    %cst_241 = arith.constant dense<0xFF800000> : vector<2x8xf32>
    %415 = vector.multi_reduction <maximumf>, %414, %cst_241 [2] : vector<2x8x8xf32> to vector<2x8xf32>
    %416 = vector.shape_cast %415 : vector<2x8xf32> to vector<2x8x1xf32>
    %417 = vector.broadcast %416 : vector<2x8x1xf32> to vector<2x8x8xf32>
    %418 = arith.subf %414, %417 : vector<2x8x8xf32>
    %419 = math.exp %418 : vector<2x8x8xf32>
    %cst_242 = arith.constant dense<0.000000e+00> : vector<2x8xf32>
    %420 = vector.multi_reduction <add>, %419, %cst_242 [2] : vector<2x8x8xf32> to vector<2x8xf32>
    %421 = vector.shape_cast %420 : vector<2x8xf32> to vector<2x8x1xf32>
    %422 = tpu.reciprocal %421 {approx = true} : vector<2x8x1xf32> -> vector<2x8x1xf32>
    %423 = vector.broadcast %422 : vector<2x8x1xf32> to vector<2x8x8xf32>
    %424 = arith.mulf %419, %423 : vector<2x8x8xf32>
    "tpu.trace_start"() <{level = 10 : i32, message = "bqk,bkd->bqd"}> : () -> ()
    %cst_243 = arith.constant dense<0.000000e+00> : vector<2x8x8xf32>
    %425 = tpu.matmul %424, %412, %cst_243 {dimension_numbers = #tpu.dot_dimension_numbers<[2], [1], [1], [2], [0, 0, 0, 1, 1, 2], [0], [0]>} : vector<2x8x8xf32>, vector<2x8x8xf32>, vector<2x8x8xf32> -> vector<2x8x8xf32>
    "tpu.trace_stop"() : () -> ()
    %426 = vector.shape_cast %425 : vector<2x8x8xf32> to vector<16x8xf32>
    %c6_244 = arith.constant 6 : index
    %c0_245 = arith.constant 0 : index
    %c0_246 = arith.constant 0 : index
    %427 = vector.load %arg7[%c6_244, %c0_245, %c0_246] : memref<8x8x32xf32, #tpu.memory_space<vmem>>, vector<1x8x32xf32>
    %428 = vector.shape_cast %427 : vector<1x8x32xf32> to vector<8x32xf32>
    %cst_247 = arith.constant dense<0.000000e+00> : vector<16x32xf32>
    %429 = tpu.matmul %426, %428, %cst_247 {dimension_numbers = #tpu.dot_dimension_numbers<[1], [0], [0], [1], [0, 0, 1, 1], [], []>} : vector<16x8xf32>, vector<8x32xf32>, vector<16x32xf32> -> vector<16x32xf32>
    %430 = arith.addf %388, %429 : vector<16x32xf32>
    %c15 = arith.constant 15 : index
    %c0_248 = arith.constant 0 : index
    %c0_249 = arith.constant 0 : index
    %431 = vector.load %arg5[%c15, %c0_248, %c0_249] : memref<24x32x8xf32, #tpu.memory_space<vmem>>, vector<1x32x8xf32>
    %432 = vector.shape_cast %431 : vector<1x32x8xf32> to vector<32x8xf32>
    %cst_250 = arith.constant dense<0.000000e+00> : vector<16x8xf32>
    %433 = tpu.matmul %303, %432, %cst_250 {dimension_numbers = #tpu.dot_dimension_numbers<[1], [0], [0], [1], [0, 0, 1, 1], [], []>} : vector<16x32xf32>, vector<32x8xf32>, vector<16x8xf32> -> vector<16x8xf32>
    %c15_251 = arith.constant 15 : index
    %c0_252 = arith.constant 0 : index
    %c0_253 = arith.constant 0 : index
    %434 = vector.load %arg6[%c15_251, %c0_252, %c0_253] : memref<24x1x8xf32, #tpu.memory_space<vmem>>, vector<1x1x8xf32>
    %435 = vector.shape_cast %434 : vector<1x1x8xf32> to vector<1x8xf32>
    %436 = vector.broadcast %435 : vector<1x8xf32> to vector<16x8xf32>
    %437 = arith.addf %433, %436 : vector<16x8xf32>
    %438 = vector.shape_cast %437 : vector<16x8xf32> to vector<2x8x8xf32>
    %c19 = arith.constant 19 : index
    %c0_254 = arith.constant 0 : index
    %c0_255 = arith.constant 0 : index
    %439 = vector.load %arg5[%c19, %c0_254, %c0_255] : memref<24x32x8xf32, #tpu.memory_space<vmem>>, vector<1x32x8xf32>
    %440 = vector.shape_cast %439 : vector<1x32x8xf32> to vector<32x8xf32>
    %cst_256 = arith.constant dense<0.000000e+00> : vector<16x8xf32>
    %441 = tpu.matmul %303, %440, %cst_256 {dimension_numbers = #tpu.dot_dimension_numbers<[1], [0], [0], [1], [0, 0, 1, 1], [], []>} : vector<16x32xf32>, vector<32x8xf32>, vector<16x8xf32> -> vector<16x8xf32>
    %c19_257 = arith.constant 19 : index
    %c0_258 = arith.constant 0 : index
    %c0_259 = arith.constant 0 : index
    %442 = vector.load %arg6[%c19_257, %c0_258, %c0_259] : memref<24x1x8xf32, #tpu.memory_space<vmem>>, vector<1x1x8xf32>
    %443 = vector.shape_cast %442 : vector<1x1x8xf32> to vector<1x8xf32>
    %444 = vector.broadcast %443 : vector<1x8xf32> to vector<16x8xf32>
    %445 = arith.addf %441, %444 : vector<16x8xf32>
    %446 = vector.shape_cast %445 : vector<16x8xf32> to vector<2x8x8xf32>
    %c23 = arith.constant 23 : index
    %c0_260 = arith.constant 0 : index
    %c0_261 = arith.constant 0 : index
    %447 = vector.load %arg5[%c23, %c0_260, %c0_261] : memref<24x32x8xf32, #tpu.memory_space<vmem>>, vector<1x32x8xf32>
    %448 = vector.shape_cast %447 : vector<1x32x8xf32> to vector<32x8xf32>
    %cst_262 = arith.constant dense<0.000000e+00> : vector<16x8xf32>
    %449 = tpu.matmul %303, %448, %cst_262 {dimension_numbers = #tpu.dot_dimension_numbers<[1], [0], [0], [1], [0, 0, 1, 1], [], []>} : vector<16x32xf32>, vector<32x8xf32>, vector<16x8xf32> -> vector<16x8xf32>
    %c23_263 = arith.constant 23 : index
    %c0_264 = arith.constant 0 : index
    %c0_265 = arith.constant 0 : index
    %450 = vector.load %arg6[%c23_263, %c0_264, %c0_265] : memref<24x1x8xf32, #tpu.memory_space<vmem>>, vector<1x1x8xf32>
    %451 = vector.shape_cast %450 : vector<1x1x8xf32> to vector<1x8xf32>
    %452 = vector.broadcast %451 : vector<1x8xf32> to vector<16x8xf32>
    %453 = arith.addf %449, %452 : vector<16x8xf32>
    %454 = vector.shape_cast %453 : vector<16x8xf32> to vector<2x8x8xf32>
    "tpu.trace_start"() <{level = 10 : i32, message = "bqd,bkd->bqk"}> : () -> ()
    %cst_266 = arith.constant dense<0.000000e+00> : vector<2x8x8xf32>
    %455 = tpu.matmul %438, %446, %cst_266 {dimension_numbers = #tpu.dot_dimension_numbers<[2], [2], [1], [1], [0, 0, 0, 1, 1, 1], [0], [0]>} : vector<2x8x8xf32>, vector<2x8x8xf32>, vector<2x8x8xf32> -> vector<2x8x8xf32>
    "tpu.trace_stop"() : () -> ()
    %456 = arith.addf %455, %54 : vector<2x8x8xf32>
    %cst_267 = arith.constant dense<0xFF800000> : vector<2x8xf32>
    %457 = vector.multi_reduction <maximumf>, %456, %cst_267 [2] : vector<2x8x8xf32> to vector<2x8xf32>
    %458 = vector.shape_cast %457 : vector<2x8xf32> to vector<2x8x1xf32>
    %459 = vector.broadcast %458 : vector<2x8x1xf32> to vector<2x8x8xf32>
    %460 = arith.subf %456, %459 : vector<2x8x8xf32>
    %461 = math.exp %460 : vector<2x8x8xf32>
    %cst_268 = arith.constant dense<0.000000e+00> : vector<2x8xf32>
    %462 = vector.multi_reduction <add>, %461, %cst_268 [2] : vector<2x8x8xf32> to vector<2x8xf32>
    %463 = vector.shape_cast %462 : vector<2x8xf32> to vector<2x8x1xf32>
    %464 = tpu.reciprocal %463 {approx = true} : vector<2x8x1xf32> -> vector<2x8x1xf32>
    %465 = vector.broadcast %464 : vector<2x8x1xf32> to vector<2x8x8xf32>
    %466 = arith.mulf %461, %465 : vector<2x8x8xf32>
    "tpu.trace_start"() <{level = 10 : i32, message = "bqk,bkd->bqd"}> : () -> ()
    %cst_269 = arith.constant dense<0.000000e+00> : vector<2x8x8xf32>
    %467 = tpu.matmul %466, %454, %cst_269 {dimension_numbers = #tpu.dot_dimension_numbers<[2], [1], [1], [2], [0, 0, 0, 1, 1, 2], [0], [0]>} : vector<2x8x8xf32>, vector<2x8x8xf32>, vector<2x8x8xf32> -> vector<2x8x8xf32>
    "tpu.trace_stop"() : () -> ()
    %468 = vector.shape_cast %467 : vector<2x8x8xf32> to vector<16x8xf32>
    %c7_270 = arith.constant 7 : index
    %c0_271 = arith.constant 0 : index
    %c0_272 = arith.constant 0 : index
    %469 = vector.load %arg7[%c7_270, %c0_271, %c0_272] : memref<8x8x32xf32, #tpu.memory_space<vmem>>, vector<1x8x32xf32>
    %470 = vector.shape_cast %469 : vector<1x8x32xf32> to vector<8x32xf32>
    %cst_273 = arith.constant dense<0.000000e+00> : vector<16x32xf32>
    %471 = tpu.matmul %468, %470, %cst_273 {dimension_numbers = #tpu.dot_dimension_numbers<[1], [0], [0], [1], [0, 0, 1, 1], [], []>} : vector<16x8xf32>, vector<8x32xf32>, vector<16x32xf32> -> vector<16x32xf32>
    %472 = arith.addf %430, %471 : vector<16x32xf32>
    %c6_274 = arith.constant 6 : index
    %c0_275 = arith.constant 0 : index
    %c0_276 = arith.constant 0 : index
    %473 = vector.load %arg11[%c6_274, %c0_275, %c0_276] : memref<12x1x32xf32, #tpu.memory_space<vmem>>, vector<1x1x32xf32>
    %474 = vector.shape_cast %473 : vector<1x1x32xf32> to vector<1x32xf32>
    %475 = vector.broadcast %474 : vector<1x32xf32> to vector<16x32xf32>
    %476 = arith.addf %472, %475 : vector<16x32xf32>
    %477 = arith.addf %303, %476 : vector<16x32xf32>
    %c7_277 = arith.constant 7 : index
    %c0_278 = arith.constant 0 : index
    %c0_279 = arith.constant 0 : index
    %478 = vector.load %arg11[%c7_277, %c0_278, %c0_279] : memref<12x1x32xf32, #tpu.memory_space<vmem>>, vector<1x1x32xf32>
    %479 = vector.shape_cast %478 : vector<1x1x32xf32> to vector<1x32xf32>
    %c8_280 = arith.constant 8 : index
    %c0_281 = arith.constant 0 : index
    %c0_282 = arith.constant 0 : index
    %480 = vector.load %arg11[%c8_280, %c0_281, %c0_282] : memref<12x1x32xf32, #tpu.memory_space<vmem>>, vector<1x1x32xf32>
    %481 = vector.shape_cast %480 : vector<1x1x32xf32> to vector<1x32xf32>
    %cst_283 = arith.constant dense<0.000000e+00> : vector<16xf32>
    %482 = vector.multi_reduction <add>, %477, %cst_283 [1] : vector<16x32xf32> to vector<16xf32>
    %483 = vector.shape_cast %482 : vector<16xf32> to vector<16x1xf32>
    %cst_284 = arith.constant 3.200000e+01 : f32
    %484 = vector.broadcast %cst_284 : f32 to vector<16x1xf32>
    %485 = arith.divf %483, %484 : vector<16x1xf32>
    %486 = vector.broadcast %485 : vector<16x1xf32> to vector<16x32xf32>
    %487 = arith.subf %477, %486 : vector<16x32xf32>
    %488 = arith.mulf %487, %487 : vector<16x32xf32>
    %cst_285 = arith.constant dense<0.000000e+00> : vector<16xf32>
    %489 = vector.multi_reduction <add>, %488, %cst_285 [1] : vector<16x32xf32> to vector<16xf32>
    %490 = vector.shape_cast %489 : vector<16xf32> to vector<16x1xf32>
    %cst_286 = arith.constant 3.200000e+01 : f32
    %491 = vector.broadcast %cst_286 : f32 to vector<16x1xf32>
    %492 = arith.divf %490, %491 : vector<16x1xf32>
    %493 = vector.broadcast %485 : vector<16x1xf32> to vector<16x32xf32>
    %494 = arith.subf %477, %493 : vector<16x32xf32>
    %cst_287 = arith.constant 9.99999996E-13 : f32
    %495 = vector.broadcast %cst_287 : f32 to vector<16x1xf32>
    %496 = arith.addf %492, %495 : vector<16x1xf32>
    %497 = math.rsqrt %496 : vector<16x1xf32>
    %498 = vector.broadcast %497 : vector<16x1xf32> to vector<16x32xf32>
    %499 = arith.mulf %494, %498 : vector<16x32xf32>
    %500 = vector.broadcast %479 : vector<1x32xf32> to vector<16x32xf32>
    %501 = arith.mulf %499, %500 : vector<16x32xf32>
    %502 = vector.broadcast %481 : vector<1x32xf32> to vector<16x32xf32>
    %503 = arith.addf %501, %502 : vector<16x32xf32>
    %c1_288 = arith.constant 1 : index
    %c0_289 = arith.constant 0 : index
    %c0_290 = arith.constant 0 : index
    %504 = vector.load %arg8[%c1_288, %c0_289, %c0_290] : memref<2x32x128xf32, #tpu.memory_space<vmem>>, vector<1x32x128xf32>
    %505 = vector.shape_cast %504 : vector<1x32x128xf32> to vector<32x128xf32>
    %cst_291 = arith.constant dense<0.000000e+00> : vector<16x128xf32>
    %506 = tpu.matmul %503, %505, %cst_291 {dimension_numbers = #tpu.dot_dimension_numbers<[1], [0], [0], [1], [0, 0, 1, 1], [], []>} : vector<16x32xf32>, vector<32x128xf32>, vector<16x128xf32> -> vector<16x128xf32>
    %c1_292 = arith.constant 1 : index
    %c0_293 = arith.constant 0 : index
    %c0_294 = arith.constant 0 : index
    %507 = vector.load %arg9[%c1_292, %c0_293, %c0_294] : memref<2x1x128xf32, #tpu.memory_space<vmem>>, vector<1x1x128xf32>
    %508 = vector.shape_cast %507 : vector<1x1x128xf32> to vector<1x128xf32>
    %509 = vector.broadcast %508 : vector<1x128xf32> to vector<16x128xf32>
    %510 = arith.addf %506, %509 : vector<16x128xf32>
    %cst_295 = arith.constant 5.000000e-01 : f32
    %511 = vector.broadcast %cst_295 : f32 to vector<16x128xf32>
    %512 = arith.mulf %511, %510 : vector<16x128xf32>
    %cst_296 = arith.constant 0.707106769 : f32
    %513 = vector.broadcast %cst_296 : f32 to vector<16x128xf32>
    %514 = arith.mulf %510, %513 : vector<16x128xf32>
    %515 = math.erf %514 : vector<16x128xf32>
    %cst_297 = arith.constant 1.000000e+00 : f32
    %516 = vector.broadcast %cst_297 : f32 to vector<16x128xf32>
    %517 = arith.addf %516, %515 : vector<16x128xf32>
    %518 = arith.mulf %512, %517 : vector<16x128xf32>
    %c1_298 = arith.constant 1 : index
    %c0_299 = arith.constant 0 : index
    %c0_300 = arith.constant 0 : index
    %519 = vector.load %arg10[%c1_298, %c0_299, %c0_300] : memref<2x128x32xf32, #tpu.memory_space<vmem>>, vector<1x128x32xf32>
    %520 = vector.shape_cast %519 : vector<1x128x32xf32> to vector<128x32xf32>
    %cst_301 = arith.constant dense<0.000000e+00> : vector<16x32xf32>
    %521 = tpu.matmul %518, %520, %cst_301 {dimension_numbers = #tpu.dot_dimension_numbers<[1], [0], [0], [1], [0, 0, 1, 1], [], []>} : vector<16x128xf32>, vector<128x32xf32>, vector<16x32xf32> -> vector<16x32xf32>
    %c9_302 = arith.constant 9 : index
    %c0_303 = arith.constant 0 : index
    %c0_304 = arith.constant 0 : index
    %522 = vector.load %arg11[%c9_302, %c0_303, %c0_304] : memref<12x1x32xf32, #tpu.memory_space<vmem>>, vector<1x1x32xf32>
    %523 = vector.shape_cast %522 : vector<1x1x32xf32> to vector<1x32xf32>
    %524 = vector.broadcast %523 : vector<1x32xf32> to vector<16x32xf32>
    %525 = arith.addf %521, %524 : vector<16x32xf32>
    %526 = arith.addf %503, %525 : vector<16x32xf32>
    %c10_305 = arith.constant 10 : index
    %c0_306 = arith.constant 0 : index
    %c0_307 = arith.constant 0 : index
    %527 = vector.load %arg11[%c10_305, %c0_306, %c0_307] : memref<12x1x32xf32, #tpu.memory_space<vmem>>, vector<1x1x32xf32>
    %528 = vector.shape_cast %527 : vector<1x1x32xf32> to vector<1x32xf32>
    %c11_308 = arith.constant 11 : index
    %c0_309 = arith.constant 0 : index
    %c0_310 = arith.constant 0 : index
    %529 = vector.load %arg11[%c11_308, %c0_309, %c0_310] : memref<12x1x32xf32, #tpu.memory_space<vmem>>, vector<1x1x32xf32>
    %530 = vector.shape_cast %529 : vector<1x1x32xf32> to vector<1x32xf32>
    %cst_311 = arith.constant dense<0.000000e+00> : vector<16xf32>
    %531 = vector.multi_reduction <add>, %526, %cst_311 [1] : vector<16x32xf32> to vector<16xf32>
    %532 = vector.shape_cast %531 : vector<16xf32> to vector<16x1xf32>
    %cst_312 = arith.constant 3.200000e+01 : f32
    %533 = vector.broadcast %cst_312 : f32 to vector<16x1xf32>
    %534 = arith.divf %532, %533 : vector<16x1xf32>
    %535 = vector.broadcast %534 : vector<16x1xf32> to vector<16x32xf32>
    %536 = arith.subf %526, %535 : vector<16x32xf32>
    %537 = arith.mulf %536, %536 : vector<16x32xf32>
    %cst_313 = arith.constant dense<0.000000e+00> : vector<16xf32>
    %538 = vector.multi_reduction <add>, %537, %cst_313 [1] : vector<16x32xf32> to vector<16xf32>
    %539 = vector.shape_cast %538 : vector<16xf32> to vector<16x1xf32>
    %cst_314 = arith.constant 3.200000e+01 : f32
    %540 = vector.broadcast %cst_314 : f32 to vector<16x1xf32>
    %541 = arith.divf %539, %540 : vector<16x1xf32>
    %542 = vector.broadcast %534 : vector<16x1xf32> to vector<16x32xf32>
    %543 = arith.subf %526, %542 : vector<16x32xf32>
    %cst_315 = arith.constant 9.99999996E-13 : f32
    %544 = vector.broadcast %cst_315 : f32 to vector<16x1xf32>
    %545 = arith.addf %541, %544 : vector<16x1xf32>
    %546 = math.rsqrt %545 : vector<16x1xf32>
    %547 = vector.broadcast %546 : vector<16x1xf32> to vector<16x32xf32>
    %548 = arith.mulf %543, %547 : vector<16x32xf32>
    %549 = vector.broadcast %528 : vector<1x32xf32> to vector<16x32xf32>
    %550 = arith.mulf %548, %549 : vector<16x32xf32>
    %551 = vector.broadcast %530 : vector<1x32xf32> to vector<16x32xf32>
    %552 = arith.addf %550, %551 : vector<16x32xf32>
    %553 = tpu.iota {dimensions = array<i32: 1>} : vector<8x16xi32>
    %554 = tpu.iota {dimensions = array<i32: 0>} : vector<8x16xi32>
    %c8_i32 = arith.constant 8 : i32
    %555 = vector.broadcast %c8_i32 : i32 to vector<8x16xi32>
    %556 = arith.muli %554, %555 : vector<8x16xi32>
    %557 = arith.cmpi eq, %553, %556 : vector<8x16xi32>
    %558 = arith.extui %557 : vector<8x16xi1> to vector<8x16xi32>
    %559 = arith.sitofp %558 : vector<8x16xi32> to vector<8x16xf32>
    %cst_316 = arith.constant dense<0.000000e+00> : vector<8x32xf32>
    %560 = tpu.matmul %559, %552, %cst_316 {dimension_numbers = #tpu.dot_dimension_numbers<[1], [0], [0], [1], [0, 0, 1, 1], [], []>} : vector<8x16xf32>, vector<16x32xf32>, vector<8x32xf32> -> vector<8x32xf32>
    %c0_317 = arith.constant 0 : index
    %c0_318 = arith.constant 0 : index
    %561 = vector.load %arg12[%c0_317, %c0_318] : memref<32x128xf32, #tpu.memory_space<vmem>>, vector<32x128xf32>
    %cst_319 = arith.constant dense<0.000000e+00> : vector<8x128xf32>
    %562 = tpu.matmul %560, %561, %cst_319 {dimension_numbers = #tpu.dot_dimension_numbers<[1], [0], [0], [1], [0, 0, 1, 1], [], []>} : vector<8x32xf32>, vector<32x128xf32>, vector<8x128xf32> -> vector<8x128xf32>
    %c0_320 = arith.constant 0 : index
    %c0_321 = arith.constant 0 : index
    %563 = vector.load %arg13[%c0_320, %c0_321] : memref<1x128xf32, #tpu.memory_space<vmem>>, vector<1x128xf32>
    %564 = vector.broadcast %563 : vector<1x128xf32> to vector<8x128xf32>
    %565 = arith.addf %562, %564 : vector<8x128xf32>
    %c0_322 = arith.constant 0 : index
    %c0_323 = arith.constant 0 : index
    %566 = vector.load %arg14[%c0_322, %c0_323] : memref<8x128xf32, #tpu.memory_space<vmem>>, vector<8x128xf32>
    tpu.vector_store %arg14[%c0_322, %c0_323], %565 {strides = array<i32>} : memref<8x128xf32, #tpu.memory_space<vmem>>, vector<8x128xf32>,
    return
  }
}

</mosaic_0001>

<llo_original>
// kernel: bert_class_forward.1
$region0: #{bert_class_forward.1}
  #allocation0 [shape = 'u32[]', space=smem, size = 0x4, offset = 0x4, fixed_abs, tag = 'smem constant byte address 0x4 - core index']
  #allocation1 [shape = 'u32[144,128]{1,0:T(1,128)}', space=vmem, size = 0x12000, scoped, tag = 'internal scratch']
  %s0 = inlined_call_operand.vmem [shape: s32[16,1], index: 0, kind: input, shape index: {}]
  %s1 = inlined_call_operand.vmem [shape: s32[16,1], index: 1, kind: input, shape index: {}]
  %s2 = inlined_call_operand.vmem [shape: s32[2,1,8], index: 2, kind: input, shape index: {}]
  %s3 = inlined_call_operand.vmem [shape: f32[110,32], index: 3, kind: input, shape index: {}]
  %s4 = inlined_call_operand.vmem [shape: f32[2,1,32], index: 4, kind: input, shape index: {}]
  %s5 = inlined_call_operand.vmem [shape: f32[24,32,8], index: 5, kind: input, shape index: {}]
  %s6 = inlined_call_operand.vmem [shape: f32[24,1,8], index: 6, kind: input, shape index: {}]
  %s7 = inlined_call_operand.vmem [shape: f32[8,8,32], index: 7, kind: input, shape index: {}]
  %s8 = inlined_call_operand.vmem [shape: f32[2,32,128], index: 8, kind: input, shape index: {}]
  %s9 = inlined_call_operand.vmem [shape: f32[2,1,128], index: 9, kind: input, shape index: {}]
  %s10 = inlined_call_operand.vmem [shape: f32[2,128,32], index: 10, kind: input, shape index: {}]
  %s11 = inlined_call_operand.vmem [shape: f32[12,1,32], index: 11, kind: input, shape index: {}]
  %s12 = inlined_call_operand.vmem [shape: f32[32,128], index: 12, kind: input, shape index: {}]
  %s13 = inlined_call_operand.vmem [shape: f32[1,128], index: 13, kind: input, shape index: {}]
  %s14 = inlined_call_operand.vmem [shape: f32[8,128], index: 14, kind: output, shape index: {}]
  %s15 = sld [smem:[#allocation0]]
  $region66: #{bert_class_forward.1} parent=0
    _
  %s17 = ssub.s32 1, %s15
  %s18 = scalar_select 0, %s17, %s15
  // Predicated region
  $region2: #{bert_class_forward.1} parent=0 // pred_check
    _
  $region3: #{bert_class_forward.1} parent=0 // pred_check_branch
    %20 = sbr.rel (0) target = $region5
  $region4: #{bert_class_forward.1} parent=0 // pred_region
    _
  $region5: #{bert_class_forward.1} parent=0 // pred_fallthru
    _
  // Predicated region
  $region6: #{bert_class_forward.1} parent=0 // pred_check
    _
  $region7: #{bert_class_forward.1} parent=0 // pred_check_branch
    %22 = sbr.rel (0) target = $region9
  $region8: #{bert_class_forward.1} parent=0 // pred_region
    _
  $region9: #{bert_class_forward.1} parent=0 // pred_fallthru
    _
  // Predicated region
  $region10: #{bert_class_forward.1} parent=0 // pred_check
    _
  $region11: #{bert_class_forward.1} parent=0 // pred_check_branch
    %24 = sbr.rel (0) target = $region13
  $region12: #{bert_class_forward.1} parent=0 // pred_region
    _
  $region13: #{bert_class_forward.1} parent=0 // pred_fallthru
    _
  // Predicated region
  $region14: #{bert_class_forward.1} parent=0 // pred_check
    _
  $region15: #{bert_class_forward.1} parent=0 // pred_check_branch
    %26 = sbr.rel (0) target = $region17
  $region16: #{bert_class_forward.1} parent=0 // pred_region
    _
  $region17: #{bert_class_forward.1} parent=0 // pred_fallthru
    _
  // Predicated region
  $region18: #{bert_class_forward.1} parent=0 // pred_check
    _
  $region19: #{bert_class_forward.1} parent=0 // pred_check_branch
    %28 = sbr.rel (0) target = $region21
  $region20: #{bert_class_forward.1} parent=0 // pred_region
    _
  $region21: #{bert_class_forward.1} parent=0 // pred_fallthru
    _
  // Predicated region
  $region22: #{bert_class_forward.1} parent=0 // pred_check
    _
  $region23: #{bert_class_forward.1} parent=0 // pred_check_branch
    %30 = sbr.rel (0) target = $region25
  $region24: #{bert_class_forward.1} parent=0 // pred_region
    _
  $region25: #{bert_class_forward.1} parent=0 // pred_fallthru
    _
  // Predicated region
  $region26: #{bert_class_forward.1} parent=0 // pred_check
    _
  $region27: #{bert_class_forward.1} parent=0 // pred_check_branch
    %32 = sbr.rel (0) target = $region29
  $region28: #{bert_class_forward.1} parent=0 // pred_region
    _
  $region29: #{bert_class_forward.1} parent=0 // pred_fallthru
    _
  // Predicated region
  $region30: #{bert_class_forward.1} parent=0 // pred_check
    _
  $region31: #{bert_class_forward.1} parent=0 // pred_check_branch
    %34 = sbr.rel (0) target = $region33
  $region32: #{bert_class_forward.1} parent=0 // pred_region
    _
  $region33: #{bert_class_forward.1} parent=0 // pred_fallthru
    _
  // Predicated region
  $region34: #{bert_class_forward.1} parent=0 // pred_check
    _
  $region35: #{bert_class_forward.1} parent=0 // pred_check_branch
    %36 = sbr.rel (0) target = $region37
  $region36: #{bert_class_forward.1} parent=0 // pred_region
    _
  $region37: #{bert_class_forward.1} parent=0 // pred_fallthru
    _
  // Predicated region
  $region38: #{bert_class_forward.1} parent=0 // pred_check
    _
  $region39: #{bert_class_forward.1} parent=0 // pred_check_branch
    %38 = sbr.rel (0) target = $region41
  $region40: #{bert_class_forward.1} parent=0 // pred_region
    _
  $region41: #{bert_class_forward.1} parent=0 // pred_fallthru
    _
  // Predicated region
  $region42: #{bert_class_forward.1} parent=0 // pred_check
    _
  $region43: #{bert_class_forward.1} parent=0 // pred_check_branch
    %40 = sbr.rel (0) target = $region45
  $region44: #{bert_class_forward.1} parent=0 // pred_region
    _
  $region45: #{bert_class_forward.1} parent=0 // pred_fallthru
    _
  // Predicated region
  $region46: #{bert_class_forward.1} parent=0 // pred_check
    _
  $region47: #{bert_class_forward.1} parent=0 // pred_check_branch
    %42 = sbr.rel (0) target = $region49
  $region48: #{bert_class_forward.1} parent=0 // pred_region
    _
  $region49: #{bert_class_forward.1} parent=0 // pred_fallthru
    _
  // Predicated region
  $region50: #{bert_class_forward.1} parent=0 // pred_check
    _
  $region51: #{bert_class_forward.1} parent=0 // pred_check_branch
    %44 = sbr.rel (0) target = $region53
  $region52: #{bert_class_forward.1} parent=0 // pred_region
    _
  $region53: #{bert_class_forward.1} parent=0 // pred_fallthru
    _
  // Predicated region
  $region54: #{bert_class_forward.1} parent=0 // pred_check
    _
  $region55: #{bert_class_forward.1} parent=0 // pred_check_branch
    %46 = sbr.rel (0) target = $region57
  $region56: #{bert_class_forward.1} parent=0 // pred_region
    _
  $region57: #{bert_class_forward.1} parent=0 // pred_fallthru
    _
  %v47 = vld [vmem:[%s0] sm:$0xff]
  %v48 = vld [vmem:[%s0 + $0x8] sm:$0xff]
  %v49 = vld [vmem:[%s1] sm:$0xff]
  %v50 = vld [vmem:[%s1 + $0x8] sm:$0xff]
  %v51 = vlaneseq
  %v52 = vand.u32 %v51, 127
  %v53 = vlaneseq
  %v54 = vshrl.u32 %v53, 7
  %v55 = vadd.s32 %v54, 8
  %v56 = vand.u32 %v54, 7
  %v57 = vand.u32 %v55, 7
  %58 = vset.pattern.permute.xlu0 0
  %59 = vperm.xlu0 %58, %v47
  %v60 = vpop.permute.xlu0 %59
  %61 = vset.pattern.permute.xlu0 0
  %62 = vperm.xlu0 %61, %v48
  %v63 = vpop.permute.xlu0 %62
  %vm64 = vcmp.eq.s32.totalorder %v52, %v60
  %vm65 = vcmp.eq.s32.totalorder %v52, %v63
  %v66 = vadd.s32 %v56, 100
  %v67 = vadd.s32 %v57, 100
  %vm68 = vcmp.eq.s32.totalorder %v52, %v66
  %vm69 = vcmp.eq.s32.totalorder %v52, %v67
  %vm70 = vmor %vm64, %vm68
  %vm71 = vmor %vm65, %vm69
  %v72 = vadd.s32 %v49, 108
  %v73 = vadd.s32 %v50, 108
  %74 = vset.pattern.permute.xlu0 0
  %75 = vperm.xlu0 %74, %v72
  %v76 = vpop.permute.xlu0 %75
  %77 = vset.pattern.permute.xlu0 0
  %78 = vperm.xlu0 %77, %v73
  %v79 = vpop.permute.xlu0 %78
  %vm80 = vcmp.eq.s32.totalorder %v52, %v76
  %vm81 = vcmp.eq.s32.totalorder %v52, %v79
  %vm82 = vmor %vm70, %vm80
  %vm83 = vmor %vm71, %vm81
  %v84 = vsel %vm82, 1, 0
  %v85 = vsel %vm83, 1, 0
  %v86 = vcvt.s32.f32 %v84
  %v87 = vcvt.s32.f32 %v85
  %v88 = vld [vmem:[%s3] sm:$0xff]
  %v89 = vld [vmem:[%s3 + $0x8] sm:$0xff]
  %v90 = vld [vmem:[%s3 + $0x10] sm:$0xff]
  %v91 = vld [vmem:[%s3 + $0x18] sm:$0xff]
  %v92 = vld [vmem:[%s3 + $0x20] sm:$0xff]
  %v93 = vld [vmem:[%s3 + $0x28] sm:$0xff]
  %v94 = vld [vmem:[%s3 + $0x30] sm:$0xff]
  %v95 = vld [vmem:[%s3 + $0x38] sm:$0xff]
  %v96 = vld [vmem:[%s3 + $0x40] sm:$0xff]
  %v97 = vld [vmem:[%s3 + $0x48] sm:$0xff]
  %v98 = vld [vmem:[%s3 + $0x50] sm:$0xff]
  %v99 = vld [vmem:[%s3 + $0x58] sm:$0xff]
  %v100 = vld [vmem:[%s3 + $0x60] sm:$0xff]
  %v101 = vld [vmem:[%s3 + $0x68] sm:$0x3f]
  %vm102 = vcmask 900096
  %v104 = vsel %vm102, %v86, 0
  %v107 = vsel %vm102, %v87, 0
  %vm109 = vcmask 1045504
  %v111 = vsel %vm109, %v101, 0
  %113 = vmatprep.subr.mxu0 0.0
  %114 = vmatpush1.msra.mxu0 0.0
  %115 = vmatprep.subr.mxu0 0.0
  %116 = vmatpush1.msra.mxu0 0.0
  %117 = vmatprep.subr.mxu0 0.0
  %118 = vmatpush1.msra.mxu0 %v111
  %119 = vmatprep.subr.mxu0 0.0
  %120 = vmatpush1.msra.mxu0 %v100
  %121 = vmatprep.subr.mxu0 0.0
  %122 = vmatpush1.msra.mxu0 %v99
  %123 = vmatprep.subr.mxu0 0.0
  %124 = vmatpush1.msra.mxu0 %v98
  %125 = vmatprep.subr.mxu0 0.0
  %126 = vmatpush1.msra.mxu0 %v97
  %127 = vmatprep.subr.mxu0 0.0
  %128 = vmatpush1.msra.mxu0 %v96
  %129 = vmatprep.subr.mxu0 0.0
  %130 = vmatpush1.msra.mxu0 %v95
  %131 = vmatprep.subr.mxu0 0.0
  %132 = vmatpush1.msra.mxu0 %v94
  %133 = vmatprep.subr.mxu0 0.0
  %134 = vmatpush1.msra.mxu0 %v93
  %135 = vmatprep.subr.mxu0 0.0
  %136 = vmatpush1.msra.mxu0 %v92
  %137 = vmatprep.subr.mxu0 0.0
  %138 = vmatpush1.msra.mxu0 %v91
  %139 = vmatprep.subr.mxu0 0.0
  %140 = vmatpush1.msra.mxu0 %v90
  %141 = vmatprep.subr.mxu0 0.0
  %142 = vmatpush1.msra.mxu0 %v89
  %143 = vmatprep.subr.mxu0 0.0
  %144 = vmatpush1.msra.mxu0 %v88
  %145 = vmatprep.subr.mxu0 0.0
  %146 = vmatpush2.msra.mxu0 0.0
  %147 = vmatprep.subr.mxu0 0.0
  %148 = vmatpush2.msra.mxu0 0.0
  %149 = vmatprep.subr.mxu0 0.0
  %150 = vmatpush2.msra.mxu0 0.0
  %151 = vmatprep.subr.mxu0 0.0
  %152 = vmatpush2.msra.mxu0 0.0
  %153 = vmatprep.subr.mxu0 0.0
  %154 = vmatpush2.msra.mxu0 0.0
  %155 = vmatprep.subr.mxu0 0.0
  %156 = vmatpush2.msra.mxu0 0.0
  %157 = vmatprep.subr.mxu0 0.0
  %158 = vmatpush2.msra.mxu0 0.0
  %159 = vmatprep.subr.mxu0 0.0
  %160 = vmatpush2.msra.mxu0 0.0
  %161 = vmatprep.subr.mxu0 0.0
  %162 = vmatpush2.msra.mxu0 0.0
  %163 = vmatprep.subr.mxu0 0.0
  %164 = vmatpush2.msra.mxu0 0.0
  %165 = vmatprep.subr.mxu0 0.0
  %166 = vmatpush2.msra.mxu0 0.0
  %167 = vmatprep.subr.mxu0 0.0
  %168 = vmatpush2.msra.mxu0 0.0
  %169 = vmatprep.subr.mxu0 0.0
  %170 = vmatpush2.msra.mxu0 0.0
  %171 = vmatprep.subr.mxu0 0.0
  %172 = vmatpush2.msra.mxu0 0.0
  %173 = vmatprep.subr.mxu0 0.0
  %174 = vmatpush2.msra.mxu0 0.0
  %175 = vmatprep.subr.mxu0 0.0
  %176 = vmatpush2.msra.mxu0 0.0
  %177 = vmatprep.mubr.f32.mxu0 0.0
  %178 = vmatmul.mubr.f32.gmra.mxu0 %v104
  %v179 = vpop.f32.mrf.mxu0
  %v180 = vadd.f32 0.0, %v179
  %v181 = vpop.f32.mrf.mxu0
  %182 = vmatprep.mubr.f32.mxu0 0.0
  %183 = vmatmul.mubr.f32.gmra.mxu0 %v107
  %v184 = vpop.f32.mrf.mxu0
  %v185 = vadd.f32 0.0, %v184
  %v186 = vpop.f32.mrf.mxu0
  %187 = vdwg.mxu0
  %v188 = vld [vmem:[%s4] sm:$0x1]
  %s189 = scalar_lea.vmem %s4, 1
  %v190 = vld [vmem:[%s189] sm:$0x1]
  %vm191 = vcmask 261120
  %v192 = vsel %vm191, %v180, 0.0
  %193 = vadd.xlane.f32.xlu0 %v192
  %v194 = vpop.xlane.xlu0 %193
  %v195 = vsel %vm191, %v185, 0.0
  %196 = vadd.xlane.f32.xlu0 %v195
  %v197 = vpop.xlane.xlu0 %196
  %v198 = vrcp.pop 32.0
  %v199 = vmul.f32 %v194, %v198
  %v200 = vmul.f32 %v197, %v198
  %v201 = vsub.f32 %v180, %v199
  %v202 = vsub.f32 %v185, %v200
  %v203 = vmul.f32 %v201, %v201
  %v204 = vmul.f32 %v202, %v202
  %v205 = vsel %vm191, %v203, 0.0
  %206 = vadd.xlane.f32.xlu0 %v205
  %v207 = vpop.xlane.xlu0 %206
  %v208 = vsel %vm191, %v204, 0.0
  %209 = vadd.xlane.f32.xlu0 %v208
  %v210 = vpop.xlane.xlu0 %209
  %v211 = vmul.f32 %v207, %v198
  %v212 = vmul.f32 %v210, %v198
  %v213 = vadd.f32 %v211, 1e-12
  %v214 = vadd.f32 %v212, 1e-12
  %v215 = vrsqrt.pop %v213
  %v216 = vrsqrt.pop %v214
  %v217 = vmul.f32 %v201, %v215
  %v218 = vmul.f32 %v202, %v216
  %v220 = vlaneseq
  %v221 = vshrl.u32 %v220, 7
  %v222 = vsub.s32 0, %v221
  %v223 = vrot.slane %v188, %v222
  %v225 = vmul.f32 %v217, %v223
  %v226 = vmul.f32 %v218, %v223
  %v228 = vlaneseq
  %v229 = vshrl.u32 %v228, 7
  %v230 = vsub.s32 0, %v229
  %v231 = vrot.slane %v190, %v230
  %v233 = vadd.f32 %v225, %v231
  %v234 = vadd.f32 %v226, %v231
  %v235 = vld [vmem:[%s2] sm:$0x1]
  %v236 = vld [vmem:[%s2 + $0x1] sm:$0x1]
  %v237 = vcvt.s32.f32 %v235
  %v238 = vcvt.s32.f32 %v236
  %v239 = vsub.f32 1.0, %v237
  %v240 = vsub.f32 1.0, %v238
  %v241 = vmul.f32 %v239, -1e+09
  %v242 = vmul.f32 %v240, -1e+09
  %v245 = vlaneseq
  %v246 = vshrl.u32 %v245, 7
  %v247 = vsub.s32 0, %v246
  %v248 = vrot.slane %v241, %v247
  %v249 = vlaneseq
  %v250 = vshrl.u32 %v249, 7
  %v251 = vsub.s32 0, %v250
  %v252 = vrot.slane %v242, %v251
  %v255 = vld [vmem:[%s5] sm:$0xff]
  %v256 = vld [vmem:[%s5 + $0x8] sm:$0xff]
  %v257 = vld [vmem:[%s5 + $0x10] sm:$0xff]
  %v258 = vld [vmem:[%s5 + $0x18] sm:$0xff]
  %v259 = vld [vmem:[%s6] sm:$0x1]
  %v261 = vlaneseq
  %v262 = vshrl.u32 %v261, 7
  %v263 = vsub.s32 0, %v262
  %v264 = vrot.slane %v259, %v263
  %v267 = vsel %vm191, %v233, 0
  %v270 = vsel %vm191, %v234, 0
  %272 = vmatprep.subr.mxu0 0.0
  %273 = vmatpush1.msra.mxu0 0.0
  %274 = vmatprep.subr.mxu0 0.0
  %275 = vmatpush1.msra.mxu0 0.0
  %276 = vmatprep.subr.mxu0 0.0
  %277 = vmatpush1.msra.mxu0 0.0
  %278 = vmatprep.subr.mxu0 0.0
  %279 = vmatpush1.msra.mxu0 0.0
  %280 = vmatprep.subr.mxu0 0.0
  %281 = vmatpush1.msra.mxu0 0.0
  %282 = vmatprep.subr.mxu0 0.0
  %283 = vmatpush1.msra.mxu0 0.0
  %284 = vmatprep.subr.mxu0 0.0
  %285 = vmatpush1.msra.mxu0 0.0
  %286 = vmatprep.subr.mxu0 0.0
  %287 = vmatpush1.msra.mxu0 0.0
  %288 = vmatprep.subr.mxu0 0.0
  %289 = vmatpush1.msra.mxu0 0.0
  %290 = vmatprep.subr.mxu0 0.0
  %291 = vmatpush1.msra.mxu0 0.0
  %292 = vmatprep.subr.mxu0 0.0
  %293 = vmatpush1.msra.mxu0 0.0
  %294 = vmatprep.subr.mxu0 0.0
  %295 = vmatpush1.msra.mxu0 0.0
  %296 = vmatprep.subr.mxu0 0.0
  %297 = vmatpush1.msra.mxu0 %v258
  %298 = vmatprep.subr.mxu0 0.0
  %299 = vmatpush1.msra.mxu0 %v257
  %300 = vmatprep.subr.mxu0 0.0
  %301 = vmatpush1.msra.mxu0 %v256
  %302 = vmatprep.subr.mxu0 0.0
  %303 = vmatpush1.msra.mxu0 %v255
  %304 = vmatprep.subr.mxu0 0.0
  %305 = vmatpush2.msra.mxu0 0.0
  %306 = vmatprep.subr.mxu0 0.0
  %307 = vmatpush2.msra.mxu0 0.0
  %308 = vmatprep.subr.mxu0 0.0
  %309 = vmatpush2.msra.mxu0 0.0
  %310 = vmatprep.subr.mxu0 0.0
  %311 = vmatpush2.msra.mxu0 0.0
  %312 = vmatprep.subr.mxu0 0.0
  %313 = vmatpush2.msra.mxu0 0.0
  %314 = vmatprep.subr.mxu0 0.0
  %315 = vmatpush2.msra.mxu0 0.0
  %316 = vmatprep.subr.mxu0 0.0
  %317 = vmatpush2.msra.mxu0 0.0
  %318 = vmatprep.subr.mxu0 0.0
  %319 = vmatpush2.msra.mxu0 0.0
  %320 = vmatprep.subr.mxu0 0.0
  %321 = vmatpush2.msra.mxu0 0.0
  %322 = vmatprep.subr.mxu0 0.0
  %323 = vmatpush2.msra.mxu0 0.0
  %324 = vmatprep.subr.mxu0 0.0
  %325 = vmatpush2.msra.mxu0 0.0
  %326 = vmatprep.subr.mxu0 0.0
  %327 = vmatpush2.msra.mxu0 0.0
  %328 = vmatprep.subr.mxu0 0.0
  %329 = vmatpush2.msra.mxu0 0.0
  %330 = vmatprep.subr.mxu0 0.0
  %331 = vmatpush2.msra.mxu0 0.0
  %332 = vmatprep.subr.mxu0 0.0
  %333 = vmatpush2.msra.mxu0 0.0
  %334 = vmatprep.subr.mxu0 0.0
  %335 = vmatpush2.msra.mxu0 0.0
  %336 = vmatprep.mubr.f32.mxu0 0.0
  %337 = vmatmul.mubr.f32.gmra.mxu0 %v267
  %v338 = vpop.f32.mrf.mxu0
  %v339 = vadd.f32 %v264, %v338
  %v340 = vpop.f32.mrf.mxu0
  %341 = vmatprep.mubr.f32.mxu0 0.0
  %342 = vmatmul.mubr.f32.gmra.mxu0 %v270
  %v343 = vpop.f32.mrf.mxu0
  %v344 = vadd.f32 %v264, %v343
  %v345 = vpop.f32.mrf.mxu0
  %346 = vdwg.mxu0
  %s347 = scalar_lea.vmem %s5, 128
  %v348 = vld [vmem:[%s347] sm:$0xff]
  %v349 = vld [vmem:[%s347 + $0x8] sm:$0xff]
  %v350 = vld [vmem:[%s347 + $0x10] sm:$0xff]
  %v351 = vld [vmem:[%s347 + $0x18] sm:$0xff]
  %s352 = scalar_lea.vmem %s6, 4
  %v353 = vld [vmem:[%s352] sm:$0x1]
  %v355 = vlaneseq
  %v356 = vshrl.u32 %v355, 7
  %v357 = vsub.s32 0, %v356
  %v358 = vrot.slane %v353, %v357
  %360 = vmatprep.subr.mxu0 0.0
  %361 = vmatpush1.msra.mxu0 0.0
  %362 = vmatprep.subr.mxu0 0.0
  %363 = vmatpush1.msra.mxu0 0.0
  %364 = vmatprep.subr.mxu0 0.0
  %365 = vmatpush1.msra.mxu0 0.0
  %366 = vmatprep.subr.mxu0 0.0
  %367 = vmatpush1.msra.mxu0 0.0
  %368 = vmatprep.subr.mxu0 0.0
  %369 = vmatpush1.msra.mxu0 0.0
  %370 = vmatprep.subr.mxu0 0.0
  %371 = vmatpush1.msra.mxu0 0.0
  %372 = vmatprep.subr.mxu0 0.0
  %373 = vmatpush1.msra.mxu0 0.0
  %374 = vmatprep.subr.mxu0 0.0
  %375 = vmatpush1.msra.mxu0 0.0
  %376 = vmatprep.subr.mxu0 0.0
  %377 = vmatpush1.msra.mxu0 0.0
  %378 = vmatprep.subr.mxu0 0.0
  %379 = vmatpush1.msra.mxu0 0.0
  %380 = vmatprep.subr.mxu0 0.0
  %381 = vmatpush1.msra.mxu0 0.0
  %382 = vmatprep.subr.mxu0 0.0
  %383 = vmatpush1.msra.mxu0 0.0
  %384 = vmatprep.subr.mxu0 0.0
  %385 = vmatpush1.msra.mxu0 %v351
  %386 = vmatprep.subr.mxu0 0.0
  %387 = vmatpush1.msra.mxu0 %v350
  %388 = vmatprep.subr.mxu0 0.0
  %389 = vmatpush1.msra.mxu0 %v349
  %390 = vmatprep.subr.mxu0 0.0
  %391 = vmatpush1.msra.mxu0 %v348
  %392 = vmatprep.subr.mxu0 0.0
  %393 = vmatpush2.msra.mxu0 0.0
  %394 = vmatprep.subr.mxu0 0.0
  %395 = vmatpush2.msra.mxu0 0.0
  %396 = vmatprep.subr.mxu0 0.0
  %397 = vmatpush2.msra.mxu0 0.0
  %398 = vmatprep.subr.mxu0 0.0
  %399 = vmatpush2.msra.mxu0 0.0
  %400 = vmatprep.subr.mxu0 0.0
  %401 = vmatpush2.msra.mxu0 0.0
  %402 = vmatprep.subr.mxu0 0.0
  %403 = vmatpush2.msra.mxu0 0.0
  %404 = vmatprep.subr.mxu0 0.0
  %405 = vmatpush2.msra.mxu0 0.0
  %406 = vmatprep.subr.mxu0 0.0
  %407 = vmatpush2.msra.mxu0 0.0
  %408 = vmatprep.subr.mxu0 0.0
  %409 = vmatpush2.msra.mxu0 0.0
  %410 = vmatprep.subr.mxu0 0.0
  %411 = vmatpush2.msra.mxu0 0.0
  %412 = vmatprep.subr.mxu0 0.0
  %413 = vmatpush2.msra.mxu0 0.0
  %414 = vmatprep.subr.mxu0 0.0
  %415 = vmatpush2.msra.mxu0 0.0
  %416 = vmatprep.subr.mxu0 0.0
  %417 = vmatpush2.msra.mxu0 0.0
  %418 = vmatprep.subr.mxu0 0.0
  %419 = vmatpush2.msra.mxu0 0.0
  %420 = vmatprep.subr.mxu0 0.0
  %421 = vmatpush2.msra.mxu0 0.0
  %422 = vmatprep.subr.mxu0 0.0
  %423 = vmatpush2.msra.mxu0 0.0
  %424 = vmatprep.mubr.f32.mxu0 0.0
  %425 = vmatmul.mubr.f32.gmra.mxu0 %v267
  %v426 = vpop.f32.mrf.mxu0
  %v427 = vadd.f32 %v358, %v426
  %v428 = vpop.f32.mrf.mxu0
  %429 = vmatprep.mubr.f32.mxu0 0.0
  %430 = vmatmul.mubr.f32.gmra.mxu0 %v270
  %v431 = vpop.f32.mrf.mxu0
  %v432 = vadd.f32 %v358, %v431
  %v433 = vpop.f32.mrf.mxu0
  %434 = vdwg.mxu0
  %s435 = scalar_lea.vmem %s5, 256
  %v436 = vld [vmem:[%s435] sm:$0xff]
  %v437 = vld [vmem:[%s435 + $0x8] sm:$0xff]
  %v438 = vld [vmem:[%s435 + $0x10] sm:$0xff]
  %v439 = vld [vmem:[%s435 + $0x18] sm:$0xff]
  %s440 = scalar_lea.vmem %s6, 8
  %v441 = vld [vmem:[%s440] sm:$0x1]
  %v443 = vlaneseq
  %v444 = vshrl.u32 %v443, 7
  %v445 = vsub.s32 0, %v444
  %v446 = vrot.slane %v441, %v445
  %448 = vmatprep.subr.mxu0 0.0
  %449 = vmatpush1.msra.mxu0 0.0
  %450 = vmatprep.subr.mxu0 0.0
  %451 = vmatpush1.msra.mxu0 0.0
  %452 = vmatprep.subr.mxu0 0.0
  %453 = vmatpush1.msra.mxu0 0.0
  %454 = vmatprep.subr.mxu0 0.0
  %455 = vmatpush1.msra.mxu0 0.0
  %456 = vmatprep.subr.mxu0 0.0
  %457 = vmatpush1.msra.mxu0 0.0
  %458 = vmatprep.subr.mxu0 0.0
  %459 = vmatpush1.msra.mxu0 0.0
  %460 = vmatprep.subr.mxu0 0.0
  %461 = vmatpush1.msra.mxu0 0.0
  %462 = vmatprep.subr.mxu0 0.0
  %463 = vmatpush1.msra.mxu0 0.0
  %464 = vmatprep.subr.mxu0 0.0
  %465 = vmatpush1.msra.mxu0 0.0
  %466 = vmatprep.subr.mxu0 0.0
  %467 = vmatpush1.msra.mxu0 0.0
  %468 = vmatprep.subr.mxu0 0.0
  %469 = vmatpush1.msra.mxu0 0.0
  %470 = vmatprep.subr.mxu0 0.0
  %471 = vmatpush1.msra.mxu0 0.0
  %472 = vmatprep.subr.mxu0 0.0
  %473 = vmatpush1.msra.mxu0 %v439
  %474 = vmatprep.subr.mxu0 0.0
  %475 = vmatpush1.msra.mxu0 %v438
  %476 = vmatprep.subr.mxu0 0.0
  %477 = vmatpush1.msra.mxu0 %v437
  %478 = vmatprep.subr.mxu0 0.0
  %479 = vmatpush1.msra.mxu0 %v436
  %480 = vmatprep.subr.mxu0 0.0
  %481 = vmatpush2.msra.mxu0 0.0
  %482 = vmatprep.subr.mxu0 0.0
  %483 = vmatpush2.msra.mxu0 0.0
  %484 = vmatprep.subr.mxu0 0.0
  %485 = vmatpush2.msra.mxu0 0.0
  %486 = vmatprep.subr.mxu0 0.0
  %487 = vmatpush2.msra.mxu0 0.0
  %488 = vmatprep.subr.mxu0 0.0
  %489 = vmatpush2.msra.mxu0 0.0
  %490 = vmatprep.subr.mxu0 0.0
  %491 = vmatpush2.msra.mxu0 0.0
  %492 = vmatprep.subr.mxu0 0.0
  %493 = vmatpush2.msra.mxu0 0.0
  %494 = vmatprep.subr.mxu0 0.0
  %495 = vmatpush2.msra.mxu0 0.0
  %496 = vmatprep.subr.mxu0 0.0
  %497 = vmatpush2.msra.mxu0 0.0
  %498 = vmatprep.subr.mxu0 0.0
  %499 = vmatpush2.msra.mxu0 0.0
  %500 = vmatprep.subr.mxu0 0.0
  %501 = vmatpush2.msra.mxu0 0.0
  %502 = vmatprep.subr.mxu0 0.0
  %503 = vmatpush2.msra.mxu0 0.0
  %504 = vmatprep.subr.mxu0 0.0
  %505 = vmatpush2.msra.mxu0 0.0
  %506 = vmatprep.subr.mxu0 0.0
  %507 = vmatpush2.msra.mxu0 0.0
  %508 = vmatprep.subr.mxu0 0.0
  %509 = vmatpush2.msra.mxu0 0.0
  %510 = vmatprep.subr.mxu0 0.0
  %511 = vmatpush2.msra.mxu0 0.0
  %512 = vmatprep.mubr.f32.mxu0 0.0
  %513 = vmatmul.mubr.f32.gmra.mxu0 %v267
  %v514 = vpop.f32.mrf.mxu0
  %v515 = vadd.f32 %v446, %v514
  %v516 = vpop.f32.mrf.mxu0
  %517 = vmatprep.mubr.f32.mxu0 0.0
  %518 = vmatmul.mubr.f32.gmra.mxu0 %v270
  %v519 = vpop.f32.mrf.mxu0
  %v520 = vadd.f32 %v446, %v519
  %v521 = vpop.f32.mrf.mxu0
  %522 = vdwg.mxu0
  %vm523 = vcmask 64512
  %v525 = vsel %vm523, %v339, 0
  %v528 = vsel %vm523, %v427, 0
  %530 = vmatprep.subr.mxu0 0.0
  %531 = vmatpush1.xpose.msra.mxu0 0.0
  %532 = vmatprep.subr.mxu0 0.0
  %533 = vmatpush1.xpose.msra.mxu0 0.0
  %534 = vmatprep.subr.mxu0 0.0
  %535 = vmatpush1.xpose.msra.mxu0 0.0
  %536 = vmatprep.subr.mxu0 0.0
  %537 = vmatpush1.xpose.msra.mxu0 0.0
  %538 = vmatprep.subr.mxu0 0.0
  %539 = vmatpush1.xpose.msra.mxu0 0.0
  %540 = vmatprep.subr.mxu0 0.0
  %541 = vmatpush1.xpose.msra.mxu0 0.0
  %542 = vmatprep.subr.mxu0 0.0
  %543 = vmatpush1.xpose.msra.mxu0 0.0
  %544 = vmatprep.subr.mxu0 0.0
  %545 = vmatpush1.xpose.msra.mxu0 0.0
  %546 = vmatprep.subr.mxu0 0.0
  %547 = vmatpush1.xpose.msra.mxu0 0.0
  %548 = vmatprep.subr.mxu0 0.0
  %549 = vmatpush1.xpose.msra.mxu0 0.0
  %550 = vmatprep.subr.mxu0 0.0
  %551 = vmatpush1.xpose.msra.mxu0 0.0
  %552 = vmatprep.subr.mxu0 0.0
  %553 = vmatpush1.xpose.msra.mxu0 0.0
  %554 = vmatprep.subr.mxu0 0.0
  %555 = vmatpush1.xpose.msra.mxu0 0.0
  %556 = vmatprep.subr.mxu0 0.0
  %557 = vmatpush1.xpose.msra.mxu0 0.0
  %558 = vmatprep.subr.mxu0 0.0
  %559 = vmatpush1.xpose.msra.mxu0 0.0
  %560 = vmatprep.subr.mxu0 0.0
  %561 = vmatpush1.xpose.msra.mxu0 %v528
  %562 = vmatprep.subr.mxu0 0.0
  %563 = vmatpush2.xpose.msra.mxu0 0.0
  %564 = vmatprep.subr.mxu0 0.0
  %565 = vmatpush2.xpose.msra.mxu0 0.0
  %566 = vmatprep.subr.mxu0 0.0
  %567 = vmatpush2.xpose.msra.mxu0 0.0
  %568 = vmatprep.subr.mxu0 0.0
  %569 = vmatpush2.xpose.msra.mxu0 0.0
  %570 = vmatprep.subr.mxu0 0.0
  %571 = vmatpush2.xpose.msra.mxu0 0.0
  %572 = vmatprep.subr.mxu0 0.0
  %573 = vmatpush2.xpose.msra.mxu0 0.0
  %574 = vmatprep.subr.mxu0 0.0
  %575 = vmatpush2.xpose.msra.mxu0 0.0
  %576 = vmatprep.subr.mxu0 0.0
  %577 = vmatpush2.xpose.msra.mxu0 0.0
  %578 = vmatprep.subr.mxu0 0.0
  %579 = vmatpush2.xpose.msra.mxu0 0.0
  %580 = vmatprep.subr.mxu0 0.0
  %581 = vmatpush2.xpose.msra.mxu0 0.0
  %582 = vmatprep.subr.mxu0 0.0
  %583 = vmatpush2.xpose.msra.mxu0 0.0
  %584 = vmatprep.subr.mxu0 0.0
  %585 = vmatpush2.xpose.msra.mxu0 0.0
  %586 = vmatprep.subr.mxu0 0.0
  %587 = vmatpush2.xpose.msra.mxu0 0.0
  %588 = vmatprep.subr.mxu0 0.0
  %589 = vmatpush2.xpose.msra.mxu0 0.0
  %590 = vmatprep.subr.mxu0 0.0
  %591 = vmatpush2.xpose.msra.mxu0 0.0
  %592 = vmatprep.subr.mxu0 0.0
  %593 = vmatpush2.xpose.msra.mxu0 0.0
  %594 = vmatprep.mubr.f32.mxu0 0.0
  %595 = vmatmul.mubr.f32.gmra.mxu0 %v525
  %v596 = vpop.f32.mrf.mxu0
  %v597 = vadd.f32 %v248, %v596
  %v598 = vpop.f32.mrf.mxu0
  %599 = vdwg.mxu0
  %v601 = vsel %vm523, %v344, 0
  %v604 = vsel %vm523, %v432, 0
  %606 = vmatprep.subr.mxu0 0.0
  %607 = vmatpush1.xpose.msra.mxu0 0.0
  %608 = vmatprep.subr.mxu0 0.0
  %609 = vmatpush1.xpose.msra.mxu0 0.0
  %610 = vmatprep.subr.mxu0 0.0
  %611 = vmatpush1.xpose.msra.mxu0 0.0
  %612 = vmatprep.subr.mxu0 0.0
  %613 = vmatpush1.xpose.msra.mxu0 0.0
  %614 = vmatprep.subr.mxu0 0.0
  %615 = vmatpush1.xpose.msra.mxu0 0.0
  %616 = vmatprep.subr.mxu0 0.0
  %617 = vmatpush1.xpose.msra.mxu0 0.0
  %618 = vmatprep.subr.mxu0 0.0
  %619 = vmatpush1.xpose.msra.mxu0 0.0
  %620 = vmatprep.subr.mxu0 0.0
  %621 = vmatpush1.xpose.msra.mxu0 0.0
  %622 = vmatprep.subr.mxu0 0.0
  %623 = vmatpush1.xpose.msra.mxu0 0.0
  %624 = vmatprep.subr.mxu0 0.0
  %625 = vmatpush1.xpose.msra.mxu0 0.0
  %626 = vmatprep.subr.mxu0 0.0
  %627 = vmatpush1.xpose.msra.mxu0 0.0
  %628 = vmatprep.subr.mxu0 0.0
  %629 = vmatpush1.xpose.msra.mxu0 0.0
  %630 = vmatprep.subr.mxu0 0.0
  %631 = vmatpush1.xpose.msra.mxu0 0.0
  %632 = vmatprep.subr.mxu0 0.0
  %633 = vmatpush1.xpose.msra.mxu0 0.0
  %634 = vmatprep.subr.mxu0 0.0
  %635 = vmatpush1.xpose.msra.mxu0 0.0
  %636 = vmatprep.subr.mxu0 0.0
  %637 = vmatpush1.xpose.msra.mxu0 %v604
  %638 = vmatprep.subr.mxu0 0.0
  %639 = vmatpush2.xpose.msra.mxu0 0.0
  %640 = vmatprep.subr.mxu0 0.0
  %641 = vmatpush2.xpose.msra.mxu0 0.0
  %642 = vmatprep.subr.mxu0 0.0
  %643 = vmatpush2.xpose.msra.mxu0 0.0
  %644 = vmatprep.subr.mxu0 0.0
  %645 = vmatpush2.xpose.msra.mxu0 0.0
  %646 = vmatprep.subr.mxu0 0.0
  %647 = vmatpush2.xpose.msra.mxu0 0.0
  %648 = vmatprep.subr.mxu0 0.0
  %649 = vmatpush2.xpose.msra.mxu0 0.0
  %650 = vmatprep.subr.mxu0 0.0
  %651 = vmatpush2.xpose.msra.mxu0 0.0
  %652 = vmatprep.subr.mxu0 0.0
  %653 = vmatpush2.xpose.msra.mxu0 0.0
  %654 = vmatprep.subr.mxu0 0.0
  %655 = vmatpush2.xpose.msra.mxu0 0.0
  %656 = vmatprep.subr.mxu0 0.0
  %657 = vmatpush2.xpose.msra.mxu0 0.0
  %658 = vmatprep.subr.mxu0 0.0
  %659 = vmatpush2.xpose.msra.mxu0 0.0
  %660 = vmatprep.subr.mxu0 0.0
  %661 = vmatpush2.xpose.msra.mxu0 0.0
  %662 = vmatprep.subr.mxu0 0.0
  %663 = vmatpush2.xpose.msra.mxu0 0.0
  %664 = vmatprep.subr.mxu0 0.0
  %665 = vmatpush2.xpose.msra.mxu0 0.0
  %666 = vmatprep.subr.mxu0 0.0
  %667 = vmatpush2.xpose.msra.mxu0 0.0
  %668 = vmatprep.subr.mxu0 0.0
  %669 = vmatpush2.xpose.msra.mxu0 0.0
  %670 = vmatprep.mubr.f32.mxu0 0.0
  %671 = vmatmul.mubr.f32.gmra.mxu0 %v601
  %v672 = vpop.f32.mrf.mxu0
  %v673 = vadd.f32 %v252, %v672
  %v674 = vpop.f32.mrf.mxu0
  %675 = vdwg.mxu0
  %v676 = vsel %vm523, %v597, -inf
  %677 = vmax.xlane.f32.xlu0 %v676
  %v678 = vpop.xlane.xlu0 %677
  %v679 = vsel %vm523, %v673, -inf
  %680 = vmax.xlane.f32.xlu0 %v679
  %v681 = vpop.xlane.xlu0 %680
  %v682 = vsub.f32 %v597, %v678
  %v683 = vsub.f32 %v673, %v681
  %v684 = vmul.f32 %v682, 1.442695
  %v685 = vpow.pop %v684
  %v686 = vmul.f32 %v683, 1.442695
  %v687 = vpow.pop %v686
  %v688 = vsel %vm523, %v685, 0.0
  %689 = vadd.xlane.f32.xlu0 %v688
  %v690 = vpop.xlane.xlu0 %689
  %v691 = vsel %vm523, %v687, 0.0
  %692 = vadd.xlane.f32.xlu0 %v691
  %v693 = vpop.xlane.xlu0 %692
  %v694 = vrcp.pop %v690
  %v695 = vrcp.pop %v693
  %v696 = vmul.f32 %v685, %v694
  %v697 = vmul.f32 %v687, %v695
  %v699 = vsel %vm523, %v696, 0
  %701 = vmatprep.subr.mxu0 0.0
  %702 = vmatpush1.msra.mxu0 0.0
  %703 = vmatprep.subr.mxu0 0.0
  %704 = vmatpush1.msra.mxu0 0.0
  %705 = vmatprep.subr.mxu0 0.0
  %706 = vmatpush1.msra.mxu0 0.0
  %707 = vmatprep.subr.mxu0 0.0
  %708 = vmatpush1.msra.mxu0 0.0
  %709 = vmatprep.subr.mxu0 0.0
  %710 = vmatpush1.msra.mxu0 0.0
  %711 = vmatprep.subr.mxu0 0.0
  %712 = vmatpush1.msra.mxu0 0.0
  %713 = vmatprep.subr.mxu0 0.0
  %714 = vmatpush1.msra.mxu0 0.0
  %715 = vmatprep.subr.mxu0 0.0
  %716 = vmatpush1.msra.mxu0 0.0
  %717 = vmatprep.subr.mxu0 0.0
  %718 = vmatpush1.msra.mxu0 0.0
  %719 = vmatprep.subr.mxu0 0.0
  %720 = vmatpush1.msra.mxu0 0.0
  %721 = vmatprep.subr.mxu0 0.0
  %722 = vmatpush1.msra.mxu0 0.0
  %723 = vmatprep.subr.mxu0 0.0
  %724 = vmatpush1.msra.mxu0 0.0
  %725 = vmatprep.subr.mxu0 0.0
  %726 = vmatpush1.msra.mxu0 0.0
  %727 = vmatprep.subr.mxu0 0.0
  %728 = vmatpush1.msra.mxu0 0.0
  %729 = vmatprep.subr.mxu0 0.0
  %730 = vmatpush1.msra.mxu0 0.0
  %731 = vmatprep.subr.mxu0 0.0
  %732 = vmatpush1.msra.mxu0 %v515
  %733 = vmatprep.subr.mxu0 0.0
  %734 = vmatpush2.msra.mxu0 0.0
  %735 = vmatprep.subr.mxu0 0.0
  %736 = vmatpush2.msra.mxu0 0.0
  %737 = vmatprep.subr.mxu0 0.0
  %738 = vmatpush2.msra.mxu0 0.0
  %739 = vmatprep.subr.mxu0 0.0
  %740 = vmatpush2.msra.mxu0 0.0
  %741 = vmatprep.subr.mxu0 0.0
  %742 = vmatpush2.msra.mxu0 0.0
  %743 = vmatprep.subr.mxu0 0.0
  %744 = vmatpush2.msra.mxu0 0.0
  %745 = vmatprep.subr.mxu0 0.0
  %746 = vmatpush2.msra.mxu0 0.0
  %747 = vmatprep.subr.mxu0 0.0
  %748 = vmatpush2.msra.mxu0 0.0
  %749 = vmatprep.subr.mxu0 0.0
  %750 = vmatpush2.msra.mxu0 0.0
  %751 = vmatprep.subr.mxu0 0.0
  %752 = vmatpush2.msra.mxu0 0.0
  %753 = vmatprep.subr.mxu0 0.0
  %754 = vmatpush2.msra.mxu0 0.0
  %755 = vmatprep.subr.mxu0 0.0
  %756 = vmatpush2.msra.mxu0 0.0
  %757 = vmatprep.subr.mxu0 0.0
  %758 = vmatpush2.msra.mxu0 0.0
  %759 = vmatprep.subr.mxu0 0.0
  %760 = vmatpush2.msra.mxu0 0.0
  %761 = vmatprep.subr.mxu0 0.0
  %762 = vmatpush2.msra.mxu0 0.0
  %763 = vmatprep.subr.mxu0 0.0
  %764 = vmatpush2.msra.mxu0 0.0
  %765 = vmatprep.mubr.f32.mxu0 0.0
  %766 = vmatmul.mubr.f32.gmra.mxu0 %v699
  %v767 = vpop.f32.mrf.mxu0
  %v768 = vadd.f32 0.0, %v767
  %v769 = vpop.f32.mrf.mxu0
  %770 = vdwg.mxu0
  %v772 = vsel %vm523, %v697, 0
  %774 = vmatprep.subr.mxu0 0.0
  %775 = vmatpush1.msra.mxu0 0.0
  %776 = vmatprep.subr.mxu0 0.0
  %777 = vmatpush1.msra.mxu0 0.0
  %778 = vmatprep.subr.mxu0 0.0
  %779 = vmatpush1.msra.mxu0 0.0
  %780 = vmatprep.subr.mxu0 0.0
  %781 = vmatpush1.msra.mxu0 0.0
  %782 = vmatprep.subr.mxu0 0.0
  %783 = vmatpush1.msra.mxu0 0.0
  %784 = vmatprep.subr.mxu0 0.0
  %785 = vmatpush1.msra.mxu0 0.0
  %786 = vmatprep.subr.mxu0 0.0
  %787 = vmatpush1.msra.mxu0 0.0
  %788 = vmatprep.subr.mxu0 0.0
  %789 = vmatpush1.msra.mxu0 0.0
  %790 = vmatprep.subr.mxu0 0.0
  %791 = vmatpush1.msra.mxu0 0.0
  %792 = vmatprep.subr.mxu0 0.0
  %793 = vmatpush1.msra.mxu0 0.0
  %794 = vmatprep.subr.mxu0 0.0
  %795 = vmatpush1.msra.mxu0 0.0
  %796 = vmatprep.subr.mxu0 0.0
  %797 = vmatpush1.msra.mxu0 0.0
  %798 = vmatprep.subr.mxu0 0.0
  %799 = vmatpush1.msra.mxu0 0.0
  %800 = vmatprep.subr.mxu0 0.0
  %801 = vmatpush1.msra.mxu0 0.0
  %802 = vmatprep.subr.mxu0 0.0
  %803 = vmatpush1.msra.mxu0 0.0
  %804 = vmatprep.subr.mxu0 0.0
  %805 = vmatpush1.msra.mxu0 %v520
  %806 = vmatprep.subr.mxu0 0.0
  %807 = vmatpush2.msra.mxu0 0.0
  %808 = vmatprep.subr.mxu0 0.0
  %809 = vmatpush2.msra.mxu0 0.0
  %810 = vmatprep.subr.mxu0 0.0
  %811 = vmatpush2.msra.mxu0 0.0
  %812 = vmatprep.subr.mxu0 0.0
  %813 = vmatpush2.msra.mxu0 0.0
  %814 = vmatprep.subr.mxu0 0.0
  %815 = vmatpush2.msra.mxu0 0.0
  %816 = vmatprep.subr.mxu0 0.0
  %817 = vmatpush2.msra.mxu0 0.0
  %818 = vmatprep.subr.mxu0 0.0
  %819 = vmatpush2.msra.mxu0 0.0
  %820 = vmatprep.subr.mxu0 0.0
  %821 = vmatpush2.msra.mxu0 0.0
  %822 = vmatprep.subr.mxu0 0.0
  %823 = vmatpush2.msra.mxu0 0.0
  %824 = vmatprep.subr.mxu0 0.0
  %825 = vmatpush2.msra.mxu0 0.0
  %826 = vmatprep.subr.mxu0 0.0
  %827 = vmatpush2.msra.mxu0 0.0
  %828 = vmatprep.subr.mxu0 0.0
  %829 = vmatpush2.msra.mxu0 0.0
  %830 = vmatprep.subr.mxu0 0.0
  %831 = vmatpush2.msra.mxu0 0.0
  %832 = vmatprep.subr.mxu0 0.0
  %833 = vmatpush2.msra.mxu0 0.0
  %834 = vmatprep.subr.mxu0 0.0
  %835 = vmatpush2.msra.mxu0 0.0
  %836 = vmatprep.subr.mxu0 0.0
  %837 = vmatpush2.msra.mxu0 0.0
  %838 = vmatprep.mubr.f32.mxu0 0.0
  %839 = vmatmul.mubr.f32.gmra.mxu0 %v772
  %v840 = vpop.f32.mrf.mxu0
  %v841 = vadd.f32 0.0, %v840
  %v842 = vpop.f32.mrf.mxu0
  %843 = vdwg.mxu0
  %v844 = vld [vmem:[%s7] sm:$0xff]
  %s845 = scalar_lea.vmem %s5, 32
  %v846 = vld [vmem:[%s845] sm:$0xff]
  %v847 = vld [vmem:[%s845 + $0x8] sm:$0xff]
  %v848 = vld [vmem:[%s845 + $0x10] sm:$0xff]
  %v849 = vld [vmem:[%s845 + $0x18] sm:$0xff]
  %s850 = scalar_lea.vmem %s6, 1
  %v851 = vld [vmem:[%s850] sm:$0x1]
  %v853 = vlaneseq
  %v854 = vshrl.u32 %v853, 7
  %v855 = vsub.s32 0, %v854
  %v856 = vrot.slane %v851, %v855
  %858 = vmatprep.subr.mxu0 0.0
  %859 = vmatpush1.msra.mxu0 0.0
  %860 = vmatprep.subr.mxu0 0.0
  %861 = vmatpush1.msra.mxu0 0.0
  %862 = vmatprep.subr.mxu0 0.0
  %863 = vmatpush1.msra.mxu0 0.0
  %864 = vmatprep.subr.mxu0 0.0
  %865 = vmatpush1.msra.mxu0 0.0
  %866 = vmatprep.subr.mxu0 0.0
  %867 = vmatpush1.msra.mxu0 0.0
  %868 = vmatprep.subr.mxu0 0.0
  %869 = vmatpush1.msra.mxu0 0.0
  %870 = vmatprep.subr.mxu0 0.0
  %871 = vmatpush1.msra.mxu0 0.0
  %872 = vmatprep.subr.mxu0 0.0
  %873 = vmatpush1.msra.mxu0 0.0
  %874 = vmatprep.subr.mxu0 0.0
  %875 = vmatpush1.msra.mxu0 0.0
  %876 = vmatprep.subr.mxu0 0.0
  %877 = vmatpush1.msra.mxu0 0.0
  %878 = vmatprep.subr.mxu0 0.0
  %879 = vmatpush1.msra.mxu0 0.0
  %880 = vmatprep.subr.mxu0 0.0
  %881 = vmatpush1.msra.mxu0 0.0
  %882 = vmatprep.subr.mxu0 0.0
  %883 = vmatpush1.msra.mxu0 %v849
  %884 = vmatprep.subr.mxu0 0.0
  %885 = vmatpush1.msra.mxu0 %v848
  %886 = vmatprep.subr.mxu0 0.0
  %887 = vmatpush1.msra.mxu0 %v847
  %888 = vmatprep.subr.mxu0 0.0
  %889 = vmatpush1.msra.mxu0 %v846
  %890 = vmatprep.subr.mxu0 0.0
  %891 = vmatpush2.msra.mxu0 0.0
  %892 = vmatprep.subr.mxu0 0.0
  %893 = vmatpush2.msra.mxu0 0.0
  %894 = vmatprep.subr.mxu0 0.0
  %895 = vmatpush2.msra.mxu0 0.0
  %896 = vmatprep.subr.mxu0 0.0
  %897 = vmatpush2.msra.mxu0 0.0
  %898 = vmatprep.subr.mxu0 0.0
  %899 = vmatpush2.msra.mxu0 0.0
  %900 = vmatprep.subr.mxu0 0.0
  %901 = vmatpush2.msra.mxu0 0.0
  %902 = vmatprep.subr.mxu0 0.0
  %903 = vmatpush2.msra.mxu0 0.0
  %904 = vmatprep.subr.mxu0 0.0
  %905 = vmatpush2.msra.mxu0 0.0
  %906 = vmatprep.subr.mxu0 0.0
  %907 = vmatpush2.msra.mxu0 0.0
  %908 = vmatprep.subr.mxu0 0.0
  %909 = vmatpush2.msra.mxu0 0.0
  %910 = vmatprep.subr.mxu0 0.0
  %911 = vmatpush2.msra.mxu0 0.0
  %912 = vmatprep.subr.mxu0 0.0
  %913 = vmatpush2.msra.mxu0 0.0
  %914 = vmatprep.subr.mxu0 0.0
  %915 = vmatpush2.msra.mxu0 0.0
  %916 = vmatprep.subr.mxu0 0.0
  %917 = vmatpush2.msra.mxu0 0.0
  %918 = vmatprep.subr.mxu0 0.0
  %919 = vmatpush2.msra.mxu0 0.0
  %920 = vmatprep.subr.mxu0 0.0
  %921 = vmatpush2.msra.mxu0 0.0
  %922 = vmatprep.mubr.f32.mxu0 0.0
  %923 = vmatmul.mubr.f32.gmra.mxu0 %v267
  %v924 = vpop.f32.mrf.mxu0
  %v925 = vadd.f32 %v856, %v924
  %v926 = vpop.f32.mrf.mxu0
  %927 = vmatprep.mubr.f32.mxu0 0.0
  %928 = vmatmul.mubr.f32.gmra.mxu0 %v270
  %v929 = vpop.f32.mrf.mxu0
  %v930 = vadd.f32 %v856, %v929
  %v931 = vpop.f32.mrf.mxu0
  %932 = vdwg.mxu0
  %s933 = scalar_lea.vmem %s5, 160
  %v934 = vld [vmem:[%s933] sm:$0xff]
  %v935 = vld [vmem:[%s933 + $0x8] sm:$0xff]
  %v936 = vld [vmem:[%s933 + $0x10] sm:$0xff]
  %v937 = vld [vmem:[%s933 + $0x18] sm:$0xff]
  %s938 = scalar_lea.vmem %s6, 5
  %v939 = vld [vmem:[%s938] sm:$0x1]
  %v941 = vlaneseq
  %v942 = vshrl.u32 %v941, 7
  %v943 = vsub.s32 0, %v942
  %v944 = vrot.slane %v939, %v943
  %946 = vmatprep.subr.mxu0 0.0
  %947 = vmatpush1.msra.mxu0 0.0
  %948 = vmatprep.subr.mxu0 0.0
  %949 = vmatpush1.msra.mxu0 0.0
  %950 = vmatprep.subr.mxu0 0.0
  %951 = vmatpush1.msra.mxu0 0.0
  %952 = vmatprep.subr.mxu0 0.0
  %953 = vmatpush1.msra.mxu0 0.0
  %954 = vmatprep.subr.mxu0 0.0
  %955 = vmatpush1.msra.mxu0 0.0
  %956 = vmatprep.subr.mxu0 0.0
  %957 = vmatpush1.msra.mxu0 0.0
  %958 = vmatprep.subr.mxu0 0.0
  %959 = vmatpush1.msra.mxu0 0.0
  %960 = vmatprep.subr.mxu0 0.0
  %961 = vmatpush1.msra.mxu0 0.0
  %962 = vmatprep.subr.mxu0 0.0
  %963 = vmatpush1.msra.mxu0 0.0
  %964 = vmatprep.subr.mxu0 0.0
  %965 = vmatpush1.msra.mxu0 0.0
  %966 = vmatprep.subr.mxu0 0.0
  %967 = vmatpush1.msra.mxu0 0.0
  %968 = vmatprep.subr.mxu0 0.0
  %969 = vmatpush1.msra.mxu0 0.0
  %970 = vmatprep.subr.mxu0 0.0
  %971 = vmatpush1.msra.mxu0 %v937
  %972 = vmatprep.subr.mxu0 0.0
  %973 = vmatpush1.msra.mxu0 %v936
  %974 = vmatprep.subr.mxu0 0.0
  %975 = vmatpush1.msra.mxu0 %v935
  %976 = vmatprep.subr.mxu0 0.0
  %977 = vmatpush1.msra.mxu0 %v934
  %978 = vmatprep.subr.mxu0 0.0
  %979 = vmatpush2.msra.mxu0 0.0
  %980 = vmatprep.subr.mxu0 0.0
  %981 = vmatpush2.msra.mxu0 0.0
  %982 = vmatprep.subr.mxu0 0.0
  %983 = vmatpush2.msra.mxu0 0.0
  %984 = vmatprep.subr.mxu0 0.0
  %985 = vmatpush2.msra.mxu0 0.0
  %986 = vmatprep.subr.mxu0 0.0
  %987 = vmatpush2.msra.mxu0 0.0
  %988 = vmatprep.subr.mxu0 0.0
  %989 = vmatpush2.msra.mxu0 0.0
  %990 = vmatprep.subr.mxu0 0.0
  %991 = vmatpush2.msra.mxu0 0.0
  %992 = vmatprep.subr.mxu0 0.0
  %993 = vmatpush2.msra.mxu0 0.0
  %994 = vmatprep.subr.mxu0 0.0
  %995 = vmatpush2.msra.mxu0 0.0
  %996 = vmatprep.subr.mxu0 0.0
  %997 = vmatpush2.msra.mxu0 0.0
  %998 = vmatprep.subr.mxu0 0.0
  %999 = vmatpush2.msra.mxu0 0.0
  %1000 = vmatprep.subr.mxu0 0.0
  %1001 = vmatpush2.msra.mxu0 0.0
  %1002 = vmatprep.subr.mxu0 0.0
  %1003 = vmatpush2.msra.mxu0 0.0
  %1004 = vmatprep.subr.mxu0 0.0
  %1005 = vmatpush2.msra.mxu0 0.0
  %1006 = vmatprep.subr.mxu0 0.0
  %1007 = vmatpush2.msra.mxu0 0.0
  %1008 = vmatprep.subr.mxu0 0.0
  %1009 = vmatpush2.msra.mxu0 0.0
  %1010 = vmatprep.mubr.f32.mxu0 0.0
  %1011 = vmatmul.mubr.f32.gmra.mxu0 %v267
  %v1012 = vpop.f32.mrf.mxu0
  %v1013 = vadd.f32 %v944, %v1012
  %v1014 = vpop.f32.mrf.mxu0
  %1015 = vmatprep.mubr.f32.mxu0 0.0
  %1016 = vmatmul.mubr.f32.gmra.mxu0 %v270
  %v1017 = vpop.f32.mrf.mxu0
  %v1018 = vadd.f32 %v944, %v1017
  %v1019 = vpop.f32.mrf.mxu0
  %1020 = vdwg.mxu0
  %s1021 = scalar_lea.vmem %s5, 288
  %v1022 = vld [vmem:[%s1021] sm:$0xff]
  %v1023 = vld [vmem:[%s1021 + $0x8] sm:$0xff]
  %v1024 = vld [vmem:[%s1021 + $0x10] sm:$0xff]
  %v1025 = vld [vmem:[%s1021 + $0x18] sm:$0xff]
  %s1026 = scalar_lea.vmem %s6, 9
  %v1027 = vld [vmem:[%s1026] sm:$0x1]
  %v1029 = vlaneseq
  %v1030 = vshrl.u32 %v1029, 7
  %v1031 = vsub.s32 0, %v1030
  %v1032 = vrot.slane %v1027, %v1031
  %1034 = vmatprep.subr.mxu0 0.0
  %1035 = vmatpush1.msra.mxu0 0.0
  %1036 = vmatprep.subr.mxu0 0.0
  %1037 = vmatpush1.msra.mxu0 0.0
  %1038 = vmatprep.subr.mxu0 0.0
  %1039 = vmatpush1.msra.mxu0 0.0
  %1040 = vmatprep.subr.mxu0 0.0
  %1041 = vmatpush1.msra.mxu0 0.0
  %1042 = vmatprep.subr.mxu0 0.0
  %1043 = vmatpush1.msra.mxu0 0.0
  %1044 = vmatprep.subr.mxu0 0.0
  %1045 = vmatpush1.msra.mxu0 0.0
  %1046 = vmatprep.subr.mxu0 0.0
  %1047 = vmatpush1.msra.mxu0 0.0
  %1048 = vmatprep.subr.mxu0 0.0
  %1049 = vmatpush1.msra.mxu0 0.0
  %1050 = vmatprep.subr.mxu0 0.0
  %1051 = vmatpush1.msra.mxu0 0.0
  %1052 = vmatprep.subr.mxu0 0.0
  %1053 = vmatpush1.msra.mxu0 0.0
  %1054 = vmatprep.subr.mxu0 0.0
  %1055 = vmatpush1.msra.mxu0 0.0
  %1056 = vmatprep.subr.mxu0 0.0
  %1057 = vmatpush1.msra.mxu0 0.0
  %1058 = vmatprep.subr.mxu0 0.0
  %1059 = vmatpush1.msra.mxu0 %v1025
  %1060 = vmatprep.subr.mxu0 0.0
  %1061 = vmatpush1.msra.mxu0 %v1024
  %1062 = vmatprep.subr.mxu0 0.0
  %1063 = vmatpush1.msra.mxu0 %v1023
  %1064 = vmatprep.subr.mxu0 0.0
  %1065 = vmatpush1.msra.mxu0 %v1022
  %1066 = vmatprep.subr.mxu0 0.0
  %1067 = vmatpush2.msra.mxu0 0.0
  %1068 = vmatprep.subr.mxu0 0.0
  %1069 = vmatpush2.msra.mxu0 0.0
  %1070 = vmatprep.subr.mxu0 0.0
  %1071 = vmatpush2.msra.mxu0 0.0
  %1072 = vmatprep.subr.mxu0 0.0
  %1073 = vmatpush2.msra.mxu0 0.0
  %1074 = vmatprep.subr.mxu0 0.0
  %1075 = vmatpush2.msra.mxu0 0.0
  %1076 = vmatprep.subr.mxu0 0.0
  %1077 = vmatpush2.msra.mxu0 0.0
  %1078 = vmatprep.subr.mxu0 0.0
  %1079 = vmatpush2.msra.mxu0 0.0
  %1080 = vmatprep.subr.mxu0 0.0
  %1081 = vmatpush2.msra.mxu0 0.0
  %1082 = vmatprep.subr.mxu0 0.0
  %1083 = vmatpush2.msra.mxu0 0.0
  %1084 = vmatprep.subr.mxu0 0.0
  %1085 = vmatpush2.msra.mxu0 0.0
  %1086 = vmatprep.subr.mxu0 0.0
  %1087 = vmatpush2.msra.mxu0 0.0
  %1088 = vmatprep.subr.mxu0 0.0
  %1089 = vmatpush2.msra.mxu0 0.0
  %1090 = vmatprep.subr.mxu0 0.0
  %1091 = vmatpush2.msra.mxu0 0.0
  %1092 = vmatprep.subr.mxu0 0.0
  %1093 = vmatpush2.msra.mxu0 0.0
  %1094 = vmatprep.subr.mxu0 0.0
  %1095 = vmatpush2.msra.mxu0 0.0
  %1096 = vmatprep.subr.mxu0 0.0
  %1097 = vmatpush2.msra.mxu0 0.0
  %1098 = vmatprep.mubr.f32.mxu0 0.0
  %1099 = vmatmul.mubr.f32.gmra.mxu0 %v267
  %v1100 = vpop.f32.mrf.mxu0
  %v1101 = vadd.f32 %v1032, %v1100
  %v1102 = vpop.f32.mrf.mxu0
  %1103 = vmatprep.mubr.f32.mxu0 0.0
  %1104 = vmatmul.mubr.f32.gmra.mxu0 %v270
  %v1105 = vpop.f32.mrf.mxu0
  %v1106 = vadd.f32 %v1032, %v1105
  %v1107 = vpop.f32.mrf.mxu0
  %1108 = vdwg.mxu0
  %v1110 = vsel %vm523, %v925, 0
  %v1113 = vsel %vm523, %v1013, 0
  %1115 = vmatprep.subr.mxu0 0.0
  %1116 = vmatpush1.xpose.msra.mxu0 0.0
  %1117 = vmatprep.subr.mxu0 0.0
  %1118 = vmatpush1.xpose.msra.mxu0 0.0
  %1119 = vmatprep.subr.mxu0 0.0
  %1120 = vmatpush1.xpose.msra.mxu0 0.0
  %1121 = vmatprep.subr.mxu0 0.0
  %1122 = vmatpush1.xpose.msra.mxu0 0.0
  %1123 = vmatprep.subr.mxu0 0.0
  %1124 = vmatpush1.xpose.msra.mxu0 0.0
  %1125 = vmatprep.subr.mxu0 0.0
  %1126 = vmatpush1.xpose.msra.mxu0 0.0
  %1127 = vmatprep.subr.mxu0 0.0
  %1128 = vmatpush1.xpose.msra.mxu0 0.0
  %1129 = vmatprep.subr.mxu0 0.0
  %1130 = vmatpush1.xpose.msra.mxu0 0.0
  %1131 = vmatprep.subr.mxu0 0.0
  %1132 = vmatpush1.xpose.msra.mxu0 0.0
  %1133 = vmatprep.subr.mxu0 0.0
  %1134 = vmatpush1.xpose.msra.mxu0 0.0
  %1135 = vmatprep.subr.mxu0 0.0
  %1136 = vmatpush1.xpose.msra.mxu0 0.0
  %1137 = vmatprep.subr.mxu0 0.0
  %1138 = vmatpush1.xpose.msra.mxu0 0.0
  %1139 = vmatprep.subr.mxu0 0.0
  %1140 = vmatpush1.xpose.msra.mxu0 0.0
  %1141 = vmatprep.subr.mxu0 0.0
  %1142 = vmatpush1.xpose.msra.mxu0 0.0
  %1143 = vmatprep.subr.mxu0 0.0
  %1144 = vmatpush1.xpose.msra.mxu0 0.0
  %1145 = vmatprep.subr.mxu0 0.0
  %1146 = vmatpush1.xpose.msra.mxu0 %v1113
  %1147 = vmatprep.subr.mxu0 0.0
  %1148 = vmatpush2.xpose.msra.mxu0 0.0
  %1149 = vmatprep.subr.mxu0 0.0
  %1150 = vmatpush2.xpose.msra.mxu0 0.0
  %1151 = vmatprep.subr.mxu0 0.0
  %1152 = vmatpush2.xpose.msra.mxu0 0.0
  %1153 = vmatprep.subr.mxu0 0.0
  %1154 = vmatpush2.xpose.msra.mxu0 0.0
  %1155 = vmatprep.subr.mxu0 0.0
  %1156 = vmatpush2.xpose.msra.mxu0 0.0
  %1157 = vmatprep.subr.mxu0 0.0
  %1158 = vmatpush2.xpose.msra.mxu0 0.0
  %1159 = vmatprep.subr.mxu0 0.0
  %1160 = vmatpush2.xpose.msra.mxu0 0.0
  %1161 = vmatprep.subr.mxu0 0.0
  %1162 = vmatpush2.xpose.msra.mxu0 0.0
  %1163 = vmatprep.subr.mxu0 0.0
  %1164 = vmatpush2.xpose.msra.mxu0 0.0
  %1165 = vmatprep.subr.mxu0 0.0
  %1166 = vmatpush2.xpose.msra.mxu0 0.0
  %1167 = vmatprep.subr.mxu0 0.0
  %1168 = vmatpush2.xpose.msra.mxu0 0.0
  %1169 = vmatprep.subr.mxu0 0.0
  %1170 = vmatpush2.xpose.msra.mxu0 0.0
  %1171 = vmatprep.subr.mxu0 0.0
  %1172 = vmatpush2.xpose.msra.mxu0 0.0
  %1173 = vmatprep.subr.mxu0 0.0
  %1174 = vmatpush2.xpose.msra.mxu0 0.0
  %1175 = vmatprep.subr.mxu0 0.0
  %1176 = vmatpush2.xpose.msra.mxu0 0.0
  %1177 = vmatprep.subr.mxu0 0.0
  %1178 = vmatpush2.xpose.msra.mxu0 0.0
  %1179 = vmatprep.mubr.f32.mxu0 0.0
  %1180 = vmatmul.mubr.f32.gmra.mxu0 %v1110
  %v1181 = vpop.f32.mrf.mxu0
  %v1182 = vadd.f32 %v248, %v1181
  %v1183 = vpop.f32.mrf.mxu0
  %1184 = vdwg.mxu0
  %v1186 = vsel %vm523, %v930, 0
  %v1189 = vsel %vm523, %v1018, 0
  %1191 = vmatprep.subr.mxu0 0.0
  %1192 = vmatpush1.xpose.msra.mxu0 0.0
  %1193 = vmatprep.subr.mxu0 0.0
  %1194 = vmatpush1.xpose.msra.mxu0 0.0
  %1195 = vmatprep.subr.mxu0 0.0
  %1196 = vmatpush1.xpose.msra.mxu0 0.0
  %1197 = vmatprep.subr.mxu0 0.0
  %1198 = vmatpush1.xpose.msra.mxu0 0.0
  %1199 = vmatprep.subr.mxu0 0.0
  %1200 = vmatpush1.xpose.msra.mxu0 0.0
  %1201 = vmatprep.subr.mxu0 0.0
  %1202 = vmatpush1.xpose.msra.mxu0 0.0
  %1203 = vmatprep.subr.mxu0 0.0
  %1204 = vmatpush1.xpose.msra.mxu0 0.0
  %1205 = vmatprep.subr.mxu0 0.0
  %1206 = vmatpush1.xpose.msra.mxu0 0.0
  %1207 = vmatprep.subr.mxu0 0.0
  %1208 = vmatpush1.xpose.msra.mxu0 0.0
  %1209 = vmatprep.subr.mxu0 0.0
  %1210 = vmatpush1.xpose.msra.mxu0 0.0
  %1211 = vmatprep.subr.mxu0 0.0
  %1212 = vmatpush1.xpose.msra.mxu0 0.0
  %1213 = vmatprep.subr.mxu0 0.0
  %1214 = vmatpush1.xpose.msra.mxu0 0.0
  %1215 = vmatprep.subr.mxu0 0.0
  %1216 = vmatpush1.xpose.msra.mxu0 0.0
  %1217 = vmatprep.subr.mxu0 0.0
  %1218 = vmatpush1.xpose.msra.mxu0 0.0
  %1219 = vmatprep.subr.mxu0 0.0
  %1220 = vmatpush1.xpose.msra.mxu0 0.0
  %1221 = vmatprep.subr.mxu0 0.0
  %1222 = vmatpush1.xpose.msra.mxu0 %v1189
  %1223 = vmatprep.subr.mxu0 0.0
  %1224 = vmatpush2.xpose.msra.mxu0 0.0
  %1225 = vmatprep.subr.mxu0 0.0
  %1226 = vmatpush2.xpose.msra.mxu0 0.0
  %1227 = vmatprep.subr.mxu0 0.0
  %1228 = vmatpush2.xpose.msra.mxu0 0.0
  %1229 = vmatprep.subr.mxu0 0.0
  %1230 = vmatpush2.xpose.msra.mxu0 0.0
  %1231 = vmatprep.subr.mxu0 0.0
  %1232 = vmatpush2.xpose.msra.mxu0 0.0
  %1233 = vmatprep.subr.mxu0 0.0
  %1234 = vmatpush2.xpose.msra.mxu0 0.0
  %1235 = vmatprep.subr.mxu0 0.0
  %1236 = vmatpush2.xpose.msra.mxu0 0.0
  %1237 = vmatprep.subr.mxu0 0.0
  %1238 = vmatpush2.xpose.msra.mxu0 0.0
  %1239 = vmatprep.subr.mxu0 0.0
  %1240 = vmatpush2.xpose.msra.mxu0 0.0
  %1241 = vmatprep.subr.mxu0 0.0
  %1242 = vmatpush2.xpose.msra.mxu0 0.0
  %1243 = vmatprep.subr.mxu0 0.0
  %1244 = vmatpush2.xpose.msra.mxu0 0.0
  %1245 = vmatprep.subr.mxu0 0.0
  %1246 = vmatpush2.xpose.msra.mxu0 0.0
  %1247 = vmatprep.subr.mxu0 0.0
  %1248 = vmatpush2.xpose.msra.mxu0 0.0
  %1249 = vmatprep.subr.mxu0 0.0
  %1250 = vmatpush2.xpose.msra.mxu0 0.0
  %1251 = vmatprep.subr.mxu0 0.0
  %1252 = vmatpush2.xpose.msra.mxu0 0.0
  %1253 = vmatprep.subr.mxu0 0.0
  %1254 = vmatpush2.xpose.msra.mxu0 0.0
  %1255 = vmatprep.mubr.f32.mxu0 0.0
  %1256 = vmatmul.mubr.f32.gmra.mxu0 %v1186
  %v1257 = vpop.f32.mrf.mxu0
  %v1258 = vadd.f32 %v252, %v1257
  %v1259 = vpop.f32.mrf.mxu0
  %1260 = vdwg.mxu0
  %v1261 = vsel %vm523, %v1182, -inf
  %1262 = vmax.xlane.f32.xlu0 %v1261
  %v1263 = vpop.xlane.xlu0 %1262
  %v1264 = vsel %vm523, %v1258, -inf
  %1265 = vmax.xlane.f32.xlu0 %v1264
  %v1266 = vpop.xlane.xlu0 %1265
  %v1267 = vsub.f32 %v1182, %v1263
  %v1268 = vsub.f32 %v1258, %v1266
  %v1269 = vmul.f32 %v1267, 1.442695
  %v1270 = vpow.pop %v1269
  %v1271 = vmul.f32 %v1268, 1.442695
  %v1272 = vpow.pop %v1271
  %v1273 = vsel %vm523, %v1270, 0.0
  %1274 = vadd.xlane.f32.xlu0 %v1273
  %v1275 = vpop.xlane.xlu0 %1274
  %v1276 = vsel %vm523, %v1272, 0.0
  %1277 = vadd.xlane.f32.xlu0 %v1276
  %v1278 = vpop.xlane.xlu0 %1277
  %v1279 = vrcp.pop %v1275
  %v1280 = vrcp.pop %v1278
  %v1281 = vmul.f32 %v1270, %v1279
  %v1282 = vmul.f32 %v1272, %v1280
  %v1284 = vsel %vm523, %v1281, 0
  %1286 = vmatprep.subr.mxu0 0.0
  %1287 = vmatpush1.msra.mxu0 0.0
  %1288 = vmatprep.subr.mxu0 0.0
  %1289 = vmatpush1.msra.mxu0 0.0
  %1290 = vmatprep.subr.mxu0 0.0
  %1291 = vmatpush1.msra.mxu0 0.0
  %1292 = vmatprep.subr.mxu0 0.0
  %1293 = vmatpush1.msra.mxu0 0.0
  %1294 = vmatprep.subr.mxu0 0.0
  %1295 = vmatpush1.msra.mxu0 0.0
  %1296 = vmatprep.subr.mxu0 0.0
  %1297 = vmatpush1.msra.mxu0 0.0
  %1298 = vmatprep.subr.mxu0 0.0
  %1299 = vmatpush1.msra.mxu0 0.0
  %1300 = vmatprep.subr.mxu0 0.0
  %1301 = vmatpush1.msra.mxu0 0.0
  %1302 = vmatprep.subr.mxu0 0.0
  %1303 = vmatpush1.msra.mxu0 0.0
  %1304 = vmatprep.subr.mxu0 0.0
  %1305 = vmatpush1.msra.mxu0 0.0
  %1306 = vmatprep.subr.mxu0 0.0
  %1307 = vmatpush1.msra.mxu0 0.0
  %1308 = vmatprep.subr.mxu0 0.0
  %1309 = vmatpush1.msra.mxu0 0.0
  %1310 = vmatprep.subr.mxu0 0.0
  %1311 = vmatpush1.msra.mxu0 0.0
  %1312 = vmatprep.subr.mxu0 0.0
  %1313 = vmatpush1.msra.mxu0 0.0
  %1314 = vmatprep.subr.mxu0 0.0
  %1315 = vmatpush1.msra.mxu0 0.0
  %1316 = vmatprep.subr.mxu0 0.0
  %1317 = vmatpush1.msra.mxu0 %v1101
  %1318 = vmatprep.subr.mxu0 0.0
  %1319 = vmatpush2.msra.mxu0 0.0
  %1320 = vmatprep.subr.mxu0 0.0
  %1321 = vmatpush2.msra.mxu0 0.0
  %1322 = vmatprep.subr.mxu0 0.0
  %1323 = vmatpush2.msra.mxu0 0.0
  %1324 = vmatprep.subr.mxu0 0.0
  %1325 = vmatpush2.msra.mxu0 0.0
  %1326 = vmatprep.subr.mxu0 0.0
  %1327 = vmatpush2.msra.mxu0 0.0
  %1328 = vmatprep.subr.mxu0 0.0
  %1329 = vmatpush2.msra.mxu0 0.0
  %1330 = vmatprep.subr.mxu0 0.0
  %1331 = vmatpush2.msra.mxu0 0.0
  %1332 = vmatprep.subr.mxu0 0.0
  %1333 = vmatpush2.msra.mxu0 0.0
  %1334 = vmatprep.subr.mxu0 0.0
  %1335 = vmatpush2.msra.mxu0 0.0
  %1336 = vmatprep.subr.mxu0 0.0
  %1337 = vmatpush2.msra.mxu0 0.0
  %1338 = vmatprep.subr.mxu0 0.0
  %1339 = vmatpush2.msra.mxu0 0.0
  %1340 = vmatprep.subr.mxu0 0.0
  %1341 = vmatpush2.msra.mxu0 0.0
  %1342 = vmatprep.subr.mxu0 0.0
  %1343 = vmatpush2.msra.mxu0 0.0
  %1344 = vmatprep.subr.mxu0 0.0
  %1345 = vmatpush2.msra.mxu0 0.0
  %1346 = vmatprep.subr.mxu0 0.0
  %1347 = vmatpush2.msra.mxu0 0.0
  %1348 = vmatprep.subr.mxu0 0.0
  %1349 = vmatpush2.msra.mxu0 0.0
  %1350 = vmatprep.mubr.f32.mxu0 0.0
  %1351 = vmatmul.mubr.f32.gmra.mxu0 %v1284
  %v1352 = vpop.f32.mrf.mxu0
  %v1353 = vadd.f32 0.0, %v1352
  %v1354 = vpop.f32.mrf.mxu0
  %1355 = vdwg.mxu0
  %v1357 = vsel %vm523, %v1282, 0
  %1359 = vmatprep.subr.mxu0 0.0
  %1360 = vmatpush1.msra.mxu0 0.0
  %1361 = vmatprep.subr.mxu0 0.0
  %1362 = vmatpush1.msra.mxu0 0.0
  %1363 = vmatprep.subr.mxu0 0.0
  %1364 = vmatpush1.msra.mxu0 0.0
  %1365 = vmatprep.subr.mxu0 0.0
  %1366 = vmatpush1.msra.mxu0 0.0
  %1367 = vmatprep.subr.mxu0 0.0
  %1368 = vmatpush1.msra.mxu0 0.0
  %1369 = vmatprep.subr.mxu0 0.0
  %1370 = vmatpush1.msra.mxu0 0.0
  %1371 = vmatprep.subr.mxu0 0.0
  %1372 = vmatpush1.msra.mxu0 0.0
  %1373 = vmatprep.subr.mxu0 0.0
  %1374 = vmatpush1.msra.mxu0 0.0
  %1375 = vmatprep.subr.mxu0 0.0
  %1376 = vmatpush1.msra.mxu0 0.0
  %1377 = vmatprep.subr.mxu0 0.0
  %1378 = vmatpush1.msra.mxu0 0.0
  %1379 = vmatprep.subr.mxu0 0.0
  %1380 = vmatpush1.msra.mxu0 0.0
  %1381 = vmatprep.subr.mxu0 0.0
  %1382 = vmatpush1.msra.mxu0 0.0
  %1383 = vmatprep.subr.mxu0 0.0
  %1384 = vmatpush1.msra.mxu0 0.0
  %1385 = vmatprep.subr.mxu0 0.0
  %1386 = vmatpush1.msra.mxu0 0.0
  %1387 = vmatprep.subr.mxu0 0.0
  %1388 = vmatpush1.msra.mxu0 0.0
  %1389 = vmatprep.subr.mxu0 0.0
  %1390 = vmatpush1.msra.mxu0 %v1106
  %1391 = vmatprep.subr.mxu0 0.0
  %1392 = vmatpush2.msra.mxu0 0.0
  %1393 = vmatprep.subr.mxu0 0.0
  %1394 = vmatpush2.msra.mxu0 0.0
  %1395 = vmatprep.subr.mxu0 0.0
  %1396 = vmatpush2.msra.mxu0 0.0
  %1397 = vmatprep.subr.mxu0 0.0
  %1398 = vmatpush2.msra.mxu0 0.0
  %1399 = vmatprep.subr.mxu0 0.0
  %1400 = vmatpush2.msra.mxu0 0.0
  %1401 = vmatprep.subr.mxu0 0.0
  %1402 = vmatpush2.msra.mxu0 0.0
  %1403 = vmatprep.subr.mxu0 0.0
  %1404 = vmatpush2.msra.mxu0 0.0
  %1405 = vmatprep.subr.mxu0 0.0
  %1406 = vmatpush2.msra.mxu0 0.0
  %1407 = vmatprep.subr.mxu0 0.0
  %1408 = vmatpush2.msra.mxu0 0.0
  %1409 = vmatprep.subr.mxu0 0.0
  %1410 = vmatpush2.msra.mxu0 0.0
  %1411 = vmatprep.subr.mxu0 0.0
  %1412 = vmatpush2.msra.mxu0 0.0
  %1413 = vmatprep.subr.mxu0 0.0
  %1414 = vmatpush2.msra.mxu0 0.0
  %1415 = vmatprep.subr.mxu0 0.0
  %1416 = vmatpush2.msra.mxu0 0.0
  %1417 = vmatprep.subr.mxu0 0.0
  %1418 = vmatpush2.msra.mxu0 0.0
  %1419 = vmatprep.subr.mxu0 0.0
  %1420 = vmatpush2.msra.mxu0 0.0
  %1421 = vmatprep.subr.mxu0 0.0
  %1422 = vmatpush2.msra.mxu0 0.0
  %1423 = vmatprep.mubr.f32.mxu0 0.0
  %1424 = vmatmul.mubr.f32.gmra.mxu0 %v1357
  %v1425 = vpop.f32.mrf.mxu0
  %v1426 = vadd.f32 0.0, %v1425
  %v1427 = vpop.f32.mrf.mxu0
  %1428 = vdwg.mxu0
  %s1429 = scalar_lea.vmem %s7, 8
  %v1430 = vld [vmem:[%s1429] sm:$0xff]
  %v1432 = vsel %vm523, %v1353, 0
  %v1435 = vsel %vm523, %v1426, 0
  %1437 = vmatprep.subr.mxu0 0.0
  %1438 = vmatpush1.msra.mxu0 0.0
  %1439 = vmatprep.subr.mxu0 0.0
  %1440 = vmatpush1.msra.mxu0 0.0
  %1441 = vmatprep.subr.mxu0 0.0
  %1442 = vmatpush1.msra.mxu0 0.0
  %1443 = vmatprep.subr.mxu0 0.0
  %1444 = vmatpush1.msra.mxu0 0.0
  %1445 = vmatprep.subr.mxu0 0.0
  %1446 = vmatpush1.msra.mxu0 0.0
  %1447 = vmatprep.subr.mxu0 0.0
  %1448 = vmatpush1.msra.mxu0 0.0
  %1449 = vmatprep.subr.mxu0 0.0
  %1450 = vmatpush1.msra.mxu0 0.0
  %1451 = vmatprep.subr.mxu0 0.0
  %1452 = vmatpush1.msra.mxu0 0.0
  %1453 = vmatprep.subr.mxu0 0.0
  %1454 = vmatpush1.msra.mxu0 0.0
  %1455 = vmatprep.subr.mxu0 0.0
  %1456 = vmatpush1.msra.mxu0 0.0
  %1457 = vmatprep.subr.mxu0 0.0
  %1458 = vmatpush1.msra.mxu0 0.0
  %1459 = vmatprep.subr.mxu0 0.0
  %1460 = vmatpush1.msra.mxu0 0.0
  %1461 = vmatprep.subr.mxu0 0.0
  %1462 = vmatpush1.msra.mxu0 0.0
  %1463 = vmatprep.subr.mxu0 0.0
  %1464 = vmatpush1.msra.mxu0 0.0
  %1465 = vmatprep.subr.mxu0 0.0
  %1466 = vmatpush1.msra.mxu0 0.0
  %1467 = vmatprep.subr.mxu0 0.0
  %1468 = vmatpush1.msra.mxu0 %v1430
  %1469 = vmatprep.subr.mxu0 0.0
  %1470 = vmatpush2.msra.mxu0 0.0
  %1471 = vmatprep.subr.mxu0 0.0
  %1472 = vmatpush2.msra.mxu0 0.0
  %1473 = vmatprep.subr.mxu0 0.0
  %1474 = vmatpush2.msra.mxu0 0.0
  %1475 = vmatprep.subr.mxu0 0.0
  %1476 = vmatpush2.msra.mxu0 0.0
  %1477 = vmatprep.subr.mxu0 0.0
  %1478 = vmatpush2.msra.mxu0 0.0
  %1479 = vmatprep.subr.mxu0 0.0
  %1480 = vmatpush2.msra.mxu0 0.0
  %1481 = vmatprep.subr.mxu0 0.0
  %1482 = vmatpush2.msra.mxu0 0.0
  %1483 = vmatprep.subr.mxu0 0.0
  %1484 = vmatpush2.msra.mxu0 0.0
  %1485 = vmatprep.subr.mxu0 0.0
  %1486 = vmatpush2.msra.mxu0 0.0
  %1487 = vmatprep.subr.mxu0 0.0
  %1488 = vmatpush2.msra.mxu0 0.0
  %1489 = vmatprep.subr.mxu0 0.0
  %1490 = vmatpush2.msra.mxu0 0.0
  %1491 = vmatprep.subr.mxu0 0.0
  %1492 = vmatpush2.msra.mxu0 0.0
  %1493 = vmatprep.subr.mxu0 0.0
  %1494 = vmatpush2.msra.mxu0 0.0
  %1495 = vmatprep.subr.mxu0 0.0
  %1496 = vmatpush2.msra.mxu0 0.0
  %1497 = vmatprep.subr.mxu0 0.0
  %1498 = vmatpush2.msra.mxu0 0.0
  %1499 = vmatprep.subr.mxu0 0.0
  %1500 = vmatpush2.msra.mxu0 0.0
  %1501 = vmatprep.mubr.f32.mxu0 0.0
  %1502 = vmatmul.mubr.f32.gmra.mxu0 %v1432
  %v1503 = vpop.f32.mrf.mxu0
  %v1504 = vadd.f32 0.0, %v1503
  %v1505 = vpop.f32.mrf.mxu0
  %1506 = vmatprep.mubr.f32.mxu0 0.0
  %1507 = vmatmul.mubr.f32.gmra.mxu0 %v1435
  %v1508 = vpop.f32.mrf.mxu0
  %v1509 = vadd.f32 0.0, %v1508
  %v1510 = vpop.f32.mrf.mxu0
  %1511 = vdwg.mxu0
  %v1513 = vsel %vm523, %v768, 0
  %v1516 = vsel %vm523, %v841, 0
  %1518 = vmatprep.subr.mxu0 0.0
  %1519 = vmatpush1.msra.mxu0 0.0
  %1520 = vmatprep.subr.mxu0 0.0
  %1521 = vmatpush1.msra.mxu0 0.0
  %1522 = vmatprep.subr.mxu0 0.0
  %1523 = vmatpush1.msra.mxu0 0.0
  %1524 = vmatprep.subr.mxu0 0.0
  %1525 = vmatpush1.msra.mxu0 0.0
  %1526 = vmatprep.subr.mxu0 0.0
  %1527 = vmatpush1.msra.mxu0 0.0
  %1528 = vmatprep.subr.mxu0 0.0
  %1529 = vmatpush1.msra.mxu0 0.0
  %1530 = vmatprep.subr.mxu0 0.0
  %1531 = vmatpush1.msra.mxu0 0.0
  %1532 = vmatprep.subr.mxu0 0.0
  %1533 = vmatpush1.msra.mxu0 0.0
  %1534 = vmatprep.subr.mxu0 0.0
  %1535 = vmatpush1.msra.mxu0 0.0
  %1536 = vmatprep.subr.mxu0 0.0
  %1537 = vmatpush1.msra.mxu0 0.0
  %1538 = vmatprep.subr.mxu0 0.0
  %1539 = vmatpush1.msra.mxu0 0.0
  %1540 = vmatprep.subr.mxu0 0.0
  %1541 = vmatpush1.msra.mxu0 0.0
  %1542 = vmatprep.subr.mxu0 0.0
  %1543 = vmatpush1.msra.mxu0 0.0
  %1544 = vmatprep.subr.mxu0 0.0
  %1545 = vmatpush1.msra.mxu0 0.0
  %1546 = vmatprep.subr.mxu0 0.0
  %1547 = vmatpush1.msra.mxu0 0.0
  %1548 = vmatprep.subr.mxu0 0.0
  %1549 = vmatpush1.msra.mxu0 %v844
  %1550 = vmatprep.subr.mxu0 0.0
  %1551 = vmatpush2.msra.mxu0 0.0
  %1552 = vmatprep.subr.mxu0 0.0
  %1553 = vmatpush2.msra.mxu0 0.0
  %1554 = vmatprep.subr.mxu0 0.0
  %1555 = vmatpush2.msra.mxu0 0.0
  %1556 = vmatprep.subr.mxu0 0.0
  %1557 = vmatpush2.msra.mxu0 0.0
  %1558 = vmatprep.subr.mxu0 0.0
  %1559 = vmatpush2.msra.mxu0 0.0
  %1560 = vmatprep.subr.mxu0 0.0
  %1561 = vmatpush2.msra.mxu0 0.0
  %1562 = vmatprep.subr.mxu0 0.0
  %1563 = vmatpush2.msra.mxu0 0.0
  %1564 = vmatprep.subr.mxu0 0.0
  %1565 = vmatpush2.msra.mxu0 0.0
  %1566 = vmatprep.subr.mxu0 0.0
  %1567 = vmatpush2.msra.mxu0 0.0
  %1568 = vmatprep.subr.mxu0 0.0
  %1569 = vmatpush2.msra.mxu0 0.0
  %1570 = vmatprep.subr.mxu0 0.0
  %1571 = vmatpush2.msra.mxu0 0.0
  %1572 = vmatprep.subr.mxu0 0.0
  %1573 = vmatpush2.msra.mxu0 0.0
  %1574 = vmatprep.subr.mxu0 0.0
  %1575 = vmatpush2.msra.mxu0 0.0
  %1576 = vmatprep.subr.mxu0 0.0
  %1577 = vmatpush2.msra.mxu0 0.0
  %1578 = vmatprep.subr.mxu0 0.0
  %1579 = vmatpush2.msra.mxu0 0.0
  %1580 = vmatprep.subr.mxu0 0.0
  %1581 = vmatpush2.msra.mxu0 0.0
  %1582 = vmatprep.mubr.f32.mxu0 0.0
  %1583 = vmatmul.mubr.f32.gmra.mxu0 %v1513
  %v1584 = vpop.f32.mrf.mxu0
  %v1585 = vadd.f32 %v1504, %v1584
  %v1586 = vpop.f32.mrf.mxu0
  %1587 = vmatprep.mubr.f32.mxu0 0.0
  %1588 = vmatmul.mubr.f32.gmra.mxu0 %v1516
  %v1589 = vpop.f32.mrf.mxu0
  %v1590 = vadd.f32 %v1509, %v1589
  %v1591 = vpop.f32.mrf.mxu0
  %1592 = vdwg.mxu0
  %s1593 = scalar_lea.vmem %s5, 64
  %v1594 = vld [vmem:[%s1593] sm:$0xff]
  %v1595 = vld [vmem:[%s1593 + $0x8] sm:$0xff]
  %v1596 = vld [vmem:[%s1593 + $0x10] sm:$0xff]
  %v1597 = vld [vmem:[%s1593 + $0x18] sm:$0xff]
  %s1598 = scalar_lea.vmem %s6, 2
  %v1599 = vld [vmem:[%s1598] sm:$0x1]
  %v1601 = vlaneseq
  %v1602 = vshrl.u32 %v1601, 7
  %v1603 = vsub.s32 0, %v1602
  %v1604 = vrot.slane %v1599, %v1603
  %1606 = vmatprep.subr.mxu0 0.0
  %1607 = vmatpush1.msra.mxu0 0.0
  %1608 = vmatprep.subr.mxu0 0.0
  %1609 = vmatpush1.msra.mxu0 0.0
  %1610 = vmatprep.subr.mxu0 0.0
  %1611 = vmatpush1.msra.mxu0 0.0
  %1612 = vmatprep.subr.mxu0 0.0
  %1613 = vmatpush1.msra.mxu0 0.0
  %1614 = vmatprep.subr.mxu0 0.0
  %1615 = vmatpush1.msra.mxu0 0.0
  %1616 = vmatprep.subr.mxu0 0.0
  %1617 = vmatpush1.msra.mxu0 0.0
  %1618 = vmatprep.subr.mxu0 0.0
  %1619 = vmatpush1.msra.mxu0 0.0
  %1620 = vmatprep.subr.mxu0 0.0
  %1621 = vmatpush1.msra.mxu0 0.0
  %1622 = vmatprep.subr.mxu0 0.0
  %1623 = vmatpush1.msra.mxu0 0.0
  %1624 = vmatprep.subr.mxu0 0.0
  %1625 = vmatpush1.msra.mxu0 0.0
  %1626 = vmatprep.subr.mxu0 0.0
  %1627 = vmatpush1.msra.mxu0 0.0
  %1628 = vmatprep.subr.mxu0 0.0
  %1629 = vmatpush1.msra.mxu0 0.0
  %1630 = vmatprep.subr.mxu0 0.0
  %1631 = vmatpush1.msra.mxu0 %v1597
  %1632 = vmatprep.subr.mxu0 0.0
  %1633 = vmatpush1.msra.mxu0 %v1596
  %1634 = vmatprep.subr.mxu0 0.0
  %1635 = vmatpush1.msra.mxu0 %v1595
  %1636 = vmatprep.subr.mxu0 0.0
  %1637 = vmatpush1.msra.mxu0 %v1594
  %1638 = vmatprep.subr.mxu0 0.0
  %1639 = vmatpush2.msra.mxu0 0.0
  %1640 = vmatprep.subr.mxu0 0.0
  %1641 = vmatpush2.msra.mxu0 0.0
  %1642 = vmatprep.subr.mxu0 0.0
  %1643 = vmatpush2.msra.mxu0 0.0
  %1644 = vmatprep.subr.mxu0 0.0
  %1645 = vmatpush2.msra.mxu0 0.0
  %1646 = vmatprep.subr.mxu0 0.0
  %1647 = vmatpush2.msra.mxu0 0.0
  %1648 = vmatprep.subr.mxu0 0.0
  %1649 = vmatpush2.msra.mxu0 0.0
  %1650 = vmatprep.subr.mxu0 0.0
  %1651 = vmatpush2.msra.mxu0 0.0
  %1652 = vmatprep.subr.mxu0 0.0
  %1653 = vmatpush2.msra.mxu0 0.0
  %1654 = vmatprep.subr.mxu0 0.0
  %1655 = vmatpush2.msra.mxu0 0.0
  %1656 = vmatprep.subr.mxu0 0.0
  %1657 = vmatpush2.msra.mxu0 0.0
  %1658 = vmatprep.subr.mxu0 0.0
  %1659 = vmatpush2.msra.mxu0 0.0
  %1660 = vmatprep.subr.mxu0 0.0
  %1661 = vmatpush2.msra.mxu0 0.0
  %1662 = vmatprep.subr.mxu0 0.0
  %1663 = vmatpush2.msra.mxu0 0.0
  %1664 = vmatprep.subr.mxu0 0.0
  %1665 = vmatpush2.msra.mxu0 0.0
  %1666 = vmatprep.subr.mxu0 0.0
  %1667 = vmatpush2.msra.mxu0 0.0
  %1668 = vmatprep.subr.mxu0 0.0
  %1669 = vmatpush2.msra.mxu0 0.0
  %1670 = vmatprep.mubr.f32.mxu0 0.0
  %1671 = vmatmul.mubr.f32.gmra.mxu0 %v267
  %v1672 = vpop.f32.mrf.mxu0
  %v1673 = vadd.f32 %v1604, %v1672
  %v1674 = vpop.f32.mrf.mxu0
  %1675 = vmatprep.mubr.f32.mxu0 0.0
  %1676 = vmatmul.mubr.f32.gmra.mxu0 %v270
  %v1677 = vpop.f32.mrf.mxu0
  %v1678 = vadd.f32 %v1604, %v1677
  %v1679 = vpop.f32.mrf.mxu0
  %1680 = vdwg.mxu0
  %s1681 = scalar_lea.vmem %s5, 192
  %v1682 = vld [vmem:[%s1681] sm:$0xff]
  %v1683 = vld [vmem:[%s1681 + $0x8] sm:$0xff]
  %v1684 = vld [vmem:[%s1681 + $0x10] sm:$0xff]
  %v1685 = vld [vmem:[%s1681 + $0x18] sm:$0xff]
  %s1686 = scalar_lea.vmem %s6, 6
  %v1687 = vld [vmem:[%s1686] sm:$0x1]
  %v1689 = vlaneseq
  %v1690 = vshrl.u32 %v1689, 7
  %v1691 = vsub.s32 0, %v1690
  %v1692 = vrot.slane %v1687, %v1691
  %1694 = vmatprep.subr.mxu0 0.0
  %1695 = vmatpush1.msra.mxu0 0.0
  %1696 = vmatprep.subr.mxu0 0.0
  %1697 = vmatpush1.msra.mxu0 0.0
  %1698 = vmatprep.subr.mxu0 0.0
  %1699 = vmatpush1.msra.mxu0 0.0
  %1700 = vmatprep.subr.mxu0 0.0
  %1701 = vmatpush1.msra.mxu0 0.0
  %1702 = vmatprep.subr.mxu0 0.0
  %1703 = vmatpush1.msra.mxu0 0.0
  %1704 = vmatprep.subr.mxu0 0.0
  %1705 = vmatpush1.msra.mxu0 0.0
  %1706 = vmatprep.subr.mxu0 0.0
  %1707 = vmatpush1.msra.mxu0 0.0
  %1708 = vmatprep.subr.mxu0 0.0
  %1709 = vmatpush1.msra.mxu0 0.0
  %1710 = vmatprep.subr.mxu0 0.0
  %1711 = vmatpush1.msra.mxu0 0.0
  %1712 = vmatprep.subr.mxu0 0.0
  %1713 = vmatpush1.msra.mxu0 0.0
  %1714 = vmatprep.subr.mxu0 0.0
  %1715 = vmatpush1.msra.mxu0 0.0
  %1716 = vmatprep.subr.mxu0 0.0
  %1717 = vmatpush1.msra.mxu0 0.0
  %1718 = vmatprep.subr.mxu0 0.0
  %1719 = vmatpush1.msra.mxu0 %v1685
  %1720 = vmatprep.subr.mxu0 0.0
  %1721 = vmatpush1.msra.mxu0 %v1684
  %1722 = vmatprep.subr.mxu0 0.0
  %1723 = vmatpush1.msra.mxu0 %v1683
  %1724 = vmatprep.subr.mxu0 0.0
  %1725 = vmatpush1.msra.mxu0 %v1682
  %1726 = vmatprep.subr.mxu0 0.0
  %1727 = vmatpush2.msra.mxu0 0.0
  %1728 = vmatprep.subr.mxu0 0.0
  %1729 = vmatpush2.msra.mxu0 0.0
  %1730 = vmatprep.subr.mxu0 0.0
  %1731 = vmatpush2.msra.mxu0 0.0
  %1732 = vmatprep.subr.mxu0 0.0
  %1733 = vmatpush2.msra.mxu0 0.0
  %1734 = vmatprep.subr.mxu0 0.0
  %1735 = vmatpush2.msra.mxu0 0.0
  %1736 = vmatprep.subr.mxu0 0.0
  %1737 = vmatpush2.msra.mxu0 0.0
  %1738 = vmatprep.subr.mxu0 0.0
  %1739 = vmatpush2.msra.mxu0 0.0
  %1740 = vmatprep.subr.mxu0 0.0
  %1741 = vmatpush2.msra.mxu0 0.0
  %1742 = vmatprep.subr.mxu0 0.0
  %1743 = vmatpush2.msra.mxu0 0.0
  %1744 = vmatprep.subr.mxu0 0.0
  %1745 = vmatpush2.msra.mxu0 0.0
  %1746 = vmatprep.subr.mxu0 0.0
  %1747 = vmatpush2.msra.mxu0 0.0
  %1748 = vmatprep.subr.mxu0 0.0
  %1749 = vmatpush2.msra.mxu0 0.0
  %1750 = vmatprep.subr.mxu0 0.0
  %1751 = vmatpush2.msra.mxu0 0.0
  %1752 = vmatprep.subr.mxu0 0.0
  %1753 = vmatpush2.msra.mxu0 0.0
  %1754 = vmatprep.subr.mxu0 0.0
  %1755 = vmatpush2.msra.mxu0 0.0
  %1756 = vmatprep.subr.mxu0 0.0
  %1757 = vmatpush2.msra.mxu0 0.0
  %1758 = vmatprep.mubr.f32.mxu0 0.0
  %1759 = vmatmul.mubr.f32.gmra.mxu0 %v267
  %v1760 = vpop.f32.mrf.mxu0
  %v1761 = vadd.f32 %v1692, %v1760
  %v1762 = vpop.f32.mrf.mxu0
  %1763 = vmatprep.mubr.f32.mxu0 0.0
  %1764 = vmatmul.mubr.f32.gmra.mxu0 %v270
  %v1765 = vpop.f32.mrf.mxu0
  %v1766 = vadd.f32 %v1692, %v1765
  %v1767 = vpop.f32.mrf.mxu0
  %1768 = vdwg.mxu0
  %s1769 = scalar_lea.vmem %s5, 320
  %v1770 = vld [vmem:[%s1769] sm:$0xff]
  %v1771 = vld [vmem:[%s1769 + $0x8] sm:$0xff]
  %v1772 = vld [vmem:[%s1769 + $0x10] sm:$0xff]
  %v1773 = vld [vmem:[%s1769 + $0x18] sm:$0xff]
  %s1774 = scalar_lea.vmem %s6, 10
  %v1775 = vld [vmem:[%s1774] sm:$0x1]
  %v1777 = vlaneseq
  %v1778 = vshrl.u32 %v1777, 7
  %v1779 = vsub.s32 0, %v1778
  %v1780 = vrot.slane %v1775, %v1779
  %1782 = vmatprep.subr.mxu0 0.0
  %1783 = vmatpush1.msra.mxu0 0.0
  %1784 = vmatprep.subr.mxu0 0.0
  %1785 = vmatpush1.msra.mxu0 0.0
  %1786 = vmatprep.subr.mxu0 0.0
  %1787 = vmatpush1.msra.mxu0 0.0
  %1788 = vmatprep.subr.mxu0 0.0
  %1789 = vmatpush1.msra.mxu0 0.0
  %1790 = vmatprep.subr.mxu0 0.0
  %1791 = vmatpush1.msra.mxu0 0.0
  %1792 = vmatprep.subr.mxu0 0.0
  %1793 = vmatpush1.msra.mxu0 0.0
  %1794 = vmatprep.subr.mxu0 0.0
  %1795 = vmatpush1.msra.mxu0 0.0
  %1796 = vmatprep.subr.mxu0 0.0
  %1797 = vmatpush1.msra.mxu0 0.0
  %1798 = vmatprep.subr.mxu0 0.0
  %1799 = vmatpush1.msra.mxu0 0.0
  %1800 = vmatprep.subr.mxu0 0.0
  %1801 = vmatpush1.msra.mxu0 0.0
  %1802 = vmatprep.subr.mxu0 0.0
  %1803 = vmatpush1.msra.mxu0 0.0
  %1804 = vmatprep.subr.mxu0 0.0
  %1805 = vmatpush1.msra.mxu0 0.0
  %1806 = vmatprep.subr.mxu0 0.0
  %1807 = vmatpush1.msra.mxu0 %v1773
  %1808 = vmatprep.subr.mxu0 0.0
  %1809 = vmatpush1.msra.mxu0 %v1772
  %1810 = vmatprep.subr.mxu0 0.0
  %1811 = vmatpush1.msra.mxu0 %v1771
  %1812 = vmatprep.subr.mxu0 0.0
  %1813 = vmatpush1.msra.mxu0 %v1770
  %1814 = vmatprep.subr.mxu0 0.0
  %1815 = vmatpush2.msra.mxu0 0.0
  %1816 = vmatprep.subr.mxu0 0.0
  %1817 = vmatpush2.msra.mxu0 0.0
  %1818 = vmatprep.subr.mxu0 0.0
  %1819 = vmatpush2.msra.mxu0 0.0
  %1820 = vmatprep.subr.mxu0 0.0
  %1821 = vmatpush2.msra.mxu0 0.0
  %1822 = vmatprep.subr.mxu0 0.0
  %1823 = vmatpush2.msra.mxu0 0.0
  %1824 = vmatprep.subr.mxu0 0.0
  %1825 = vmatpush2.msra.mxu0 0.0
  %1826 = vmatprep.subr.mxu0 0.0
  %1827 = vmatpush2.msra.mxu0 0.0
  %1828 = vmatprep.subr.mxu0 0.0
  %1829 = vmatpush2.msra.mxu0 0.0
  %1830 = vmatprep.subr.mxu0 0.0
  %1831 = vmatpush2.msra.mxu0 0.0
  %1832 = vmatprep.subr.mxu0 0.0
  %1833 = vmatpush2.msra.mxu0 0.0
  %1834 = vmatprep.subr.mxu0 0.0
  %1835 = vmatpush2.msra.mxu0 0.0
  %1836 = vmatprep.subr.mxu0 0.0
  %1837 = vmatpush2.msra.mxu0 0.0
  %1838 = vmatprep.subr.mxu0 0.0
  %1839 = vmatpush2.msra.mxu0 0.0
  %1840 = vmatprep.subr.mxu0 0.0
  %1841 = vmatpush2.msra.mxu0 0.0
  %1842 = vmatprep.subr.mxu0 0.0
  %1843 = vmatpush2.msra.mxu0 0.0
  %1844 = vmatprep.subr.mxu0 0.0
  %1845 = vmatpush2.msra.mxu0 0.0
  %1846 = vmatprep.mubr.f32.mxu0 0.0
  %1847 = vmatmul.mubr.f32.gmra.mxu0 %v267
  %v1848 = vpop.f32.mrf.mxu0
  %v1849 = vadd.f32 %v1780, %v1848
  %v1850 = vpop.f32.mrf.mxu0
  %1851 = vmatprep.mubr.f32.mxu0 0.0
  %1852 = vmatmul.mubr.f32.gmra.mxu0 %v270
  %v1853 = vpop.f32.mrf.mxu0
  %v1854 = vadd.f32 %v1780, %v1853
  %v1855 = vpop.f32.mrf.mxu0
  %1856 = vdwg.mxu0
  %v1858 = vsel %vm523, %v1673, 0
  %v1861 = vsel %vm523, %v1761, 0
  %1863 = vmatprep.subr.mxu0 0.0
  %1864 = vmatpush1.xpose.msra.mxu0 0.0
  %1865 = vmatprep.subr.mxu0 0.0
  %1866 = vmatpush1.xpose.msra.mxu0 0.0
  %1867 = vmatprep.subr.mxu0 0.0
  %1868 = vmatpush1.xpose.msra.mxu0 0.0
  %1869 = vmatprep.subr.mxu0 0.0
  %1870 = vmatpush1.xpose.msra.mxu0 0.0
  %1871 = vmatprep.subr.mxu0 0.0
  %1872 = vmatpush1.xpose.msra.mxu0 0.0
  %1873 = vmatprep.subr.mxu0 0.0
  %1874 = vmatpush1.xpose.msra.mxu0 0.0
  %1875 = vmatprep.subr.mxu0 0.0
  %1876 = vmatpush1.xpose.msra.mxu0 0.0
  %1877 = vmatprep.subr.mxu0 0.0
  %1878 = vmatpush1.xpose.msra.mxu0 0.0
  %1879 = vmatprep.subr.mxu0 0.0
  %1880 = vmatpush1.xpose.msra.mxu0 0.0
  %1881 = vmatprep.subr.mxu0 0.0
  %1882 = vmatpush1.xpose.msra.mxu0 0.0
  %1883 = vmatprep.subr.mxu0 0.0
  %1884 = vmatpush1.xpose.msra.mxu0 0.0
  %1885 = vmatprep.subr.mxu0 0.0
  %1886 = vmatpush1.xpose.msra.mxu0 0.0
  %1887 = vmatprep.subr.mxu0 0.0
  %1888 = vmatpush1.xpose.msra.mxu0 0.0
  %1889 = vmatprep.subr.mxu0 0.0
  %1890 = vmatpush1.xpose.msra.mxu0 0.0
  %1891 = vmatprep.subr.mxu0 0.0
  %1892 = vmatpush1.xpose.msra.mxu0 0.0
  %1893 = vmatprep.subr.mxu0 0.0
  %1894 = vmatpush1.xpose.msra.mxu0 %v1861
  %1895 = vmatprep.subr.mxu0 0.0
  %1896 = vmatpush2.xpose.msra.mxu0 0.0
  %1897 = vmatprep.subr.mxu0 0.0
  %1898 = vmatpush2.xpose.msra.mxu0 0.0
  %1899 = vmatprep.subr.mxu0 0.0
  %1900 = vmatpush2.xpose.msra.mxu0 0.0
  %1901 = vmatprep.subr.mxu0 0.0
  %1902 = vmatpush2.xpose.msra.mxu0 0.0
  %1903 = vmatprep.subr.mxu0 0.0
  %1904 = vmatpush2.xpose.msra.mxu0 0.0
  %1905 = vmatprep.subr.mxu0 0.0
  %1906 = vmatpush2.xpose.msra.mxu0 0.0
  %1907 = vmatprep.subr.mxu0 0.0
  %1908 = vmatpush2.xpose.msra.mxu0 0.0
  %1909 = vmatprep.subr.mxu0 0.0
  %1910 = vmatpush2.xpose.msra.mxu0 0.0
  %1911 = vmatprep.subr.mxu0 0.0
  %1912 = vmatpush2.xpose.msra.mxu0 0.0
  %1913 = vmatprep.subr.mxu0 0.0
  %1914 = vmatpush2.xpose.msra.mxu0 0.0
  %1915 = vmatprep.subr.mxu0 0.0
  %1916 = vmatpush2.xpose.msra.mxu0 0.0
  %1917 = vmatprep.subr.mxu0 0.0
  %1918 = vmatpush2.xpose.msra.mxu0 0.0
  %1919 = vmatprep.subr.mxu0 0.0
  %1920 = vmatpush2.xpose.msra.mxu0 0.0
  %1921 = vmatprep.subr.mxu0 0.0
  %1922 = vmatpush2.xpose.msra.mxu0 0.0
  %1923 = vmatprep.subr.mxu0 0.0
  %1924 = vmatpush2.xpose.msra.mxu0 0.0
  %1925 = vmatprep.subr.mxu0 0.0
  %1926 = vmatpush2.xpose.msra.mxu0 0.0
  %1927 = vmatprep.mubr.f32.mxu0 0.0
  %1928 = vmatmul.mubr.f32.gmra.mxu0 %v1858
  %v1929 = vpop.f32.mrf.mxu0
  %v1930 = vadd.f32 %v248, %v1929
  %v1931 = vpop.f32.mrf.mxu0
  %1932 = vdwg.mxu0
  %v1934 = vsel %vm523, %v1678, 0
  %v1937 = vsel %vm523, %v1766, 0
  %1939 = vmatprep.subr.mxu0 0.0
  %1940 = vmatpush1.xpose.msra.mxu0 0.0
  %1941 = vmatprep.subr.mxu0 0.0
  %1942 = vmatpush1.xpose.msra.mxu0 0.0
  %1943 = vmatprep.subr.mxu0 0.0
  %1944 = vmatpush1.xpose.msra.mxu0 0.0
  %1945 = vmatprep.subr.mxu0 0.0
  %1946 = vmatpush1.xpose.msra.mxu0 0.0
  %1947 = vmatprep.subr.mxu0 0.0
  %1948 = vmatpush1.xpose.msra.mxu0 0.0
  %1949 = vmatprep.subr.mxu0 0.0
  %1950 = vmatpush1.xpose.msra.mxu0 0.0
  %1951 = vmatprep.subr.mxu0 0.0
  %1952 = vmatpush1.xpose.msra.mxu0 0.0
  %1953 = vmatprep.subr.mxu0 0.0
  %1954 = vmatpush1.xpose.msra.mxu0 0.0
  %1955 = vmatprep.subr.mxu0 0.0
  %1956 = vmatpush1.xpose.msra.mxu0 0.0
  %1957 = vmatprep.subr.mxu0 0.0
  %1958 = vmatpush1.xpose.msra.mxu0 0.0
  %1959 = vmatprep.subr.mxu0 0.0
  %1960 = vmatpush1.xpose.msra.mxu0 0.0
  %1961 = vmatprep.subr.mxu0 0.0
  %1962 = vmatpush1.xpose.msra.mxu0 0.0
  %1963 = vmatprep.subr.mxu0 0.0
  %1964 = vmatpush1.xpose.msra.mxu0 0.0
  %1965 = vmatprep.subr.mxu0 0.0
  %1966 = vmatpush1.xpose.msra.mxu0 0.0
  %1967 = vmatprep.subr.mxu0 0.0
  %1968 = vmatpush1.xpose.msra.mxu0 0.0
  %1969 = vmatprep.subr.mxu0 0.0
  %1970 = vmatpush1.xpose.msra.mxu0 %v1937
  %1971 = vmatprep.subr.mxu0 0.0
  %1972 = vmatpush2.xpose.msra.mxu0 0.0
  %1973 = vmatprep.subr.mxu0 0.0
  %1974 = vmatpush2.xpose.msra.mxu0 0.0
  %1975 = vmatprep.subr.mxu0 0.0
  %1976 = vmatpush2.xpose.msra.mxu0 0.0
  %1977 = vmatprep.subr.mxu0 0.0
  %1978 = vmatpush2.xpose.msra.mxu0 0.0
  %1979 = vmatprep.subr.mxu0 0.0
  %1980 = vmatpush2.xpose.msra.mxu0 0.0
  %1981 = vmatprep.subr.mxu0 0.0
  %1982 = vmatpush2.xpose.msra.mxu0 0.0
  %1983 = vmatprep.subr.mxu0 0.0
  %1984 = vmatpush2.xpose.msra.mxu0 0.0
  %1985 = vmatprep.subr.mxu0 0.0
  %1986 = vmatpush2.xpose.msra.mxu0 0.0
  %1987 = vmatprep.subr.mxu0 0.0
  %1988 = vmatpush2.xpose.msra.mxu0 0.0
  %1989 = vmatprep.subr.mxu0 0.0
  %1990 = vmatpush2.xpose.msra.mxu0 0.0
  %1991 = vmatprep.subr.mxu0 0.0
  %1992 = vmatpush2.xpose.msra.mxu0 0.0
  %1993 = vmatprep.subr.mxu0 0.0
  %1994 = vmatpush2.xpose.msra.mxu0 0.0
  %1995 = vmatprep.subr.mxu0 0.0
  %1996 = vmatpush2.xpose.msra.mxu0 0.0
  %1997 = vmatprep.subr.mxu0 0.0
  %1998 = vmatpush2.xpose.msra.mxu0 0.0
  %1999 = vmatprep.subr.mxu0 0.0
  %2000 = vmatpush2.xpose.msra.mxu0 0.0
  %2001 = vmatprep.subr.mxu0 0.0
  %2002 = vmatpush2.xpose.msra.mxu0 0.0
  %2003 = vmatprep.mubr.f32.mxu0 0.0
  %2004 = vmatmul.mubr.f32.gmra.mxu0 %v1934
  %v2005 = vpop.f32.mrf.mxu0
  %v2006 = vadd.f32 %v252, %v2005
  %v2007 = vpop.f32.mrf.mxu0
  %2008 = vdwg.mxu0
  %v2009 = vsel %vm523, %v1930, -inf
  %2010 = vmax.xlane.f32.xlu0 %v2009
  %v2011 = vpop.xlane.xlu0 %2010
  %v2012 = vsel %vm523, %v2006, -inf
  %2013 = vmax.xlane.f32.xlu0 %v2012
  %v2014 = vpop.xlane.xlu0 %2013
  %v2015 = vsub.f32 %v1930, %v2011
  %v2016 = vsub.f32 %v2006, %v2014
  %v2017 = vmul.f32 %v2015, 1.442695
  %v2018 = vpow.pop %v2017
  %v2019 = vmul.f32 %v2016, 1.442695
  %v2020 = vpow.pop %v2019
  %v2021 = vsel %vm523, %v2018, 0.0
  %2022 = vadd.xlane.f32.xlu0 %v2021
  %v2023 = vpop.xlane.xlu0 %2022
  %v2024 = vsel %vm523, %v2020, 0.0
  %2025 = vadd.xlane.f32.xlu0 %v2024
  %v2026 = vpop.xlane.xlu0 %2025
  %v2027 = vrcp.pop %v2023
  %v2028 = vrcp.pop %v2026
  %v2029 = vmul.f32 %v2018, %v2027
  %v2030 = vmul.f32 %v2020, %v2028
  %v2032 = vsel %vm523, %v2029, 0
  %2034 = vmatprep.subr.mxu0 0.0
  %2035 = vmatpush1.msra.mxu0 0.0
  %2036 = vmatprep.subr.mxu0 0.0
  %2037 = vmatpush1.msra.mxu0 0.0
  %2038 = vmatprep.subr.mxu0 0.0
  %2039 = vmatpush1.msra.mxu0 0.0
  %2040 = vmatprep.subr.mxu0 0.0
  %2041 = vmatpush1.msra.mxu0 0.0
  %2042 = vmatprep.subr.mxu0 0.0
  %2043 = vmatpush1.msra.mxu0 0.0
  %2044 = vmatprep.subr.mxu0 0.0
  %2045 = vmatpush1.msra.mxu0 0.0
  %2046 = vmatprep.subr.mxu0 0.0
  %2047 = vmatpush1.msra.mxu0 0.0
  %2048 = vmatprep.subr.mxu0 0.0
  %2049 = vmatpush1.msra.mxu0 0.0
  %2050 = vmatprep.subr.mxu0 0.0
  %2051 = vmatpush1.msra.mxu0 0.0
  %2052 = vmatprep.subr.mxu0 0.0
  %2053 = vmatpush1.msra.mxu0 0.0
  %2054 = vmatprep.subr.mxu0 0.0
  %2055 = vmatpush1.msra.mxu0 0.0
  %2056 = vmatprep.subr.mxu0 0.0
  %2057 = vmatpush1.msra.mxu0 0.0
  %2058 = vmatprep.subr.mxu0 0.0
  %2059 = vmatpush1.msra.mxu0 0.0
  %2060 = vmatprep.subr.mxu0 0.0
  %2061 = vmatpush1.msra.mxu0 0.0
  %2062 = vmatprep.subr.mxu0 0.0
  %2063 = vmatpush1.msra.mxu0 0.0
  %2064 = vmatprep.subr.mxu0 0.0
  %2065 = vmatpush1.msra.mxu0 %v1849
  %2066 = vmatprep.subr.mxu0 0.0
  %2067 = vmatpush2.msra.mxu0 0.0
  %2068 = vmatprep.subr.mxu0 0.0
  %2069 = vmatpush2.msra.mxu0 0.0
  %2070 = vmatprep.subr.mxu0 0.0
  %2071 = vmatpush2.msra.mxu0 0.0
  %2072 = vmatprep.subr.mxu0 0.0
  %2073 = vmatpush2.msra.mxu0 0.0
  %2074 = vmatprep.subr.mxu0 0.0
  %2075 = vmatpush2.msra.mxu0 0.0
  %2076 = vmatprep.subr.mxu0 0.0
  %2077 = vmatpush2.msra.mxu0 0.0
  %2078 = vmatprep.subr.mxu0 0.0
  %2079 = vmatpush2.msra.mxu0 0.0
  %2080 = vmatprep.subr.mxu0 0.0
  %2081 = vmatpush2.msra.mxu0 0.0
  %2082 = vmatprep.subr.mxu0 0.0
  %2083 = vmatpush2.msra.mxu0 0.0
  %2084 = vmatprep.subr.mxu0 0.0
  %2085 = vmatpush2.msra.mxu0 0.0
  %2086 = vmatprep.subr.mxu0 0.0
  %2087 = vmatpush2.msra.mxu0 0.0
  %2088 = vmatprep.subr.mxu0 0.0
  %2089 = vmatpush2.msra.mxu0 0.0
  %2090 = vmatprep.subr.mxu0 0.0
  %2091 = vmatpush2.msra.mxu0 0.0
  %2092 = vmatprep.subr.mxu0 0.0
  %2093 = vmatpush2.msra.mxu0 0.0
  %2094 = vmatprep.subr.mxu0 0.0
  %2095 = vmatpush2.msra.mxu0 0.0
  %2096 = vmatprep.subr.mxu0 0.0
  %2097 = vmatpush2.msra.mxu0 0.0
  %2098 = vmatprep.mubr.f32.mxu0 0.0
  %2099 = vmatmul.mubr.f32.gmra.mxu0 %v2032
  %v2100 = vpop.f32.mrf.mxu0
  %v2101 = vadd.f32 0.0, %v2100
  %v2102 = vpop.f32.mrf.mxu0
  %2103 = vdwg.mxu0
  %v2105 = vsel %vm523, %v2030, 0
  %2107 = vmatprep.subr.mxu0 0.0
  %2108 = vmatpush1.msra.mxu0 0.0
  %2109 = vmatprep.subr.mxu0 0.0
  %2110 = vmatpush1.msra.mxu0 0.0
  %2111 = vmatprep.subr.mxu0 0.0
  %2112 = vmatpush1.msra.mxu0 0.0
  %2113 = vmatprep.subr.mxu0 0.0
  %2114 = vmatpush1.msra.mxu0 0.0
  %2115 = vmatprep.subr.mxu0 0.0
  %2116 = vmatpush1.msra.mxu0 0.0
  %2117 = vmatprep.subr.mxu0 0.0
  %2118 = vmatpush1.msra.mxu0 0.0
  %2119 = vmatprep.subr.mxu0 0.0
  %2120 = vmatpush1.msra.mxu0 0.0
  %2121 = vmatprep.subr.mxu0 0.0
  %2122 = vmatpush1.msra.mxu0 0.0
  %2123 = vmatprep.subr.mxu0 0.0
  %2124 = vmatpush1.msra.mxu0 0.0
  %2125 = vmatprep.subr.mxu0 0.0
  %2126 = vmatpush1.msra.mxu0 0.0
  %2127 = vmatprep.subr.mxu0 0.0
  %2128 = vmatpush1.msra.mxu0 0.0
  %2129 = vmatprep.subr.mxu0 0.0
  %2130 = vmatpush1.msra.mxu0 0.0
  %2131 = vmatprep.subr.mxu0 0.0
  %2132 = vmatpush1.msra.mxu0 0.0
  %2133 = vmatprep.subr.mxu0 0.0
  %2134 = vmatpush1.msra.mxu0 0.0
  %2135 = vmatprep.subr.mxu0 0.0
  %2136 = vmatpush1.msra.mxu0 0.0
  %2137 = vmatprep.subr.mxu0 0.0
  %2138 = vmatpush1.msra.mxu0 %v1854
  %2139 = vmatprep.subr.mxu0 0.0
  %2140 = vmatpush2.msra.mxu0 0.0
  %2141 = vmatprep.subr.mxu0 0.0
  %2142 = vmatpush2.msra.mxu0 0.0
  %2143 = vmatprep.subr.mxu0 0.0
  %2144 = vmatpush2.msra.mxu0 0.0
  %2145 = vmatprep.subr.mxu0 0.0
  %2146 = vmatpush2.msra.mxu0 0.0
  %2147 = vmatprep.subr.mxu0 0.0
  %2148 = vmatpush2.msra.mxu0 0.0
  %2149 = vmatprep.subr.mxu0 0.0
  %2150 = vmatpush2.msra.mxu0 0.0
  %2151 = vmatprep.subr.mxu0 0.0
  %2152 = vmatpush2.msra.mxu0 0.0
  %2153 = vmatprep.subr.mxu0 0.0
  %2154 = vmatpush2.msra.mxu0 0.0
  %2155 = vmatprep.subr.mxu0 0.0
  %2156 = vmatpush2.msra.mxu0 0.0
  %2157 = vmatprep.subr.mxu0 0.0
  %2158 = vmatpush2.msra.mxu0 0.0
  %2159 = vmatprep.subr.mxu0 0.0
  %2160 = vmatpush2.msra.mxu0 0.0
  %2161 = vmatprep.subr.mxu0 0.0
  %2162 = vmatpush2.msra.mxu0 0.0
  %2163 = vmatprep.subr.mxu0 0.0
  %2164 = vmatpush2.msra.mxu0 0.0
  %2165 = vmatprep.subr.mxu0 0.0
  %2166 = vmatpush2.msra.mxu0 0.0
  %2167 = vmatprep.subr.mxu0 0.0
  %2168 = vmatpush2.msra.mxu0 0.0
  %2169 = vmatprep.subr.mxu0 0.0
  %2170 = vmatpush2.msra.mxu0 0.0
  %2171 = vmatprep.mubr.f32.mxu0 0.0
  %2172 = vmatmul.mubr.f32.gmra.mxu0 %v2105
  %v2173 = vpop.f32.mrf.mxu0
  %v2174 = vadd.f32 0.0, %v2173
  %v2175 = vpop.f32.mrf.mxu0
  %2176 = vdwg.mxu0
  %s2177 = scalar_lea.vmem %s7, 16
  %v2178 = vld [vmem:[%s2177] sm:$0xff]
  %v2180 = vsel %vm523, %v2101, 0
  %v2183 = vsel %vm523, %v2174, 0
  %2185 = vmatprep.subr.mxu0 0.0
  %2186 = vmatpush1.msra.mxu0 0.0
  %2187 = vmatprep.subr.mxu0 0.0
  %2188 = vmatpush1.msra.mxu0 0.0
  %2189 = vmatprep.subr.mxu0 0.0
  %2190 = vmatpush1.msra.mxu0 0.0
  %2191 = vmatprep.subr.mxu0 0.0
  %2192 = vmatpush1.msra.mxu0 0.0
  %2193 = vmatprep.subr.mxu0 0.0
  %2194 = vmatpush1.msra.mxu0 0.0
  %2195 = vmatprep.subr.mxu0 0.0
  %2196 = vmatpush1.msra.mxu0 0.0
  %2197 = vmatprep.subr.mxu0 0.0
  %2198 = vmatpush1.msra.mxu0 0.0
  %2199 = vmatprep.subr.mxu0 0.0
  %2200 = vmatpush1.msra.mxu0 0.0
  %2201 = vmatprep.subr.mxu0 0.0
  %2202 = vmatpush1.msra.mxu0 0.0
  %2203 = vmatprep.subr.mxu0 0.0
  %2204 = vmatpush1.msra.mxu0 0.0
  %2205 = vmatprep.subr.mxu0 0.0
  %2206 = vmatpush1.msra.mxu0 0.0
  %2207 = vmatprep.subr.mxu0 0.0
  %2208 = vmatpush1.msra.mxu0 0.0
  %2209 = vmatprep.subr.mxu0 0.0
  %2210 = vmatpush1.msra.mxu0 0.0
  %2211 = vmatprep.subr.mxu0 0.0
  %2212 = vmatpush1.msra.mxu0 0.0
  %2213 = vmatprep.subr.mxu0 0.0
  %2214 = vmatpush1.msra.mxu0 0.0
  %2215 = vmatprep.subr.mxu0 0.0
  %2216 = vmatpush1.msra.mxu0 %v2178
  %2217 = vmatprep.subr.mxu0 0.0
  %2218 = vmatpush2.msra.mxu0 0.0
  %2219 = vmatprep.subr.mxu0 0.0
  %2220 = vmatpush2.msra.mxu0 0.0
  %2221 = vmatprep.subr.mxu0 0.0
  %2222 = vmatpush2.msra.mxu0 0.0
  %2223 = vmatprep.subr.mxu0 0.0
  %2224 = vmatpush2.msra.mxu0 0.0
  %2225 = vmatprep.subr.mxu0 0.0
  %2226 = vmatpush2.msra.mxu0 0.0
  %2227 = vmatprep.subr.mxu0 0.0
  %2228 = vmatpush2.msra.mxu0 0.0
  %2229 = vmatprep.subr.mxu0 0.0
  %2230 = vmatpush2.msra.mxu0 0.0
  %2231 = vmatprep.subr.mxu0 0.0
  %2232 = vmatpush2.msra.mxu0 0.0
  %2233 = vmatprep.subr.mxu0 0.0
  %2234 = vmatpush2.msra.mxu0 0.0
  %2235 = vmatprep.subr.mxu0 0.0
  %2236 = vmatpush2.msra.mxu0 0.0
  %2237 = vmatprep.subr.mxu0 0.0
  %2238 = vmatpush2.msra.mxu0 0.0
  %2239 = vmatprep.subr.mxu0 0.0
  %2240 = vmatpush2.msra.mxu0 0.0
  %2241 = vmatprep.subr.mxu0 0.0
  %2242 = vmatpush2.msra.mxu0 0.0
  %2243 = vmatprep.subr.mxu0 0.0
  %2244 = vmatpush2.msra.mxu0 0.0
  %2245 = vmatprep.subr.mxu0 0.0
  %2246 = vmatpush2.msra.mxu0 0.0
  %2247 = vmatprep.subr.mxu0 0.0
  %2248 = vmatpush2.msra.mxu0 0.0
  %2249 = vmatprep.mubr.f32.mxu0 0.0
  %2250 = vmatmul.mubr.f32.gmra.mxu0 %v2180
  %v2251 = vpop.f32.mrf.mxu0
  %v2252 = vadd.f32 0.0, %v2251
  %v2253 = vpop.f32.mrf.mxu0
  %2254 = vmatprep.mubr.f32.mxu0 0.0
  %2255 = vmatmul.mubr.f32.gmra.mxu0 %v2183
  %v2256 = vpop.f32.mrf.mxu0
  %v2257 = vadd.f32 0.0, %v2256
  %v2258 = vpop.f32.mrf.mxu0
  %2259 = vdwg.mxu0
  %v2260 = vadd.f32 %v1585, %v2252
  %v2261 = vadd.f32 %v1590, %v2257
  %s2262 = scalar_lea.vmem %s5, 96
  %v2263 = vld [vmem:[%s2262] sm:$0xff]
  %v2264 = vld [vmem:[%s2262 + $0x8] sm:$0xff]
  %v2265 = vld [vmem:[%s2262 + $0x10] sm:$0xff]
  %v2266 = vld [vmem:[%s2262 + $0x18] sm:$0xff]
  %s2267 = scalar_lea.vmem %s6, 3
  %v2268 = vld [vmem:[%s2267] sm:$0x1]
  %v2270 = vlaneseq
  %v2271 = vshrl.u32 %v2270, 7
  %v2272 = vsub.s32 0, %v2271
  %v2273 = vrot.slane %v2268, %v2272
  %2275 = vmatprep.subr.mxu0 0.0
  %2276 = vmatpush1.msra.mxu0 0.0
  %2277 = vmatprep.subr.mxu0 0.0
  %2278 = vmatpush1.msra.mxu0 0.0
  %2279 = vmatprep.subr.mxu0 0.0
  %2280 = vmatpush1.msra.mxu0 0.0
  %2281 = vmatprep.subr.mxu0 0.0
  %2282 = vmatpush1.msra.mxu0 0.0
  %2283 = vmatprep.subr.mxu0 0.0
  %2284 = vmatpush1.msra.mxu0 0.0
  %2285 = vmatprep.subr.mxu0 0.0
  %2286 = vmatpush1.msra.mxu0 0.0
  %2287 = vmatprep.subr.mxu0 0.0
  %2288 = vmatpush1.msra.mxu0 0.0
  %2289 = vmatprep.subr.mxu0 0.0
  %2290 = vmatpush1.msra.mxu0 0.0
  %2291 = vmatprep.subr.mxu0 0.0
  %2292 = vmatpush1.msra.mxu0 0.0
  %2293 = vmatprep.subr.mxu0 0.0
  %2294 = vmatpush1.msra.mxu0 0.0
  %2295 = vmatprep.subr.mxu0 0.0
  %2296 = vmatpush1.msra.mxu0 0.0
  %2297 = vmatprep.subr.mxu0 0.0
  %2298 = vmatpush1.msra.mxu0 0.0
  %2299 = vmatprep.subr.mxu0 0.0
  %2300 = vmatpush1.msra.mxu0 %v2266
  %2301 = vmatprep.subr.mxu0 0.0
  %2302 = vmatpush1.msra.mxu0 %v2265
  %2303 = vmatprep.subr.mxu0 0.0
  %2304 = vmatpush1.msra.mxu0 %v2264
  %2305 = vmatprep.subr.mxu0 0.0
  %2306 = vmatpush1.msra.mxu0 %v2263
  %2307 = vmatprep.subr.mxu0 0.0
  %2308 = vmatpush2.msra.mxu0 0.0
  %2309 = vmatprep.subr.mxu0 0.0
  %2310 = vmatpush2.msra.mxu0 0.0
  %2311 = vmatprep.subr.mxu0 0.0
  %2312 = vmatpush2.msra.mxu0 0.0
  %2313 = vmatprep.subr.mxu0 0.0
  %2314 = vmatpush2.msra.mxu0 0.0
  %2315 = vmatprep.subr.mxu0 0.0
  %2316 = vmatpush2.msra.mxu0 0.0
  %2317 = vmatprep.subr.mxu0 0.0
  %2318 = vmatpush2.msra.mxu0 0.0
  %2319 = vmatprep.subr.mxu0 0.0
  %2320 = vmatpush2.msra.mxu0 0.0
  %2321 = vmatprep.subr.mxu0 0.0
  %2322 = vmatpush2.msra.mxu0 0.0
  %2323 = vmatprep.subr.mxu0 0.0
  %2324 = vmatpush2.msra.mxu0 0.0
  %2325 = vmatprep.subr.mxu0 0.0
  %2326 = vmatpush2.msra.mxu0 0.0
  %2327 = vmatprep.subr.mxu0 0.0
  %2328 = vmatpush2.msra.mxu0 0.0
  %2329 = vmatprep.subr.mxu0 0.0
  %2330 = vmatpush2.msra.mxu0 0.0
  %2331 = vmatprep.subr.mxu0 0.0
  %2332 = vmatpush2.msra.mxu0 0.0
  %2333 = vmatprep.subr.mxu0 0.0
  %2334 = vmatpush2.msra.mxu0 0.0
  %2335 = vmatprep.subr.mxu0 0.0
  %2336 = vmatpush2.msra.mxu0 0.0
  %2337 = vmatprep.subr.mxu0 0.0
  %2338 = vmatpush2.msra.mxu0 0.0
  %2339 = vmatprep.mubr.f32.mxu0 0.0
  %2340 = vmatmul.mubr.f32.gmra.mxu0 %v267
  %v2341 = vpop.f32.mrf.mxu0
  %v2342 = vadd.f32 %v2273, %v2341
  %v2343 = vpop.f32.mrf.mxu0
  %2344 = vmatprep.mubr.f32.mxu0 0.0
  %2345 = vmatmul.mubr.f32.gmra.mxu0 %v270
  %v2346 = vpop.f32.mrf.mxu0
  %v2347 = vadd.f32 %v2273, %v2346
  %v2348 = vpop.f32.mrf.mxu0
  %2349 = vdwg.mxu0
  %s2350 = scalar_lea.vmem %s5, 224
  %v2351 = vld [vmem:[%s2350] sm:$0xff]
  %v2352 = vld [vmem:[%s2350 + $0x8] sm:$0xff]
  %v2353 = vld [vmem:[%s2350 + $0x10] sm:$0xff]
  %v2354 = vld [vmem:[%s2350 + $0x18] sm:$0xff]
  %s2355 = scalar_lea.vmem %s6, 7
  %v2356 = vld [vmem:[%s2355] sm:$0x1]
  %v2358 = vlaneseq
  %v2359 = vshrl.u32 %v2358, 7
  %v2360 = vsub.s32 0, %v2359
  %v2361 = vrot.slane %v2356, %v2360
  %2363 = vmatprep.subr.mxu0 0.0
  %2364 = vmatpush1.msra.mxu0 0.0
  %2365 = vmatprep.subr.mxu0 0.0
  %2366 = vmatpush1.msra.mxu0 0.0
  %2367 = vmatprep.subr.mxu0 0.0
  %2368 = vmatpush1.msra.mxu0 0.0
  %2369 = vmatprep.subr.mxu0 0.0
  %2370 = vmatpush1.msra.mxu0 0.0
  %2371 = vmatprep.subr.mxu0 0.0
  %2372 = vmatpush1.msra.mxu0 0.0
  %2373 = vmatprep.subr.mxu0 0.0
  %2374 = vmatpush1.msra.mxu0 0.0
  %2375 = vmatprep.subr.mxu0 0.0
  %2376 = vmatpush1.msra.mxu0 0.0
  %2377 = vmatprep.subr.mxu0 0.0
  %2378 = vmatpush1.msra.mxu0 0.0
  %2379 = vmatprep.subr.mxu0 0.0
  %2380 = vmatpush1.msra.mxu0 0.0
  %2381 = vmatprep.subr.mxu0 0.0
  %2382 = vmatpush1.msra.mxu0 0.0
  %2383 = vmatprep.subr.mxu0 0.0
  %2384 = vmatpush1.msra.mxu0 0.0
  %2385 = vmatprep.subr.mxu0 0.0
  %2386 = vmatpush1.msra.mxu0 0.0
  %2387 = vmatprep.subr.mxu0 0.0
  %2388 = vmatpush1.msra.mxu0 %v2354
  %2389 = vmatprep.subr.mxu0 0.0
  %2390 = vmatpush1.msra.mxu0 %v2353
  %2391 = vmatprep.subr.mxu0 0.0
  %2392 = vmatpush1.msra.mxu0 %v2352
  %2393 = vmatprep.subr.mxu0 0.0
  %2394 = vmatpush1.msra.mxu0 %v2351
  %2395 = vmatprep.subr.mxu0 0.0
  %2396 = vmatpush2.msra.mxu0 0.0
  %2397 = vmatprep.subr.mxu0 0.0
  %2398 = vmatpush2.msra.mxu0 0.0
  %2399 = vmatprep.subr.mxu0 0.0
  %2400 = vmatpush2.msra.mxu0 0.0
  %2401 = vmatprep.subr.mxu0 0.0
  %2402 = vmatpush2.msra.mxu0 0.0
  %2403 = vmatprep.subr.mxu0 0.0
  %2404 = vmatpush2.msra.mxu0 0.0
  %2405 = vmatprep.subr.mxu0 0.0
  %2406 = vmatpush2.msra.mxu0 0.0
  %2407 = vmatprep.subr.mxu0 0.0
  %2408 = vmatpush2.msra.mxu0 0.0
  %2409 = vmatprep.subr.mxu0 0.0
  %2410 = vmatpush2.msra.mxu0 0.0
  %2411 = vmatprep.subr.mxu0 0.0
  %2412 = vmatpush2.msra.mxu0 0.0
  %2413 = vmatprep.subr.mxu0 0.0
  %2414 = vmatpush2.msra.mxu0 0.0
  %2415 = vmatprep.subr.mxu0 0.0
  %2416 = vmatpush2.msra.mxu0 0.0
  %2417 = vmatprep.subr.mxu0 0.0
  %2418 = vmatpush2.msra.mxu0 0.0
  %2419 = vmatprep.subr.mxu0 0.0
  %2420 = vmatpush2.msra.mxu0 0.0
  %2421 = vmatprep.subr.mxu0 0.0
  %2422 = vmatpush2.msra.mxu0 0.0
  %2423 = vmatprep.subr.mxu0 0.0
  %2424 = vmatpush2.msra.mxu0 0.0
  %2425 = vmatprep.subr.mxu0 0.0
  %2426 = vmatpush2.msra.mxu0 0.0
  %2427 = vmatprep.mubr.f32.mxu0 0.0
  %2428 = vmatmul.mubr.f32.gmra.mxu0 %v267
  %v2429 = vpop.f32.mrf.mxu0
  %v2430 = vadd.f32 %v2361, %v2429
  %v2431 = vpop.f32.mrf.mxu0
  %2432 = vmatprep.mubr.f32.mxu0 0.0
  %2433 = vmatmul.mubr.f32.gmra.mxu0 %v270
  %v2434 = vpop.f32.mrf.mxu0
  %v2435 = vadd.f32 %v2361, %v2434
  %v2436 = vpop.f32.mrf.mxu0
  %2437 = vdwg.mxu0
  %s2438 = scalar_lea.vmem %s5, 352
  %v2439 = vld [vmem:[%s2438] sm:$0xff]
  %v2440 = vld [vmem:[%s2438 + $0x8] sm:$0xff]
  %v2441 = vld [vmem:[%s2438 + $0x10] sm:$0xff]
  %v2442 = vld [vmem:[%s2438 + $0x18] sm:$0xff]
  %s2443 = scalar_lea.vmem %s6, 11
  %v2444 = vld [vmem:[%s2443] sm:$0x1]
  %v2446 = vlaneseq
  %v2447 = vshrl.u32 %v2446, 7
  %v2448 = vsub.s32 0, %v2447
  %v2449 = vrot.slane %v2444, %v2448
  %2451 = vmatprep.subr.mxu0 0.0
  %2452 = vmatpush1.msra.mxu0 0.0
  %2453 = vmatprep.subr.mxu0 0.0
  %2454 = vmatpush1.msra.mxu0 0.0
  %2455 = vmatprep.subr.mxu0 0.0
  %2456 = vmatpush1.msra.mxu0 0.0
  %2457 = vmatprep.subr.mxu0 0.0
  %2458 = vmatpush1.msra.mxu0 0.0
  %2459 = vmatprep.subr.mxu0 0.0
  %2460 = vmatpush1.msra.mxu0 0.0
  %2461 = vmatprep.subr.mxu0 0.0
  %2462 = vmatpush1.msra.mxu0 0.0
  %2463 = vmatprep.subr.mxu0 0.0
  %2464 = vmatpush1.msra.mxu0 0.0
  %2465 = vmatprep.subr.mxu0 0.0
  %2466 = vmatpush1.msra.mxu0 0.0
  %2467 = vmatprep.subr.mxu0 0.0
  %2468 = vmatpush1.msra.mxu0 0.0
  %2469 = vmatprep.subr.mxu0 0.0
  %2470 = vmatpush1.msra.mxu0 0.0
  %2471 = vmatprep.subr.mxu0 0.0
  %2472 = vmatpush1.msra.mxu0 0.0
  %2473 = vmatprep.subr.mxu0 0.0
  %2474 = vmatpush1.msra.mxu0 0.0
  %2475 = vmatprep.subr.mxu0 0.0
  %2476 = vmatpush1.msra.mxu0 %v2442
  %2477 = vmatprep.subr.mxu0 0.0
  %2478 = vmatpush1.msra.mxu0 %v2441
  %2479 = vmatprep.subr.mxu0 0.0
  %2480 = vmatpush1.msra.mxu0 %v2440
  %2481 = vmatprep.subr.mxu0 0.0
  %2482 = vmatpush1.msra.mxu0 %v2439
  %2483 = vmatprep.subr.mxu0 0.0
  %2484 = vmatpush2.msra.mxu0 0.0
  %2485 = vmatprep.subr.mxu0 0.0
  %2486 = vmatpush2.msra.mxu0 0.0
  %2487 = vmatprep.subr.mxu0 0.0
  %2488 = vmatpush2.msra.mxu0 0.0
  %2489 = vmatprep.subr.mxu0 0.0
  %2490 = vmatpush2.msra.mxu0 0.0
  %2491 = vmatprep.subr.mxu0 0.0
  %2492 = vmatpush2.msra.mxu0 0.0
  %2493 = vmatprep.subr.mxu0 0.0
  %2494 = vmatpush2.msra.mxu0 0.0
  %2495 = vmatprep.subr.mxu0 0.0
  %2496 = vmatpush2.msra.mxu0 0.0
  %2497 = vmatprep.subr.mxu0 0.0
  %2498 = vmatpush2.msra.mxu0 0.0
  %2499 = vmatprep.subr.mxu0 0.0
  %2500 = vmatpush2.msra.mxu0 0.0
  %2501 = vmatprep.subr.mxu0 0.0
  %2502 = vmatpush2.msra.mxu0 0.0
  %2503 = vmatprep.subr.mxu0 0.0
  %2504 = vmatpush2.msra.mxu0 0.0
  %2505 = vmatprep.subr.mxu0 0.0
  %2506 = vmatpush2.msra.mxu0 0.0
  %2507 = vmatprep.subr.mxu0 0.0
  %2508 = vmatpush2.msra.mxu0 0.0
  %2509 = vmatprep.subr.mxu0 0.0
  %2510 = vmatpush2.msra.mxu0 0.0
  %2511 = vmatprep.subr.mxu0 0.0
  %2512 = vmatpush2.msra.mxu0 0.0
  %2513 = vmatprep.subr.mxu0 0.0
  %2514 = vmatpush2.msra.mxu0 0.0
  %2515 = vmatprep.mubr.f32.mxu0 0.0
  %2516 = vmatmul.mubr.f32.gmra.mxu0 %v267
  %v2517 = vpop.f32.mrf.mxu0
  %v2518 = vadd.f32 %v2449, %v2517
  %v2519 = vpop.f32.mrf.mxu0
  %2520 = vmatprep.mubr.f32.mxu0 0.0
  %2521 = vmatmul.mubr.f32.gmra.mxu0 %v270
  %v2522 = vpop.f32.mrf.mxu0
  %v2523 = vadd.f32 %v2449, %v2522
  %v2524 = vpop.f32.mrf.mxu0
  %2525 = vdwg.mxu0
  %v2527 = vsel %vm523, %v2342, 0
  %v2530 = vsel %vm523, %v2430, 0
  %2532 = vmatprep.subr.mxu0 0.0
  %2533 = vmatpush1.xpose.msra.mxu0 0.0
  %2534 = vmatprep.subr.mxu0 0.0
  %2535 = vmatpush1.xpose.msra.mxu0 0.0
  %2536 = vmatprep.subr.mxu0 0.0
  %2537 = vmatpush1.xpose.msra.mxu0 0.0
  %2538 = vmatprep.subr.mxu0 0.0
  %2539 = vmatpush1.xpose.msra.mxu0 0.0
  %2540 = vmatprep.subr.mxu0 0.0
  %2541 = vmatpush1.xpose.msra.mxu0 0.0
  %2542 = vmatprep.subr.mxu0 0.0
  %2543 = vmatpush1.xpose.msra.mxu0 0.0
  %2544 = vmatprep.subr.mxu0 0.0
  %2545 = vmatpush1.xpose.msra.mxu0 0.0
  %2546 = vmatprep.subr.mxu0 0.0
  %2547 = vmatpush1.xpose.msra.mxu0 0.0
  %2548 = vmatprep.subr.mxu0 0.0
  %2549 = vmatpush1.xpose.msra.mxu0 0.0
  %2550 = vmatprep.subr.mxu0 0.0
  %2551 = vmatpush1.xpose.msra.mxu0 0.0
  %2552 = vmatprep.subr.mxu0 0.0
  %2553 = vmatpush1.xpose.msra.mxu0 0.0
  %2554 = vmatprep.subr.mxu0 0.0
  %2555 = vmatpush1.xpose.msra.mxu0 0.0
  %2556 = vmatprep.subr.mxu0 0.0
  %2557 = vmatpush1.xpose.msra.mxu0 0.0
  %2558 = vmatprep.subr.mxu0 0.0
  %2559 = vmatpush1.xpose.msra.mxu0 0.0
  %2560 = vmatprep.subr.mxu0 0.0
  %2561 = vmatpush1.xpose.msra.mxu0 0.0
  %2562 = vmatprep.subr.mxu0 0.0
  %2563 = vmatpush1.xpose.msra.mxu0 %v2530
  %2564 = vmatprep.subr.mxu0 0.0
  %2565 = vmatpush2.xpose.msra.mxu0 0.0
  %2566 = vmatprep.subr.mxu0 0.0
  %2567 = vmatpush2.xpose.msra.mxu0 0.0
  %2568 = vmatprep.subr.mxu0 0.0
  %2569 = vmatpush2.xpose.msra.mxu0 0.0
  %2570 = vmatprep.subr.mxu0 0.0
  %2571 = vmatpush2.xpose.msra.mxu0 0.0
  %2572 = vmatprep.subr.mxu0 0.0
  %2573 = vmatpush2.xpose.msra.mxu0 0.0
  %2574 = vmatprep.subr.mxu0 0.0
  %2575 = vmatpush2.xpose.msra.mxu0 0.0
  %2576 = vmatprep.subr.mxu0 0.0
  %2577 = vmatpush2.xpose.msra.mxu0 0.0
  %2578 = vmatprep.subr.mxu0 0.0
  %2579 = vmatpush2.xpose.msra.mxu0 0.0
  %2580 = vmatprep.subr.mxu0 0.0
  %2581 = vmatpush2.xpose.msra.mxu0 0.0
  %2582 = vmatprep.subr.mxu0 0.0
  %2583 = vmatpush2.xpose.msra.mxu0 0.0
  %2584 = vmatprep.subr.mxu0 0.0
  %2585 = vmatpush2.xpose.msra.mxu0 0.0
  %2586 = vmatprep.subr.mxu0 0.0
  %2587 = vmatpush2.xpose.msra.mxu0 0.0
  %2588 = vmatprep.subr.mxu0 0.0
  %2589 = vmatpush2.xpose.msra.mxu0 0.0
  %2590 = vmatprep.subr.mxu0 0.0
  %2591 = vmatpush2.xpose.msra.mxu0 0.0
  %2592 = vmatprep.subr.mxu0 0.0
  %2593 = vmatpush2.xpose.msra.mxu0 0.0
  %2594 = vmatprep.subr.mxu0 0.0
  %2595 = vmatpush2.xpose.msra.mxu0 0.0
  %2596 = vmatprep.mubr.f32.mxu0 0.0
  %2597 = vmatmul.mubr.f32.gmra.mxu0 %v2527
  %v2598 = vpop.f32.mrf.mxu0
  %v2599 = vadd.f32 %v248, %v2598
  %v2600 = vpop.f32.mrf.mxu0
  %2601 = vdwg.mxu0
  %v2603 = vsel %vm523, %v2347, 0
  %v2606 = vsel %vm523, %v2435, 0
  %2608 = vmatprep.subr.mxu0 0.0
  %2609 = vmatpush1.xpose.msra.mxu0 0.0
  %2610 = vmatprep.subr.mxu0 0.0
  %2611 = vmatpush1.xpose.msra.mxu0 0.0
  %2612 = vmatprep.subr.mxu0 0.0
  %2613 = vmatpush1.xpose.msra.mxu0 0.0
  %2614 = vmatprep.subr.mxu0 0.0
  %2615 = vmatpush1.xpose.msra.mxu0 0.0
  %2616 = vmatprep.subr.mxu0 0.0
  %2617 = vmatpush1.xpose.msra.mxu0 0.0
  %2618 = vmatprep.subr.mxu0 0.0
  %2619 = vmatpush1.xpose.msra.mxu0 0.0
  %2620 = vmatprep.subr.mxu0 0.0
  %2621 = vmatpush1.xpose.msra.mxu0 0.0
  %2622 = vmatprep.subr.mxu0 0.0
  %2623 = vmatpush1.xpose.msra.mxu0 0.0
  %2624 = vmatprep.subr.mxu0 0.0
  %2625 = vmatpush1.xpose.msra.mxu0 0.0
  %2626 = vmatprep.subr.mxu0 0.0
  %2627 = vmatpush1.xpose.msra.mxu0 0.0
  %2628 = vmatprep.subr.mxu0 0.0
  %2629 = vmatpush1.xpose.msra.mxu0 0.0
  %2630 = vmatprep.subr.mxu0 0.0
  %2631 = vmatpush1.xpose.msra.mxu0 0.0
  %2632 = vmatprep.subr.mxu0 0.0
  %2633 = vmatpush1.xpose.msra.mxu0 0.0
  %2634 = vmatprep.subr.mxu0 0.0
  %2635 = vmatpush1.xpose.msra.mxu0 0.0
  %2636 = vmatprep.subr.mxu0 0.0
  %2637 = vmatpush1.xpose.msra.mxu0 0.0
  %2638 = vmatprep.subr.mxu0 0.0
  %2639 = vmatpush1.xpose.msra.mxu0 %v2606
  %2640 = vmatprep.subr.mxu0 0.0
  %2641 = vmatpush2.xpose.msra.mxu0 0.0
  %2642 = vmatprep.subr.mxu0 0.0
  %2643 = vmatpush2.xpose.msra.mxu0 0.0
  %2644 = vmatprep.subr.mxu0 0.0
  %2645 = vmatpush2.xpose.msra.mxu0 0.0
  %2646 = vmatprep.subr.mxu0 0.0
  %2647 = vmatpush2.xpose.msra.mxu0 0.0
  %2648 = vmatprep.subr.mxu0 0.0
  %2649 = vmatpush2.xpose.msra.mxu0 0.0
  %2650 = vmatprep.subr.mxu0 0.0
  %2651 = vmatpush2.xpose.msra.mxu0 0.0
  %2652 = vmatprep.subr.mxu0 0.0
  %2653 = vmatpush2.xpose.msra.mxu0 0.0
  %2654 = vmatprep.subr.mxu0 0.0
  %2655 = vmatpush2.xpose.msra.mxu0 0.0
  %2656 = vmatprep.subr.mxu0 0.0
  %2657 = vmatpush2.xpose.msra.mxu0 0.0
  %2658 = vmatprep.subr.mxu0 0.0
  %2659 = vmatpush2.xpose.msra.mxu0 0.0
  %2660 = vmatprep.subr.mxu0 0.0
  %2661 = vmatpush2.xpose.msra.mxu0 0.0
  %2662 = vmatprep.subr.mxu0 0.0
  %2663 = vmatpush2.xpose.msra.mxu0 0.0
  %2664 = vmatprep.subr.mxu0 0.0
  %2665 = vmatpush2.xpose.msra.mxu0 0.0
  %2666 = vmatprep.subr.mxu0 0.0
  %2667 = vmatpush2.xpose.msra.mxu0 0.0
  %2668 = vmatprep.subr.mxu0 0.0
  %2669 = vmatpush2.xpose.msra.mxu0 0.0
  %2670 = vmatprep.subr.mxu0 0.0
  %2671 = vmatpush2.xpose.msra.mxu0 0.0
  %2672 = vmatprep.mubr.f32.mxu0 0.0
  %2673 = vmatmul.mubr.f32.gmra.mxu0 %v2603
  %v2674 = vpop.f32.mrf.mxu0
  %v2675 = vadd.f32 %v252, %v2674
  %v2676 = vpop.f32.mrf.mxu0
  %2677 = vdwg.mxu0
  %v2678 = vsel %vm523, %v2599, -inf
  %2679 = vmax.xlane.f32.xlu0 %v2678
  %v2680 = vpop.xlane.xlu0 %2679
  %v2681 = vsel %vm523, %v2675, -inf
  %2682 = vmax.xlane.f32.xlu0 %v2681
  %v2683 = vpop.xlane.xlu0 %2682
  %v2684 = vsub.f32 %v2599, %v2680
  %v2685 = vsub.f32 %v2675, %v2683
  %v2686 = vmul.f32 %v2684, 1.442695
  %v2687 = vpow.pop %v2686
  %v2688 = vmul.f32 %v2685, 1.442695
  %v2689 = vpow.pop %v2688
  %v2690 = vsel %vm523, %v2687, 0.0
  %2691 = vadd.xlane.f32.xlu0 %v2690
  %v2692 = vpop.xlane.xlu0 %2691
  %v2693 = vsel %vm523, %v2689, 0.0
  %2694 = vadd.xlane.f32.xlu0 %v2693
  %v2695 = vpop.xlane.xlu0 %2694
  %v2696 = vrcp.pop %v2692
  %v2697 = vrcp.pop %v2695
  %v2698 = vmul.f32 %v2687, %v2696
  %v2699 = vmul.f32 %v2689, %v2697
  %v2701 = vsel %vm523, %v2698, 0
  %2703 = vmatprep.subr.mxu0 0.0
  %2704 = vmatpush1.msra.mxu0 0.0
  %2705 = vmatprep.subr.mxu0 0.0
  %2706 = vmatpush1.msra.mxu0 0.0
  %2707 = vmatprep.subr.mxu0 0.0
  %2708 = vmatpush1.msra.mxu0 0.0
  %2709 = vmatprep.subr.mxu0 0.0
  %2710 = vmatpush1.msra.mxu0 0.0
  %2711 = vmatprep.subr.mxu0 0.0
  %2712 = vmatpush1.msra.mxu0 0.0
  %2713 = vmatprep.subr.mxu0 0.0
  %2714 = vmatpush1.msra.mxu0 0.0
  %2715 = vmatprep.subr.mxu0 0.0
  %2716 = vmatpush1.msra.mxu0 0.0
  %2717 = vmatprep.subr.mxu0 0.0
  %2718 = vmatpush1.msra.mxu0 0.0
  %2719 = vmatprep.subr.mxu0 0.0
  %2720 = vmatpush1.msra.mxu0 0.0
  %2721 = vmatprep.subr.mxu0 0.0
  %2722 = vmatpush1.msra.mxu0 0.0
  %2723 = vmatprep.subr.mxu0 0.0
  %2724 = vmatpush1.msra.mxu0 0.0
  %2725 = vmatprep.subr.mxu0 0.0
  %2726 = vmatpush1.msra.mxu0 0.0
  %2727 = vmatprep.subr.mxu0 0.0
  %2728 = vmatpush1.msra.mxu0 0.0
  %2729 = vmatprep.subr.mxu0 0.0
  %2730 = vmatpush1.msra.mxu0 0.0
  %2731 = vmatprep.subr.mxu0 0.0
  %2732 = vmatpush1.msra.mxu0 0.0
  %2733 = vmatprep.subr.mxu0 0.0
  %2734 = vmatpush1.msra.mxu0 %v2518
  %2735 = vmatprep.subr.mxu0 0.0
  %2736 = vmatpush2.msra.mxu0 0.0
  %2737 = vmatprep.subr.mxu0 0.0
  %2738 = vmatpush2.msra.mxu0 0.0
  %2739 = vmatprep.subr.mxu0 0.0
  %2740 = vmatpush2.msra.mxu0 0.0
  %2741 = vmatprep.subr.mxu0 0.0
  %2742 = vmatpush2.msra.mxu0 0.0
  %2743 = vmatprep.subr.mxu0 0.0
  %2744 = vmatpush2.msra.mxu0 0.0
  %2745 = vmatprep.subr.mxu0 0.0
  %2746 = vmatpush2.msra.mxu0 0.0
  %2747 = vmatprep.subr.mxu0 0.0
  %2748 = vmatpush2.msra.mxu0 0.0
  %2749 = vmatprep.subr.mxu0 0.0
  %2750 = vmatpush2.msra.mxu0 0.0
  %2751 = vmatprep.subr.mxu0 0.0
  %2752 = vmatpush2.msra.mxu0 0.0
  %2753 = vmatprep.subr.mxu0 0.0
  %2754 = vmatpush2.msra.mxu0 0.0
  %2755 = vmatprep.subr.mxu0 0.0
  %2756 = vmatpush2.msra.mxu0 0.0
  %2757 = vmatprep.subr.mxu0 0.0
  %2758 = vmatpush2.msra.mxu0 0.0
  %2759 = vmatprep.subr.mxu0 0.0
  %2760 = vmatpush2.msra.mxu0 0.0
  %2761 = vmatprep.subr.mxu0 0.0
  %2762 = vmatpush2.msra.mxu0 0.0
  %2763 = vmatprep.subr.mxu0 0.0
  %2764 = vmatpush2.msra.mxu0 0.0
  %2765 = vmatprep.subr.mxu0 0.0
  %2766 = vmatpush2.msra.mxu0 0.0
  %2767 = vmatprep.mubr.f32.mxu0 0.0
  %2768 = vmatmul.mubr.f32.gmra.mxu0 %v2701
  %v2769 = vpop.f32.mrf.mxu0
  %v2770 = vadd.f32 0.0, %v2769
  %v2771 = vpop.f32.mrf.mxu0
  %2772 = vdwg.mxu0
  %v2774 = vsel %vm523, %v2699, 0
  %2776 = vmatprep.subr.mxu0 0.0
  %2777 = vmatpush1.msra.mxu0 0.0
  %2778 = vmatprep.subr.mxu0 0.0
  %2779 = vmatpush1.msra.mxu0 0.0
  %2780 = vmatprep.subr.mxu0 0.0
  %2781 = vmatpush1.msra.mxu0 0.0
  %2782 = vmatprep.subr.mxu0 0.0
  %2783 = vmatpush1.msra.mxu0 0.0
  %2784 = vmatprep.subr.mxu0 0.0
  %2785 = vmatpush1.msra.mxu0 0.0
  %2786 = vmatprep.subr.mxu0 0.0
  %2787 = vmatpush1.msra.mxu0 0.0
  %2788 = vmatprep.subr.mxu0 0.0
  %2789 = vmatpush1.msra.mxu0 0.0
  %2790 = vmatprep.subr.mxu0 0.0
  %2791 = vmatpush1.msra.mxu0 0.0
  %2792 = vmatprep.subr.mxu0 0.0
  %2793 = vmatpush1.msra.mxu0 0.0
  %2794 = vmatprep.subr.mxu0 0.0
  %2795 = vmatpush1.msra.mxu0 0.0
  %2796 = vmatprep.subr.mxu0 0.0
  %2797 = vmatpush1.msra.mxu0 0.0
  %2798 = vmatprep.subr.mxu0 0.0
  %2799 = vmatpush1.msra.mxu0 0.0
  %2800 = vmatprep.subr.mxu0 0.0
  %2801 = vmatpush1.msra.mxu0 0.0
  %2802 = vmatprep.subr.mxu0 0.0
  %2803 = vmatpush1.msra.mxu0 0.0
  %2804 = vmatprep.subr.mxu0 0.0
  %2805 = vmatpush1.msra.mxu0 0.0
  %2806 = vmatprep.subr.mxu0 0.0
  %2807 = vmatpush1.msra.mxu0 %v2523
  %2808 = vmatprep.subr.mxu0 0.0
  %2809 = vmatpush2.msra.mxu0 0.0
  %2810 = vmatprep.subr.mxu0 0.0
  %2811 = vmatpush2.msra.mxu0 0.0
  %2812 = vmatprep.subr.mxu0 0.0
  %2813 = vmatpush2.msra.mxu0 0.0
  %2814 = vmatprep.subr.mxu0 0.0
  %2815 = vmatpush2.msra.mxu0 0.0
  %2816 = vmatprep.subr.mxu0 0.0
  %2817 = vmatpush2.msra.mxu0 0.0
  %2818 = vmatprep.subr.mxu0 0.0
  %2819 = vmatpush2.msra.mxu0 0.0
  %2820 = vmatprep.subr.mxu0 0.0
  %2821 = vmatpush2.msra.mxu0 0.0
  %2822 = vmatprep.subr.mxu0 0.0
  %2823 = vmatpush2.msra.mxu0 0.0
  %2824 = vmatprep.subr.mxu0 0.0
  %2825 = vmatpush2.msra.mxu0 0.0
  %2826 = vmatprep.subr.mxu0 0.0
  %2827 = vmatpush2.msra.mxu0 0.0
  %2828 = vmatprep.subr.mxu0 0.0
  %2829 = vmatpush2.msra.mxu0 0.0
  %2830 = vmatprep.subr.mxu0 0.0
  %2831 = vmatpush2.msra.mxu0 0.0
  %2832 = vmatprep.subr.mxu0 0.0
  %2833 = vmatpush2.msra.mxu0 0.0
  %2834 = vmatprep.subr.mxu0 0.0
  %2835 = vmatpush2.msra.mxu0 0.0
  %2836 = vmatprep.subr.mxu0 0.0
  %2837 = vmatpush2.msra.mxu0 0.0
  %2838 = vmatprep.subr.mxu0 0.0
  %2839 = vmatpush2.msra.mxu0 0.0
  %2840 = vmatprep.mubr.f32.mxu0 0.0
  %2841 = vmatmul.mubr.f32.gmra.mxu0 %v2774
  %v2842 = vpop.f32.mrf.mxu0
  %v2843 = vadd.f32 0.0, %v2842
  %v2844 = vpop.f32.mrf.mxu0
  %2845 = vdwg.mxu0
  %s2846 = scalar_lea.vmem %s7, 24
  %v2847 = vld [vmem:[%s2846] sm:$0xff]
  %v2849 = vsel %vm523, %v2770, 0
  %v2852 = vsel %vm523, %v2843, 0
  %2854 = vmatprep.subr.mxu0 0.0
  %2855 = vmatpush1.msra.mxu0 0.0
  %2856 = vmatprep.subr.mxu0 0.0
  %2857 = vmatpush1.msra.mxu0 0.0
  %2858 = vmatprep.subr.mxu0 0.0
  %2859 = vmatpush1.msra.mxu0 0.0
  %2860 = vmatprep.subr.mxu0 0.0
  %2861 = vmatpush1.msra.mxu0 0.0
  %2862 = vmatprep.subr.mxu0 0.0
  %2863 = vmatpush1.msra.mxu0 0.0
  %2864 = vmatprep.subr.mxu0 0.0
  %2865 = vmatpush1.msra.mxu0 0.0
  %2866 = vmatprep.subr.mxu0 0.0
  %2867 = vmatpush1.msra.mxu0 0.0
  %2868 = vmatprep.subr.mxu0 0.0
  %2869 = vmatpush1.msra.mxu0 0.0
  %2870 = vmatprep.subr.mxu0 0.0
  %2871 = vmatpush1.msra.mxu0 0.0
  %2872 = vmatprep.subr.mxu0 0.0
  %2873 = vmatpush1.msra.mxu0 0.0
  %2874 = vmatprep.subr.mxu0 0.0
  %2875 = vmatpush1.msra.mxu0 0.0
  %2876 = vmatprep.subr.mxu0 0.0
  %2877 = vmatpush1.msra.mxu0 0.0
  %2878 = vmatprep.subr.mxu0 0.0
  %2879 = vmatpush1.msra.mxu0 0.0
  %2880 = vmatprep.subr.mxu0 0.0
  %2881 = vmatpush1.msra.mxu0 0.0
  %2882 = vmatprep.subr.mxu0 0.0
  %2883 = vmatpush1.msra.mxu0 0.0
  %2884 = vmatprep.subr.mxu0 0.0
  %2885 = vmatpush1.msra.mxu0 %v2847
  %2886 = vmatprep.subr.mxu0 0.0
  %2887 = vmatpush2.msra.mxu0 0.0
  %2888 = vmatprep.subr.mxu0 0.0
  %2889 = vmatpush2.msra.mxu0 0.0
  %2890 = vmatprep.subr.mxu0 0.0
  %2891 = vmatpush2.msra.mxu0 0.0
  %2892 = vmatprep.subr.mxu0 0.0
  %2893 = vmatpush2.msra.mxu0 0.0
  %2894 = vmatprep.subr.mxu0 0.0
  %2895 = vmatpush2.msra.mxu0 0.0
  %2896 = vmatprep.subr.mxu0 0.0
  %2897 = vmatpush2.msra.mxu0 0.0
  %2898 = vmatprep.subr.mxu0 0.0
  %2899 = vmatpush2.msra.mxu0 0.0
  %2900 = vmatprep.subr.mxu0 0.0
  %2901 = vmatpush2.msra.mxu0 0.0
  %2902 = vmatprep.subr.mxu0 0.0
  %2903 = vmatpush2.msra.mxu0 0.0
  %2904 = vmatprep.subr.mxu0 0.0
  %2905 = vmatpush2.msra.mxu0 0.0
  %2906 = vmatprep.subr.mxu0 0.0
  %2907 = vmatpush2.msra.mxu0 0.0
  %2908 = vmatprep.subr.mxu0 0.0
  %2909 = vmatpush2.msra.mxu0 0.0
  %2910 = vmatprep.subr.mxu0 0.0
  %2911 = vmatpush2.msra.mxu0 0.0
  %2912 = vmatprep.subr.mxu0 0.0
  %2913 = vmatpush2.msra.mxu0 0.0
  %2914 = vmatprep.subr.mxu0 0.0
  %2915 = vmatpush2.msra.mxu0 0.0
  %2916 = vmatprep.subr.mxu0 0.0
  %2917 = vmatpush2.msra.mxu0 0.0
  %2918 = vmatprep.mubr.f32.mxu0 0.0
  %2919 = vmatmul.mubr.f32.gmra.mxu0 %v2849
  %v2920 = vpop.f32.mrf.mxu0
  %v2921 = vadd.f32 0.0, %v2920
  %v2922 = vpop.f32.mrf.mxu0
  %2923 = vmatprep.mubr.f32.mxu0 0.0
  %2924 = vmatmul.mubr.f32.gmra.mxu0 %v2852
  %v2925 = vpop.f32.mrf.mxu0
  %v2926 = vadd.f32 0.0, %v2925
  %v2927 = vpop.f32.mrf.mxu0
  %2928 = vdwg.mxu0
  %v2929 = vadd.f32 %v2260, %v2921
  %v2930 = vadd.f32 %v2261, %v2926
  %v2931 = vld [vmem:[%s11] sm:$0x1]
  %v2933 = vlaneseq
  %v2934 = vshrl.u32 %v2933, 7
  %v2935 = vsub.s32 0, %v2934
  %v2936 = vrot.slane %v2931, %v2935
  %v2938 = vadd.f32 %v2929, %v2936
  %v2939 = vadd.f32 %v2930, %v2936
  %v2940 = vadd.f32 %v233, %v2938
  %v2941 = vadd.f32 %v234, %v2939
  %s2942 = scalar_lea.vmem %s11, 1
  %v2943 = vld [vmem:[%s2942] sm:$0x1]
  %s2944 = scalar_lea.vmem %s11, 2
  %v2945 = vld [vmem:[%s2944] sm:$0x1]
  %v2946 = vsel %vm191, %v2940, 0.0
  %2947 = vadd.xlane.f32.xlu0 %v2946
  %v2948 = vpop.xlane.xlu0 %2947
  %v2949 = vsel %vm191, %v2941, 0.0
  %2950 = vadd.xlane.f32.xlu0 %v2949
  %v2951 = vpop.xlane.xlu0 %2950
  %v2952 = vmul.f32 %v2948, %v198
  %v2953 = vmul.f32 %v2951, %v198
  %v2954 = vsub.f32 %v2940, %v2952
  %v2955 = vsub.f32 %v2941, %v2953
  %v2956 = vmul.f32 %v2954, %v2954
  %v2957 = vmul.f32 %v2955, %v2955
  %v2958 = vsel %vm191, %v2956, 0.0
  %2959 = vadd.xlane.f32.xlu0 %v2958
  %v2960 = vpop.xlane.xlu0 %2959
  %v2961 = vsel %vm191, %v2957, 0.0
  %2962 = vadd.xlane.f32.xlu0 %v2961
  %v2963 = vpop.xlane.xlu0 %2962
  %v2964 = vmul.f32 %v2960, %v198
  %v2965 = vmul.f32 %v2963, %v198
  %v2966 = vadd.f32 %v2964, 1e-12
  %v2967 = vadd.f32 %v2965, 1e-12
  %v2968 = vrsqrt.pop %v2966
  %v2969 = vrsqrt.pop %v2967
  %v2970 = vmul.f32 %v2954, %v2968
  %v2971 = vmul.f32 %v2955, %v2969
  %v2973 = vlaneseq
  %v2974 = vshrl.u32 %v2973, 7
  %v2975 = vsub.s32 0, %v2974
  %v2976 = vrot.slane %v2943, %v2975
  %v2978 = vmul.f32 %v2970, %v2976
  %v2979 = vmul.f32 %v2971, %v2976
  %v2981 = vlaneseq
  %v2982 = vshrl.u32 %v2981, 7
  %v2983 = vsub.s32 0, %v2982
  %v2984 = vrot.slane %v2945, %v2983
  %v2986 = vadd.f32 %v2978, %v2984
  %v2987 = vadd.f32 %v2979, %v2984
  %v2988 = vld [vmem:[%s8] sm:$0xff]
  %v2989 = vld [vmem:[%s8 + $0x8] sm:$0xff]
  %v2990 = vld [vmem:[%s8 + $0x10] sm:$0xff]
  %v2991 = vld [vmem:[%s8 + $0x18] sm:$0xff]
  %v2992 = vld [vmem:[%s9] sm:$0x1]
  %v2994 = vlaneseq
  %v2995 = vshrl.u32 %v2994, 7
  %v2996 = vsub.s32 0, %v2995
  %v2997 = vrot.slane %v2992, %v2996
  %v3000 = vsel %vm191, %v2986, 0
  %v3003 = vsel %vm191, %v2987, 0
  %3005 = vmatprep.subr.mxu0 0.0
  %3006 = vmatpush1.msra.mxu0 0.0
  %3007 = vmatprep.subr.mxu0 0.0
  %3008 = vmatpush1.msra.mxu0 0.0
  %3009 = vmatprep.subr.mxu0 0.0
  %3010 = vmatpush1.msra.mxu0 0.0
  %3011 = vmatprep.subr.mxu0 0.0
  %3012 = vmatpush1.msra.mxu0 0.0
  %3013 = vmatprep.subr.mxu0 0.0
  %3014 = vmatpush1.msra.mxu0 0.0
  %3015 = vmatprep.subr.mxu0 0.0
  %3016 = vmatpush1.msra.mxu0 0.0
  %3017 = vmatprep.subr.mxu0 0.0
  %3018 = vmatpush1.msra.mxu0 0.0
  %3019 = vmatprep.subr.mxu0 0.0
  %3020 = vmatpush1.msra.mxu0 0.0
  %3021 = vmatprep.subr.mxu0 0.0
  %3022 = vmatpush1.msra.mxu0 0.0
  %3023 = vmatprep.subr.mxu0 0.0
  %3024 = vmatpush1.msra.mxu0 0.0
  %3025 = vmatprep.subr.mxu0 0.0
  %3026 = vmatpush1.msra.mxu0 0.0
  %3027 = vmatprep.subr.mxu0 0.0
  %3028 = vmatpush1.msra.mxu0 0.0
  %3029 = vmatprep.subr.mxu0 0.0
  %3030 = vmatpush1.msra.mxu0 %v2991
  %3031 = vmatprep.subr.mxu0 0.0
  %3032 = vmatpush1.msra.mxu0 %v2990
  %3033 = vmatprep.subr.mxu0 0.0
  %3034 = vmatpush1.msra.mxu0 %v2989
  %3035 = vmatprep.subr.mxu0 0.0
  %3036 = vmatpush1.msra.mxu0 %v2988
  %3037 = vmatprep.subr.mxu0 0.0
  %3038 = vmatpush2.msra.mxu0 0.0
  %3039 = vmatprep.subr.mxu0 0.0
  %3040 = vmatpush2.msra.mxu0 0.0
  %3041 = vmatprep.subr.mxu0 0.0
  %3042 = vmatpush2.msra.mxu0 0.0
  %3043 = vmatprep.subr.mxu0 0.0
  %3044 = vmatpush2.msra.mxu0 0.0
  %3045 = vmatprep.subr.mxu0 0.0
  %3046 = vmatpush2.msra.mxu0 0.0
  %3047 = vmatprep.subr.mxu0 0.0
  %3048 = vmatpush2.msra.mxu0 0.0
  %3049 = vmatprep.subr.mxu0 0.0
  %3050 = vmatpush2.msra.mxu0 0.0
  %3051 = vmatprep.subr.mxu0 0.0
  %3052 = vmatpush2.msra.mxu0 0.0
  %3053 = vmatprep.subr.mxu0 0.0
  %3054 = vmatpush2.msra.mxu0 0.0
  %3055 = vmatprep.subr.mxu0 0.0
  %3056 = vmatpush2.msra.mxu0 0.0
  %3057 = vmatprep.subr.mxu0 0.0
  %3058 = vmatpush2.msra.mxu0 0.0
  %3059 = vmatprep.subr.mxu0 0.0
  %3060 = vmatpush2.msra.mxu0 0.0
  %3061 = vmatprep.subr.mxu0 0.0
  %3062 = vmatpush2.msra.mxu0 0.0
  %3063 = vmatprep.subr.mxu0 0.0
  %3064 = vmatpush2.msra.mxu0 0.0
  %3065 = vmatprep.subr.mxu0 0.0
  %3066 = vmatpush2.msra.mxu0 0.0
  %3067 = vmatprep.subr.mxu0 0.0
  %3068 = vmatpush2.msra.mxu0 0.0
  %3069 = vmatprep.mubr.f32.mxu0 0.0
  %3070 = vmatmul.mubr.f32.gmra.mxu0 %v3000
  %v3071 = vpop.f32.mrf.mxu0
  %v3072 = vadd.f32 %v2997, %v3071
  %v3073 = vpop.f32.mrf.mxu0
  %3074 = vmatprep.mubr.f32.mxu0 0.0
  %3075 = vmatmul.mubr.f32.gmra.mxu0 %v3003
  %v3076 = vpop.f32.mrf.mxu0
  %v3077 = vadd.f32 %v2997, %v3076
  %v3078 = vpop.f32.mrf.mxu0
  %3079 = vdwg.mxu0
  %v3080 = vmul.f32 %v3072, 0.5
  %v3081 = vmul.f32 %v3077, 0.5
  %v3082 = vmul.f32 %v3072, 0.70710677
  %v3083 = vmul.f32 %v3077, 0.70710677
  %v3084 = verf.f32.pop %v3082
  %v3085 = verf.f32.pop %v3083
  %v3086 = vadd.f32 %v3084, 1.0
  %v3087 = vadd.f32 %v3085, 1.0
  %v3088 = vmul.f32 %v3080, %v3086
  %v3089 = vmul.f32 %v3081, %v3087
  %v3090 = vld [vmem:[%s10] sm:$0xff]
  %v3091 = vld [vmem:[%s10 + $0x8] sm:$0xff]
  %v3092 = vld [vmem:[%s10 + $0x10] sm:$0xff]
  %v3093 = vld [vmem:[%s10 + $0x18] sm:$0xff]
  %v3094 = vld [vmem:[%s10 + $0x20] sm:$0xff]
  %v3095 = vld [vmem:[%s10 + $0x28] sm:$0xff]
  %v3096 = vld [vmem:[%s10 + $0x30] sm:$0xff]
  %v3097 = vld [vmem:[%s10 + $0x38] sm:$0xff]
  %v3098 = vld [vmem:[%s10 + $0x40] sm:$0xff]
  %v3099 = vld [vmem:[%s10 + $0x48] sm:$0xff]
  %v3100 = vld [vmem:[%s10 + $0x50] sm:$0xff]
  %v3101 = vld [vmem:[%s10 + $0x58] sm:$0xff]
  %v3102 = vld [vmem:[%s10 + $0x60] sm:$0xff]
  %v3103 = vld [vmem:[%s10 + $0x68] sm:$0xff]
  %v3104 = vld [vmem:[%s10 + $0x70] sm:$0xff]
  %v3105 = vld [vmem:[%s10 + $0x78] sm:$0xff]
  %s3106 = scalar_lea.vmem %s11, 3
  %v3107 = vld [vmem:[%s3106] sm:$0x1]
  %v3109 = vlaneseq
  %v3110 = vshrl.u32 %v3109, 7
  %v3111 = vsub.s32 0, %v3110
  %v3112 = vrot.slane %v3107, %v3111
  %3114 = vmatprep.subr.mxu0 0.0
  %3115 = vmatpush1.msra.mxu0 %v3105
  %3116 = vmatprep.subr.mxu0 0.0
  %3117 = vmatpush1.msra.mxu0 %v3104
  %3118 = vmatprep.subr.mxu0 0.0
  %3119 = vmatpush1.msra.mxu0 %v3103
  %3120 = vmatprep.subr.mxu0 0.0
  %3121 = vmatpush1.msra.mxu0 %v3102
  %3122 = vmatprep.subr.mxu0 0.0
  %3123 = vmatpush1.msra.mxu0 %v3101
  %3124 = vmatprep.subr.mxu0 0.0
  %3125 = vmatpush1.msra.mxu0 %v3100
  %3126 = vmatprep.subr.mxu0 0.0
  %3127 = vmatpush1.msra.mxu0 %v3099
  %3128 = vmatprep.subr.mxu0 0.0
  %3129 = vmatpush1.msra.mxu0 %v3098
  %3130 = vmatprep.subr.mxu0 0.0
  %3131 = vmatpush1.msra.mxu0 %v3097
  %3132 = vmatprep.subr.mxu0 0.0
  %3133 = vmatpush1.msra.mxu0 %v3096
  %3134 = vmatprep.subr.mxu0 0.0
  %3135 = vmatpush1.msra.mxu0 %v3095
  %3136 = vmatprep.subr.mxu0 0.0
  %3137 = vmatpush1.msra.mxu0 %v3094
  %3138 = vmatprep.subr.mxu0 0.0
  %3139 = vmatpush1.msra.mxu0 %v3093
  %3140 = vmatprep.subr.mxu0 0.0
  %3141 = vmatpush1.msra.mxu0 %v3092
  %3142 = vmatprep.subr.mxu0 0.0
  %3143 = vmatpush1.msra.mxu0 %v3091
  %3144 = vmatprep.subr.mxu0 0.0
  %3145 = vmatpush1.msra.mxu0 %v3090
  %3146 = vmatprep.subr.mxu0 0.0
  %3147 = vmatpush2.msra.mxu0 0.0
  %3148 = vmatprep.subr.mxu0 0.0
  %3149 = vmatpush2.msra.mxu0 0.0
  %3150 = vmatprep.subr.mxu0 0.0
  %3151 = vmatpush2.msra.mxu0 0.0
  %3152 = vmatprep.subr.mxu0 0.0
  %3153 = vmatpush2.msra.mxu0 0.0
  %3154 = vmatprep.subr.mxu0 0.0
  %3155 = vmatpush2.msra.mxu0 0.0
  %3156 = vmatprep.subr.mxu0 0.0
  %3157 = vmatpush2.msra.mxu0 0.0
  %3158 = vmatprep.subr.mxu0 0.0
  %3159 = vmatpush2.msra.mxu0 0.0
  %3160 = vmatprep.subr.mxu0 0.0
  %3161 = vmatpush2.msra.mxu0 0.0
  %3162 = vmatprep.subr.mxu0 0.0
  %3163 = vmatpush2.msra.mxu0 0.0
  %3164 = vmatprep.subr.mxu0 0.0
  %3165 = vmatpush2.msra.mxu0 0.0
  %3166 = vmatprep.subr.mxu0 0.0
  %3167 = vmatpush2.msra.mxu0 0.0
  %3168 = vmatprep.subr.mxu0 0.0
  %3169 = vmatpush2.msra.mxu0 0.0
  %3170 = vmatprep.subr.mxu0 0.0
  %3171 = vmatpush2.msra.mxu0 0.0
  %3172 = vmatprep.subr.mxu0 0.0
  %3173 = vmatpush2.msra.mxu0 0.0
  %3174 = vmatprep.subr.mxu0 0.0
  %3175 = vmatpush2.msra.mxu0 0.0
  %3176 = vmatprep.subr.mxu0 0.0
  %3177 = vmatpush2.msra.mxu0 0.0
  %3178 = vmatprep.mubr.f32.mxu0 0.0
  %3179 = vmatmul.mubr.f32.gmra.mxu0 %v3088
  %v3180 = vpop.f32.mrf.mxu0
  %v3181 = vadd.f32 %v3112, %v3180
  %v3182 = vpop.f32.mrf.mxu0
  %3183 = vmatprep.mubr.f32.mxu0 0.0
  %3184 = vmatmul.mubr.f32.gmra.mxu0 %v3089
  %v3185 = vpop.f32.mrf.mxu0
  %v3186 = vadd.f32 %v3112, %v3185
  %v3187 = vpop.f32.mrf.mxu0
  %3188 = vdwg.mxu0
  %v3189 = vadd.f32 %v2986, %v3181
  %v3190 = vadd.f32 %v2987, %v3186
  %s3191 = scalar_lea.vmem %s11, 4
  %v3192 = vld [vmem:[%s3191] sm:$0x1]
  %s3193 = scalar_lea.vmem %s11, 5
  %v3194 = vld [vmem:[%s3193] sm:$0x1]
  %v3195 = vsel %vm191, %v3189, 0.0
  %3196 = vadd.xlane.f32.xlu0 %v3195
  %v3197 = vpop.xlane.xlu0 %3196
  %v3198 = vsel %vm191, %v3190, 0.0
  %3199 = vadd.xlane.f32.xlu0 %v3198
  %v3200 = vpop.xlane.xlu0 %3199
  %v3201 = vmul.f32 %v3197, %v198
  %v3202 = vmul.f32 %v3200, %v198
  %v3203 = vsub.f32 %v3189, %v3201
  %v3204 = vsub.f32 %v3190, %v3202
  %v3205 = vmul.f32 %v3203, %v3203
  %v3206 = vmul.f32 %v3204, %v3204
  %v3207 = vsel %vm191, %v3205, 0.0
  %3208 = vadd.xlane.f32.xlu0 %v3207
  %v3209 = vpop.xlane.xlu0 %3208
  %v3210 = vsel %vm191, %v3206, 0.0
  %3211 = vadd.xlane.f32.xlu0 %v3210
  %v3212 = vpop.xlane.xlu0 %3211
  %v3213 = vmul.f32 %v3209, %v198
  %v3214 = vmul.f32 %v3212, %v198
  %v3215 = vadd.f32 %v3213, 1e-12
  %v3216 = vadd.f32 %v3214, 1e-12
  %v3217 = vrsqrt.pop %v3215
  %v3218 = vrsqrt.pop %v3216
  %v3219 = vmul.f32 %v3203, %v3217
  %v3220 = vmul.f32 %v3204, %v3218
  %v3222 = vlaneseq
  %v3223 = vshrl.u32 %v3222, 7
  %v3224 = vsub.s32 0, %v3223
  %v3225 = vrot.slane %v3192, %v3224
  %v3227 = vmul.f32 %v3219, %v3225
  %v3228 = vmul.f32 %v3220, %v3225
  %v3230 = vlaneseq
  %v3231 = vshrl.u32 %v3230, 7
  %v3232 = vsub.s32 0, %v3231
  %v3233 = vrot.slane %v3194, %v3232
  %v3235 = vadd.f32 %v3227, %v3233
  %v3236 = vadd.f32 %v3228, %v3233
  %s3237 = scalar_lea.vmem %s5, 384
  %v3238 = vld [vmem:[%s3237] sm:$0xff]
  %v3239 = vld [vmem:[%s3237 + $0x8] sm:$0xff]
  %v3240 = vld [vmem:[%s3237 + $0x10] sm:$0xff]
  %v3241 = vld [vmem:[%s3237 + $0x18] sm:$0xff]
  %s3242 = scalar_lea.vmem %s6, 12
  %v3243 = vld [vmem:[%s3242] sm:$0x1]
  %v3245 = vlaneseq
  %v3246 = vshrl.u32 %v3245, 7
  %v3247 = vsub.s32 0, %v3246
  %v3248 = vrot.slane %v3243, %v3247
  %v3251 = vsel %vm191, %v3235, 0
  %v3254 = vsel %vm191, %v3236, 0
  %3256 = vmatprep.subr.mxu0 0.0
  %3257 = vmatpush1.msra.mxu0 0.0
  %3258 = vmatprep.subr.mxu0 0.0
  %3259 = vmatpush1.msra.mxu0 0.0
  %3260 = vmatprep.subr.mxu0 0.0
  %3261 = vmatpush1.msra.mxu0 0.0
  %3262 = vmatprep.subr.mxu0 0.0
  %3263 = vmatpush1.msra.mxu0 0.0
  %3264 = vmatprep.subr.mxu0 0.0
  %3265 = vmatpush1.msra.mxu0 0.0
  %3266 = vmatprep.subr.mxu0 0.0
  %3267 = vmatpush1.msra.mxu0 0.0
  %3268 = vmatprep.subr.mxu0 0.0
  %3269 = vmatpush1.msra.mxu0 0.0
  %3270 = vmatprep.subr.mxu0 0.0
  %3271 = vmatpush1.msra.mxu0 0.0
  %3272 = vmatprep.subr.mxu0 0.0
  %3273 = vmatpush1.msra.mxu0 0.0
  %3274 = vmatprep.subr.mxu0 0.0
  %3275 = vmatpush1.msra.mxu0 0.0
  %3276 = vmatprep.subr.mxu0 0.0
  %3277 = vmatpush1.msra.mxu0 0.0
  %3278 = vmatprep.subr.mxu0 0.0
  %3279 = vmatpush1.msra.mxu0 0.0
  %3280 = vmatprep.subr.mxu0 0.0
  %3281 = vmatpush1.msra.mxu0 %v3241
  %3282 = vmatprep.subr.mxu0 0.0
  %3283 = vmatpush1.msra.mxu0 %v3240
  %3284 = vmatprep.subr.mxu0 0.0
  %3285 = vmatpush1.msra.mxu0 %v3239
  %3286 = vmatprep.subr.mxu0 0.0
  %3287 = vmatpush1.msra.mxu0 %v3238
  %3288 = vmatprep.subr.mxu0 0.0
  %3289 = vmatpush2.msra.mxu0 0.0
  %3290 = vmatprep.subr.mxu0 0.0
  %3291 = vmatpush2.msra.mxu0 0.0
  %3292 = vmatprep.subr.mxu0 0.0
  %3293 = vmatpush2.msra.mxu0 0.0
  %3294 = vmatprep.subr.mxu0 0.0
  %3295 = vmatpush2.msra.mxu0 0.0
  %3296 = vmatprep.subr.mxu0 0.0
  %3297 = vmatpush2.msra.mxu0 0.0
  %3298 = vmatprep.subr.mxu0 0.0
  %3299 = vmatpush2.msra.mxu0 0.0
  %3300 = vmatprep.subr.mxu0 0.0
  %3301 = vmatpush2.msra.mxu0 0.0
  %3302 = vmatprep.subr.mxu0 0.0
  %3303 = vmatpush2.msra.mxu0 0.0
  %3304 = vmatprep.subr.mxu0 0.0
  %3305 = vmatpush2.msra.mxu0 0.0
  %3306 = vmatprep.subr.mxu0 0.0
  %3307 = vmatpush2.msra.mxu0 0.0
  %3308 = vmatprep.subr.mxu0 0.0
  %3309 = vmatpush2.msra.mxu0 0.0
  %3310 = vmatprep.subr.mxu0 0.0
  %3311 = vmatpush2.msra.mxu0 0.0
  %3312 = vmatprep.subr.mxu0 0.0
  %3313 = vmatpush2.msra.mxu0 0.0
  %3314 = vmatprep.subr.mxu0 0.0
  %3315 = vmatpush2.msra.mxu0 0.0
  %3316 = vmatprep.subr.mxu0 0.0
  %3317 = vmatpush2.msra.mxu0 0.0
  %3318 = vmatprep.subr.mxu0 0.0
  %3319 = vmatpush2.msra.mxu0 0.0
  %3320 = vmatprep.mubr.f32.mxu0 0.0
  %3321 = vmatmul.mubr.f32.gmra.mxu0 %v3251
  %v3322 = vpop.f32.mrf.mxu0
  %v3323 = vadd.f32 %v3248, %v3322
  %v3324 = vpop.f32.mrf.mxu0
  %3325 = vmatprep.mubr.f32.mxu0 0.0
  %3326 = vmatmul.mubr.f32.gmra.mxu0 %v3254
  %v3327 = vpop.f32.mrf.mxu0
  %v3328 = vadd.f32 %v3248, %v3327
  %v3329 = vpop.f32.mrf.mxu0
  %3330 = vdwg.mxu0
  %s3331 = scalar_lea.vmem %s5, 512
  %v3332 = vld [vmem:[%s3331] sm:$0xff]
  %v3333 = vld [vmem:[%s3331 + $0x8] sm:$0xff]
  %v3334 = vld [vmem:[%s3331 + $0x10] sm:$0xff]
  %v3335 = vld [vmem:[%s3331 + $0x18] sm:$0xff]
  %s3336 = scalar_lea.vmem %s6, 16
  %v3337 = vld [vmem:[%s3336] sm:$0x1]
  %v3339 = vlaneseq
  %v3340 = vshrl.u32 %v3339, 7
  %v3341 = vsub.s32 0, %v3340
  %v3342 = vrot.slane %v3337, %v3341
  %3344 = vmatprep.subr.mxu0 0.0
  %3345 = vmatpush1.msra.mxu0 0.0
  %3346 = vmatprep.subr.mxu0 0.0
  %3347 = vmatpush1.msra.mxu0 0.0
  %3348 = vmatprep.subr.mxu0 0.0
  %3349 = vmatpush1.msra.mxu0 0.0
  %3350 = vmatprep.subr.mxu0 0.0
  %3351 = vmatpush1.msra.mxu0 0.0
  %3352 = vmatprep.subr.mxu0 0.0
  %3353 = vmatpush1.msra.mxu0 0.0
  %3354 = vmatprep.subr.mxu0 0.0
  %3355 = vmatpush1.msra.mxu0 0.0
  %3356 = vmatprep.subr.mxu0 0.0
  %3357 = vmatpush1.msra.mxu0 0.0
  %3358 = vmatprep.subr.mxu0 0.0
  %3359 = vmatpush1.msra.mxu0 0.0
  %3360 = vmatprep.subr.mxu0 0.0
  %3361 = vmatpush1.msra.mxu0 0.0
  %3362 = vmatprep.subr.mxu0 0.0
  %3363 = vmatpush1.msra.mxu0 0.0
  %3364 = vmatprep.subr.mxu0 0.0
  %3365 = vmatpush1.msra.mxu0 0.0
  %3366 = vmatprep.subr.mxu0 0.0
  %3367 = vmatpush1.msra.mxu0 0.0
  %3368 = vmatprep.subr.mxu0 0.0
  %3369 = vmatpush1.msra.mxu0 %v3335
  %3370 = vmatprep.subr.mxu0 0.0
  %3371 = vmatpush1.msra.mxu0 %v3334
  %3372 = vmatprep.subr.mxu0 0.0
  %3373 = vmatpush1.msra.mxu0 %v3333
  %3374 = vmatprep.subr.mxu0 0.0
  %3375 = vmatpush1.msra.mxu0 %v3332
  %3376 = vmatprep.subr.mxu0 0.0
  %3377 = vmatpush2.msra.mxu0 0.0
  %3378 = vmatprep.subr.mxu0 0.0
  %3379 = vmatpush2.msra.mxu0 0.0
  %3380 = vmatprep.subr.mxu0 0.0
  %3381 = vmatpush2.msra.mxu0 0.0
  %3382 = vmatprep.subr.mxu0 0.0
  %3383 = vmatpush2.msra.mxu0 0.0
  %3384 = vmatprep.subr.mxu0 0.0
  %3385 = vmatpush2.msra.mxu0 0.0
  %3386 = vmatprep.subr.mxu0 0.0
  %3387 = vmatpush2.msra.mxu0 0.0
  %3388 = vmatprep.subr.mxu0 0.0
  %3389 = vmatpush2.msra.mxu0 0.0
  %3390 = vmatprep.subr.mxu0 0.0
  %3391 = vmatpush2.msra.mxu0 0.0
  %3392 = vmatprep.subr.mxu0 0.0
  %3393 = vmatpush2.msra.mxu0 0.0
  %3394 = vmatprep.subr.mxu0 0.0
  %3395 = vmatpush2.msra.mxu0 0.0
  %3396 = vmatprep.subr.mxu0 0.0
  %3397 = vmatpush2.msra.mxu0 0.0
  %3398 = vmatprep.subr.mxu0 0.0
  %3399 = vmatpush2.msra.mxu0 0.0
  %3400 = vmatprep.subr.mxu0 0.0
  %3401 = vmatpush2.msra.mxu0 0.0
  %3402 = vmatprep.subr.mxu0 0.0
  %3403 = vmatpush2.msra.mxu0 0.0
  %3404 = vmatprep.subr.mxu0 0.0
  %3405 = vmatpush2.msra.mxu0 0.0
  %3406 = vmatprep.subr.mxu0 0.0
  %3407 = vmatpush2.msra.mxu0 0.0
  %3408 = vmatprep.mubr.f32.mxu0 0.0
  %3409 = vmatmul.mubr.f32.gmra.mxu0 %v3251
  %v3410 = vpop.f32.mrf.mxu0
  %v3411 = vadd.f32 %v3342, %v3410
  %v3412 = vpop.f32.mrf.mxu0
  %3413 = vmatprep.mubr.f32.mxu0 0.0
  %3414 = vmatmul.mubr.f32.gmra.mxu0 %v3254
  %v3415 = vpop.f32.mrf.mxu0
  %v3416 = vadd.f32 %v3342, %v3415
  %v3417 = vpop.f32.mrf.mxu0
  %3418 = vdwg.mxu0
  %s3419 = scalar_lea.vmem %s5, 640
  %v3420 = vld [vmem:[%s3419] sm:$0xff]
  %v3421 = vld [vmem:[%s3419 + $0x8] sm:$0xff]
  %v3422 = vld [vmem:[%s3419 + $0x10] sm:$0xff]
  %v3423 = vld [vmem:[%s3419 + $0x18] sm:$0xff]
  %s3424 = scalar_lea.vmem %s6, 20
  %v3425 = vld [vmem:[%s3424] sm:$0x1]
  %v3427 = vlaneseq
  %v3428 = vshrl.u32 %v3427, 7
  %v3429 = vsub.s32 0, %v3428
  %v3430 = vrot.slane %v3425, %v3429
  %3432 = vmatprep.subr.mxu0 0.0
  %3433 = vmatpush1.msra.mxu0 0.0
  %3434 = vmatprep.subr.mxu0 0.0
  %3435 = vmatpush1.msra.mxu0 0.0
  %3436 = vmatprep.subr.mxu0 0.0
  %3437 = vmatpush1.msra.mxu0 0.0
  %3438 = vmatprep.subr.mxu0 0.0
  %3439 = vmatpush1.msra.mxu0 0.0
  %3440 = vmatprep.subr.mxu0 0.0
  %3441 = vmatpush1.msra.mxu0 0.0
  %3442 = vmatprep.subr.mxu0 0.0
  %3443 = vmatpush1.msra.mxu0 0.0
  %3444 = vmatprep.subr.mxu0 0.0
  %3445 = vmatpush1.msra.mxu0 0.0
  %3446 = vmatprep.subr.mxu0 0.0
  %3447 = vmatpush1.msra.mxu0 0.0
  %3448 = vmatprep.subr.mxu0 0.0
  %3449 = vmatpush1.msra.mxu0 0.0
  %3450 = vmatprep.subr.mxu0 0.0
  %3451 = vmatpush1.msra.mxu0 0.0
  %3452 = vmatprep.subr.mxu0 0.0
  %3453 = vmatpush1.msra.mxu0 0.0
  %3454 = vmatprep.subr.mxu0 0.0
  %3455 = vmatpush1.msra.mxu0 0.0
  %3456 = vmatprep.subr.mxu0 0.0
  %3457 = vmatpush1.msra.mxu0 %v3423
  %3458 = vmatprep.subr.mxu0 0.0
  %3459 = vmatpush1.msra.mxu0 %v3422
  %3460 = vmatprep.subr.mxu0 0.0
  %3461 = vmatpush1.msra.mxu0 %v3421
  %3462 = vmatprep.subr.mxu0 0.0
  %3463 = vmatpush1.msra.mxu0 %v3420
  %3464 = vmatprep.subr.mxu0 0.0
  %3465 = vmatpush2.msra.mxu0 0.0
  %3466 = vmatprep.subr.mxu0 0.0
  %3467 = vmatpush2.msra.mxu0 0.0
  %3468 = vmatprep.subr.mxu0 0.0
  %3469 = vmatpush2.msra.mxu0 0.0
  %3470 = vmatprep.subr.mxu0 0.0
  %3471 = vmatpush2.msra.mxu0 0.0
  %3472 = vmatprep.subr.mxu0 0.0
  %3473 = vmatpush2.msra.mxu0 0.0
  %3474 = vmatprep.subr.mxu0 0.0
  %3475 = vmatpush2.msra.mxu0 0.0
  %3476 = vmatprep.subr.mxu0 0.0
  %3477 = vmatpush2.msra.mxu0 0.0
  %3478 = vmatprep.subr.mxu0 0.0
  %3479 = vmatpush2.msra.mxu0 0.0
  %3480 = vmatprep.subr.mxu0 0.0
  %3481 = vmatpush2.msra.mxu0 0.0
  %3482 = vmatprep.subr.mxu0 0.0
  %3483 = vmatpush2.msra.mxu0 0.0
  %3484 = vmatprep.subr.mxu0 0.0
  %3485 = vmatpush2.msra.mxu0 0.0
  %3486 = vmatprep.subr.mxu0 0.0
  %3487 = vmatpush2.msra.mxu0 0.0
  %3488 = vmatprep.subr.mxu0 0.0
  %3489 = vmatpush2.msra.mxu0 0.0
  %3490 = vmatprep.subr.mxu0 0.0
  %3491 = vmatpush2.msra.mxu0 0.0
  %3492 = vmatprep.subr.mxu0 0.0
  %3493 = vmatpush2.msra.mxu0 0.0
  %3494 = vmatprep.subr.mxu0 0.0
  %3495 = vmatpush2.msra.mxu0 0.0
  %3496 = vmatprep.mubr.f32.mxu0 0.0
  %3497 = vmatmul.mubr.f32.gmra.mxu0 %v3251
  %v3498 = vpop.f32.mrf.mxu0
  %v3499 = vadd.f32 %v3430, %v3498
  %v3500 = vpop.f32.mrf.mxu0
  %3501 = vmatprep.mubr.f32.mxu0 0.0
  %3502 = vmatmul.mubr.f32.gmra.mxu0 %v3254
  %v3503 = vpop.f32.mrf.mxu0
  %v3504 = vadd.f32 %v3430, %v3503
  %v3505 = vpop.f32.mrf.mxu0
  %3506 = vdwg.mxu0
  %v3508 = vsel %vm523, %v3323, 0
  %v3511 = vsel %vm523, %v3411, 0
  %3513 = vmatprep.subr.mxu0 0.0
  %3514 = vmatpush1.xpose.msra.mxu0 0.0
  %3515 = vmatprep.subr.mxu0 0.0
  %3516 = vmatpush1.xpose.msra.mxu0 0.0
  %3517 = vmatprep.subr.mxu0 0.0
  %3518 = vmatpush1.xpose.msra.mxu0 0.0
  %3519 = vmatprep.subr.mxu0 0.0
  %3520 = vmatpush1.xpose.msra.mxu0 0.0
  %3521 = vmatprep.subr.mxu0 0.0
  %3522 = vmatpush1.xpose.msra.mxu0 0.0
  %3523 = vmatprep.subr.mxu0 0.0
  %3524 = vmatpush1.xpose.msra.mxu0 0.0
  %3525 = vmatprep.subr.mxu0 0.0
  %3526 = vmatpush1.xpose.msra.mxu0 0.0
  %3527 = vmatprep.subr.mxu0 0.0
  %3528 = vmatpush1.xpose.msra.mxu0 0.0
  %3529 = vmatprep.subr.mxu0 0.0
  %3530 = vmatpush1.xpose.msra.mxu0 0.0
  %3531 = vmatprep.subr.mxu0 0.0
  %3532 = vmatpush1.xpose.msra.mxu0 0.0
  %3533 = vmatprep.subr.mxu0 0.0
  %3534 = vmatpush1.xpose.msra.mxu0 0.0
  %3535 = vmatprep.subr.mxu0 0.0
  %3536 = vmatpush1.xpose.msra.mxu0 0.0
  %3537 = vmatprep.subr.mxu0 0.0
  %3538 = vmatpush1.xpose.msra.mxu0 0.0
  %3539 = vmatprep.subr.mxu0 0.0
  %3540 = vmatpush1.xpose.msra.mxu0 0.0
  %3541 = vmatprep.subr.mxu0 0.0
  %3542 = vmatpush1.xpose.msra.mxu0 0.0
  %3543 = vmatprep.subr.mxu0 0.0
  %3544 = vmatpush1.xpose.msra.mxu0 %v3511
  %3545 = vmatprep.subr.mxu0 0.0
  %3546 = vmatpush2.xpose.msra.mxu0 0.0
  %3547 = vmatprep.subr.mxu0 0.0
  %3548 = vmatpush2.xpose.msra.mxu0 0.0
  %3549 = vmatprep.subr.mxu0 0.0
  %3550 = vmatpush2.xpose.msra.mxu0 0.0
  %3551 = vmatprep.subr.mxu0 0.0
  %3552 = vmatpush2.xpose.msra.mxu0 0.0
  %3553 = vmatprep.subr.mxu0 0.0
  %3554 = vmatpush2.xpose.msra.mxu0 0.0
  %3555 = vmatprep.subr.mxu0 0.0
  %3556 = vmatpush2.xpose.msra.mxu0 0.0
  %3557 = vmatprep.subr.mxu0 0.0
  %3558 = vmatpush2.xpose.msra.mxu0 0.0
  %3559 = vmatprep.subr.mxu0 0.0
  %3560 = vmatpush2.xpose.msra.mxu0 0.0
  %3561 = vmatprep.subr.mxu0 0.0
  %3562 = vmatpush2.xpose.msra.mxu0 0.0
  %3563 = vmatprep.subr.mxu0 0.0
  %3564 = vmatpush2.xpose.msra.mxu0 0.0
  %3565 = vmatprep.subr.mxu0 0.0
  %3566 = vmatpush2.xpose.msra.mxu0 0.0
  %3567 = vmatprep.subr.mxu0 0.0
  %3568 = vmatpush2.xpose.msra.mxu0 0.0
  %3569 = vmatprep.subr.mxu0 0.0
  %3570 = vmatpush2.xpose.msra.mxu0 0.0
  %3571 = vmatprep.subr.mxu0 0.0
  %3572 = vmatpush2.xpose.msra.mxu0 0.0
  %3573 = vmatprep.subr.mxu0 0.0
  %3574 = vmatpush2.xpose.msra.mxu0 0.0
  %3575 = vmatprep.subr.mxu0 0.0
  %3576 = vmatpush2.xpose.msra.mxu0 0.0
  %3577 = vmatprep.mubr.f32.mxu0 0.0
  %3578 = vmatmul.mubr.f32.gmra.mxu0 %v3508
  %v3579 = vpop.f32.mrf.mxu0
  %v3580 = vadd.f32 %v248, %v3579
  %v3581 = vpop.f32.mrf.mxu0
  %3582 = vdwg.mxu0
  %v3584 = vsel %vm523, %v3328, 0
  %v3587 = vsel %vm523, %v3416, 0
  %3589 = vmatprep.subr.mxu0 0.0
  %3590 = vmatpush1.xpose.msra.mxu0 0.0
  %3591 = vmatprep.subr.mxu0 0.0
  %3592 = vmatpush1.xpose.msra.mxu0 0.0
  %3593 = vmatprep.subr.mxu0 0.0
  %3594 = vmatpush1.xpose.msra.mxu0 0.0
  %3595 = vmatprep.subr.mxu0 0.0
  %3596 = vmatpush1.xpose.msra.mxu0 0.0
  %3597 = vmatprep.subr.mxu0 0.0
  %3598 = vmatpush1.xpose.msra.mxu0 0.0
  %3599 = vmatprep.subr.mxu0 0.0
  %3600 = vmatpush1.xpose.msra.mxu0 0.0
  %3601 = vmatprep.subr.mxu0 0.0
  %3602 = vmatpush1.xpose.msra.mxu0 0.0
  %3603 = vmatprep.subr.mxu0 0.0
  %3604 = vmatpush1.xpose.msra.mxu0 0.0
  %3605 = vmatprep.subr.mxu0 0.0
  %3606 = vmatpush1.xpose.msra.mxu0 0.0
  %3607 = vmatprep.subr.mxu0 0.0
  %3608 = vmatpush1.xpose.msra.mxu0 0.0
  %3609 = vmatprep.subr.mxu0 0.0
  %3610 = vmatpush1.xpose.msra.mxu0 0.0
  %3611 = vmatprep.subr.mxu0 0.0
  %3612 = vmatpush1.xpose.msra.mxu0 0.0
  %3613 = vmatprep.subr.mxu0 0.0
  %3614 = vmatpush1.xpose.msra.mxu0 0.0
  %3615 = vmatprep.subr.mxu0 0.0
  %3616 = vmatpush1.xpose.msra.mxu0 0.0
  %3617 = vmatprep.subr.mxu0 0.0
  %3618 = vmatpush1.xpose.msra.mxu0 0.0
  %3619 = vmatprep.subr.mxu0 0.0
  %3620 = vmatpush1.xpose.msra.mxu0 %v3587
  %3621 = vmatprep.subr.mxu0 0.0
  %3622 = vmatpush2.xpose.msra.mxu0 0.0
  %3623 = vmatprep.subr.mxu0 0.0
  %3624 = vmatpush2.xpose.msra.mxu0 0.0
  %3625 = vmatprep.subr.mxu0 0.0
  %3626 = vmatpush2.xpose.msra.mxu0 0.0
  %3627 = vmatprep.subr.mxu0 0.0
  %3628 = vmatpush2.xpose.msra.mxu0 0.0
  %3629 = vmatprep.subr.mxu0 0.0
  %3630 = vmatpush2.xpose.msra.mxu0 0.0
  %3631 = vmatprep.subr.mxu0 0.0
  %3632 = vmatpush2.xpose.msra.mxu0 0.0
  %3633 = vmatprep.subr.mxu0 0.0
  %3634 = vmatpush2.xpose.msra.mxu0 0.0
  %3635 = vmatprep.subr.mxu0 0.0
  %3636 = vmatpush2.xpose.msra.mxu0 0.0
  %3637 = vmatprep.subr.mxu0 0.0
  %3638 = vmatpush2.xpose.msra.mxu0 0.0
  %3639 = vmatprep.subr.mxu0 0.0
  %3640 = vmatpush2.xpose.msra.mxu0 0.0
  %3641 = vmatprep.subr.mxu0 0.0
  %3642 = vmatpush2.xpose.msra.mxu0 0.0
  %3643 = vmatprep.subr.mxu0 0.0
  %3644 = vmatpush2.xpose.msra.mxu0 0.0
  %3645 = vmatprep.subr.mxu0 0.0
  %3646 = vmatpush2.xpose.msra.mxu0 0.0
  %3647 = vmatprep.subr.mxu0 0.0
  %3648 = vmatpush2.xpose.msra.mxu0 0.0
  %3649 = vmatprep.subr.mxu0 0.0
  %3650 = vmatpush2.xpose.msra.mxu0 0.0
  %3651 = vmatprep.subr.mxu0 0.0
  %3652 = vmatpush2.xpose.msra.mxu0 0.0
  %3653 = vmatprep.mubr.f32.mxu0 0.0
  %3654 = vmatmul.mubr.f32.gmra.mxu0 %v3584
  %v3655 = vpop.f32.mrf.mxu0
  %v3656 = vadd.f32 %v252, %v3655
  %v3657 = vpop.f32.mrf.mxu0
  %3658 = vdwg.mxu0
  %v3659 = vsel %vm523, %v3580, -inf
  %3660 = vmax.xlane.f32.xlu0 %v3659
  %v3661 = vpop.xlane.xlu0 %3660
  %v3662 = vsel %vm523, %v3656, -inf
  %3663 = vmax.xlane.f32.xlu0 %v3662
  %v3664 = vpop.xlane.xlu0 %3663
  %v3665 = vsub.f32 %v3580, %v3661
  %v3666 = vsub.f32 %v3656, %v3664
  %v3667 = vmul.f32 %v3665, 1.442695
  %v3668 = vpow.pop %v3667
  %v3669 = vmul.f32 %v3666, 1.442695
  %v3670 = vpow.pop %v3669
  %v3671 = vsel %vm523, %v3668, 0.0
  %3672 = vadd.xlane.f32.xlu0 %v3671
  %v3673 = vpop.xlane.xlu0 %3672
  %v3674 = vsel %vm523, %v3670, 0.0
  %3675 = vadd.xlane.f32.xlu0 %v3674
  %v3676 = vpop.xlane.xlu0 %3675
  %v3677 = vrcp.pop %v3673
  %v3678 = vrcp.pop %v3676
  %v3679 = vmul.f32 %v3668, %v3677
  %v3680 = vmul.f32 %v3670, %v3678
  %v3682 = vsel %vm523, %v3679, 0
  %3684 = vmatprep.subr.mxu0 0.0
  %3685 = vmatpush1.msra.mxu0 0.0
  %3686 = vmatprep.subr.mxu0 0.0
  %3687 = vmatpush1.msra.mxu0 0.0
  %3688 = vmatprep.subr.mxu0 0.0
  %3689 = vmatpush1.msra.mxu0 0.0
  %3690 = vmatprep.subr.mxu0 0.0
  %3691 = vmatpush1.msra.mxu0 0.0
  %3692 = vmatprep.subr.mxu0 0.0
  %3693 = vmatpush1.msra.mxu0 0.0
  %3694 = vmatprep.subr.mxu0 0.0
  %3695 = vmatpush1.msra.mxu0 0.0
  %3696 = vmatprep.subr.mxu0 0.0
  %3697 = vmatpush1.msra.mxu0 0.0
  %3698 = vmatprep.subr.mxu0 0.0
  %3699 = vmatpush1.msra.mxu0 0.0
  %3700 = vmatprep.subr.mxu0 0.0
  %3701 = vmatpush1.msra.mxu0 0.0
  %3702 = vmatprep.subr.mxu0 0.0
  %3703 = vmatpush1.msra.mxu0 0.0
  %3704 = vmatprep.subr.mxu0 0.0
  %3705 = vmatpush1.msra.mxu0 0.0
  %3706 = vmatprep.subr.mxu0 0.0
  %3707 = vmatpush1.msra.mxu0 0.0
  %3708 = vmatprep.subr.mxu0 0.0
  %3709 = vmatpush1.msra.mxu0 0.0
  %3710 = vmatprep.subr.mxu0 0.0
  %3711 = vmatpush1.msra.mxu0 0.0
  %3712 = vmatprep.subr.mxu0 0.0
  %3713 = vmatpush1.msra.mxu0 0.0
  %3714 = vmatprep.subr.mxu0 0.0
  %3715 = vmatpush1.msra.mxu0 %v3499
  %3716 = vmatprep.subr.mxu0 0.0
  %3717 = vmatpush2.msra.mxu0 0.0
  %3718 = vmatprep.subr.mxu0 0.0
  %3719 = vmatpush2.msra.mxu0 0.0
  %3720 = vmatprep.subr.mxu0 0.0
  %3721 = vmatpush2.msra.mxu0 0.0
  %3722 = vmatprep.subr.mxu0 0.0
  %3723 = vmatpush2.msra.mxu0 0.0
  %3724 = vmatprep.subr.mxu0 0.0
  %3725 = vmatpush2.msra.mxu0 0.0
  %3726 = vmatprep.subr.mxu0 0.0
  %3727 = vmatpush2.msra.mxu0 0.0
  %3728 = vmatprep.subr.mxu0 0.0
  %3729 = vmatpush2.msra.mxu0 0.0
  %3730 = vmatprep.subr.mxu0 0.0
  %3731 = vmatpush2.msra.mxu0 0.0
  %3732 = vmatprep.subr.mxu0 0.0
  %3733 = vmatpush2.msra.mxu0 0.0
  %3734 = vmatprep.subr.mxu0 0.0
  %3735 = vmatpush2.msra.mxu0 0.0
  %3736 = vmatprep.subr.mxu0 0.0
  %3737 = vmatpush2.msra.mxu0 0.0
  %3738 = vmatprep.subr.mxu0 0.0
  %3739 = vmatpush2.msra.mxu0 0.0
  %3740 = vmatprep.subr.mxu0 0.0
  %3741 = vmatpush2.msra.mxu0 0.0
  %3742 = vmatprep.subr.mxu0 0.0
  %3743 = vmatpush2.msra.mxu0 0.0
  %3744 = vmatprep.subr.mxu0 0.0
  %3745 = vmatpush2.msra.mxu0 0.0
  %3746 = vmatprep.subr.mxu0 0.0
  %3747 = vmatpush2.msra.mxu0 0.0
  %3748 = vmatprep.mubr.f32.mxu0 0.0
  %3749 = vmatmul.mubr.f32.gmra.mxu0 %v3682
  %v3750 = vpop.f32.mrf.mxu0
  %v3751 = vadd.f32 0.0, %v3750
  %v3752 = vpop.f32.mrf.mxu0
  %3753 = vdwg.mxu0
  %v3755 = vsel %vm523, %v3680, 0
  %3757 = vmatprep.subr.mxu0 0.0
  %3758 = vmatpush1.msra.mxu0 0.0
  %3759 = vmatprep.subr.mxu0 0.0
  %3760 = vmatpush1.msra.mxu0 0.0
  %3761 = vmatprep.subr.mxu0 0.0
  %3762 = vmatpush1.msra.mxu0 0.0
  %3763 = vmatprep.subr.mxu0 0.0
  %3764 = vmatpush1.msra.mxu0 0.0
  %3765 = vmatprep.subr.mxu0 0.0
  %3766 = vmatpush1.msra.mxu0 0.0
  %3767 = vmatprep.subr.mxu0 0.0
  %3768 = vmatpush1.msra.mxu0 0.0
  %3769 = vmatprep.subr.mxu0 0.0
  %3770 = vmatpush1.msra.mxu0 0.0
  %3771 = vmatprep.subr.mxu0 0.0
  %3772 = vmatpush1.msra.mxu0 0.0
  %3773 = vmatprep.subr.mxu0 0.0
  %3774 = vmatpush1.msra.mxu0 0.0
  %3775 = vmatprep.subr.mxu0 0.0
  %3776 = vmatpush1.msra.mxu0 0.0
  %3777 = vmatprep.subr.mxu0 0.0
  %3778 = vmatpush1.msra.mxu0 0.0
  %3779 = vmatprep.subr.mxu0 0.0
  %3780 = vmatpush1.msra.mxu0 0.0
  %3781 = vmatprep.subr.mxu0 0.0
  %3782 = vmatpush1.msra.mxu0 0.0
  %3783 = vmatprep.subr.mxu0 0.0
  %3784 = vmatpush1.msra.mxu0 0.0
  %3785 = vmatprep.subr.mxu0 0.0
  %3786 = vmatpush1.msra.mxu0 0.0
  %3787 = vmatprep.subr.mxu0 0.0
  %3788 = vmatpush1.msra.mxu0 %v3504
  %3789 = vmatprep.subr.mxu0 0.0
  %3790 = vmatpush2.msra.mxu0 0.0
  %3791 = vmatprep.subr.mxu0 0.0
  %3792 = vmatpush2.msra.mxu0 0.0
  %3793 = vmatprep.subr.mxu0 0.0
  %3794 = vmatpush2.msra.mxu0 0.0
  %3795 = vmatprep.subr.mxu0 0.0
  %3796 = vmatpush2.msra.mxu0 0.0
  %3797 = vmatprep.subr.mxu0 0.0
  %3798 = vmatpush2.msra.mxu0 0.0
  %3799 = vmatprep.subr.mxu0 0.0
  %3800 = vmatpush2.msra.mxu0 0.0
  %3801 = vmatprep.subr.mxu0 0.0
  %3802 = vmatpush2.msra.mxu0 0.0
  %3803 = vmatprep.subr.mxu0 0.0
  %3804 = vmatpush2.msra.mxu0 0.0
  %3805 = vmatprep.subr.mxu0 0.0
  %3806 = vmatpush2.msra.mxu0 0.0
  %3807 = vmatprep.subr.mxu0 0.0
  %3808 = vmatpush2.msra.mxu0 0.0
  %3809 = vmatprep.subr.mxu0 0.0
  %3810 = vmatpush2.msra.mxu0 0.0
  %3811 = vmatprep.subr.mxu0 0.0
  %3812 = vmatpush2.msra.mxu0 0.0
  %3813 = vmatprep.subr.mxu0 0.0
  %3814 = vmatpush2.msra.mxu0 0.0
  %3815 = vmatprep.subr.mxu0 0.0
  %3816 = vmatpush2.msra.mxu0 0.0
  %3817 = vmatprep.subr.mxu0 0.0
  %3818 = vmatpush2.msra.mxu0 0.0
  %3819 = vmatprep.subr.mxu0 0.0
  %3820 = vmatpush2.msra.mxu0 0.0
  %3821 = vmatprep.mubr.f32.mxu0 0.0
  %3822 = vmatmul.mubr.f32.gmra.mxu0 %v3755
  %v3823 = vpop.f32.mrf.mxu0
  %v3824 = vadd.f32 0.0, %v3823
  %v3825 = vpop.f32.mrf.mxu0
  %3826 = vdwg.mxu0
  %s3827 = scalar_lea.vmem %s7, 32
  %v3828 = vld [vmem:[%s3827] sm:$0xff]
  %s3829 = scalar_lea.vmem %s5, 416
  %v3830 = vld [vmem:[%s3829] sm:$0xff]
  %v3831 = vld [vmem:[%s3829 + $0x8] sm:$0xff]
  %v3832 = vld [vmem:[%s3829 + $0x10] sm:$0xff]
  %v3833 = vld [vmem:[%s3829 + $0x18] sm:$0xff]
  %s3834 = scalar_lea.vmem %s6, 13
  %v3835 = vld [vmem:[%s3834] sm:$0x1]
  %v3837 = vlaneseq
  %v3838 = vshrl.u32 %v3837, 7
  %v3839 = vsub.s32 0, %v3838
  %v3840 = vrot.slane %v3835, %v3839
  %3842 = vmatprep.subr.mxu0 0.0
  %3843 = vmatpush1.msra.mxu0 0.0
  %3844 = vmatprep.subr.mxu0 0.0
  %3845 = vmatpush1.msra.mxu0 0.0
  %3846 = vmatprep.subr.mxu0 0.0
  %3847 = vmatpush1.msra.mxu0 0.0
  %3848 = vmatprep.subr.mxu0 0.0
  %3849 = vmatpush1.msra.mxu0 0.0
  %3850 = vmatprep.subr.mxu0 0.0
  %3851 = vmatpush1.msra.mxu0 0.0
  %3852 = vmatprep.subr.mxu0 0.0
  %3853 = vmatpush1.msra.mxu0 0.0
  %3854 = vmatprep.subr.mxu0 0.0
  %3855 = vmatpush1.msra.mxu0 0.0
  %3856 = vmatprep.subr.mxu0 0.0
  %3857 = vmatpush1.msra.mxu0 0.0
  %3858 = vmatprep.subr.mxu0 0.0
  %3859 = vmatpush1.msra.mxu0 0.0
  %3860 = vmatprep.subr.mxu0 0.0
  %3861 = vmatpush1.msra.mxu0 0.0
  %3862 = vmatprep.subr.mxu0 0.0
  %3863 = vmatpush1.msra.mxu0 0.0
  %3864 = vmatprep.subr.mxu0 0.0
  %3865 = vmatpush1.msra.mxu0 0.0
  %3866 = vmatprep.subr.mxu0 0.0
  %3867 = vmatpush1.msra.mxu0 %v3833
  %3868 = vmatprep.subr.mxu0 0.0
  %3869 = vmatpush1.msra.mxu0 %v3832
  %3870 = vmatprep.subr.mxu0 0.0
  %3871 = vmatpush1.msra.mxu0 %v3831
  %3872 = vmatprep.subr.mxu0 0.0
  %3873 = vmatpush1.msra.mxu0 %v3830
  %3874 = vmatprep.subr.mxu0 0.0
  %3875 = vmatpush2.msra.mxu0 0.0
  %3876 = vmatprep.subr.mxu0 0.0
  %3877 = vmatpush2.msra.mxu0 0.0
  %3878 = vmatprep.subr.mxu0 0.0
  %3879 = vmatpush2.msra.mxu0 0.0
  %3880 = vmatprep.subr.mxu0 0.0
  %3881 = vmatpush2.msra.mxu0 0.0
  %3882 = vmatprep.subr.mxu0 0.0
  %3883 = vmatpush2.msra.mxu0 0.0
  %3884 = vmatprep.subr.mxu0 0.0
  %3885 = vmatpush2.msra.mxu0 0.0
  %3886 = vmatprep.subr.mxu0 0.0
  %3887 = vmatpush2.msra.mxu0 0.0
  %3888 = vmatprep.subr.mxu0 0.0
  %3889 = vmatpush2.msra.mxu0 0.0
  %3890 = vmatprep.subr.mxu0 0.0
  %3891 = vmatpush2.msra.mxu0 0.0
  %3892 = vmatprep.subr.mxu0 0.0
  %3893 = vmatpush2.msra.mxu0 0.0
  %3894 = vmatprep.subr.mxu0 0.0
  %3895 = vmatpush2.msra.mxu0 0.0
  %3896 = vmatprep.subr.mxu0 0.0
  %3897 = vmatpush2.msra.mxu0 0.0
  %3898 = vmatprep.subr.mxu0 0.0
  %3899 = vmatpush2.msra.mxu0 0.0
  %3900 = vmatprep.subr.mxu0 0.0
  %3901 = vmatpush2.msra.mxu0 0.0
  %3902 = vmatprep.subr.mxu0 0.0
  %3903 = vmatpush2.msra.mxu0 0.0
  %3904 = vmatprep.subr.mxu0 0.0
  %3905 = vmatpush2.msra.mxu0 0.0
  %3906 = vmatprep.mubr.f32.mxu0 0.0
  %3907 = vmatmul.mubr.f32.gmra.mxu0 %v3251
  %v3908 = vpop.f32.mrf.mxu0
  %v3909 = vadd.f32 %v3840, %v3908
  %v3910 = vpop.f32.mrf.mxu0
  %3911 = vmatprep.mubr.f32.mxu0 0.0
  %3912 = vmatmul.mubr.f32.gmra.mxu0 %v3254
  %v3913 = vpop.f32.mrf.mxu0
  %v3914 = vadd.f32 %v3840, %v3913
  %v3915 = vpop.f32.mrf.mxu0
  %3916 = vdwg.mxu0
  %s3917 = scalar_lea.vmem %s5, 544
  %v3918 = vld [vmem:[%s3917] sm:$0xff]
  %v3919 = vld [vmem:[%s3917 + $0x8] sm:$0xff]
  %v3920 = vld [vmem:[%s3917 + $0x10] sm:$0xff]
  %v3921 = vld [vmem:[%s3917 + $0x18] sm:$0xff]
  %s3922 = scalar_lea.vmem %s6, 17
  %v3923 = vld [vmem:[%s3922] sm:$0x1]
  %v3925 = vlaneseq
  %v3926 = vshrl.u32 %v3925, 7
  %v3927 = vsub.s32 0, %v3926
  %v3928 = vrot.slane %v3923, %v3927
  %3930 = vmatprep.subr.mxu0 0.0
  %3931 = vmatpush1.msra.mxu0 0.0
  %3932 = vmatprep.subr.mxu0 0.0
  %3933 = vmatpush1.msra.mxu0 0.0
  %3934 = vmatprep.subr.mxu0 0.0
  %3935 = vmatpush1.msra.mxu0 0.0
  %3936 = vmatprep.subr.mxu0 0.0
  %3937 = vmatpush1.msra.mxu0 0.0
  %3938 = vmatprep.subr.mxu0 0.0
  %3939 = vmatpush1.msra.mxu0 0.0
  %3940 = vmatprep.subr.mxu0 0.0
  %3941 = vmatpush1.msra.mxu0 0.0
  %3942 = vmatprep.subr.mxu0 0.0
  %3943 = vmatpush1.msra.mxu0 0.0
  %3944 = vmatprep.subr.mxu0 0.0
  %3945 = vmatpush1.msra.mxu0 0.0
  %3946 = vmatprep.subr.mxu0 0.0
  %3947 = vmatpush1.msra.mxu0 0.0
  %3948 = vmatprep.subr.mxu0 0.0
  %3949 = vmatpush1.msra.mxu0 0.0
  %3950 = vmatprep.subr.mxu0 0.0
  %3951 = vmatpush1.msra.mxu0 0.0
  %3952 = vmatprep.subr.mxu0 0.0
  %3953 = vmatpush1.msra.mxu0 0.0
  %3954 = vmatprep.subr.mxu0 0.0
  %3955 = vmatpush1.msra.mxu0 %v3921
  %3956 = vmatprep.subr.mxu0 0.0
  %3957 = vmatpush1.msra.mxu0 %v3920
  %3958 = vmatprep.subr.mxu0 0.0
  %3959 = vmatpush1.msra.mxu0 %v3919
  %3960 = vmatprep.subr.mxu0 0.0
  %3961 = vmatpush1.msra.mxu0 %v3918
  %3962 = vmatprep.subr.mxu0 0.0
  %3963 = vmatpush2.msra.mxu0 0.0
  %3964 = vmatprep.subr.mxu0 0.0
  %3965 = vmatpush2.msra.mxu0 0.0
  %3966 = vmatprep.subr.mxu0 0.0
  %3967 = vmatpush2.msra.mxu0 0.0
  %3968 = vmatprep.subr.mxu0 0.0
  %3969 = vmatpush2.msra.mxu0 0.0
  %3970 = vmatprep.subr.mxu0 0.0
  %3971 = vmatpush2.msra.mxu0 0.0
  %3972 = vmatprep.subr.mxu0 0.0
  %3973 = vmatpush2.msra.mxu0 0.0
  %3974 = vmatprep.subr.mxu0 0.0
  %3975 = vmatpush2.msra.mxu0 0.0
  %3976 = vmatprep.subr.mxu0 0.0
  %3977 = vmatpush2.msra.mxu0 0.0
  %3978 = vmatprep.subr.mxu0 0.0
  %3979 = vmatpush2.msra.mxu0 0.0
  %3980 = vmatprep.subr.mxu0 0.0
  %3981 = vmatpush2.msra.mxu0 0.0
  %3982 = vmatprep.subr.mxu0 0.0
  %3983 = vmatpush2.msra.mxu0 0.0
  %3984 = vmatprep.subr.mxu0 0.0
  %3985 = vmatpush2.msra.mxu0 0.0
  %3986 = vmatprep.subr.mxu0 0.0
  %3987 = vmatpush2.msra.mxu0 0.0
  %3988 = vmatprep.subr.mxu0 0.0
  %3989 = vmatpush2.msra.mxu0 0.0
  %3990 = vmatprep.subr.mxu0 0.0
  %3991 = vmatpush2.msra.mxu0 0.0
  %3992 = vmatprep.subr.mxu0 0.0
  %3993 = vmatpush2.msra.mxu0 0.0
  %3994 = vmatprep.mubr.f32.mxu0 0.0
  %3995 = vmatmul.mubr.f32.gmra.mxu0 %v3251
  %v3996 = vpop.f32.mrf.mxu0
  %v3997 = vadd.f32 %v3928, %v3996
  %v3998 = vpop.f32.mrf.mxu0
  %3999 = vmatprep.mubr.f32.mxu0 0.0
  %4000 = vmatmul.mubr.f32.gmra.mxu0 %v3254
  %v4001 = vpop.f32.mrf.mxu0
  %v4002 = vadd.f32 %v3928, %v4001
  %v4003 = vpop.f32.mrf.mxu0
  %4004 = vdwg.mxu0
  %s4005 = scalar_lea.vmem %s5, 672
  %v4006 = vld [vmem:[%s4005] sm:$0xff]
  %v4007 = vld [vmem:[%s4005 + $0x8] sm:$0xff]
  %v4008 = vld [vmem:[%s4005 + $0x10] sm:$0xff]
  %v4009 = vld [vmem:[%s4005 + $0x18] sm:$0xff]
  %s4010 = scalar_lea.vmem %s6, 21
  %v4011 = vld [vmem:[%s4010] sm:$0x1]
  %v4013 = vlaneseq
  %v4014 = vshrl.u32 %v4013, 7
  %v4015 = vsub.s32 0, %v4014
  %v4016 = vrot.slane %v4011, %v4015
  %4018 = vmatprep.subr.mxu0 0.0
  %4019 = vmatpush1.msra.mxu0 0.0
  %4020 = vmatprep.subr.mxu0 0.0
  %4021 = vmatpush1.msra.mxu0 0.0
  %4022 = vmatprep.subr.mxu0 0.0
  %4023 = vmatpush1.msra.mxu0 0.0
  %4024 = vmatprep.subr.mxu0 0.0
  %4025 = vmatpush1.msra.mxu0 0.0
  %4026 = vmatprep.subr.mxu0 0.0
  %4027 = vmatpush1.msra.mxu0 0.0
  %4028 = vmatprep.subr.mxu0 0.0
  %4029 = vmatpush1.msra.mxu0 0.0
  %4030 = vmatprep.subr.mxu0 0.0
  %4031 = vmatpush1.msra.mxu0 0.0
  %4032 = vmatprep.subr.mxu0 0.0
  %4033 = vmatpush1.msra.mxu0 0.0
  %4034 = vmatprep.subr.mxu0 0.0
  %4035 = vmatpush1.msra.mxu0 0.0
  %4036 = vmatprep.subr.mxu0 0.0
  %4037 = vmatpush1.msra.mxu0 0.0
  %4038 = vmatprep.subr.mxu0 0.0
  %4039 = vmatpush1.msra.mxu0 0.0
  %4040 = vmatprep.subr.mxu0 0.0
  %4041 = vmatpush1.msra.mxu0 0.0
  %4042 = vmatprep.subr.mxu0 0.0
  %4043 = vmatpush1.msra.mxu0 %v4009
  %4044 = vmatprep.subr.mxu0 0.0
  %4045 = vmatpush1.msra.mxu0 %v4008
  %4046 = vmatprep.subr.mxu0 0.0
  %4047 = vmatpush1.msra.mxu0 %v4007
  %4048 = vmatprep.subr.mxu0 0.0
  %4049 = vmatpush1.msra.mxu0 %v4006
  %4050 = vmatprep.subr.mxu0 0.0
  %4051 = vmatpush2.msra.mxu0 0.0
  %4052 = vmatprep.subr.mxu0 0.0
  %4053 = vmatpush2.msra.mxu0 0.0
  %4054 = vmatprep.subr.mxu0 0.0
  %4055 = vmatpush2.msra.mxu0 0.0
  %4056 = vmatprep.subr.mxu0 0.0
  %4057 = vmatpush2.msra.mxu0 0.0
  %4058 = vmatprep.subr.mxu0 0.0
  %4059 = vmatpush2.msra.mxu0 0.0
  %4060 = vmatprep.subr.mxu0 0.0
  %4061 = vmatpush2.msra.mxu0 0.0
  %4062 = vmatprep.subr.mxu0 0.0
  %4063 = vmatpush2.msra.mxu0 0.0
  %4064 = vmatprep.subr.mxu0 0.0
  %4065 = vmatpush2.msra.mxu0 0.0
  %4066 = vmatprep.subr.mxu0 0.0
  %4067 = vmatpush2.msra.mxu0 0.0
  %4068 = vmatprep.subr.mxu0 0.0
  %4069 = vmatpush2.msra.mxu0 0.0
  %4070 = vmatprep.subr.mxu0 0.0
  %4071 = vmatpush2.msra.mxu0 0.0
  %4072 = vmatprep.subr.mxu0 0.0
  %4073 = vmatpush2.msra.mxu0 0.0
  %4074 = vmatprep.subr.mxu0 0.0
  %4075 = vmatpush2.msra.mxu0 0.0
  %4076 = vmatprep.subr.mxu0 0.0
  %4077 = vmatpush2.msra.mxu0 0.0
  %4078 = vmatprep.subr.mxu0 0.0
  %4079 = vmatpush2.msra.mxu0 0.0
  %4080 = vmatprep.subr.mxu0 0.0
  %4081 = vmatpush2.msra.mxu0 0.0
  %4082 = vmatprep.mubr.f32.mxu0 0.0
  %4083 = vmatmul.mubr.f32.gmra.mxu0 %v3251
  %v4084 = vpop.f32.mrf.mxu0
  %v4085 = vadd.f32 %v4016, %v4084
  %v4086 = vpop.f32.mrf.mxu0
  %4087 = vmatprep.mubr.f32.mxu0 0.0
  %4088 = vmatmul.mubr.f32.gmra.mxu0 %v3254
  %v4089 = vpop.f32.mrf.mxu0
  %v4090 = vadd.f32 %v4016, %v4089
  %v4091 = vpop.f32.mrf.mxu0
  %4092 = vdwg.mxu0
  %v4094 = vsel %vm523, %v3909, 0
  %v4097 = vsel %vm523, %v3997, 0
  %4099 = vmatprep.subr.mxu0 0.0
  %4100 = vmatpush1.xpose.msra.mxu0 0.0
  %4101 = vmatprep.subr.mxu0 0.0
  %4102 = vmatpush1.xpose.msra.mxu0 0.0
  %4103 = vmatprep.subr.mxu0 0.0
  %4104 = vmatpush1.xpose.msra.mxu0 0.0
  %4105 = vmatprep.subr.mxu0 0.0
  %4106 = vmatpush1.xpose.msra.mxu0 0.0
  %4107 = vmatprep.subr.mxu0 0.0
  %4108 = vmatpush1.xpose.msra.mxu0 0.0
  %4109 = vmatprep.subr.mxu0 0.0
  %4110 = vmatpush1.xpose.msra.mxu0 0.0
  %4111 = vmatprep.subr.mxu0 0.0
  %4112 = vmatpush1.xpose.msra.mxu0 0.0
  %4113 = vmatprep.subr.mxu0 0.0
  %4114 = vmatpush1.xpose.msra.mxu0 0.0
  %4115 = vmatprep.subr.mxu0 0.0
  %4116 = vmatpush1.xpose.msra.mxu0 0.0
  %4117 = vmatprep.subr.mxu0 0.0
  %4118 = vmatpush1.xpose.msra.mxu0 0.0
  %4119 = vmatprep.subr.mxu0 0.0
  %4120 = vmatpush1.xpose.msra.mxu0 0.0
  %4121 = vmatprep.subr.mxu0 0.0
  %4122 = vmatpush1.xpose.msra.mxu0 0.0
  %4123 = vmatprep.subr.mxu0 0.0
  %4124 = vmatpush1.xpose.msra.mxu0 0.0
  %4125 = vmatprep.subr.mxu0 0.0
  %4126 = vmatpush1.xpose.msra.mxu0 0.0
  %4127 = vmatprep.subr.mxu0 0.0
  %4128 = vmatpush1.xpose.msra.mxu0 0.0
  %4129 = vmatprep.subr.mxu0 0.0
  %4130 = vmatpush1.xpose.msra.mxu0 %v4097
  %4131 = vmatprep.subr.mxu0 0.0
  %4132 = vmatpush2.xpose.msra.mxu0 0.0
  %4133 = vmatprep.subr.mxu0 0.0
  %4134 = vmatpush2.xpose.msra.mxu0 0.0
  %4135 = vmatprep.subr.mxu0 0.0
  %4136 = vmatpush2.xpose.msra.mxu0 0.0
  %4137 = vmatprep.subr.mxu0 0.0
  %4138 = vmatpush2.xpose.msra.mxu0 0.0
  %4139 = vmatprep.subr.mxu0 0.0
  %4140 = vmatpush2.xpose.msra.mxu0 0.0
  %4141 = vmatprep.subr.mxu0 0.0
  %4142 = vmatpush2.xpose.msra.mxu0 0.0
  %4143 = vmatprep.subr.mxu0 0.0
  %4144 = vmatpush2.xpose.msra.mxu0 0.0
  %4145 = vmatprep.subr.mxu0 0.0
  %4146 = vmatpush2.xpose.msra.mxu0 0.0
  %4147 = vmatprep.subr.mxu0 0.0
  %4148 = vmatpush2.xpose.msra.mxu0 0.0
  %4149 = vmatprep.subr.mxu0 0.0
  %4150 = vmatpush2.xpose.msra.mxu0 0.0
  %4151 = vmatprep.subr.mxu0 0.0
  %4152 = vmatpush2.xpose.msra.mxu0 0.0
  %4153 = vmatprep.subr.mxu0 0.0
  %4154 = vmatpush2.xpose.msra.mxu0 0.0
  %4155 = vmatprep.subr.mxu0 0.0
  %4156 = vmatpush2.xpose.msra.mxu0 0.0
  %4157 = vmatprep.subr.mxu0 0.0
  %4158 = vmatpush2.xpose.msra.mxu0 0.0
  %4159 = vmatprep.subr.mxu0 0.0
  %4160 = vmatpush2.xpose.msra.mxu0 0.0
  %4161 = vmatprep.subr.mxu0 0.0
  %4162 = vmatpush2.xpose.msra.mxu0 0.0
  %4163 = vmatprep.mubr.f32.mxu0 0.0
  %4164 = vmatmul.mubr.f32.gmra.mxu0 %v4094
  %v4165 = vpop.f32.mrf.mxu0
  %v4166 = vadd.f32 %v248, %v4165
  %v4167 = vpop.f32.mrf.mxu0
  %4168 = vdwg.mxu0
  %v4170 = vsel %vm523, %v3914, 0
  %v4173 = vsel %vm523, %v4002, 0
  %4175 = vmatprep.subr.mxu0 0.0
  %4176 = vmatpush1.xpose.msra.mxu0 0.0
  %4177 = vmatprep.subr.mxu0 0.0
  %4178 = vmatpush1.xpose.msra.mxu0 0.0
  %4179 = vmatprep.subr.mxu0 0.0
  %4180 = vmatpush1.xpose.msra.mxu0 0.0
  %4181 = vmatprep.subr.mxu0 0.0
  %4182 = vmatpush1.xpose.msra.mxu0 0.0
  %4183 = vmatprep.subr.mxu0 0.0
  %4184 = vmatpush1.xpose.msra.mxu0 0.0
  %4185 = vmatprep.subr.mxu0 0.0
  %4186 = vmatpush1.xpose.msra.mxu0 0.0
  %4187 = vmatprep.subr.mxu0 0.0
  %4188 = vmatpush1.xpose.msra.mxu0 0.0
  %4189 = vmatprep.subr.mxu0 0.0
  %4190 = vmatpush1.xpose.msra.mxu0 0.0
  %4191 = vmatprep.subr.mxu0 0.0
  %4192 = vmatpush1.xpose.msra.mxu0 0.0
  %4193 = vmatprep.subr.mxu0 0.0
  %4194 = vmatpush1.xpose.msra.mxu0 0.0
  %4195 = vmatprep.subr.mxu0 0.0
  %4196 = vmatpush1.xpose.msra.mxu0 0.0
  %4197 = vmatprep.subr.mxu0 0.0
  %4198 = vmatpush1.xpose.msra.mxu0 0.0
  %4199 = vmatprep.subr.mxu0 0.0
  %4200 = vmatpush1.xpose.msra.mxu0 0.0
  %4201 = vmatprep.subr.mxu0 0.0
  %4202 = vmatpush1.xpose.msra.mxu0 0.0
  %4203 = vmatprep.subr.mxu0 0.0
  %4204 = vmatpush1.xpose.msra.mxu0 0.0
  %4205 = vmatprep.subr.mxu0 0.0
  %4206 = vmatpush1.xpose.msra.mxu0 %v4173
  %4207 = vmatprep.subr.mxu0 0.0
  %4208 = vmatpush2.xpose.msra.mxu0 0.0
  %4209 = vmatprep.subr.mxu0 0.0
  %4210 = vmatpush2.xpose.msra.mxu0 0.0
  %4211 = vmatprep.subr.mxu0 0.0
  %4212 = vmatpush2.xpose.msra.mxu0 0.0
  %4213 = vmatprep.subr.mxu0 0.0
  %4214 = vmatpush2.xpose.msra.mxu0 0.0
  %4215 = vmatprep.subr.mxu0 0.0
  %4216 = vmatpush2.xpose.msra.mxu0 0.0
  %4217 = vmatprep.subr.mxu0 0.0
  %4218 = vmatpush2.xpose.msra.mxu0 0.0
  %4219 = vmatprep.subr.mxu0 0.0
  %4220 = vmatpush2.xpose.msra.mxu0 0.0
  %4221 = vmatprep.subr.mxu0 0.0
  %4222 = vmatpush2.xpose.msra.mxu0 0.0
  %4223 = vmatprep.subr.mxu0 0.0
  %4224 = vmatpush2.xpose.msra.mxu0 0.0
  %4225 = vmatprep.subr.mxu0 0.0
  %4226 = vmatpush2.xpose.msra.mxu0 0.0
  %4227 = vmatprep.subr.mxu0 0.0
  %4228 = vmatpush2.xpose.msra.mxu0 0.0
  %4229 = vmatprep.subr.mxu0 0.0
  %4230 = vmatpush2.xpose.msra.mxu0 0.0
  %4231 = vmatprep.subr.mxu0 0.0
  %4232 = vmatpush2.xpose.msra.mxu0 0.0
  %4233 = vmatprep.subr.mxu0 0.0
  %4234 = vmatpush2.xpose.msra.mxu0 0.0
  %4235 = vmatprep.subr.mxu0 0.0
  %4236 = vmatpush2.xpose.msra.mxu0 0.0
  %4237 = vmatprep.subr.mxu0 0.0
  %4238 = vmatpush2.xpose.msra.mxu0 0.0
  %4239 = vmatprep.mubr.f32.mxu0 0.0
  %4240 = vmatmul.mubr.f32.gmra.mxu0 %v4170
  %v4241 = vpop.f32.mrf.mxu0
  %v4242 = vadd.f32 %v252, %v4241
  %v4243 = vpop.f32.mrf.mxu0
  %4244 = vdwg.mxu0
  %v4245 = vsel %vm523, %v4166, -inf
  %4246 = vmax.xlane.f32.xlu0 %v4245
  %v4247 = vpop.xlane.xlu0 %4246
  %v4248 = vsel %vm523, %v4242, -inf
  %4249 = vmax.xlane.f32.xlu0 %v4248
  %v4250 = vpop.xlane.xlu0 %4249
  %v4251 = vsub.f32 %v4166, %v4247
  %v4252 = vsub.f32 %v4242, %v4250
  %v4253 = vmul.f32 %v4251, 1.442695
  %v4254 = vpow.pop %v4253
  %v4255 = vmul.f32 %v4252, 1.442695
  %v4256 = vpow.pop %v4255
  %v4257 = vsel %vm523, %v4254, 0.0
  %4258 = vadd.xlane.f32.xlu0 %v4257
  %v4259 = vpop.xlane.xlu0 %4258
  %v4260 = vsel %vm523, %v4256, 0.0
  %4261 = vadd.xlane.f32.xlu0 %v4260
  %v4262 = vpop.xlane.xlu0 %4261
  %v4263 = vrcp.pop %v4259
  %v4264 = vrcp.pop %v4262
  %v4265 = vmul.f32 %v4254, %v4263
  %v4266 = vmul.f32 %v4256, %v4264
  %v4268 = vsel %vm523, %v4265, 0
  %4270 = vmatprep.subr.mxu0 0.0
  %4271 = vmatpush1.msra.mxu0 0.0
  %4272 = vmatprep.subr.mxu0 0.0
  %4273 = vmatpush1.msra.mxu0 0.0
  %4274 = vmatprep.subr.mxu0 0.0
  %4275 = vmatpush1.msra.mxu0 0.0
  %4276 = vmatprep.subr.mxu0 0.0
  %4277 = vmatpush1.msra.mxu0 0.0
  %4278 = vmatprep.subr.mxu0 0.0
  %4279 = vmatpush1.msra.mxu0 0.0
  %4280 = vmatprep.subr.mxu0 0.0
  %4281 = vmatpush1.msra.mxu0 0.0
  %4282 = vmatprep.subr.mxu0 0.0
  %4283 = vmatpush1.msra.mxu0 0.0
  %4284 = vmatprep.subr.mxu0 0.0
  %4285 = vmatpush1.msra.mxu0 0.0
  %4286 = vmatprep.subr.mxu0 0.0
  %4287 = vmatpush1.msra.mxu0 0.0
  %4288 = vmatprep.subr.mxu0 0.0
  %4289 = vmatpush1.msra.mxu0 0.0
  %4290 = vmatprep.subr.mxu0 0.0
  %4291 = vmatpush1.msra.mxu0 0.0
  %4292 = vmatprep.subr.mxu0 0.0
  %4293 = vmatpush1.msra.mxu0 0.0
  %4294 = vmatprep.subr.mxu0 0.0
  %4295 = vmatpush1.msra.mxu0 0.0
  %4296 = vmatprep.subr.mxu0 0.0
  %4297 = vmatpush1.msra.mxu0 0.0
  %4298 = vmatprep.subr.mxu0 0.0
  %4299 = vmatpush1.msra.mxu0 0.0
  %4300 = vmatprep.subr.mxu0 0.0
  %4301 = vmatpush1.msra.mxu0 %v4085
  %4302 = vmatprep.subr.mxu0 0.0
  %4303 = vmatpush2.msra.mxu0 0.0
  %4304 = vmatprep.subr.mxu0 0.0
  %4305 = vmatpush2.msra.mxu0 0.0
  %4306 = vmatprep.subr.mxu0 0.0
  %4307 = vmatpush2.msra.mxu0 0.0
  %4308 = vmatprep.subr.mxu0 0.0
  %4309 = vmatpush2.msra.mxu0 0.0
  %4310 = vmatprep.subr.mxu0 0.0
  %4311 = vmatpush2.msra.mxu0 0.0
  %4312 = vmatprep.subr.mxu0 0.0
  %4313 = vmatpush2.msra.mxu0 0.0
  %4314 = vmatprep.subr.mxu0 0.0
  %4315 = vmatpush2.msra.mxu0 0.0
  %4316 = vmatprep.subr.mxu0 0.0
  %4317 = vmatpush2.msra.mxu0 0.0
  %4318 = vmatprep.subr.mxu0 0.0
  %4319 = vmatpush2.msra.mxu0 0.0
  %4320 = vmatprep.subr.mxu0 0.0
  %4321 = vmatpush2.msra.mxu0 0.0
  %4322 = vmatprep.subr.mxu0 0.0
  %4323 = vmatpush2.msra.mxu0 0.0
  %4324 = vmatprep.subr.mxu0 0.0
  %4325 = vmatpush2.msra.mxu0 0.0
  %4326 = vmatprep.subr.mxu0 0.0
  %4327 = vmatpush2.msra.mxu0 0.0
  %4328 = vmatprep.subr.mxu0 0.0
  %4329 = vmatpush2.msra.mxu0 0.0
  %4330 = vmatprep.subr.mxu0 0.0
  %4331 = vmatpush2.msra.mxu0 0.0
  %4332 = vmatprep.subr.mxu0 0.0
  %4333 = vmatpush2.msra.mxu0 0.0
  %4334 = vmatprep.mubr.f32.mxu0 0.0
  %4335 = vmatmul.mubr.f32.gmra.mxu0 %v4268
  %v4336 = vpop.f32.mrf.mxu0
  %v4337 = vadd.f32 0.0, %v4336
  %v4338 = vpop.f32.mrf.mxu0
  %4339 = vdwg.mxu0
  %v4341 = vsel %vm523, %v4266, 0
  %4343 = vmatprep.subr.mxu0 0.0
  %4344 = vmatpush1.msra.mxu0 0.0
  %4345 = vmatprep.subr.mxu0 0.0
  %4346 = vmatpush1.msra.mxu0 0.0
  %4347 = vmatprep.subr.mxu0 0.0
  %4348 = vmatpush1.msra.mxu0 0.0
  %4349 = vmatprep.subr.mxu0 0.0
  %4350 = vmatpush1.msra.mxu0 0.0
  %4351 = vmatprep.subr.mxu0 0.0
  %4352 = vmatpush1.msra.mxu0 0.0
  %4353 = vmatprep.subr.mxu0 0.0
  %4354 = vmatpush1.msra.mxu0 0.0
  %4355 = vmatprep.subr.mxu0 0.0
  %4356 = vmatpush1.msra.mxu0 0.0
  %4357 = vmatprep.subr.mxu0 0.0
  %4358 = vmatpush1.msra.mxu0 0.0
  %4359 = vmatprep.subr.mxu0 0.0
  %4360 = vmatpush1.msra.mxu0 0.0
  %4361 = vmatprep.subr.mxu0 0.0
  %4362 = vmatpush1.msra.mxu0 0.0
  %4363 = vmatprep.subr.mxu0 0.0
  %4364 = vmatpush1.msra.mxu0 0.0
  %4365 = vmatprep.subr.mxu0 0.0
  %4366 = vmatpush1.msra.mxu0 0.0
  %4367 = vmatprep.subr.mxu0 0.0
  %4368 = vmatpush1.msra.mxu0 0.0
  %4369 = vmatprep.subr.mxu0 0.0
  %4370 = vmatpush1.msra.mxu0 0.0
  %4371 = vmatprep.subr.mxu0 0.0
  %4372 = vmatpush1.msra.mxu0 0.0
  %4373 = vmatprep.subr.mxu0 0.0
  %4374 = vmatpush1.msra.mxu0 %v4090
  %4375 = vmatprep.subr.mxu0 0.0
  %4376 = vmatpush2.msra.mxu0 0.0
  %4377 = vmatprep.subr.mxu0 0.0
  %4378 = vmatpush2.msra.mxu0 0.0
  %4379 = vmatprep.subr.mxu0 0.0
  %4380 = vmatpush2.msra.mxu0 0.0
  %4381 = vmatprep.subr.mxu0 0.0
  %4382 = vmatpush2.msra.mxu0 0.0
  %4383 = vmatprep.subr.mxu0 0.0
  %4384 = vmatpush2.msra.mxu0 0.0
  %4385 = vmatprep.subr.mxu0 0.0
  %4386 = vmatpush2.msra.mxu0 0.0
  %4387 = vmatprep.subr.mxu0 0.0
  %4388 = vmatpush2.msra.mxu0 0.0
  %4389 = vmatprep.subr.mxu0 0.0
  %4390 = vmatpush2.msra.mxu0 0.0
  %4391 = vmatprep.subr.mxu0 0.0
  %4392 = vmatpush2.msra.mxu0 0.0
  %4393 = vmatprep.subr.mxu0 0.0
  %4394 = vmatpush2.msra.mxu0 0.0
  %4395 = vmatprep.subr.mxu0 0.0
  %4396 = vmatpush2.msra.mxu0 0.0
  %4397 = vmatprep.subr.mxu0 0.0
  %4398 = vmatpush2.msra.mxu0 0.0
  %4399 = vmatprep.subr.mxu0 0.0
  %4400 = vmatpush2.msra.mxu0 0.0
  %4401 = vmatprep.subr.mxu0 0.0
  %4402 = vmatpush2.msra.mxu0 0.0
  %4403 = vmatprep.subr.mxu0 0.0
  %4404 = vmatpush2.msra.mxu0 0.0
  %4405 = vmatprep.subr.mxu0 0.0
  %4406 = vmatpush2.msra.mxu0 0.0
  %4407 = vmatprep.mubr.f32.mxu0 0.0
  %4408 = vmatmul.mubr.f32.gmra.mxu0 %v4341
  %v4409 = vpop.f32.mrf.mxu0
  %v4410 = vadd.f32 0.0, %v4409
  %v4411 = vpop.f32.mrf.mxu0
  %4412 = vdwg.mxu0
  %s4413 = scalar_lea.vmem %s7, 40
  %v4414 = vld [vmem:[%s4413] sm:$0xff]
  %v4416 = vsel %vm523, %v4337, 0
  %v4419 = vsel %vm523, %v4410, 0
  %4421 = vmatprep.subr.mxu0 0.0
  %4422 = vmatpush1.msra.mxu0 0.0
  %4423 = vmatprep.subr.mxu0 0.0
  %4424 = vmatpush1.msra.mxu0 0.0
  %4425 = vmatprep.subr.mxu0 0.0
  %4426 = vmatpush1.msra.mxu0 0.0
  %4427 = vmatprep.subr.mxu0 0.0
  %4428 = vmatpush1.msra.mxu0 0.0
  %4429 = vmatprep.subr.mxu0 0.0
  %4430 = vmatpush1.msra.mxu0 0.0
  %4431 = vmatprep.subr.mxu0 0.0
  %4432 = vmatpush1.msra.mxu0 0.0
  %4433 = vmatprep.subr.mxu0 0.0
  %4434 = vmatpush1.msra.mxu0 0.0
  %4435 = vmatprep.subr.mxu0 0.0
  %4436 = vmatpush1.msra.mxu0 0.0
  %4437 = vmatprep.subr.mxu0 0.0
  %4438 = vmatpush1.msra.mxu0 0.0
  %4439 = vmatprep.subr.mxu0 0.0
  %4440 = vmatpush1.msra.mxu0 0.0
  %4441 = vmatprep.subr.mxu0 0.0
  %4442 = vmatpush1.msra.mxu0 0.0
  %4443 = vmatprep.subr.mxu0 0.0
  %4444 = vmatpush1.msra.mxu0 0.0
  %4445 = vmatprep.subr.mxu0 0.0
  %4446 = vmatpush1.msra.mxu0 0.0
  %4447 = vmatprep.subr.mxu0 0.0
  %4448 = vmatpush1.msra.mxu0 0.0
  %4449 = vmatprep.subr.mxu0 0.0
  %4450 = vmatpush1.msra.mxu0 0.0
  %4451 = vmatprep.subr.mxu0 0.0
  %4452 = vmatpush1.msra.mxu0 %v4414
  %4453 = vmatprep.subr.mxu0 0.0
  %4454 = vmatpush2.msra.mxu0 0.0
  %4455 = vmatprep.subr.mxu0 0.0
  %4456 = vmatpush2.msra.mxu0 0.0
  %4457 = vmatprep.subr.mxu0 0.0
  %4458 = vmatpush2.msra.mxu0 0.0
  %4459 = vmatprep.subr.mxu0 0.0
  %4460 = vmatpush2.msra.mxu0 0.0
  %4461 = vmatprep.subr.mxu0 0.0
  %4462 = vmatpush2.msra.mxu0 0.0
  %4463 = vmatprep.subr.mxu0 0.0
  %4464 = vmatpush2.msra.mxu0 0.0
  %4465 = vmatprep.subr.mxu0 0.0
  %4466 = vmatpush2.msra.mxu0 0.0
  %4467 = vmatprep.subr.mxu0 0.0
  %4468 = vmatpush2.msra.mxu0 0.0
  %4469 = vmatprep.subr.mxu0 0.0
  %4470 = vmatpush2.msra.mxu0 0.0
  %4471 = vmatprep.subr.mxu0 0.0
  %4472 = vmatpush2.msra.mxu0 0.0
  %4473 = vmatprep.subr.mxu0 0.0
  %4474 = vmatpush2.msra.mxu0 0.0
  %4475 = vmatprep.subr.mxu0 0.0
  %4476 = vmatpush2.msra.mxu0 0.0
  %4477 = vmatprep.subr.mxu0 0.0
  %4478 = vmatpush2.msra.mxu0 0.0
  %4479 = vmatprep.subr.mxu0 0.0
  %4480 = vmatpush2.msra.mxu0 0.0
  %4481 = vmatprep.subr.mxu0 0.0
  %4482 = vmatpush2.msra.mxu0 0.0
  %4483 = vmatprep.subr.mxu0 0.0
  %4484 = vmatpush2.msra.mxu0 0.0
  %4485 = vmatprep.mubr.f32.mxu0 0.0
  %4486 = vmatmul.mubr.f32.gmra.mxu0 %v4416
  %v4487 = vpop.f32.mrf.mxu0
  %v4488 = vadd.f32 0.0, %v4487
  %v4489 = vpop.f32.mrf.mxu0
  %4490 = vmatprep.mubr.f32.mxu0 0.0
  %4491 = vmatmul.mubr.f32.gmra.mxu0 %v4419
  %v4492 = vpop.f32.mrf.mxu0
  %v4493 = vadd.f32 0.0, %v4492
  %v4494 = vpop.f32.mrf.mxu0
  %4495 = vdwg.mxu0
  %v4497 = vsel %vm523, %v3751, 0
  %v4500 = vsel %vm523, %v3824, 0
  %4502 = vmatprep.subr.mxu0 0.0
  %4503 = vmatpush1.msra.mxu0 0.0
  %4504 = vmatprep.subr.mxu0 0.0
  %4505 = vmatpush1.msra.mxu0 0.0
  %4506 = vmatprep.subr.mxu0 0.0
  %4507 = vmatpush1.msra.mxu0 0.0
  %4508 = vmatprep.subr.mxu0 0.0
  %4509 = vmatpush1.msra.mxu0 0.0
  %4510 = vmatprep.subr.mxu0 0.0
  %4511 = vmatpush1.msra.mxu0 0.0
  %4512 = vmatprep.subr.mxu0 0.0
  %4513 = vmatpush1.msra.mxu0 0.0
  %4514 = vmatprep.subr.mxu0 0.0
  %4515 = vmatpush1.msra.mxu0 0.0
  %4516 = vmatprep.subr.mxu0 0.0
  %4517 = vmatpush1.msra.mxu0 0.0
  %4518 = vmatprep.subr.mxu0 0.0
  %4519 = vmatpush1.msra.mxu0 0.0
  %4520 = vmatprep.subr.mxu0 0.0
  %4521 = vmatpush1.msra.mxu0 0.0
  %4522 = vmatprep.subr.mxu0 0.0
  %4523 = vmatpush1.msra.mxu0 0.0
  %4524 = vmatprep.subr.mxu0 0.0
  %4525 = vmatpush1.msra.mxu0 0.0
  %4526 = vmatprep.subr.mxu0 0.0
  %4527 = vmatpush1.msra.mxu0 0.0
  %4528 = vmatprep.subr.mxu0 0.0
  %4529 = vmatpush1.msra.mxu0 0.0
  %4530 = vmatprep.subr.mxu0 0.0
  %4531 = vmatpush1.msra.mxu0 0.0
  %4532 = vmatprep.subr.mxu0 0.0
  %4533 = vmatpush1.msra.mxu0 %v3828
  %4534 = vmatprep.subr.mxu0 0.0
  %4535 = vmatpush2.msra.mxu0 0.0
  %4536 = vmatprep.subr.mxu0 0.0
  %4537 = vmatpush2.msra.mxu0 0.0
  %4538 = vmatprep.subr.mxu0 0.0
  %4539 = vmatpush2.msra.mxu0 0.0
  %4540 = vmatprep.subr.mxu0 0.0
  %4541 = vmatpush2.msra.mxu0 0.0
  %4542 = vmatprep.subr.mxu0 0.0
  %4543 = vmatpush2.msra.mxu0 0.0
  %4544 = vmatprep.subr.mxu0 0.0
  %4545 = vmatpush2.msra.mxu0 0.0
  %4546 = vmatprep.subr.mxu0 0.0
  %4547 = vmatpush2.msra.mxu0 0.0
  %4548 = vmatprep.subr.mxu0 0.0
  %4549 = vmatpush2.msra.mxu0 0.0
  %4550 = vmatprep.subr.mxu0 0.0
  %4551 = vmatpush2.msra.mxu0 0.0
  %4552 = vmatprep.subr.mxu0 0.0
  %4553 = vmatpush2.msra.mxu0 0.0
  %4554 = vmatprep.subr.mxu0 0.0
  %4555 = vmatpush2.msra.mxu0 0.0
  %4556 = vmatprep.subr.mxu0 0.0
  %4557 = vmatpush2.msra.mxu0 0.0
  %4558 = vmatprep.subr.mxu0 0.0
  %4559 = vmatpush2.msra.mxu0 0.0
  %4560 = vmatprep.subr.mxu0 0.0
  %4561 = vmatpush2.msra.mxu0 0.0
  %4562 = vmatprep.subr.mxu0 0.0
  %4563 = vmatpush2.msra.mxu0 0.0
  %4564 = vmatprep.subr.mxu0 0.0
  %4565 = vmatpush2.msra.mxu0 0.0
  %4566 = vmatprep.mubr.f32.mxu0 0.0
  %4567 = vmatmul.mubr.f32.gmra.mxu0 %v4497
  %v4568 = vpop.f32.mrf.mxu0
  %v4569 = vadd.f32 %v4488, %v4568
  %v4570 = vpop.f32.mrf.mxu0
  %4571 = vmatprep.mubr.f32.mxu0 0.0
  %4572 = vmatmul.mubr.f32.gmra.mxu0 %v4500
  %v4573 = vpop.f32.mrf.mxu0
  %v4574 = vadd.f32 %v4493, %v4573
  %v4575 = vpop.f32.mrf.mxu0
  %4576 = vdwg.mxu0
  %s4577 = scalar_lea.vmem %s5, 448
  %v4578 = vld [vmem:[%s4577] sm:$0xff]
  %v4579 = vld [vmem:[%s4577 + $0x8] sm:$0xff]
  %v4580 = vld [vmem:[%s4577 + $0x10] sm:$0xff]
  %v4581 = vld [vmem:[%s4577 + $0x18] sm:$0xff]
  %s4582 = scalar_lea.vmem %s6, 14
  %v4583 = vld [vmem:[%s4582] sm:$0x1]
  %v4585 = vlaneseq
  %v4586 = vshrl.u32 %v4585, 7
  %v4587 = vsub.s32 0, %v4586
  %v4588 = vrot.slane %v4583, %v4587
  %4590 = vmatprep.subr.mxu0 0.0
  %4591 = vmatpush1.msra.mxu0 0.0
  %4592 = vmatprep.subr.mxu0 0.0
  %4593 = vmatpush1.msra.mxu0 0.0
  %4594 = vmatprep.subr.mxu0 0.0
  %4595 = vmatpush1.msra.mxu0 0.0
  %4596 = vmatprep.subr.mxu0 0.0
  %4597 = vmatpush1.msra.mxu0 0.0
  %4598 = vmatprep.subr.mxu0 0.0
  %4599 = vmatpush1.msra.mxu0 0.0
  %4600 = vmatprep.subr.mxu0 0.0
  %4601 = vmatpush1.msra.mxu0 0.0
  %4602 = vmatprep.subr.mxu0 0.0
  %4603 = vmatpush1.msra.mxu0 0.0
  %4604 = vmatprep.subr.mxu0 0.0
  %4605 = vmatpush1.msra.mxu0 0.0
  %4606 = vmatprep.subr.mxu0 0.0
  %4607 = vmatpush1.msra.mxu0 0.0
  %4608 = vmatprep.subr.mxu0 0.0
  %4609 = vmatpush1.msra.mxu0 0.0
  %4610 = vmatprep.subr.mxu0 0.0
  %4611 = vmatpush1.msra.mxu0 0.0
  %4612 = vmatprep.subr.mxu0 0.0
  %4613 = vmatpush1.msra.mxu0 0.0
  %4614 = vmatprep.subr.mxu0 0.0
  %4615 = vmatpush1.msra.mxu0 %v4581
  %4616 = vmatprep.subr.mxu0 0.0
  %4617 = vmatpush1.msra.mxu0 %v4580
  %4618 = vmatprep.subr.mxu0 0.0
  %4619 = vmatpush1.msra.mxu0 %v4579
  %4620 = vmatprep.subr.mxu0 0.0
  %4621 = vmatpush1.msra.mxu0 %v4578
  %4622 = vmatprep.subr.mxu0 0.0
  %4623 = vmatpush2.msra.mxu0 0.0
  %4624 = vmatprep.subr.mxu0 0.0
  %4625 = vmatpush2.msra.mxu0 0.0
  %4626 = vmatprep.subr.mxu0 0.0
  %4627 = vmatpush2.msra.mxu0 0.0
  %4628 = vmatprep.subr.mxu0 0.0
  %4629 = vmatpush2.msra.mxu0 0.0
  %4630 = vmatprep.subr.mxu0 0.0
  %4631 = vmatpush2.msra.mxu0 0.0
  %4632 = vmatprep.subr.mxu0 0.0
  %4633 = vmatpush2.msra.mxu0 0.0
  %4634 = vmatprep.subr.mxu0 0.0
  %4635 = vmatpush2.msra.mxu0 0.0
  %4636 = vmatprep.subr.mxu0 0.0
  %4637 = vmatpush2.msra.mxu0 0.0
  %4638 = vmatprep.subr.mxu0 0.0
  %4639 = vmatpush2.msra.mxu0 0.0
  %4640 = vmatprep.subr.mxu0 0.0
  %4641 = vmatpush2.msra.mxu0 0.0
  %4642 = vmatprep.subr.mxu0 0.0
  %4643 = vmatpush2.msra.mxu0 0.0
  %4644 = vmatprep.subr.mxu0 0.0
  %4645 = vmatpush2.msra.mxu0 0.0
  %4646 = vmatprep.subr.mxu0 0.0
  %4647 = vmatpush2.msra.mxu0 0.0
  %4648 = vmatprep.subr.mxu0 0.0
  %4649 = vmatpush2.msra.mxu0 0.0
  %4650 = vmatprep.subr.mxu0 0.0
  %4651 = vmatpush2.msra.mxu0 0.0
  %4652 = vmatprep.subr.mxu0 0.0
  %4653 = vmatpush2.msra.mxu0 0.0
  %4654 = vmatprep.mubr.f32.mxu0 0.0
  %4655 = vmatmul.mubr.f32.gmra.mxu0 %v3251
  %v4656 = vpop.f32.mrf.mxu0
  %v4657 = vadd.f32 %v4588, %v4656
  %v4658 = vpop.f32.mrf.mxu0
  %4659 = vmatprep.mubr.f32.mxu0 0.0
  %4660 = vmatmul.mubr.f32.gmra.mxu0 %v3254
  %v4661 = vpop.f32.mrf.mxu0
  %v4662 = vadd.f32 %v4588, %v4661
  %v4663 = vpop.f32.mrf.mxu0
  %4664 = vdwg.mxu0
  %s4665 = scalar_lea.vmem %s5, 576
  %v4666 = vld [vmem:[%s4665] sm:$0xff]
  %v4667 = vld [vmem:[%s4665 + $0x8] sm:$0xff]
  %v4668 = vld [vmem:[%s4665 + $0x10] sm:$0xff]
  %v4669 = vld [vmem:[%s4665 + $0x18] sm:$0xff]
  %s4670 = scalar_lea.vmem %s6, 18
  %v4671 = vld [vmem:[%s4670] sm:$0x1]
  %v4673 = vlaneseq
  %v4674 = vshrl.u32 %v4673, 7
  %v4675 = vsub.s32 0, %v4674
  %v4676 = vrot.slane %v4671, %v4675
  %4678 = vmatprep.subr.mxu0 0.0
  %4679 = vmatpush1.msra.mxu0 0.0
  %4680 = vmatprep.subr.mxu0 0.0
  %4681 = vmatpush1.msra.mxu0 0.0
  %4682 = vmatprep.subr.mxu0 0.0
  %4683 = vmatpush1.msra.mxu0 0.0
  %4684 = vmatprep.subr.mxu0 0.0
  %4685 = vmatpush1.msra.mxu0 0.0
  %4686 = vmatprep.subr.mxu0 0.0
  %4687 = vmatpush1.msra.mxu0 0.0
  %4688 = vmatprep.subr.mxu0 0.0
  %4689 = vmatpush1.msra.mxu0 0.0
  %4690 = vmatprep.subr.mxu0 0.0
  %4691 = vmatpush1.msra.mxu0 0.0
  %4692 = vmatprep.subr.mxu0 0.0
  %4693 = vmatpush1.msra.mxu0 0.0
  %4694 = vmatprep.subr.mxu0 0.0
  %4695 = vmatpush1.msra.mxu0 0.0
  %4696 = vmatprep.subr.mxu0 0.0
  %4697 = vmatpush1.msra.mxu0 0.0
  %4698 = vmatprep.subr.mxu0 0.0
  %4699 = vmatpush1.msra.mxu0 0.0
  %4700 = vmatprep.subr.mxu0 0.0
  %4701 = vmatpush1.msra.mxu0 0.0
  %4702 = vmatprep.subr.mxu0 0.0
  %4703 = vmatpush1.msra.mxu0 %v4669
  %4704 = vmatprep.subr.mxu0 0.0
  %4705 = vmatpush1.msra.mxu0 %v4668
  %4706 = vmatprep.subr.mxu0 0.0
  %4707 = vmatpush1.msra.mxu0 %v4667
  %4708 = vmatprep.subr.mxu0 0.0
  %4709 = vmatpush1.msra.mxu0 %v4666
  %4710 = vmatprep.subr.mxu0 0.0
  %4711 = vmatpush2.msra.mxu0 0.0
  %4712 = vmatprep.subr.mxu0 0.0
  %4713 = vmatpush2.msra.mxu0 0.0
  %4714 = vmatprep.subr.mxu0 0.0
  %4715 = vmatpush2.msra.mxu0 0.0
  %4716 = vmatprep.subr.mxu0 0.0
  %4717 = vmatpush2.msra.mxu0 0.0
  %4718 = vmatprep.subr.mxu0 0.0
  %4719 = vmatpush2.msra.mxu0 0.0
  %4720 = vmatprep.subr.mxu0 0.0
  %4721 = vmatpush2.msra.mxu0 0.0
  %4722 = vmatprep.subr.mxu0 0.0
  %4723 = vmatpush2.msra.mxu0 0.0
  %4724 = vmatprep.subr.mxu0 0.0
  %4725 = vmatpush2.msra.mxu0 0.0
  %4726 = vmatprep.subr.mxu0 0.0
  %4727 = vmatpush2.msra.mxu0 0.0
  %4728 = vmatprep.subr.mxu0 0.0
  %4729 = vmatpush2.msra.mxu0 0.0
  %4730 = vmatprep.subr.mxu0 0.0
  %4731 = vmatpush2.msra.mxu0 0.0
  %4732 = vmatprep.subr.mxu0 0.0
  %4733 = vmatpush2.msra.mxu0 0.0
  %4734 = vmatprep.subr.mxu0 0.0
  %4735 = vmatpush2.msra.mxu0 0.0
  %4736 = vmatprep.subr.mxu0 0.0
  %4737 = vmatpush2.msra.mxu0 0.0
  %4738 = vmatprep.subr.mxu0 0.0
  %4739 = vmatpush2.msra.mxu0 0.0
  %4740 = vmatprep.subr.mxu0 0.0
  %4741 = vmatpush2.msra.mxu0 0.0
  %4742 = vmatprep.mubr.f32.mxu0 0.0
  %4743 = vmatmul.mubr.f32.gmra.mxu0 %v3251
  %v4744 = vpop.f32.mrf.mxu0
  %v4745 = vadd.f32 %v4676, %v4744
  %v4746 = vpop.f32.mrf.mxu0
  %4747 = vmatprep.mubr.f32.mxu0 0.0
  %4748 = vmatmul.mubr.f32.gmra.mxu0 %v3254
  %v4749 = vpop.f32.mrf.mxu0
  %v4750 = vadd.f32 %v4676, %v4749
  %v4751 = vpop.f32.mrf.mxu0
  %4752 = vdwg.mxu0
  %s4753 = scalar_lea.vmem %s5, 704
  %v4754 = vld [vmem:[%s4753] sm:$0xff]
  %v4755 = vld [vmem:[%s4753 + $0x8] sm:$0xff]
  %v4756 = vld [vmem:[%s4753 + $0x10] sm:$0xff]
  %v4757 = vld [vmem:[%s4753 + $0x18] sm:$0xff]
  %s4758 = scalar_lea.vmem %s6, 22
  %v4759 = vld [vmem:[%s4758] sm:$0x1]
  %v4761 = vlaneseq
  %v4762 = vshrl.u32 %v4761, 7
  %v4763 = vsub.s32 0, %v4762
  %v4764 = vrot.slane %v4759, %v4763
  %4766 = vmatprep.subr.mxu0 0.0
  %4767 = vmatpush1.msra.mxu0 0.0
  %4768 = vmatprep.subr.mxu0 0.0
  %4769 = vmatpush1.msra.mxu0 0.0
  %4770 = vmatprep.subr.mxu0 0.0
  %4771 = vmatpush1.msra.mxu0 0.0
  %4772 = vmatprep.subr.mxu0 0.0
  %4773 = vmatpush1.msra.mxu0 0.0
  %4774 = vmatprep.subr.mxu0 0.0
  %4775 = vmatpush1.msra.mxu0 0.0
  %4776 = vmatprep.subr.mxu0 0.0
  %4777 = vmatpush1.msra.mxu0 0.0
  %4778 = vmatprep.subr.mxu0 0.0
  %4779 = vmatpush1.msra.mxu0 0.0
  %4780 = vmatprep.subr.mxu0 0.0
  %4781 = vmatpush1.msra.mxu0 0.0
  %4782 = vmatprep.subr.mxu0 0.0
  %4783 = vmatpush1.msra.mxu0 0.0
  %4784 = vmatprep.subr.mxu0 0.0
  %4785 = vmatpush1.msra.mxu0 0.0
  %4786 = vmatprep.subr.mxu0 0.0
  %4787 = vmatpush1.msra.mxu0 0.0
  %4788 = vmatprep.subr.mxu0 0.0
  %4789 = vmatpush1.msra.mxu0 0.0
  %4790 = vmatprep.subr.mxu0 0.0
  %4791 = vmatpush1.msra.mxu0 %v4757
  %4792 = vmatprep.subr.mxu0 0.0
  %4793 = vmatpush1.msra.mxu0 %v4756
  %4794 = vmatprep.subr.mxu0 0.0
  %4795 = vmatpush1.msra.mxu0 %v4755
  %4796 = vmatprep.subr.mxu0 0.0
  %4797 = vmatpush1.msra.mxu0 %v4754
  %4798 = vmatprep.subr.mxu0 0.0
  %4799 = vmatpush2.msra.mxu0 0.0
  %4800 = vmatprep.subr.mxu0 0.0
  %4801 = vmatpush2.msra.mxu0 0.0
  %4802 = vmatprep.subr.mxu0 0.0
  %4803 = vmatpush2.msra.mxu0 0.0
  %4804 = vmatprep.subr.mxu0 0.0
  %4805 = vmatpush2.msra.mxu0 0.0
  %4806 = vmatprep.subr.mxu0 0.0
  %4807 = vmatpush2.msra.mxu0 0.0
  %4808 = vmatprep.subr.mxu0 0.0
  %4809 = vmatpush2.msra.mxu0 0.0
  %4810 = vmatprep.subr.mxu0 0.0
  %4811 = vmatpush2.msra.mxu0 0.0
  %4812 = vmatprep.subr.mxu0 0.0
  %4813 = vmatpush2.msra.mxu0 0.0
  %4814 = vmatprep.subr.mxu0 0.0
  %4815 = vmatpush2.msra.mxu0 0.0
  %4816 = vmatprep.subr.mxu0 0.0
  %4817 = vmatpush2.msra.mxu0 0.0
  %4818 = vmatprep.subr.mxu0 0.0
  %4819 = vmatpush2.msra.mxu0 0.0
  %4820 = vmatprep.subr.mxu0 0.0
  %4821 = vmatpush2.msra.mxu0 0.0
  %4822 = vmatprep.subr.mxu0 0.0
  %4823 = vmatpush2.msra.mxu0 0.0
  %4824 = vmatprep.subr.mxu0 0.0
  %4825 = vmatpush2.msra.mxu0 0.0
  %4826 = vmatprep.subr.mxu0 0.0
  %4827 = vmatpush2.msra.mxu0 0.0
  %4828 = vmatprep.subr.mxu0 0.0
  %4829 = vmatpush2.msra.mxu0 0.0
  %4830 = vmatprep.mubr.f32.mxu0 0.0
  %4831 = vmatmul.mubr.f32.gmra.mxu0 %v3251
  %v4832 = vpop.f32.mrf.mxu0
  %v4833 = vadd.f32 %v4764, %v4832
  %v4834 = vpop.f32.mrf.mxu0
  %4835 = vmatprep.mubr.f32.mxu0 0.0
  %4836 = vmatmul.mubr.f32.gmra.mxu0 %v3254
  %v4837 = vpop.f32.mrf.mxu0
  %v4838 = vadd.f32 %v4764, %v4837
  %v4839 = vpop.f32.mrf.mxu0
  %4840 = vdwg.mxu0
  %v4842 = vsel %vm523, %v4657, 0
  %v4845 = vsel %vm523, %v4745, 0
  %4847 = vmatprep.subr.mxu0 0.0
  %4848 = vmatpush1.xpose.msra.mxu0 0.0
  %4849 = vmatprep.subr.mxu0 0.0
  %4850 = vmatpush1.xpose.msra.mxu0 0.0
  %4851 = vmatprep.subr.mxu0 0.0
  %4852 = vmatpush1.xpose.msra.mxu0 0.0
  %4853 = vmatprep.subr.mxu0 0.0
  %4854 = vmatpush1.xpose.msra.mxu0 0.0
  %4855 = vmatprep.subr.mxu0 0.0
  %4856 = vmatpush1.xpose.msra.mxu0 0.0
  %4857 = vmatprep.subr.mxu0 0.0
  %4858 = vmatpush1.xpose.msra.mxu0 0.0
  %4859 = vmatprep.subr.mxu0 0.0
  %4860 = vmatpush1.xpose.msra.mxu0 0.0
  %4861 = vmatprep.subr.mxu0 0.0
  %4862 = vmatpush1.xpose.msra.mxu0 0.0
  %4863 = vmatprep.subr.mxu0 0.0
  %4864 = vmatpush1.xpose.msra.mxu0 0.0
  %4865 = vmatprep.subr.mxu0 0.0
  %4866 = vmatpush1.xpose.msra.mxu0 0.0
  %4867 = vmatprep.subr.mxu0 0.0
  %4868 = vmatpush1.xpose.msra.mxu0 0.0
  %4869 = vmatprep.subr.mxu0 0.0
  %4870 = vmatpush1.xpose.msra.mxu0 0.0
  %4871 = vmatprep.subr.mxu0 0.0
  %4872 = vmatpush1.xpose.msra.mxu0 0.0
  %4873 = vmatprep.subr.mxu0 0.0
  %4874 = vmatpush1.xpose.msra.mxu0 0.0
  %4875 = vmatprep.subr.mxu0 0.0
  %4876 = vmatpush1.xpose.msra.mxu0 0.0
  %4877 = vmatprep.subr.mxu0 0.0
  %4878 = vmatpush1.xpose.msra.mxu0 %v4845
  %4879 = vmatprep.subr.mxu0 0.0
  %4880 = vmatpush2.xpose.msra.mxu0 0.0
  %4881 = vmatprep.subr.mxu0 0.0
  %4882 = vmatpush2.xpose.msra.mxu0 0.0
  %4883 = vmatprep.subr.mxu0 0.0
  %4884 = vmatpush2.xpose.msra.mxu0 0.0
  %4885 = vmatprep.subr.mxu0 0.0
  %4886 = vmatpush2.xpose.msra.mxu0 0.0
  %4887 = vmatprep.subr.mxu0 0.0
  %4888 = vmatpush2.xpose.msra.mxu0 0.0
  %4889 = vmatprep.subr.mxu0 0.0
  %4890 = vmatpush2.xpose.msra.mxu0 0.0
  %4891 = vmatprep.subr.mxu0 0.0
  %4892 = vmatpush2.xpose.msra.mxu0 0.0
  %4893 = vmatprep.subr.mxu0 0.0
  %4894 = vmatpush2.xpose.msra.mxu0 0.0
  %4895 = vmatprep.subr.mxu0 0.0
  %4896 = vmatpush2.xpose.msra.mxu0 0.0
  %4897 = vmatprep.subr.mxu0 0.0
  %4898 = vmatpush2.xpose.msra.mxu0 0.0
  %4899 = vmatprep.subr.mxu0 0.0
  %4900 = vmatpush2.xpose.msra.mxu0 0.0
  %4901 = vmatprep.subr.mxu0 0.0
  %4902 = vmatpush2.xpose.msra.mxu0 0.0
  %4903 = vmatprep.subr.mxu0 0.0
  %4904 = vmatpush2.xpose.msra.mxu0 0.0
  %4905 = vmatprep.subr.mxu0 0.0
  %4906 = vmatpush2.xpose.msra.mxu0 0.0
  %4907 = vmatprep.subr.mxu0 0.0
  %4908 = vmatpush2.xpose.msra.mxu0 0.0
  %4909 = vmatprep.subr.mxu0 0.0
  %4910 = vmatpush2.xpose.msra.mxu0 0.0
  %4911 = vmatprep.mubr.f32.mxu0 0.0
  %4912 = vmatmul.mubr.f32.gmra.mxu0 %v4842
  %v4913 = vpop.f32.mrf.mxu0
  %v4914 = vadd.f32 %v248, %v4913
  %v4915 = vpop.f32.mrf.mxu0
  %4916 = vdwg.mxu0
  %v4918 = vsel %vm523, %v4662, 0
  %v4921 = vsel %vm523, %v4750, 0
  %4923 = vmatprep.subr.mxu0 0.0
  %4924 = vmatpush1.xpose.msra.mxu0 0.0
  %4925 = vmatprep.subr.mxu0 0.0
  %4926 = vmatpush1.xpose.msra.mxu0 0.0
  %4927 = vmatprep.subr.mxu0 0.0
  %4928 = vmatpush1.xpose.msra.mxu0 0.0
  %4929 = vmatprep.subr.mxu0 0.0
  %4930 = vmatpush1.xpose.msra.mxu0 0.0
  %4931 = vmatprep.subr.mxu0 0.0
  %4932 = vmatpush1.xpose.msra.mxu0 0.0
  %4933 = vmatprep.subr.mxu0 0.0
  %4934 = vmatpush1.xpose.msra.mxu0 0.0
  %4935 = vmatprep.subr.mxu0 0.0
  %4936 = vmatpush1.xpose.msra.mxu0 0.0
  %4937 = vmatprep.subr.mxu0 0.0
  %4938 = vmatpush1.xpose.msra.mxu0 0.0
  %4939 = vmatprep.subr.mxu0 0.0
  %4940 = vmatpush1.xpose.msra.mxu0 0.0
  %4941 = vmatprep.subr.mxu0 0.0
  %4942 = vmatpush1.xpose.msra.mxu0 0.0
  %4943 = vmatprep.subr.mxu0 0.0
  %4944 = vmatpush1.xpose.msra.mxu0 0.0
  %4945 = vmatprep.subr.mxu0 0.0
  %4946 = vmatpush1.xpose.msra.mxu0 0.0
  %4947 = vmatprep.subr.mxu0 0.0
  %4948 = vmatpush1.xpose.msra.mxu0 0.0
  %4949 = vmatprep.subr.mxu0 0.0
  %4950 = vmatpush1.xpose.msra.mxu0 0.0
  %4951 = vmatprep.subr.mxu0 0.0
  %4952 = vmatpush1.xpose.msra.mxu0 0.0
  %4953 = vmatprep.subr.mxu0 0.0
  %4954 = vmatpush1.xpose.msra.mxu0 %v4921
  %4955 = vmatprep.subr.mxu0 0.0
  %4956 = vmatpush2.xpose.msra.mxu0 0.0
  %4957 = vmatprep.subr.mxu0 0.0
  %4958 = vmatpush2.xpose.msra.mxu0 0.0
  %4959 = vmatprep.subr.mxu0 0.0
  %4960 = vmatpush2.xpose.msra.mxu0 0.0
  %4961 = vmatprep.subr.mxu0 0.0
  %4962 = vmatpush2.xpose.msra.mxu0 0.0
  %4963 = vmatprep.subr.mxu0 0.0
  %4964 = vmatpush2.xpose.msra.mxu0 0.0
  %4965 = vmatprep.subr.mxu0 0.0
  %4966 = vmatpush2.xpose.msra.mxu0 0.0
  %4967 = vmatprep.subr.mxu0 0.0
  %4968 = vmatpush2.xpose.msra.mxu0 0.0
  %4969 = vmatprep.subr.mxu0 0.0
  %4970 = vmatpush2.xpose.msra.mxu0 0.0
  %4971 = vmatprep.subr.mxu0 0.0
  %4972 = vmatpush2.xpose.msra.mxu0 0.0
  %4973 = vmatprep.subr.mxu0 0.0
  %4974 = vmatpush2.xpose.msra.mxu0 0.0
  %4975 = vmatprep.subr.mxu0 0.0
  %4976 = vmatpush2.xpose.msra.mxu0 0.0
  %4977 = vmatprep.subr.mxu0 0.0
  %4978 = vmatpush2.xpose.msra.mxu0 0.0
  %4979 = vmatprep.subr.mxu0 0.0
  %4980 = vmatpush2.xpose.msra.mxu0 0.0
  %4981 = vmatprep.subr.mxu0 0.0
  %4982 = vmatpush2.xpose.msra.mxu0 0.0
  %4983 = vmatprep.subr.mxu0 0.0
  %4984 = vmatpush2.xpose.msra.mxu0 0.0
  %4985 = vmatprep.subr.mxu0 0.0
  %4986 = vmatpush2.xpose.msra.mxu0 0.0
  %4987 = vmatprep.mubr.f32.mxu0 0.0
  %4988 = vmatmul.mubr.f32.gmra.mxu0 %v4918
  %v4989 = vpop.f32.mrf.mxu0
  %v4990 = vadd.f32 %v252, %v4989
  %v4991 = vpop.f32.mrf.mxu0
  %4992 = vdwg.mxu0
  %v4993 = vsel %vm523, %v4914, -inf
  %4994 = vmax.xlane.f32.xlu0 %v4993
  %v4995 = vpop.xlane.xlu0 %4994
  %v4996 = vsel %vm523, %v4990, -inf
  %4997 = vmax.xlane.f32.xlu0 %v4996
  %v4998 = vpop.xlane.xlu0 %4997
  %v4999 = vsub.f32 %v4914, %v4995
  %v5000 = vsub.f32 %v4990, %v4998
  %v5001 = vmul.f32 %v4999, 1.442695
  %v5002 = vpow.pop %v5001
  %v5003 = vmul.f32 %v5000, 1.442695
  %v5004 = vpow.pop %v5003
  %v5005 = vsel %vm523, %v5002, 0.0
  %5006 = vadd.xlane.f32.xlu0 %v5005
  %v5007 = vpop.xlane.xlu0 %5006
  %v5008 = vsel %vm523, %v5004, 0.0
  %5009 = vadd.xlane.f32.xlu0 %v5008
  %v5010 = vpop.xlane.xlu0 %5009
  %v5011 = vrcp.pop %v5007
  %v5012 = vrcp.pop %v5010
  %v5013 = vmul.f32 %v5002, %v5011
  %v5014 = vmul.f32 %v5004, %v5012
  %v5016 = vsel %vm523, %v5013, 0
  %5018 = vmatprep.subr.mxu0 0.0
  %5019 = vmatpush1.msra.mxu0 0.0
  %5020 = vmatprep.subr.mxu0 0.0
  %5021 = vmatpush1.msra.mxu0 0.0
  %5022 = vmatprep.subr.mxu0 0.0
  %5023 = vmatpush1.msra.mxu0 0.0
  %5024 = vmatprep.subr.mxu0 0.0
  %5025 = vmatpush1.msra.mxu0 0.0
  %5026 = vmatprep.subr.mxu0 0.0
  %5027 = vmatpush1.msra.mxu0 0.0
  %5028 = vmatprep.subr.mxu0 0.0
  %5029 = vmatpush1.msra.mxu0 0.0
  %5030 = vmatprep.subr.mxu0 0.0
  %5031 = vmatpush1.msra.mxu0 0.0
  %5032 = vmatprep.subr.mxu0 0.0
  %5033 = vmatpush1.msra.mxu0 0.0
  %5034 = vmatprep.subr.mxu0 0.0
  %5035 = vmatpush1.msra.mxu0 0.0
  %5036 = vmatprep.subr.mxu0 0.0
  %5037 = vmatpush1.msra.mxu0 0.0
  %5038 = vmatprep.subr.mxu0 0.0
  %5039 = vmatpush1.msra.mxu0 0.0
  %5040 = vmatprep.subr.mxu0 0.0
  %5041 = vmatpush1.msra.mxu0 0.0
  %5042 = vmatprep.subr.mxu0 0.0
  %5043 = vmatpush1.msra.mxu0 0.0
  %5044 = vmatprep.subr.mxu0 0.0
  %5045 = vmatpush1.msra.mxu0 0.0
  %5046 = vmatprep.subr.mxu0 0.0
  %5047 = vmatpush1.msra.mxu0 0.0
  %5048 = vmatprep.subr.mxu0 0.0
  %5049 = vmatpush1.msra.mxu0 %v4833
  %5050 = vmatprep.subr.mxu0 0.0
  %5051 = vmatpush2.msra.mxu0 0.0
  %5052 = vmatprep.subr.mxu0 0.0
  %5053 = vmatpush2.msra.mxu0 0.0
  %5054 = vmatprep.subr.mxu0 0.0
  %5055 = vmatpush2.msra.mxu0 0.0
  %5056 = vmatprep.subr.mxu0 0.0
  %5057 = vmatpush2.msra.mxu0 0.0
  %5058 = vmatprep.subr.mxu0 0.0
  %5059 = vmatpush2.msra.mxu0 0.0
  %5060 = vmatprep.subr.mxu0 0.0
  %5061 = vmatpush2.msra.mxu0 0.0
  %5062 = vmatprep.subr.mxu0 0.0
  %5063 = vmatpush2.msra.mxu0 0.0
  %5064 = vmatprep.subr.mxu0 0.0
  %5065 = vmatpush2.msra.mxu0 0.0
  %5066 = vmatprep.subr.mxu0 0.0
  %5067 = vmatpush2.msra.mxu0 0.0
  %5068 = vmatprep.subr.mxu0 0.0
  %5069 = vmatpush2.msra.mxu0 0.0
  %5070 = vmatprep.subr.mxu0 0.0
  %5071 = vmatpush2.msra.mxu0 0.0
  %5072 = vmatprep.subr.mxu0 0.0
  %5073 = vmatpush2.msra.mxu0 0.0
  %5074 = vmatprep.subr.mxu0 0.0
  %5075 = vmatpush2.msra.mxu0 0.0
  %5076 = vmatprep.subr.mxu0 0.0
  %5077 = vmatpush2.msra.mxu0 0.0
  %5078 = vmatprep.subr.mxu0 0.0
  %5079 = vmatpush2.msra.mxu0 0.0
  %5080 = vmatprep.subr.mxu0 0.0
  %5081 = vmatpush2.msra.mxu0 0.0
  %5082 = vmatprep.mubr.f32.mxu0 0.0
  %5083 = vmatmul.mubr.f32.gmra.mxu0 %v5016
  %v5084 = vpop.f32.mrf.mxu0
  %v5085 = vadd.f32 0.0, %v5084
  %v5086 = vpop.f32.mrf.mxu0
  %5087 = vdwg.mxu0
  %v5089 = vsel %vm523, %v5014, 0
  %5091 = vmatprep.subr.mxu0 0.0
  %5092 = vmatpush1.msra.mxu0 0.0
  %5093 = vmatprep.subr.mxu0 0.0
  %5094 = vmatpush1.msra.mxu0 0.0
  %5095 = vmatprep.subr.mxu0 0.0
  %5096 = vmatpush1.msra.mxu0 0.0
  %5097 = vmatprep.subr.mxu0 0.0
  %5098 = vmatpush1.msra.mxu0 0.0
  %5099 = vmatprep.subr.mxu0 0.0
  %5100 = vmatpush1.msra.mxu0 0.0
  %5101 = vmatprep.subr.mxu0 0.0
  %5102 = vmatpush1.msra.mxu0 0.0
  %5103 = vmatprep.subr.mxu0 0.0
  %5104 = vmatpush1.msra.mxu0 0.0
  %5105 = vmatprep.subr.mxu0 0.0
  %5106 = vmatpush1.msra.mxu0 0.0
  %5107 = vmatprep.subr.mxu0 0.0
  %5108 = vmatpush1.msra.mxu0 0.0
  %5109 = vmatprep.subr.mxu0 0.0
  %5110 = vmatpush1.msra.mxu0 0.0
  %5111 = vmatprep.subr.mxu0 0.0
  %5112 = vmatpush1.msra.mxu0 0.0
  %5113 = vmatprep.subr.mxu0 0.0
  %5114 = vmatpush1.msra.mxu0 0.0
  %5115 = vmatprep.subr.mxu0 0.0
  %5116 = vmatpush1.msra.mxu0 0.0
  %5117 = vmatprep.subr.mxu0 0.0
  %5118 = vmatpush1.msra.mxu0 0.0
  %5119 = vmatprep.subr.mxu0 0.0
  %5120 = vmatpush1.msra.mxu0 0.0
  %5121 = vmatprep.subr.mxu0 0.0
  %5122 = vmatpush1.msra.mxu0 %v4838
  %5123 = vmatprep.subr.mxu0 0.0
  %5124 = vmatpush2.msra.mxu0 0.0
  %5125 = vmatprep.subr.mxu0 0.0
  %5126 = vmatpush2.msra.mxu0 0.0
  %5127 = vmatprep.subr.mxu0 0.0
  %5128 = vmatpush2.msra.mxu0 0.0
  %5129 = vmatprep.subr.mxu0 0.0
  %5130 = vmatpush2.msra.mxu0 0.0
  %5131 = vmatprep.subr.mxu0 0.0
  %5132 = vmatpush2.msra.mxu0 0.0
  %5133 = vmatprep.subr.mxu0 0.0
  %5134 = vmatpush2.msra.mxu0 0.0
  %5135 = vmatprep.subr.mxu0 0.0
  %5136 = vmatpush2.msra.mxu0 0.0
  %5137 = vmatprep.subr.mxu0 0.0
  %5138 = vmatpush2.msra.mxu0 0.0
  %5139 = vmatprep.subr.mxu0 0.0
  %5140 = vmatpush2.msra.mxu0 0.0
  %5141 = vmatprep.subr.mxu0 0.0
  %5142 = vmatpush2.msra.mxu0 0.0
  %5143 = vmatprep.subr.mxu0 0.0
  %5144 = vmatpush2.msra.mxu0 0.0
  %5145 = vmatprep.subr.mxu0 0.0
  %5146 = vmatpush2.msra.mxu0 0.0
  %5147 = vmatprep.subr.mxu0 0.0
  %5148 = vmatpush2.msra.mxu0 0.0
  %5149 = vmatprep.subr.mxu0 0.0
  %5150 = vmatpush2.msra.mxu0 0.0
  %5151 = vmatprep.subr.mxu0 0.0
  %5152 = vmatpush2.msra.mxu0 0.0
  %5153 = vmatprep.subr.mxu0 0.0
  %5154 = vmatpush2.msra.mxu0 0.0
  %5155 = vmatprep.mubr.f32.mxu0 0.0
  %5156 = vmatmul.mubr.f32.gmra.mxu0 %v5089
  %v5157 = vpop.f32.mrf.mxu0
  %v5158 = vadd.f32 0.0, %v5157
  %v5159 = vpop.f32.mrf.mxu0
  %5160 = vdwg.mxu0
  %s5161 = scalar_lea.vmem %s7, 48
  %v5162 = vld [vmem:[%s5161] sm:$0xff]
  %v5164 = vsel %vm523, %v5085, 0
  %v5167 = vsel %vm523, %v5158, 0
  %5169 = vmatprep.subr.mxu0 0.0
  %5170 = vmatpush1.msra.mxu0 0.0
  %5171 = vmatprep.subr.mxu0 0.0
  %5172 = vmatpush1.msra.mxu0 0.0
  %5173 = vmatprep.subr.mxu0 0.0
  %5174 = vmatpush1.msra.mxu0 0.0
  %5175 = vmatprep.subr.mxu0 0.0
  %5176 = vmatpush1.msra.mxu0 0.0
  %5177 = vmatprep.subr.mxu0 0.0
  %5178 = vmatpush1.msra.mxu0 0.0
  %5179 = vmatprep.subr.mxu0 0.0
  %5180 = vmatpush1.msra.mxu0 0.0
  %5181 = vmatprep.subr.mxu0 0.0
  %5182 = vmatpush1.msra.mxu0 0.0
  %5183 = vmatprep.subr.mxu0 0.0
  %5184 = vmatpush1.msra.mxu0 0.0
  %5185 = vmatprep.subr.mxu0 0.0
  %5186 = vmatpush1.msra.mxu0 0.0
  %5187 = vmatprep.subr.mxu0 0.0
  %5188 = vmatpush1.msra.mxu0 0.0
  %5189 = vmatprep.subr.mxu0 0.0
  %5190 = vmatpush1.msra.mxu0 0.0
  %5191 = vmatprep.subr.mxu0 0.0
  %5192 = vmatpush1.msra.mxu0 0.0
  %5193 = vmatprep.subr.mxu0 0.0
  %5194 = vmatpush1.msra.mxu0 0.0
  %5195 = vmatprep.subr.mxu0 0.0
  %5196 = vmatpush1.msra.mxu0 0.0
  %5197 = vmatprep.subr.mxu0 0.0
  %5198 = vmatpush1.msra.mxu0 0.0
  %5199 = vmatprep.subr.mxu0 0.0
  %5200 = vmatpush1.msra.mxu0 %v5162
  %5201 = vmatprep.subr.mxu0 0.0
  %5202 = vmatpush2.msra.mxu0 0.0
  %5203 = vmatprep.subr.mxu0 0.0
  %5204 = vmatpush2.msra.mxu0 0.0
  %5205 = vmatprep.subr.mxu0 0.0
  %5206 = vmatpush2.msra.mxu0 0.0
  %5207 = vmatprep.subr.mxu0 0.0
  %5208 = vmatpush2.msra.mxu0 0.0
  %5209 = vmatprep.subr.mxu0 0.0
  %5210 = vmatpush2.msra.mxu0 0.0
  %5211 = vmatprep.subr.mxu0 0.0
  %5212 = vmatpush2.msra.mxu0 0.0
  %5213 = vmatprep.subr.mxu0 0.0
  %5214 = vmatpush2.msra.mxu0 0.0
  %5215 = vmatprep.subr.mxu0 0.0
  %5216 = vmatpush2.msra.mxu0 0.0
  %5217 = vmatprep.subr.mxu0 0.0
  %5218 = vmatpush2.msra.mxu0 0.0
  %5219 = vmatprep.subr.mxu0 0.0
  %5220 = vmatpush2.msra.mxu0 0.0
  %5221 = vmatprep.subr.mxu0 0.0
  %5222 = vmatpush2.msra.mxu0 0.0
  %5223 = vmatprep.subr.mxu0 0.0
  %5224 = vmatpush2.msra.mxu0 0.0
  %5225 = vmatprep.subr.mxu0 0.0
  %5226 = vmatpush2.msra.mxu0 0.0
  %5227 = vmatprep.subr.mxu0 0.0
  %5228 = vmatpush2.msra.mxu0 0.0
  %5229 = vmatprep.subr.mxu0 0.0
  %5230 = vmatpush2.msra.mxu0 0.0
  %5231 = vmatprep.subr.mxu0 0.0
  %5232 = vmatpush2.msra.mxu0 0.0
  %5233 = vmatprep.mubr.f32.mxu0 0.0
  %5234 = vmatmul.mubr.f32.gmra.mxu0 %v5164
  %v5235 = vpop.f32.mrf.mxu0
  %v5236 = vadd.f32 0.0, %v5235
  %v5237 = vpop.f32.mrf.mxu0
  %5238 = vmatprep.mubr.f32.mxu0 0.0
  %5239 = vmatmul.mubr.f32.gmra.mxu0 %v5167
  %v5240 = vpop.f32.mrf.mxu0
  %v5241 = vadd.f32 0.0, %v5240
  %v5242 = vpop.f32.mrf.mxu0
  %5243 = vdwg.mxu0
  %v5244 = vadd.f32 %v4569, %v5236
  %v5245 = vadd.f32 %v4574, %v5241
  %s5246 = scalar_lea.vmem %s5, 480
  %v5247 = vld [vmem:[%s5246] sm:$0xff]
  %v5248 = vld [vmem:[%s5246 + $0x8] sm:$0xff]
  %v5249 = vld [vmem:[%s5246 + $0x10] sm:$0xff]
  %v5250 = vld [vmem:[%s5246 + $0x18] sm:$0xff]
  %s5251 = scalar_lea.vmem %s6, 15
  %v5252 = vld [vmem:[%s5251] sm:$0x1]
  %v5254 = vlaneseq
  %v5255 = vshrl.u32 %v5254, 7
  %v5256 = vsub.s32 0, %v5255
  %v5257 = vrot.slane %v5252, %v5256
  %5259 = vmatprep.subr.mxu0 0.0
  %5260 = vmatpush1.msra.mxu0 0.0
  %5261 = vmatprep.subr.mxu0 0.0
  %5262 = vmatpush1.msra.mxu0 0.0
  %5263 = vmatprep.subr.mxu0 0.0
  %5264 = vmatpush1.msra.mxu0 0.0
  %5265 = vmatprep.subr.mxu0 0.0
  %5266 = vmatpush1.msra.mxu0 0.0
  %5267 = vmatprep.subr.mxu0 0.0
  %5268 = vmatpush1.msra.mxu0 0.0
  %5269 = vmatprep.subr.mxu0 0.0
  %5270 = vmatpush1.msra.mxu0 0.0
  %5271 = vmatprep.subr.mxu0 0.0
  %5272 = vmatpush1.msra.mxu0 0.0
  %5273 = vmatprep.subr.mxu0 0.0
  %5274 = vmatpush1.msra.mxu0 0.0
  %5275 = vmatprep.subr.mxu0 0.0
  %5276 = vmatpush1.msra.mxu0 0.0
  %5277 = vmatprep.subr.mxu0 0.0
  %5278 = vmatpush1.msra.mxu0 0.0
  %5279 = vmatprep.subr.mxu0 0.0
  %5280 = vmatpush1.msra.mxu0 0.0
  %5281 = vmatprep.subr.mxu0 0.0
  %5282 = vmatpush1.msra.mxu0 0.0
  %5283 = vmatprep.subr.mxu0 0.0
  %5284 = vmatpush1.msra.mxu0 %v5250
  %5285 = vmatprep.subr.mxu0 0.0
  %5286 = vmatpush1.msra.mxu0 %v5249
  %5287 = vmatprep.subr.mxu0 0.0
  %5288 = vmatpush1.msra.mxu0 %v5248
  %5289 = vmatprep.subr.mxu0 0.0
  %5290 = vmatpush1.msra.mxu0 %v5247
  %5291 = vmatprep.subr.mxu0 0.0
  %5292 = vmatpush2.msra.mxu0 0.0
  %5293 = vmatprep.subr.mxu0 0.0
  %5294 = vmatpush2.msra.mxu0 0.0
  %5295 = vmatprep.subr.mxu0 0.0
  %5296 = vmatpush2.msra.mxu0 0.0
  %5297 = vmatprep.subr.mxu0 0.0
  %5298 = vmatpush2.msra.mxu0 0.0
  %5299 = vmatprep.subr.mxu0 0.0
  %5300 = vmatpush2.msra.mxu0 0.0
  %5301 = vmatprep.subr.mxu0 0.0
  %5302 = vmatpush2.msra.mxu0 0.0
  %5303 = vmatprep.subr.mxu0 0.0
  %5304 = vmatpush2.msra.mxu0 0.0
  %5305 = vmatprep.subr.mxu0 0.0
  %5306 = vmatpush2.msra.mxu0 0.0
  %5307 = vmatprep.subr.mxu0 0.0
  %5308 = vmatpush2.msra.mxu0 0.0
  %5309 = vmatprep.subr.mxu0 0.0
  %5310 = vmatpush2.msra.mxu0 0.0
  %5311 = vmatprep.subr.mxu0 0.0
  %5312 = vmatpush2.msra.mxu0 0.0
  %5313 = vmatprep.subr.mxu0 0.0
  %5314 = vmatpush2.msra.mxu0 0.0
  %5315 = vmatprep.subr.mxu0 0.0
  %5316 = vmatpush2.msra.mxu0 0.0
  %5317 = vmatprep.subr.mxu0 0.0
  %5318 = vmatpush2.msra.mxu0 0.0
  %5319 = vmatprep.subr.mxu0 0.0
  %5320 = vmatpush2.msra.mxu0 0.0
  %5321 = vmatprep.subr.mxu0 0.0
  %5322 = vmatpush2.msra.mxu0 0.0
  %5323 = vmatprep.mubr.f32.mxu0 0.0
  %5324 = vmatmul.mubr.f32.gmra.mxu0 %v3251
  %v5325 = vpop.f32.mrf.mxu0
  %v5326 = vadd.f32 %v5257, %v5325
  %v5327 = vpop.f32.mrf.mxu0
  %5328 = vmatprep.mubr.f32.mxu0 0.0
  %5329 = vmatmul.mubr.f32.gmra.mxu0 %v3254
  %v5330 = vpop.f32.mrf.mxu0
  %v5331 = vadd.f32 %v5257, %v5330
  %v5332 = vpop.f32.mrf.mxu0
  %5333 = vdwg.mxu0
  %s5334 = scalar_lea.vmem %s5, 608
  %v5335 = vld [vmem:[%s5334] sm:$0xff]
  %v5336 = vld [vmem:[%s5334 + $0x8] sm:$0xff]
  %v5337 = vld [vmem:[%s5334 + $0x10] sm:$0xff]
  %v5338 = vld [vmem:[%s5334 + $0x18] sm:$0xff]
  %s5339 = scalar_lea.vmem %s6, 19
  %v5340 = vld [vmem:[%s5339] sm:$0x1]
  %v5342 = vlaneseq
  %v5343 = vshrl.u32 %v5342, 7
  %v5344 = vsub.s32 0, %v5343
  %v5345 = vrot.slane %v5340, %v5344
  %5347 = vmatprep.subr.mxu0 0.0
  %5348 = vmatpush1.msra.mxu0 0.0
  %5349 = vmatprep.subr.mxu0 0.0
  %5350 = vmatpush1.msra.mxu0 0.0
  %5351 = vmatprep.subr.mxu0 0.0
  %5352 = vmatpush1.msra.mxu0 0.0
  %5353 = vmatprep.subr.mxu0 0.0
  %5354 = vmatpush1.msra.mxu0 0.0
  %5355 = vmatprep.subr.mxu0 0.0
  %5356 = vmatpush1.msra.mxu0 0.0
  %5357 = vmatprep.subr.mxu0 0.0
  %5358 = vmatpush1.msra.mxu0 0.0
  %5359 = vmatprep.subr.mxu0 0.0
  %5360 = vmatpush1.msra.mxu0 0.0
  %5361 = vmatprep.subr.mxu0 0.0
  %5362 = vmatpush1.msra.mxu0 0.0
  %5363 = vmatprep.subr.mxu0 0.0
  %5364 = vmatpush1.msra.mxu0 0.0
  %5365 = vmatprep.subr.mxu0 0.0
  %5366 = vmatpush1.msra.mxu0 0.0
  %5367 = vmatprep.subr.mxu0 0.0
  %5368 = vmatpush1.msra.mxu0 0.0
  %5369 = vmatprep.subr.mxu0 0.0
  %5370 = vmatpush1.msra.mxu0 0.0
  %5371 = vmatprep.subr.mxu0 0.0
  %5372 = vmatpush1.msra.mxu0 %v5338
  %5373 = vmatprep.subr.mxu0 0.0
  %5374 = vmatpush1.msra.mxu0 %v5337
  %5375 = vmatprep.subr.mxu0 0.0
  %5376 = vmatpush1.msra.mxu0 %v5336
  %5377 = vmatprep.subr.mxu0 0.0
  %5378 = vmatpush1.msra.mxu0 %v5335
  %5379 = vmatprep.subr.mxu0 0.0
  %5380 = vmatpush2.msra.mxu0 0.0
  %5381 = vmatprep.subr.mxu0 0.0
  %5382 = vmatpush2.msra.mxu0 0.0
  %5383 = vmatprep.subr.mxu0 0.0
  %5384 = vmatpush2.msra.mxu0 0.0
  %5385 = vmatprep.subr.mxu0 0.0
  %5386 = vmatpush2.msra.mxu0 0.0
  %5387 = vmatprep.subr.mxu0 0.0
  %5388 = vmatpush2.msra.mxu0 0.0
  %5389 = vmatprep.subr.mxu0 0.0
  %5390 = vmatpush2.msra.mxu0 0.0
  %5391 = vmatprep.subr.mxu0 0.0
  %5392 = vmatpush2.msra.mxu0 0.0
  %5393 = vmatprep.subr.mxu0 0.0
  %5394 = vmatpush2.msra.mxu0 0.0
  %5395 = vmatprep.subr.mxu0 0.0
  %5396 = vmatpush2.msra.mxu0 0.0
  %5397 = vmatprep.subr.mxu0 0.0
  %5398 = vmatpush2.msra.mxu0 0.0
  %5399 = vmatprep.subr.mxu0 0.0
  %5400 = vmatpush2.msra.mxu0 0.0
  %5401 = vmatprep.subr.mxu0 0.0
  %5402 = vmatpush2.msra.mxu0 0.0
  %5403 = vmatprep.subr.mxu0 0.0
  %5404 = vmatpush2.msra.mxu0 0.0
  %5405 = vmatprep.subr.mxu0 0.0
  %5406 = vmatpush2.msra.mxu0 0.0
  %5407 = vmatprep.subr.mxu0 0.0
  %5408 = vmatpush2.msra.mxu0 0.0
  %5409 = vmatprep.subr.mxu0 0.0
  %5410 = vmatpush2.msra.mxu0 0.0
  %5411 = vmatprep.mubr.f32.mxu0 0.0
  %5412 = vmatmul.mubr.f32.gmra.mxu0 %v3251
  %v5413 = vpop.f32.mrf.mxu0
  %v5414 = vadd.f32 %v5345, %v5413
  %v5415 = vpop.f32.mrf.mxu0
  %5416 = vmatprep.mubr.f32.mxu0 0.0
  %5417 = vmatmul.mubr.f32.gmra.mxu0 %v3254
  %v5418 = vpop.f32.mrf.mxu0
  %v5419 = vadd.f32 %v5345, %v5418
  %v5420 = vpop.f32.mrf.mxu0
  %5421 = vdwg.mxu0
  %s5422 = scalar_lea.vmem %s5, 736
  %v5423 = vld [vmem:[%s5422] sm:$0xff]
  %v5424 = vld [vmem:[%s5422 + $0x8] sm:$0xff]
  %v5425 = vld [vmem:[%s5422 + $0x10] sm:$0xff]
  %v5426 = vld [vmem:[%s5422 + $0x18] sm:$0xff]
  %s5427 = scalar_lea.vmem %s6, 23
  %v5428 = vld [vmem:[%s5427] sm:$0x1]
  %v5430 = vlaneseq
  %v5431 = vshrl.u32 %v5430, 7
  %v5432 = vsub.s32 0, %v5431
  %v5433 = vrot.slane %v5428, %v5432
  %5435 = vmatprep.subr.mxu0 0.0
  %5436 = vmatpush1.msra.mxu0 0.0
  %5437 = vmatprep.subr.mxu0 0.0
  %5438 = vmatpush1.msra.mxu0 0.0
  %5439 = vmatprep.subr.mxu0 0.0
  %5440 = vmatpush1.msra.mxu0 0.0
  %5441 = vmatprep.subr.mxu0 0.0
  %5442 = vmatpush1.msra.mxu0 0.0
  %5443 = vmatprep.subr.mxu0 0.0
  %5444 = vmatpush1.msra.mxu0 0.0
  %5445 = vmatprep.subr.mxu0 0.0
  %5446 = vmatpush1.msra.mxu0 0.0
  %5447 = vmatprep.subr.mxu0 0.0
  %5448 = vmatpush1.msra.mxu0 0.0
  %5449 = vmatprep.subr.mxu0 0.0
  %5450 = vmatpush1.msra.mxu0 0.0
  %5451 = vmatprep.subr.mxu0 0.0
  %5452 = vmatpush1.msra.mxu0 0.0
  %5453 = vmatprep.subr.mxu0 0.0
  %5454 = vmatpush1.msra.mxu0 0.0
  %5455 = vmatprep.subr.mxu0 0.0
  %5456 = vmatpush1.msra.mxu0 0.0
  %5457 = vmatprep.subr.mxu0 0.0
  %5458 = vmatpush1.msra.mxu0 0.0
  %5459 = vmatprep.subr.mxu0 0.0
  %5460 = vmatpush1.msra.mxu0 %v5426
  %5461 = vmatprep.subr.mxu0 0.0
  %5462 = vmatpush1.msra.mxu0 %v5425
  %5463 = vmatprep.subr.mxu0 0.0
  %5464 = vmatpush1.msra.mxu0 %v5424
  %5465 = vmatprep.subr.mxu0 0.0
  %5466 = vmatpush1.msra.mxu0 %v5423
  %5467 = vmatprep.subr.mxu0 0.0
  %5468 = vmatpush2.msra.mxu0 0.0
  %5469 = vmatprep.subr.mxu0 0.0
  %5470 = vmatpush2.msra.mxu0 0.0
  %5471 = vmatprep.subr.mxu0 0.0
  %5472 = vmatpush2.msra.mxu0 0.0
  %5473 = vmatprep.subr.mxu0 0.0
  %5474 = vmatpush2.msra.mxu0 0.0
  %5475 = vmatprep.subr.mxu0 0.0
  %5476 = vmatpush2.msra.mxu0 0.0
  %5477 = vmatprep.subr.mxu0 0.0
  %5478 = vmatpush2.msra.mxu0 0.0
  %5479 = vmatprep.subr.mxu0 0.0
  %5480 = vmatpush2.msra.mxu0 0.0
  %5481 = vmatprep.subr.mxu0 0.0
  %5482 = vmatpush2.msra.mxu0 0.0
  %5483 = vmatprep.subr.mxu0 0.0
  %5484 = vmatpush2.msra.mxu0 0.0
  %5485 = vmatprep.subr.mxu0 0.0
  %5486 = vmatpush2.msra.mxu0 0.0
  %5487 = vmatprep.subr.mxu0 0.0
  %5488 = vmatpush2.msra.mxu0 0.0
  %5489 = vmatprep.subr.mxu0 0.0
  %5490 = vmatpush2.msra.mxu0 0.0
  %5491 = vmatprep.subr.mxu0 0.0
  %5492 = vmatpush2.msra.mxu0 0.0
  %5493 = vmatprep.subr.mxu0 0.0
  %5494 = vmatpush2.msra.mxu0 0.0
  %5495 = vmatprep.subr.mxu0 0.0
  %5496 = vmatpush2.msra.mxu0 0.0
  %5497 = vmatprep.subr.mxu0 0.0
  %5498 = vmatpush2.msra.mxu0 0.0
  %5499 = vmatprep.mubr.f32.mxu0 0.0
  %5500 = vmatmul.mubr.f32.gmra.mxu0 %v3251
  %v5501 = vpop.f32.mrf.mxu0
  %v5502 = vadd.f32 %v5433, %v5501
  %v5503 = vpop.f32.mrf.mxu0
  %5504 = vmatprep.mubr.f32.mxu0 0.0
  %5505 = vmatmul.mubr.f32.gmra.mxu0 %v3254
  %v5506 = vpop.f32.mrf.mxu0
  %v5507 = vadd.f32 %v5433, %v5506
  %v5508 = vpop.f32.mrf.mxu0
  %5509 = vdwg.mxu0
  %v5511 = vsel %vm523, %v5326, 0
  %v5514 = vsel %vm523, %v5414, 0
  %5516 = vmatprep.subr.mxu0 0.0
  %5517 = vmatpush1.xpose.msra.mxu0 0.0
  %5518 = vmatprep.subr.mxu0 0.0
  %5519 = vmatpush1.xpose.msra.mxu0 0.0
  %5520 = vmatprep.subr.mxu0 0.0
  %5521 = vmatpush1.xpose.msra.mxu0 0.0
  %5522 = vmatprep.subr.mxu0 0.0
  %5523 = vmatpush1.xpose.msra.mxu0 0.0
  %5524 = vmatprep.subr.mxu0 0.0
  %5525 = vmatpush1.xpose.msra.mxu0 0.0
  %5526 = vmatprep.subr.mxu0 0.0
  %5527 = vmatpush1.xpose.msra.mxu0 0.0
  %5528 = vmatprep.subr.mxu0 0.0
  %5529 = vmatpush1.xpose.msra.mxu0 0.0
  %5530 = vmatprep.subr.mxu0 0.0
  %5531 = vmatpush1.xpose.msra.mxu0 0.0
  %5532 = vmatprep.subr.mxu0 0.0
  %5533 = vmatpush1.xpose.msra.mxu0 0.0
  %5534 = vmatprep.subr.mxu0 0.0
  %5535 = vmatpush1.xpose.msra.mxu0 0.0
  %5536 = vmatprep.subr.mxu0 0.0
  %5537 = vmatpush1.xpose.msra.mxu0 0.0
  %5538 = vmatprep.subr.mxu0 0.0
  %5539 = vmatpush1.xpose.msra.mxu0 0.0
  %5540 = vmatprep.subr.mxu0 0.0
  %5541 = vmatpush1.xpose.msra.mxu0 0.0
  %5542 = vmatprep.subr.mxu0 0.0
  %5543 = vmatpush1.xpose.msra.mxu0 0.0
  %5544 = vmatprep.subr.mxu0 0.0
  %5545 = vmatpush1.xpose.msra.mxu0 0.0
  %5546 = vmatprep.subr.mxu0 0.0
  %5547 = vmatpush1.xpose.msra.mxu0 %v5514
  %5548 = vmatprep.subr.mxu0 0.0
  %5549 = vmatpush2.xpose.msra.mxu0 0.0
  %5550 = vmatprep.subr.mxu0 0.0
  %5551 = vmatpush2.xpose.msra.mxu0 0.0
  %5552 = vmatprep.subr.mxu0 0.0
  %5553 = vmatpush2.xpose.msra.mxu0 0.0
  %5554 = vmatprep.subr.mxu0 0.0
  %5555 = vmatpush2.xpose.msra.mxu0 0.0
  %5556 = vmatprep.subr.mxu0 0.0
  %5557 = vmatpush2.xpose.msra.mxu0 0.0
  %5558 = vmatprep.subr.mxu0 0.0
  %5559 = vmatpush2.xpose.msra.mxu0 0.0
  %5560 = vmatprep.subr.mxu0 0.0
  %5561 = vmatpush2.xpose.msra.mxu0 0.0
  %5562 = vmatprep.subr.mxu0 0.0
  %5563 = vmatpush2.xpose.msra.mxu0 0.0
  %5564 = vmatprep.subr.mxu0 0.0
  %5565 = vmatpush2.xpose.msra.mxu0 0.0
  %5566 = vmatprep.subr.mxu0 0.0
  %5567 = vmatpush2.xpose.msra.mxu0 0.0
  %5568 = vmatprep.subr.mxu0 0.0
  %5569 = vmatpush2.xpose.msra.mxu0 0.0
  %5570 = vmatprep.subr.mxu0 0.0
  %5571 = vmatpush2.xpose.msra.mxu0 0.0
  %5572 = vmatprep.subr.mxu0 0.0
  %5573 = vmatpush2.xpose.msra.mxu0 0.0
  %5574 = vmatprep.subr.mxu0 0.0
  %5575 = vmatpush2.xpose.msra.mxu0 0.0
  %5576 = vmatprep.subr.mxu0 0.0
  %5577 = vmatpush2.xpose.msra.mxu0 0.0
  %5578 = vmatprep.subr.mxu0 0.0
  %5579 = vmatpush2.xpose.msra.mxu0 0.0
  %5580 = vmatprep.mubr.f32.mxu0 0.0
  %5581 = vmatmul.mubr.f32.gmra.mxu0 %v5511
  %v5582 = vpop.f32.mrf.mxu0
  %v5583 = vadd.f32 %v248, %v5582
  %v5584 = vpop.f32.mrf.mxu0
  %5585 = vdwg.mxu0
  %v5587 = vsel %vm523, %v5331, 0
  %v5590 = vsel %vm523, %v5419, 0
  %5592 = vmatprep.subr.mxu0 0.0
  %5593 = vmatpush1.xpose.msra.mxu0 0.0
  %5594 = vmatprep.subr.mxu0 0.0
  %5595 = vmatpush1.xpose.msra.mxu0 0.0
  %5596 = vmatprep.subr.mxu0 0.0
  %5597 = vmatpush1.xpose.msra.mxu0 0.0
  %5598 = vmatprep.subr.mxu0 0.0
  %5599 = vmatpush1.xpose.msra.mxu0 0.0
  %5600 = vmatprep.subr.mxu0 0.0
  %5601 = vmatpush1.xpose.msra.mxu0 0.0
  %5602 = vmatprep.subr.mxu0 0.0
  %5603 = vmatpush1.xpose.msra.mxu0 0.0
  %5604 = vmatprep.subr.mxu0 0.0
  %5605 = vmatpush1.xpose.msra.mxu0 0.0
  %5606 = vmatprep.subr.mxu0 0.0
  %5607 = vmatpush1.xpose.msra.mxu0 0.0
  %5608 = vmatprep.subr.mxu0 0.0
  %5609 = vmatpush1.xpose.msra.mxu0 0.0
  %5610 = vmatprep.subr.mxu0 0.0
  %5611 = vmatpush1.xpose.msra.mxu0 0.0
  %5612 = vmatprep.subr.mxu0 0.0
  %5613 = vmatpush1.xpose.msra.mxu0 0.0
  %5614 = vmatprep.subr.mxu0 0.0
  %5615 = vmatpush1.xpose.msra.mxu0 0.0
  %5616 = vmatprep.subr.mxu0 0.0
  %5617 = vmatpush1.xpose.msra.mxu0 0.0
  %5618 = vmatprep.subr.mxu0 0.0
  %5619 = vmatpush1.xpose.msra.mxu0 0.0
  %5620 = vmatprep.subr.mxu0 0.0
  %5621 = vmatpush1.xpose.msra.mxu0 0.0
  %5622 = vmatprep.subr.mxu0 0.0
  %5623 = vmatpush1.xpose.msra.mxu0 %v5590
  %5624 = vmatprep.subr.mxu0 0.0
  %5625 = vmatpush2.xpose.msra.mxu0 0.0
  %5626 = vmatprep.subr.mxu0 0.0
  %5627 = vmatpush2.xpose.msra.mxu0 0.0
  %5628 = vmatprep.subr.mxu0 0.0
  %5629 = vmatpush2.xpose.msra.mxu0 0.0
  %5630 = vmatprep.subr.mxu0 0.0
  %5631 = vmatpush2.xpose.msra.mxu0 0.0
  %5632 = vmatprep.subr.mxu0 0.0
  %5633 = vmatpush2.xpose.msra.mxu0 0.0
  %5634 = vmatprep.subr.mxu0 0.0
  %5635 = vmatpush2.xpose.msra.mxu0 0.0
  %5636 = vmatprep.subr.mxu0 0.0
  %5637 = vmatpush2.xpose.msra.mxu0 0.0
  %5638 = vmatprep.subr.mxu0 0.0
  %5639 = vmatpush2.xpose.msra.mxu0 0.0
  %5640 = vmatprep.subr.mxu0 0.0
  %5641 = vmatpush2.xpose.msra.mxu0 0.0
  %5642 = vmatprep.subr.mxu0 0.0
  %5643 = vmatpush2.xpose.msra.mxu0 0.0
  %5644 = vmatprep.subr.mxu0 0.0
  %5645 = vmatpush2.xpose.msra.mxu0 0.0
  %5646 = vmatprep.subr.mxu0 0.0
  %5647 = vmatpush2.xpose.msra.mxu0 0.0
  %5648 = vmatprep.subr.mxu0 0.0
  %5649 = vmatpush2.xpose.msra.mxu0 0.0
  %5650 = vmatprep.subr.mxu0 0.0
  %5651 = vmatpush2.xpose.msra.mxu0 0.0
  %5652 = vmatprep.subr.mxu0 0.0
  %5653 = vmatpush2.xpose.msra.mxu0 0.0
  %5654 = vmatprep.subr.mxu0 0.0
  %5655 = vmatpush2.xpose.msra.mxu0 0.0
  %5656 = vmatprep.mubr.f32.mxu0 0.0
  %5657 = vmatmul.mubr.f32.gmra.mxu0 %v5587
  %v5658 = vpop.f32.mrf.mxu0
  %v5659 = vadd.f32 %v252, %v5658
  %v5660 = vpop.f32.mrf.mxu0
  %5661 = vdwg.mxu0
  %v5662 = vsel %vm523, %v5583, -inf
  %5663 = vmax.xlane.f32.xlu0 %v5662
  %v5664 = vpop.xlane.xlu0 %5663
  %v5665 = vsel %vm523, %v5659, -inf
  %5666 = vmax.xlane.f32.xlu0 %v5665
  %v5667 = vpop.xlane.xlu0 %5666
  %v5668 = vsub.f32 %v5583, %v5664
  %v5669 = vsub.f32 %v5659, %v5667
  %v5670 = vmul.f32 %v5668, 1.442695
  %v5671 = vpow.pop %v5670
  %v5672 = vmul.f32 %v5669, 1.442695
  %v5673 = vpow.pop %v5672
  %v5674 = vsel %vm523, %v5671, 0.0
  %5675 = vadd.xlane.f32.xlu0 %v5674
  %v5676 = vpop.xlane.xlu0 %5675
  %v5677 = vsel %vm523, %v5673, 0.0
  %5678 = vadd.xlane.f32.xlu0 %v5677
  %v5679 = vpop.xlane.xlu0 %5678
  %v5680 = vrcp.pop %v5676
  %v5681 = vrcp.pop %v5679
  %v5682 = vmul.f32 %v5671, %v5680
  %v5683 = vmul.f32 %v5673, %v5681
  %v5685 = vsel %vm523, %v5682, 0
  %5687 = vmatprep.subr.mxu0 0.0
  %5688 = vmatpush1.msra.mxu0 0.0
  %5689 = vmatprep.subr.mxu0 0.0
  %5690 = vmatpush1.msra.mxu0 0.0
  %5691 = vmatprep.subr.mxu0 0.0
  %5692 = vmatpush1.msra.mxu0 0.0
  %5693 = vmatprep.subr.mxu0 0.0
  %5694 = vmatpush1.msra.mxu0 0.0
  %5695 = vmatprep.subr.mxu0 0.0
  %5696 = vmatpush1.msra.mxu0 0.0
  %5697 = vmatprep.subr.mxu0 0.0
  %5698 = vmatpush1.msra.mxu0 0.0
  %5699 = vmatprep.subr.mxu0 0.0
  %5700 = vmatpush1.msra.mxu0 0.0
  %5701 = vmatprep.subr.mxu0 0.0
  %5702 = vmatpush1.msra.mxu0 0.0
  %5703 = vmatprep.subr.mxu0 0.0
  %5704 = vmatpush1.msra.mxu0 0.0
  %5705 = vmatprep.subr.mxu0 0.0
  %5706 = vmatpush1.msra.mxu0 0.0
  %5707 = vmatprep.subr.mxu0 0.0
  %5708 = vmatpush1.msra.mxu0 0.0
  %5709 = vmatprep.subr.mxu0 0.0
  %5710 = vmatpush1.msra.mxu0 0.0
  %5711 = vmatprep.subr.mxu0 0.0
  %5712 = vmatpush1.msra.mxu0 0.0
  %5713 = vmatprep.subr.mxu0 0.0
  %5714 = vmatpush1.msra.mxu0 0.0
  %5715 = vmatprep.subr.mxu0 0.0
  %5716 = vmatpush1.msra.mxu0 0.0
  %5717 = vmatprep.subr.mxu0 0.0
  %5718 = vmatpush1.msra.mxu0 %v5502
  %5719 = vmatprep.subr.mxu0 0.0
  %5720 = vmatpush2.msra.mxu0 0.0
  %5721 = vmatprep.subr.mxu0 0.0
  %5722 = vmatpush2.msra.mxu0 0.0
  %5723 = vmatprep.subr.mxu0 0.0
  %5724 = vmatpush2.msra.mxu0 0.0
  %5725 = vmatprep.subr.mxu0 0.0
  %5726 = vmatpush2.msra.mxu0 0.0
  %5727 = vmatprep.subr.mxu0 0.0
  %5728 = vmatpush2.msra.mxu0 0.0
  %5729 = vmatprep.subr.mxu0 0.0
  %5730 = vmatpush2.msra.mxu0 0.0
  %5731 = vmatprep.subr.mxu0 0.0
  %5732 = vmatpush2.msra.mxu0 0.0
  %5733 = vmatprep.subr.mxu0 0.0
  %5734 = vmatpush2.msra.mxu0 0.0
  %5735 = vmatprep.subr.mxu0 0.0
  %5736 = vmatpush2.msra.mxu0 0.0
  %5737 = vmatprep.subr.mxu0 0.0
  %5738 = vmatpush2.msra.mxu0 0.0
  %5739 = vmatprep.subr.mxu0 0.0
  %5740 = vmatpush2.msra.mxu0 0.0
  %5741 = vmatprep.subr.mxu0 0.0
  %5742 = vmatpush2.msra.mxu0 0.0
  %5743 = vmatprep.subr.mxu0 0.0
  %5744 = vmatpush2.msra.mxu0 0.0
  %5745 = vmatprep.subr.mxu0 0.0
  %5746 = vmatpush2.msra.mxu0 0.0
  %5747 = vmatprep.subr.mxu0 0.0
  %5748 = vmatpush2.msra.mxu0 0.0
  %5749 = vmatprep.subr.mxu0 0.0
  %5750 = vmatpush2.msra.mxu0 0.0
  %5751 = vmatprep.mubr.f32.mxu0 0.0
  %5752 = vmatmul.mubr.f32.gmra.mxu0 %v5685
  %v5753 = vpop.f32.mrf.mxu0
  %v5754 = vadd.f32 0.0, %v5753
  %v5755 = vpop.f32.mrf.mxu0
  %5756 = vdwg.mxu0
  %v5758 = vsel %vm523, %v5683, 0
  %5760 = vmatprep.subr.mxu0 0.0
  %5761 = vmatpush1.msra.mxu0 0.0
  %5762 = vmatprep.subr.mxu0 0.0
  %5763 = vmatpush1.msra.mxu0 0.0
  %5764 = vmatprep.subr.mxu0 0.0
  %5765 = vmatpush1.msra.mxu0 0.0
  %5766 = vmatprep.subr.mxu0 0.0
  %5767 = vmatpush1.msra.mxu0 0.0
  %5768 = vmatprep.subr.mxu0 0.0
  %5769 = vmatpush1.msra.mxu0 0.0
  %5770 = vmatprep.subr.mxu0 0.0
  %5771 = vmatpush1.msra.mxu0 0.0
  %5772 = vmatprep.subr.mxu0 0.0
  %5773 = vmatpush1.msra.mxu0 0.0
  %5774 = vmatprep.subr.mxu0 0.0
  %5775 = vmatpush1.msra.mxu0 0.0
  %5776 = vmatprep.subr.mxu0 0.0
  %5777 = vmatpush1.msra.mxu0 0.0
  %5778 = vmatprep.subr.mxu0 0.0
  %5779 = vmatpush1.msra.mxu0 0.0
  %5780 = vmatprep.subr.mxu0 0.0
  %5781 = vmatpush1.msra.mxu0 0.0
  %5782 = vmatprep.subr.mxu0 0.0
  %5783 = vmatpush1.msra.mxu0 0.0
  %5784 = vmatprep.subr.mxu0 0.0
  %5785 = vmatpush1.msra.mxu0 0.0
  %5786 = vmatprep.subr.mxu0 0.0
  %5787 = vmatpush1.msra.mxu0 0.0
  %5788 = vmatprep.subr.mxu0 0.0
  %5789 = vmatpush1.msra.mxu0 0.0
  %5790 = vmatprep.subr.mxu0 0.0
  %5791 = vmatpush1.msra.mxu0 %v5507
  %5792 = vmatprep.subr.mxu0 0.0
  %5793 = vmatpush2.msra.mxu0 0.0
  %5794 = vmatprep.subr.mxu0 0.0
  %5795 = vmatpush2.msra.mxu0 0.0
  %5796 = vmatprep.subr.mxu0 0.0
  %5797 = vmatpush2.msra.mxu0 0.0
  %5798 = vmatprep.subr.mxu0 0.0
  %5799 = vmatpush2.msra.mxu0 0.0
  %5800 = vmatprep.subr.mxu0 0.0
  %5801 = vmatpush2.msra.mxu0 0.0
  %5802 = vmatprep.subr.mxu0 0.0
  %5803 = vmatpush2.msra.mxu0 0.0
  %5804 = vmatprep.subr.mxu0 0.0
  %5805 = vmatpush2.msra.mxu0 0.0
  %5806 = vmatprep.subr.mxu0 0.0
  %5807 = vmatpush2.msra.mxu0 0.0
  %5808 = vmatprep.subr.mxu0 0.0
  %5809 = vmatpush2.msra.mxu0 0.0
  %5810 = vmatprep.subr.mxu0 0.0
  %5811 = vmatpush2.msra.mxu0 0.0
  %5812 = vmatprep.subr.mxu0 0.0
  %5813 = vmatpush2.msra.mxu0 0.0
  %5814 = vmatprep.subr.mxu0 0.0
  %5815 = vmatpush2.msra.mxu0 0.0
  %5816 = vmatprep.subr.mxu0 0.0
  %5817 = vmatpush2.msra.mxu0 0.0
  %5818 = vmatprep.subr.mxu0 0.0
  %5819 = vmatpush2.msra.mxu0 0.0
  %5820 = vmatprep.subr.mxu0 0.0
  %5821 = vmatpush2.msra.mxu0 0.0
  %5822 = vmatprep.subr.mxu0 0.0
  %5823 = vmatpush2.msra.mxu0 0.0
  %5824 = vmatprep.mubr.f32.mxu0 0.0
  %5825 = vmatmul.mubr.f32.gmra.mxu0 %v5758
  %v5826 = vpop.f32.mrf.mxu0
  %v5827 = vadd.f32 0.0, %v5826
  %v5828 = vpop.f32.mrf.mxu0
  %5829 = vdwg.mxu0
  %s5830 = scalar_lea.vmem %s7, 56
  %v5831 = vld [vmem:[%s5830] sm:$0xff]
  %v5833 = vsel %vm523, %v5754, 0
  %v5836 = vsel %vm523, %v5827, 0
  %5838 = vmatprep.subr.mxu0 0.0
  %5839 = vmatpush1.msra.mxu0 0.0
  %5840 = vmatprep.subr.mxu0 0.0
  %5841 = vmatpush1.msra.mxu0 0.0
  %5842 = vmatprep.subr.mxu0 0.0
  %5843 = vmatpush1.msra.mxu0 0.0
  %5844 = vmatprep.subr.mxu0 0.0
  %5845 = vmatpush1.msra.mxu0 0.0
  %5846 = vmatprep.subr.mxu0 0.0
  %5847 = vmatpush1.msra.mxu0 0.0
  %5848 = vmatprep.subr.mxu0 0.0
  %5849 = vmatpush1.msra.mxu0 0.0
  %5850 = vmatprep.subr.mxu0 0.0
  %5851 = vmatpush1.msra.mxu0 0.0
  %5852 = vmatprep.subr.mxu0 0.0
  %5853 = vmatpush1.msra.mxu0 0.0
  %5854 = vmatprep.subr.mxu0 0.0
  %5855 = vmatpush1.msra.mxu0 0.0
  %5856 = vmatprep.subr.mxu0 0.0
  %5857 = vmatpush1.msra.mxu0 0.0
  %5858 = vmatprep.subr.mxu0 0.0
  %5859 = vmatpush1.msra.mxu0 0.0
  %5860 = vmatprep.subr.mxu0 0.0
  %5861 = vmatpush1.msra.mxu0 0.0
  %5862 = vmatprep.subr.mxu0 0.0
  %5863 = vmatpush1.msra.mxu0 0.0
  %5864 = vmatprep.subr.mxu0 0.0
  %5865 = vmatpush1.msra.mxu0 0.0
  %5866 = vmatprep.subr.mxu0 0.0
  %5867 = vmatpush1.msra.mxu0 0.0
  %5868 = vmatprep.subr.mxu0 0.0
  %5869 = vmatpush1.msra.mxu0 %v5831
  %5870 = vmatprep.subr.mxu0 0.0
  %5871 = vmatpush2.msra.mxu0 0.0
  %5872 = vmatprep.subr.mxu0 0.0
  %5873 = vmatpush2.msra.mxu0 0.0
  %5874 = vmatprep.subr.mxu0 0.0
  %5875 = vmatpush2.msra.mxu0 0.0
  %5876 = vmatprep.subr.mxu0 0.0
  %5877 = vmatpush2.msra.mxu0 0.0
  %5878 = vmatprep.subr.mxu0 0.0
  %5879 = vmatpush2.msra.mxu0 0.0
  %5880 = vmatprep.subr.mxu0 0.0
  %5881 = vmatpush2.msra.mxu0 0.0
  %5882 = vmatprep.subr.mxu0 0.0
  %5883 = vmatpush2.msra.mxu0 0.0
  %5884 = vmatprep.subr.mxu0 0.0
  %5885 = vmatpush2.msra.mxu0 0.0
  %5886 = vmatprep.subr.mxu0 0.0
  %5887 = vmatpush2.msra.mxu0 0.0
  %5888 = vmatprep.subr.mxu0 0.0
  %5889 = vmatpush2.msra.mxu0 0.0
  %5890 = vmatprep.subr.mxu0 0.0
  %5891 = vmatpush2.msra.mxu0 0.0
  %5892 = vmatprep.subr.mxu0 0.0
  %5893 = vmatpush2.msra.mxu0 0.0
  %5894 = vmatprep.subr.mxu0 0.0
  %5895 = vmatpush2.msra.mxu0 0.0
  %5896 = vmatprep.subr.mxu0 0.0
  %5897 = vmatpush2.msra.mxu0 0.0
  %5898 = vmatprep.subr.mxu0 0.0
  %5899 = vmatpush2.msra.mxu0 0.0
  %5900 = vmatprep.subr.mxu0 0.0
  %5901 = vmatpush2.msra.mxu0 0.0
  %5902 = vmatprep.mubr.f32.mxu0 0.0
  %5903 = vmatmul.mubr.f32.gmra.mxu0 %v5833
  %v5904 = vpop.f32.mrf.mxu0
  %v5905 = vadd.f32 0.0, %v5904
  %v5906 = vpop.f32.mrf.mxu0
  %5907 = vmatprep.mubr.f32.mxu0 0.0
  %5908 = vmatmul.mubr.f32.gmra.mxu0 %v5836
  %v5909 = vpop.f32.mrf.mxu0
  %v5910 = vadd.f32 0.0, %v5909
  %v5911 = vpop.f32.mrf.mxu0
  %5912 = vdwg.mxu0
  %v5913 = vadd.f32 %v5244, %v5905
  %v5914 = vadd.f32 %v5245, %v5910
  %s5915 = scalar_lea.vmem %s11, 6
  %v5916 = vld [vmem:[%s5915] sm:$0x1]
  %v5918 = vlaneseq
  %v5919 = vshrl.u32 %v5918, 7
  %v5920 = vsub.s32 0, %v5919
  %v5921 = vrot.slane %v5916, %v5920
  %v5923 = vadd.f32 %v5913, %v5921
  %v5924 = vadd.f32 %v5914, %v5921
  %v5925 = vadd.f32 %v3235, %v5923
  %v5926 = vadd.f32 %v3236, %v5924
  %s5927 = scalar_lea.vmem %s11, 7
  %v5928 = vld [vmem:[%s5927] sm:$0x1]
  %s5929 = scalar_lea.vmem %s11, 8
  %v5930 = vld [vmem:[%s5929] sm:$0x1]
  %v5931 = vsel %vm191, %v5925, 0.0
  %5932 = vadd.xlane.f32.xlu0 %v5931
  %v5933 = vpop.xlane.xlu0 %5932
  %v5934 = vsel %vm191, %v5926, 0.0
  %5935 = vadd.xlane.f32.xlu0 %v5934
  %v5936 = vpop.xlane.xlu0 %5935
  %v5937 = vmul.f32 %v5933, %v198
  %v5938 = vmul.f32 %v5936, %v198
  %v5939 = vsub.f32 %v5925, %v5937
  %v5940 = vsub.f32 %v5926, %v5938
  %v5941 = vmul.f32 %v5939, %v5939
  %v5942 = vmul.f32 %v5940, %v5940
  %v5943 = vsel %vm191, %v5941, 0.0
  %5944 = vadd.xlane.f32.xlu0 %v5943
  %v5945 = vpop.xlane.xlu0 %5944
  %v5946 = vsel %vm191, %v5942, 0.0
  %5947 = vadd.xlane.f32.xlu0 %v5946
  %v5948 = vpop.xlane.xlu0 %5947
  %v5949 = vmul.f32 %v5945, %v198
  %v5950 = vmul.f32 %v5948, %v198
  %v5951 = vadd.f32 %v5949, 1e-12
  %v5952 = vadd.f32 %v5950, 1e-12
  %v5953 = vrsqrt.pop %v5951
  %v5954 = vrsqrt.pop %v5952
  %v5955 = vmul.f32 %v5939, %v5953
  %v5956 = vmul.f32 %v5940, %v5954
  %v5958 = vlaneseq
  %v5959 = vshrl.u32 %v5958, 7
  %v5960 = vsub.s32 0, %v5959
  %v5961 = vrot.slane %v5928, %v5960
  %v5963 = vmul.f32 %v5955, %v5961
  %v5964 = vmul.f32 %v5956, %v5961
  %v5966 = vlaneseq
  %v5967 = vshrl.u32 %v5966, 7
  %v5968 = vsub.s32 0, %v5967
  %v5969 = vrot.slane %v5930, %v5968
  %v5971 = vadd.f32 %v5963, %v5969
  %v5972 = vadd.f32 %v5964, %v5969
  %s5973 = scalar_lea.vmem %s8, 32
  %v5974 = vld [vmem:[%s5973] sm:$0xff]
  %v5975 = vld [vmem:[%s5973 + $0x8] sm:$0xff]
  %v5976 = vld [vmem:[%s5973 + $0x10] sm:$0xff]
  %v5977 = vld [vmem:[%s5973 + $0x18] sm:$0xff]
  %s5978 = scalar_lea.vmem %s9, 1
  %v5979 = vld [vmem:[%s5978] sm:$0x1]
  %v5981 = vlaneseq
  %v5982 = vshrl.u32 %v5981, 7
  %v5983 = vsub.s32 0, %v5982
  %v5984 = vrot.slane %v5979, %v5983
  %v5987 = vsel %vm191, %v5971, 0
  %v5990 = vsel %vm191, %v5972, 0
  %5992 = vmatprep.subr.mxu0 0.0
  %5993 = vmatpush1.msra.mxu0 0.0
  %5994 = vmatprep.subr.mxu0 0.0
  %5995 = vmatpush1.msra.mxu0 0.0
  %5996 = vmatprep.subr.mxu0 0.0
  %5997 = vmatpush1.msra.mxu0 0.0
  %5998 = vmatprep.subr.mxu0 0.0
  %5999 = vmatpush1.msra.mxu0 0.0
  %6000 = vmatprep.subr.mxu0 0.0
  %6001 = vmatpush1.msra.mxu0 0.0
  %6002 = vmatprep.subr.mxu0 0.0
  %6003 = vmatpush1.msra.mxu0 0.0
  %6004 = vmatprep.subr.mxu0 0.0
  %6005 = vmatpush1.msra.mxu0 0.0
  %6006 = vmatprep.subr.mxu0 0.0
  %6007 = vmatpush1.msra.mxu0 0.0
  %6008 = vmatprep.subr.mxu0 0.0
  %6009 = vmatpush1.msra.mxu0 0.0
  %6010 = vmatprep.subr.mxu0 0.0
  %6011 = vmatpush1.msra.mxu0 0.0
  %6012 = vmatprep.subr.mxu0 0.0
  %6013 = vmatpush1.msra.mxu0 0.0
  %6014 = vmatprep.subr.mxu0 0.0
  %6015 = vmatpush1.msra.mxu0 0.0
  %6016 = vmatprep.subr.mxu0 0.0
  %6017 = vmatpush1.msra.mxu0 %v5977
  %6018 = vmatprep.subr.mxu0 0.0
  %6019 = vmatpush1.msra.mxu0 %v5976
  %6020 = vmatprep.subr.mxu0 0.0
  %6021 = vmatpush1.msra.mxu0 %v5975
  %6022 = vmatprep.subr.mxu0 0.0
  %6023 = vmatpush1.msra.mxu0 %v5974
  %6024 = vmatprep.subr.mxu0 0.0
  %6025 = vmatpush2.msra.mxu0 0.0
  %6026 = vmatprep.subr.mxu0 0.0
  %6027 = vmatpush2.msra.mxu0 0.0
  %6028 = vmatprep.subr.mxu0 0.0
  %6029 = vmatpush2.msra.mxu0 0.0
  %6030 = vmatprep.subr.mxu0 0.0
  %6031 = vmatpush2.msra.mxu0 0.0
  %6032 = vmatprep.subr.mxu0 0.0
  %6033 = vmatpush2.msra.mxu0 0.0
  %6034 = vmatprep.subr.mxu0 0.0
  %6035 = vmatpush2.msra.mxu0 0.0
  %6036 = vmatprep.subr.mxu0 0.0
  %6037 = vmatpush2.msra.mxu0 0.0
  %6038 = vmatprep.subr.mxu0 0.0
  %6039 = vmatpush2.msra.mxu0 0.0
  %6040 = vmatprep.subr.mxu0 0.0
  %6041 = vmatpush2.msra.mxu0 0.0
  %6042 = vmatprep.subr.mxu0 0.0
  %6043 = vmatpush2.msra.mxu0 0.0
  %6044 = vmatprep.subr.mxu0 0.0
  %6045 = vmatpush2.msra.mxu0 0.0
  %6046 = vmatprep.subr.mxu0 0.0
  %6047 = vmatpush2.msra.mxu0 0.0
  %6048 = vmatprep.subr.mxu0 0.0
  %6049 = vmatpush2.msra.mxu0 0.0
  %6050 = vmatprep.subr.mxu0 0.0
  %6051 = vmatpush2.msra.mxu0 0.0
  %6052 = vmatprep.subr.mxu0 0.0
  %6053 = vmatpush2.msra.mxu0 0.0
  %6054 = vmatprep.subr.mxu0 0.0
  %6055 = vmatpush2.msra.mxu0 0.0
  %6056 = vmatprep.mubr.f32.mxu0 0.0
  %6057 = vmatmul.mubr.f32.gmra.mxu0 %v5987
  %v6058 = vpop.f32.mrf.mxu0
  %v6059 = vadd.f32 %v5984, %v6058
  %v6060 = vpop.f32.mrf.mxu0
  %6061 = vmatprep.mubr.f32.mxu0 0.0
  %6062 = vmatmul.mubr.f32.gmra.mxu0 %v5990
  %v6063 = vpop.f32.mrf.mxu0
  %v6064 = vadd.f32 %v5984, %v6063
  %v6065 = vpop.f32.mrf.mxu0
  %6066 = vdwg.mxu0
  %v6067 = vmul.f32 %v6059, 0.5
  %v6068 = vmul.f32 %v6064, 0.5
  %v6069 = vmul.f32 %v6059, 0.70710677
  %v6070 = vmul.f32 %v6064, 0.70710677
  %v6071 = verf.f32.pop %v6069
  %v6072 = verf.f32.pop %v6070
  %v6073 = vadd.f32 %v6071, 1.0
  %v6074 = vadd.f32 %v6072, 1.0
  %v6075 = vmul.f32 %v6067, %v6073
  %v6076 = vmul.f32 %v6068, %v6074
  %s6077 = scalar_lea.vmem %s10, 128
  %v6078 = vld [vmem:[%s6077] sm:$0xff]
  %v6079 = vld [vmem:[%s6077 + $0x8] sm:$0xff]
  %v6080 = vld [vmem:[%s6077 + $0x10] sm:$0xff]
  %v6081 = vld [vmem:[%s6077 + $0x18] sm:$0xff]
  %v6082 = vld [vmem:[%s6077 + $0x20] sm:$0xff]
  %v6083 = vld [vmem:[%s6077 + $0x28] sm:$0xff]
  %v6084 = vld [vmem:[%s6077 + $0x30] sm:$0xff]
  %v6085 = vld [vmem:[%s6077 + $0x38] sm:$0xff]
  %v6086 = vld [vmem:[%s6077 + $0x40] sm:$0xff]
  %v6087 = vld [vmem:[%s6077 + $0x48] sm:$0xff]
  %v6088 = vld [vmem:[%s6077 + $0x50] sm:$0xff]
  %v6089 = vld [vmem:[%s6077 + $0x58] sm:$0xff]
  %v6090 = vld [vmem:[%s6077 + $0x60] sm:$0xff]
  %v6091 = vld [vmem:[%s6077 + $0x68] sm:$0xff]
  %v6092 = vld [vmem:[%s6077 + $0x70] sm:$0xff]
  %v6093 = vld [vmem:[%s6077 + $0x78] sm:$0xff]
  %s6094 = scalar_lea.vmem %s11, 9
  %v6095 = vld [vmem:[%s6094] sm:$0x1]
  %v6097 = vlaneseq
  %v6098 = vshrl.u32 %v6097, 7
  %v6099 = vsub.s32 0, %v6098
  %v6100 = vrot.slane %v6095, %v6099
  %6102 = vmatprep.subr.mxu0 0.0
  %6103 = vmatpush1.msra.mxu0 %v6093
  %6104 = vmatprep.subr.mxu0 0.0
  %6105 = vmatpush1.msra.mxu0 %v6092
  %6106 = vmatprep.subr.mxu0 0.0
  %6107 = vmatpush1.msra.mxu0 %v6091
  %6108 = vmatprep.subr.mxu0 0.0
  %6109 = vmatpush1.msra.mxu0 %v6090
  %6110 = vmatprep.subr.mxu0 0.0
  %6111 = vmatpush1.msra.mxu0 %v6089
  %6112 = vmatprep.subr.mxu0 0.0
  %6113 = vmatpush1.msra.mxu0 %v6088
  %6114 = vmatprep.subr.mxu0 0.0
  %6115 = vmatpush1.msra.mxu0 %v6087
  %6116 = vmatprep.subr.mxu0 0.0
  %6117 = vmatpush1.msra.mxu0 %v6086
  %6118 = vmatprep.subr.mxu0 0.0
  %6119 = vmatpush1.msra.mxu0 %v6085
  %6120 = vmatprep.subr.mxu0 0.0
  %6121 = vmatpush1.msra.mxu0 %v6084
  %6122 = vmatprep.subr.mxu0 0.0
  %6123 = vmatpush1.msra.mxu0 %v6083
  %6124 = vmatprep.subr.mxu0 0.0
  %6125 = vmatpush1.msra.mxu0 %v6082
  %6126 = vmatprep.subr.mxu0 0.0
  %6127 = vmatpush1.msra.mxu0 %v6081
  %6128 = vmatprep.subr.mxu0 0.0
  %6129 = vmatpush1.msra.mxu0 %v6080
  %6130 = vmatprep.subr.mxu0 0.0
  %6131 = vmatpush1.msra.mxu0 %v6079
  %6132 = vmatprep.subr.mxu0 0.0
  %6133 = vmatpush1.msra.mxu0 %v6078
  %6134 = vmatprep.subr.mxu0 0.0
  %6135 = vmatpush2.msra.mxu0 0.0
  %6136 = vmatprep.subr.mxu0 0.0
  %6137 = vmatpush2.msra.mxu0 0.0
  %6138 = vmatprep.subr.mxu0 0.0
  %6139 = vmatpush2.msra.mxu0 0.0
  %6140 = vmatprep.subr.mxu0 0.0
  %6141 = vmatpush2.msra.mxu0 0.0
  %6142 = vmatprep.subr.mxu0 0.0
  %6143 = vmatpush2.msra.mxu0 0.0
  %6144 = vmatprep.subr.mxu0 0.0
  %6145 = vmatpush2.msra.mxu0 0.0
  %6146 = vmatprep.subr.mxu0 0.0
  %6147 = vmatpush2.msra.mxu0 0.0
  %6148 = vmatprep.subr.mxu0 0.0
  %6149 = vmatpush2.msra.mxu0 0.0
  %6150 = vmatprep.subr.mxu0 0.0
  %6151 = vmatpush2.msra.mxu0 0.0
  %6152 = vmatprep.subr.mxu0 0.0
  %6153 = vmatpush2.msra.mxu0 0.0
  %6154 = vmatprep.subr.mxu0 0.0
  %6155 = vmatpush2.msra.mxu0 0.0
  %6156 = vmatprep.subr.mxu0 0.0
  %6157 = vmatpush2.msra.mxu0 0.0
  %6158 = vmatprep.subr.mxu0 0.0
  %6159 = vmatpush2.msra.mxu0 0.0
  %6160 = vmatprep.subr.mxu0 0.0
  %6161 = vmatpush2.msra.mxu0 0.0
  %6162 = vmatprep.subr.mxu0 0.0
  %6163 = vmatpush2.msra.mxu0 0.0
  %6164 = vmatprep.subr.mxu0 0.0
  %6165 = vmatpush2.msra.mxu0 0.0
  %6166 = vmatprep.mubr.f32.mxu0 0.0
  %6167 = vmatmul.mubr.f32.gmra.mxu0 %v6075
  %v6168 = vpop.f32.mrf.mxu0
  %v6169 = vadd.f32 %v6100, %v6168
  %v6170 = vpop.f32.mrf.mxu0
  %6171 = vmatprep.mubr.f32.mxu0 0.0
  %6172 = vmatmul.mubr.f32.gmra.mxu0 %v6076
  %v6173 = vpop.f32.mrf.mxu0
  %v6174 = vadd.f32 %v6100, %v6173
  %v6175 = vpop.f32.mrf.mxu0
  %6176 = vdwg.mxu0
  %v6177 = vadd.f32 %v5971, %v6169
  %v6178 = vadd.f32 %v5972, %v6174
  %s6179 = scalar_lea.vmem %s11, 10
  %v6180 = vld [vmem:[%s6179] sm:$0x1]
  %s6181 = scalar_lea.vmem %s11, 11
  %v6182 = vld [vmem:[%s6181] sm:$0x1]
  %v6183 = vsel %vm191, %v6177, 0.0
  %6184 = vadd.xlane.f32.xlu0 %v6183
  %v6185 = vpop.xlane.xlu0 %6184
  %v6186 = vsel %vm191, %v6178, 0.0
  %6187 = vadd.xlane.f32.xlu0 %v6186
  %v6188 = vpop.xlane.xlu0 %6187
  %v6189 = vmul.f32 %v6185, %v198
  %v6190 = vmul.f32 %v6188, %v198
  %v6191 = vsub.f32 %v6177, %v6189
  %v6192 = vsub.f32 %v6178, %v6190
  %v6193 = vmul.f32 %v6191, %v6191
  %v6194 = vmul.f32 %v6192, %v6192
  %v6195 = vsel %vm191, %v6193, 0.0
  %6196 = vadd.xlane.f32.xlu0 %v6195
  %v6197 = vpop.xlane.xlu0 %6196
  %v6198 = vsel %vm191, %v6194, 0.0
  %6199 = vadd.xlane.f32.xlu0 %v6198
  %v6200 = vpop.xlane.xlu0 %6199
  %v6201 = vmul.f32 %v6197, %v198
  %v6202 = vmul.f32 %v6200, %v198
  %v6203 = vadd.f32 %v6201, 1e-12
  %v6204 = vadd.f32 %v6202, 1e-12
  %v6205 = vrsqrt.pop %v6203
  %v6206 = vrsqrt.pop %v6204
  %v6207 = vmul.f32 %v6191, %v6205
  %v6208 = vmul.f32 %v6192, %v6206
  %v6210 = vlaneseq
  %v6211 = vshrl.u32 %v6210, 7
  %v6212 = vsub.s32 0, %v6211
  %v6213 = vrot.slane %v6180, %v6212
  %v6215 = vmul.f32 %v6207, %v6213
  %v6216 = vmul.f32 %v6208, %v6213
  %v6218 = vlaneseq
  %v6219 = vshrl.u32 %v6218, 7
  %v6220 = vsub.s32 0, %v6219
  %v6221 = vrot.slane %v6182, %v6220
  %v6223 = vadd.f32 %v6215, %v6221
  %v6224 = vadd.f32 %v6216, %v6221
  %v6225 = vmul.u32 %v54, 8
  %vm6226 = vcmp.eq.s32.totalorder %v52, %v6225
  %v6227 = vsel %vm6226, 1, 0
  %v6228 = vcvt.s32.f32 %v6227
  %vm6229 = vcmask 130048
  %v6231 = vsel %vm6229, %v6228, 0
  %6233 = vmatprep.subr.mxu0 0.0
  %6234 = vmatpush1.msra.mxu0 0.0
  %6235 = vmatprep.subr.mxu0 0.0
  %6236 = vmatpush1.msra.mxu0 0.0
  %6237 = vmatprep.subr.mxu0 0.0
  %6238 = vmatpush1.msra.mxu0 0.0
  %6239 = vmatprep.subr.mxu0 0.0
  %6240 = vmatpush1.msra.mxu0 0.0
  %6241 = vmatprep.subr.mxu0 0.0
  %6242 = vmatpush1.msra.mxu0 0.0
  %6243 = vmatprep.subr.mxu0 0.0
  %6244 = vmatpush1.msra.mxu0 0.0
  %6245 = vmatprep.subr.mxu0 0.0
  %6246 = vmatpush1.msra.mxu0 0.0
  %6247 = vmatprep.subr.mxu0 0.0
  %6248 = vmatpush1.msra.mxu0 0.0
  %6249 = vmatprep.subr.mxu0 0.0
  %6250 = vmatpush1.msra.mxu0 0.0
  %6251 = vmatprep.subr.mxu0 0.0
  %6252 = vmatpush1.msra.mxu0 0.0
  %6253 = vmatprep.subr.mxu0 0.0
  %6254 = vmatpush1.msra.mxu0 0.0
  %6255 = vmatprep.subr.mxu0 0.0
  %6256 = vmatpush1.msra.mxu0 0.0
  %6257 = vmatprep.subr.mxu0 0.0
  %6258 = vmatpush1.msra.mxu0 0.0
  %6259 = vmatprep.subr.mxu0 0.0
  %6260 = vmatpush1.msra.mxu0 0.0
  %6261 = vmatprep.subr.mxu0 0.0
  %6262 = vmatpush1.msra.mxu0 %v6224
  %6263 = vmatprep.subr.mxu0 0.0
  %6264 = vmatpush1.msra.mxu0 %v6223
  %6265 = vmatprep.subr.mxu0 0.0
  %6266 = vmatpush2.msra.mxu0 0.0
  %6267 = vmatprep.subr.mxu0 0.0
  %6268 = vmatpush2.msra.mxu0 0.0
  %6269 = vmatprep.subr.mxu0 0.0
  %6270 = vmatpush2.msra.mxu0 0.0
  %6271 = vmatprep.subr.mxu0 0.0
  %6272 = vmatpush2.msra.mxu0 0.0
  %6273 = vmatprep.subr.mxu0 0.0
  %6274 = vmatpush2.msra.mxu0 0.0
  %6275 = vmatprep.subr.mxu0 0.0
  %6276 = vmatpush2.msra.mxu0 0.0
  %6277 = vmatprep.subr.mxu0 0.0
  %6278 = vmatpush2.msra.mxu0 0.0
  %6279 = vmatprep.subr.mxu0 0.0
  %6280 = vmatpush2.msra.mxu0 0.0
  %6281 = vmatprep.subr.mxu0 0.0
  %6282 = vmatpush2.msra.mxu0 0.0
  %6283 = vmatprep.subr.mxu0 0.0
  %6284 = vmatpush2.msra.mxu0 0.0
  %6285 = vmatprep.subr.mxu0 0.0
  %6286 = vmatpush2.msra.mxu0 0.0
  %6287 = vmatprep.subr.mxu0 0.0
  %6288 = vmatpush2.msra.mxu0 0.0
  %6289 = vmatprep.subr.mxu0 0.0
  %6290 = vmatpush2.msra.mxu0 0.0
  %6291 = vmatprep.subr.mxu0 0.0
  %6292 = vmatpush2.msra.mxu0 0.0
  %6293 = vmatprep.subr.mxu0 0.0
  %6294 = vmatpush2.msra.mxu0 0.0
  %6295 = vmatprep.subr.mxu0 0.0
  %6296 = vmatpush2.msra.mxu0 0.0
  %6297 = vmatprep.mubr.f32.mxu0 0.0
  %6298 = vmatmul.mubr.f32.gmra.mxu0 %v6231
  %v6299 = vpop.f32.mrf.mxu0
  %v6300 = vadd.f32 0.0, %v6299
  %v6301 = vpop.f32.mrf.mxu0
  %6302 = vdwg.mxu0
  %v6303 = vld [vmem:[%s12] sm:$0xff]
  %v6304 = vld [vmem:[%s12 + $0x8] sm:$0xff]
  %v6305 = vld [vmem:[%s12 + $0x10] sm:$0xff]
  %v6306 = vld [vmem:[%s12 + $0x18] sm:$0xff]
  %v6307 = vld [vmem:[%s13] sm:$0x1]
  %v6309 = vlaneseq
  %v6310 = vshrl.u32 %v6309, 7
  %v6311 = vsub.s32 0, %v6310
  %v6312 = vrot.slane %v6307, %v6311
  %v6315 = vsel %vm191, %v6300, 0
  %6317 = vmatprep.subr.mxu0 0.0
  %6318 = vmatpush1.msra.mxu0 0.0
  %6319 = vmatprep.subr.mxu0 0.0
  %6320 = vmatpush1.msra.mxu0 0.0
  %6321 = vmatprep.subr.mxu0 0.0
  %6322 = vmatpush1.msra.mxu0 0.0
  %6323 = vmatprep.subr.mxu0 0.0
  %6324 = vmatpush1.msra.mxu0 0.0
  %6325 = vmatprep.subr.mxu0 0.0
  %6326 = vmatpush1.msra.mxu0 0.0
  %6327 = vmatprep.subr.mxu0 0.0
  %6328 = vmatpush1.msra.mxu0 0.0
  %6329 = vmatprep.subr.mxu0 0.0
  %6330 = vmatpush1.msra.mxu0 0.0
  %6331 = vmatprep.subr.mxu0 0.0
  %6332 = vmatpush1.msra.mxu0 0.0
  %6333 = vmatprep.subr.mxu0 0.0
  %6334 = vmatpush1.msra.mxu0 0.0
  %6335 = vmatprep.subr.mxu0 0.0
  %6336 = vmatpush1.msra.mxu0 0.0
  %6337 = vmatprep.subr.mxu0 0.0
  %6338 = vmatpush1.msra.mxu0 0.0
  %6339 = vmatprep.subr.mxu0 0.0
  %6340 = vmatpush1.msra.mxu0 0.0
  %6341 = vmatprep.subr.mxu0 0.0
  %6342 = vmatpush1.msra.mxu0 %v6306
  %6343 = vmatprep.subr.mxu0 0.0
  %6344 = vmatpush1.msra.mxu0 %v6305
  %6345 = vmatprep.subr.mxu0 0.0
  %6346 = vmatpush1.msra.mxu0 %v6304
  %6347 = vmatprep.subr.mxu0 0.0
  %6348 = vmatpush1.msra.mxu0 %v6303
  %6349 = vmatprep.subr.mxu0 0.0
  %6350 = vmatpush2.msra.mxu0 0.0
  %6351 = vmatprep.subr.mxu0 0.0
  %6352 = vmatpush2.msra.mxu0 0.0
  %6353 = vmatprep.subr.mxu0 0.0
  %6354 = vmatpush2.msra.mxu0 0.0
  %6355 = vmatprep.subr.mxu0 0.0
  %6356 = vmatpush2.msra.mxu0 0.0
  %6357 = vmatprep.subr.mxu0 0.0
  %6358 = vmatpush2.msra.mxu0 0.0
  %6359 = vmatprep.subr.mxu0 0.0
  %6360 = vmatpush2.msra.mxu0 0.0
  %6361 = vmatprep.subr.mxu0 0.0
  %6362 = vmatpush2.msra.mxu0 0.0
  %6363 = vmatprep.subr.mxu0 0.0
  %6364 = vmatpush2.msra.mxu0 0.0
  %6365 = vmatprep.subr.mxu0 0.0
  %6366 = vmatpush2.msra.mxu0 0.0
  %6367 = vmatprep.subr.mxu0 0.0
  %6368 = vmatpush2.msra.mxu0 0.0
  %6369 = vmatprep.subr.mxu0 0.0
  %6370 = vmatpush2.msra.mxu0 0.0
  %6371 = vmatprep.subr.mxu0 0.0
  %6372 = vmatpush2.msra.mxu0 0.0
  %6373 = vmatprep.subr.mxu0 0.0
  %6374 = vmatpush2.msra.mxu0 0.0
  %6375 = vmatprep.subr.mxu0 0.0
  %6376 = vmatpush2.msra.mxu0 0.0
  %6377 = vmatprep.subr.mxu0 0.0
  %6378 = vmatpush2.msra.mxu0 0.0
  %6379 = vmatprep.subr.mxu0 0.0
  %6380 = vmatpush2.msra.mxu0 0.0
  %6381 = vmatprep.mubr.f32.mxu0 0.0
  %6382 = vmatmul.mubr.f32.gmra.mxu0 %v6315
  %v6383 = vpop.f32.mrf.mxu0
  %v6384 = vadd.f32 %v6312, %v6383
  %v6385 = vpop.f32.mrf.mxu0
  %6386 = vdwg.mxu0
  %6387 = vst [vmem:[%s14] sm:$0xff] %v6384
  // Predicated region
  $region58: #{bert_class_forward.1} parent=0 // pred_check
    _
  $region59: #{bert_class_forward.1} parent=0 // pred_check_branch
    %6389 = sbr.rel (0) target = $region61
  $region60: #{bert_class_forward.1} parent=0 // pred_region
    _
  $region61: #{bert_class_forward.1} parent=0 // pred_fallthru
    _
  // Predicated region
  $region62: #{bert_class_forward.1} parent=0 // pred_check
    _
  $region63: #{bert_class_forward.1} parent=0 // pred_check_branch
    %6391 = sbr.rel (0) target = $region65
  $region64: #{bert_class_forward.1} parent=0 // pred_region
    _
  $region65: #{bert_class_forward.1} parent=0 // pred_fallthru
    _

</llo_original>
